<compile_context>
chip_gen: v7x
topology: tpu7x:2x2x1
jax: 0.10.0
libtpu: 0.0.40
codegen_flags: <defaults>
</compile_context>

<pallas_src>
import functools
import numpy as np

import jax
import jax.numpy as jnp
from jax.experimental import pallas as pl
from jax.experimental.pallas import tpu as pltpu

EPS = 1e-5      # nn.BatchNorm1d default eps
CPAD = 128      # channel padding on the lane axis (activations / weight Cout)
KPAD = 32       # stored contraction (Cin) padding; real channels <= 16 <= 32


class Configs:
    input_channels = 4
    mid_channels = 8
    final_out_channels = 16
    stride = 2
    features_len = 4


# ----------------------------------------------------------------------------- #
# Fused whole-network kernel
# ----------------------------------------------------------------------------- #
def resnet_fused_kernel(meta, inv_n,
                        x_ref, w1n_hbm, w1d_hbm, w2_hbm, bn_hbm, a_ref,
                        o_ref,
                        w1n_buf, w1d_buf, w2_buf, bn_buf, sem):
    """16 x BasicBlock1d (conv1x1->BN->ReLU->conv1x1->BN->(+res)->ReLU) + adaptive pool.

    meta[i] = (has_ds, w1_stack_index).  Weights/BN params are double-buffered
    from HBM per block; activations stay (N, 128) f32 for the whole network.
    """
    nb = len(meta)

    def start_fetch(i, slot):
        has_ds, wi = meta[i]
        w_hbm, w_buf = (w1d_hbm, w1d_buf) if has_ds else (w1n_hbm, w1n_buf)
        pltpu.make_async_copy(w_hbm.at[wi], w_buf.at[slot], sem.at[slot, 0]).start()
        pltpu.make_async_copy(w2_hbm.at[i], w2_buf.at[slot], sem.at[slot, 1]).start()
        pltpu.make_async_copy(bn_hbm.at[i], bn_buf.at[slot], sem.at[slot, 2]).start()

    def wait_fetch(i, slot):
        has_ds, wi = meta[i]
        w_hbm, w_buf = (w1d_hbm, w1d_buf) if has_ds else (w1n_hbm, w1n_buf)
        pltpu.make_async_copy(w_hbm.at[wi], w_buf.at[slot], sem.at[slot, 0]).wait()
        pltpu.make_async_copy(w2_hbm.at[i], w2_buf.at[slot], sem.at[slot, 1]).wait()
        pltpu.make_async_copy(bn_hbm.at[i], bn_buf.at[slot], sem.at[slot, 2]).wait()

    def bn_apply(h, gamma, beta):
        # Training-mode batch stats over all N rows, single pass, biased variance.
        s1 = jnp.sum(h, axis=0, keepdims=True)
        s2 = jnp.sum(h * h, axis=0, keepdims=True)
        mean = s1 * inv_n
        var = jnp.maximum(s2 * inv_n - mean * mean, 0.0)
        scale = gamma * jax.lax.rsqrt(var + EPS)     # rsqrt -> EUP slot
        shift = beta - mean * scale
        return h * scale + shift

    start_fetch(0, 0)                                 # prime slot 0
    h = x_ref[...]                                    # (N, CPAD) f32

    for i in range(nb):                               # static Python loop, unrolled
        slot = i & 1
        wait_fetch(i, slot)
        if i + 1 < nb:
            start_fetch(i + 1, 1 - slot)              # prefetch next block's weights

        has_ds, _ = meta[i]
        bnp = bn_buf[slot]                            # (8, CPAD) f32
        # Only the first KPAD lanes of h can be non-zero -> K=32 contraction.
        xb = h[:, :KPAD].astype(jnp.bfloat16)         # (N, KPAD) bf16

        if has_ds:
            # conv1 and downsample share the LHS: one MXU pass -> (N, 2*CPAD).
            hcat = jnp.dot(xb, w1d_buf[slot], preferred_element_type=jnp.float32)
            gcat = jnp.concatenate([bnp[0:1], bnp[4:5]], axis=1)   # [g1 | gd]
            bcat = jnp.concatenate([bnp[1:2], bnp[5:6]], axis=1)   # [b1 | bd]
            hbn = bn_apply(hcat, gcat, bcat)          # one stats pass over 256 cols
            h1 = jnp.maximum(hbn[:, :CPAD], 0.0)      # bn1 + relu
            r = hbn[:, CPAD:]                         # downsample path (no relu)
        else:
            h1c = jnp.dot(xb, w1n_buf[slot], preferred_element_type=jnp.float32)
            h1 = jnp.maximum(bn_apply(h1c, bnp[0:1], bnp[1:2]), 0.0)
            r = h                                     # identity residual

        h2 = jnp.dot(h1[:, :KPAD].astype(jnp.bfloat16), w2_buf[slot],
                     preferred_element_type=jnp.float32)            # conv2 (1x1)
        h2 = bn_apply(h2, bnp[2:3], bnp[3:4])                        # bn2
        h = jnp.maximum(h2 + r, 0.0)                                 # + res, relu

    # Adaptive avg pool: block-diagonal (B*F, N) @ (N, CPAD), bf16 MXU operands,
    # lane-dense (B*F, 128) f32 output slab.
    o_ref[...] = jnp.dot(a_ref[...].astype(jnp.bfloat16), h.astype(jnp.bfloat16),
                         preferred_element_type=jnp.float32)


# ----------------------------------------------------------------------------- #
# Parameter construction (deterministic, mirrors RESNET34._make_layer shapes)
# ----------------------------------------------------------------------------- #
def init_params(key, cfg):
    layer_cfgs = [
        (cfg.mid_channels, 3, cfg.stride),        # layer1
        (cfg.mid_channels * 2, 4, 1),             # layer2
        (cfg.final_out_channels, 6, 1),           # layer3
        (cfg.final_out_channels, 3, 1),           # layer4
    ]
    assert max(cfg.input_channels, cfg.mid_channels * 2, cfg.final_out_channels) <= KPAD

    inplanes = cfg.input_channels
    w1n, w1d, w2s, bns, meta = [], [], [], [], []

    for planes, nblocks, stride in layer_cfgs:
        for bi in range(nblocks):
            s = stride if bi == 0 else 1
            has_ds = (bi == 0) and (s != 1 or inplanes != planes)

            key, k1, k2, kg1, kb1, kg2, kb2 = jax.random.split(key, 7)
            # conv weights stored pre-transposed as (Cin, Cout) for x @ W
            w1 = 0.3 * jax.random.normal(k1, (inplanes, planes), jnp.float32)
            w2 = 0.3 * jax.random.normal(k2, (planes, planes), jnp.float32)
            g1 = 1.0 + 0.1 * jax.random.normal(kg1, (planes,), jnp.float32)
            b1 = 0.1 * jax.random.normal(kb1, (planes,), jnp.float32)
            g2 = 1.0 + 0.1 * jax.random.normal(kg2, (planes,), jnp.float32)
            b2 = 0.1 * jax.random.normal(kb2, (planes,), jnp.float32)

            # K (Cin) padded only to 32; Cout padded to 128 (lane-dense).
            w1p = jnp.zeros((KPAD, CPAD), jnp.float32).at[:inplanes, :planes].set(w1)
            w2p = jnp.zeros((KPAD, CPAD), jnp.float32).at[:planes, :planes].set(w2)

            bn = jnp.zeros((8, CPAD), jnp.float32)    # rows: g1,b1,g2,b2,gd,bd,0,0
            bn = bn.at[0, :planes].set(g1).at[1, :planes].set(b1)
            bn = bn.at[2, :planes].set(g2).at[3, :planes].set(b2)

            if has_ds:
                key, kd, kgd, kbd = jax.random.split(key, 4)
                wd = 0.3 * jax.random.normal(kd, (inplanes, planes), jnp.float32)
                wdp = jnp.zeros((KPAD, CPAD), jnp.float32).at[:inplanes, :planes].set(wd)
                gd = 1.0 + 0.1 * jax.random.normal(kgd, (planes,), jnp.float32)
                bd = 0.1 * jax.random.normal(kbd, (planes,), jnp.float32)
                bn = bn.at[4, :planes].set(gd).at[5, :planes].set(bd)
                w1_idx = len(w1d)
                w1d.append(jnp.concatenate([w1p, wdp], axis=1))   # (KPAD, 2*CPAD)
            else:
                w1_idx = len(w1n)
                w1n.append(w1p)                                    # (KPAD, CPAD)

            w2s.append(w2p)
            bns.append(bn)
            meta.append((bool(has_ds), int(w1_idx), int(s)))
            inplanes = planes

    if not w1d:   # keep the stack non-empty (never indexed if no downsample block)
        w1d.append(jnp.zeros((KPAD, 2 * CPAD), jnp.float32))

    params = {
        # bf16 weights for the MXU; BN/ReLU math stays f32 inside the kernel.
        "w1n": jnp.stack(w1n).astype(jnp.bfloat16),   # (n_nds, KPAD, CPAD)
        "w1d": jnp.stack(w1d).astype(jnp.bfloat16),   # (n_ds,  KPAD, 2*CPAD)
        "w2": jnp.stack(w2s).astype(jnp.bfloat16),    # (NB, KPAD, CPAD)
        "bn": jnp.stack(bns),                         # (NB, 8, CPAD) f32
    }
    return params, tuple(meta)


# ----------------------------------------------------------------------------- #
# Forward pass (one pallas_call; tiny layout glue in jitted JAX)
# ----------------------------------------------------------------------------- #
def _pool_matrix(B, L, F):
    # Exact nn.AdaptiveAvgPool1d bins, laid out block-diagonally per batch so the
    # pool is a single matmul in the fused kernel's epilogue.
    A = np.zeros((B * F, B * L), np.float32)
    for b in range(B):
        for f in range(F):
            start = (f * L) // F
            end = -((-(f + 1) * L) // F)
            A[b * F + f, b * L + start: b * L + end] = 1.0 / (end - start)
    return A


def resnet34_forward(x_ncl, params, meta, cfg):
    B, C, L = x_ncl.shape
    s0 = meta[0][2]  # only layer1/block0 can have a non-unit stride in this net
    h = jnp.transpose(x_ncl, (0, 2, 1)).astype(jnp.float32)   # (B, L, C)
    if s0 > 1:
        # kernel_size=1 stride-s conv == subsample length, then pointwise conv;
        # conv1 and the downsample conv of block0 both use the same strided x.
        h = h[:, ::s0, :]
    Lf = h.shape[1]
    h = jnp.pad(h, ((0, 0), (0, 0), (0, CPAD - C)))           # lane-dense channels
    x_nc = h.reshape(B * Lf, CPAD)

    F = cfg.features_len
    A = jnp.asarray(_pool_matrix(B, Lf, F))                   # (B*F, B*Lf) f32 const
    n_rows = B * Lf
    kmeta = tuple((hd, wi) for hd, wi, _ in meta)

    args = (x_nc, params["w1n"], params["w1d"], params["w2"], params["bn"], A)

    def vmem_spec(shape):
        nd = len(shape)
        return pl.BlockSpec(shape, lambda i, _nd=nd: (0,) * _nd)

    any_spec = pl.BlockSpec(memory_space=pl.ANY)

    pooled = pl.pallas_call(
        functools.partial(resnet_fused_kernel, kmeta, 1.0 / n_rows),
        grid=(1,),
        in_specs=[vmem_spec(x_nc.shape),     # activations -> VMEM up front
                  any_spec, any_spec, any_spec, any_spec,   # weights/BN stay in HBM
                  vmem_spec(A.shape)],
        out_specs=vmem_spec((B * F, CPAD)),
        out_shape=jax.ShapeDtypeStruct((B * F, CPAD), jnp.float32),
        scratch_shapes=[
            pltpu.VMEM((2, KPAD, CPAD), jnp.bfloat16),       # w1 (no downsample)
            pltpu.VMEM((2, KPAD, 2 * CPAD), jnp.bfloat16),   # [w1 | w_ds]
            pltpu.VMEM((2, KPAD, CPAD), jnp.bfloat16),       # w2
            pltpu.VMEM((2, 8, CPAD), jnp.float32),           # packed BN params
            pltpu.SemaphoreType.DMA((2, 3)),                 # (slot, array-kind)
        ],
        compiler_params=pltpu.CompilerParams(dimension_semantics=("arbitrary",)),
    )(*args)

    pooled = pooled.reshape(B, F, CPAD)[:, :, :cfg.final_out_channels]  # (B, F, C)
    # PyTorch flattens (B, C, F) -> (B, C*F): channel-major order
    return jnp.transpose(pooled, (0, 2, 1)).reshape(B, -1)


if __name__ == "__main__":
    cfg = Configs()
    key = jax.random.PRNGKey(0)
    key, kx, kp = jax.random.split(key, 3)

    x = jax.random.normal(kx, (2, cfg.input_channels, 16), jnp.float32)  # (B, C, L)
    params, meta = init_params(kp, cfg)

    fwd = jax.jit(lambda xx, pp: resnet34_forward(xx, pp, meta, cfg))
    out = jax.block_until_ready(fwd(x, params))

    assert out.shape == (2, cfg.final_out_channels * cfg.features_len), out.shape
    assert bool(jnp.all(jnp.isfinite(out)))
    print("KERNEL_OK")
</pallas_src>

<mosaic_0001>
module attributes {stable_mosaic.version = 11 : i64} {
  func.func @resnet_fused_kernel(%arg0: i32, %arg1: memref<16x128xf32, #tpu.memory_space<vmem>>, %arg2: memref<14x32x128xbf16, #tpu.memory_space<any>>, %arg3: memref<2x32x256xbf16, #tpu.memory_space<any>>, %arg4: memref<16x32x128xbf16, #tpu.memory_space<any>>, %arg5: memref<16x8x128xf32, #tpu.memory_space<any>>, %arg6: memref<8x16xf32, #tpu.memory_space<vmem>>, %arg7: memref<8x128xf32, #tpu.memory_space<vmem>>, %arg8: memref<2x32x128xbf16, #tpu.memory_space<vmem>>, %arg9: memref<2x32x256xbf16, #tpu.memory_space<vmem>>, %arg10: memref<2x32x128xbf16, #tpu.memory_space<vmem>>, %arg11: memref<2x8x128xf32, #tpu.memory_space<vmem>>, %arg12: memref<2x3x!tpu.dma_semaphore, #tpu.memory_space<semaphore_mem>>) attributes {dimension_semantics = [#tpu.dimension_semantics<arbitrary>], iteration_bounds = array<i64: 1>, scalar_prefetch = 0 : i64, scratch_operands = 5 : i64, tpu.core_type = #tpu.core_type<tc>, window_params = [{pipeline_mode = #tpu.pipeline_mode<synchronous>, transform_indices = @transform_0, window_bounds = array<i64: 16, 128>}, {}, {}, {}, {}, {pipeline_mode = #tpu.pipeline_mode<synchronous>, transform_indices = @transform_5, window_bounds = array<i64: 8, 16>}, {pipeline_mode = #tpu.pipeline_mode<synchronous>, transform_indices = @transform_6, window_bounds = array<i64: 8, 128>}]} {
    %c0_i32 = arith.constant 0 : i32
    %c0_i32_0 = arith.constant 0 : i32
    %c0_i32_1 = arith.constant 0 : i32
    %c0_i32_2 = arith.constant 0 : i32
    %c0_i32_3 = arith.constant 0 : i32
    %c0_i32_4 = arith.constant 0 : i32
    %0 = tpu.memref_slice %arg3[%c0_i32, %c0_i32_3, %c0_i32_4] : memref<2x32x256xbf16, #tpu.memory_space<any>> -> memref<1x32x256xbf16, #tpu.memory_space<any>>
    %1 = tpu.memref_squeeze %0 : memref<1x32x256xbf16, #tpu.memory_space<any>> -> memref<32x256xbf16, #tpu.memory_space<any>>
    %c0_i32_5 = arith.constant 0 : i32
    %c0_i32_6 = arith.constant 0 : i32
    %2 = tpu.memref_slice %arg9[%c0_i32_0, %c0_i32_5, %c0_i32_6] : memref<2x32x256xbf16, #tpu.memory_space<vmem>> -> memref<1x32x256xbf16, #tpu.memory_space<vmem>>
    %3 = tpu.memref_squeeze %2 : memref<1x32x256xbf16, #tpu.memory_space<vmem>> -> memref<32x256xbf16, #tpu.memory_space<vmem>>
    %4 = tpu.memref_slice %arg12[%c0_i32_1, %c0_i32_2] : memref<2x3x!tpu.dma_semaphore, #tpu.memory_space<semaphore_mem>> -> memref<1x1x!tpu.dma_semaphore, #tpu.memory_space<semaphore_mem>>
    %5 = tpu.memref_squeeze %4 : memref<1x1x!tpu.dma_semaphore, #tpu.memory_space<semaphore_mem>> -> memref<!tpu.dma_semaphore, #tpu.memory_space<semaphore_mem>>
    tpu.enqueue_dma source(%1 : memref<32x256xbf16, #tpu.memory_space<any>>) target(%3 : memref<32x256xbf16, #tpu.memory_space<vmem>>) target_semaphore(%5 : memref<!tpu.dma_semaphore, #tpu.memory_space<semaphore_mem>>)
    %c0_i32_7 = arith.constant 0 : i32
    %c0_i32_8 = arith.constant 0 : i32
    %c0_i32_9 = arith.constant 0 : i32
    %c1_i32 = arith.constant 1 : i32
    %c0_i32_10 = arith.constant 0 : i32
    %c0_i32_11 = arith.constant 0 : i32
    %6 = tpu.memref_slice %arg4[%c0_i32_7, %c0_i32_10, %c0_i32_11] : memref<16x32x128xbf16, #tpu.memory_space<any>> -> memref<1x32x128xbf16, #tpu.memory_space<any>>
    %7 = tpu.memref_squeeze %6 : memref<1x32x128xbf16, #tpu.memory_space<any>> -> memref<32x128xbf16, #tpu.memory_space<any>>
    %c0_i32_12 = arith.constant 0 : i32
    %c0_i32_13 = arith.constant 0 : i32
    %8 = tpu.memref_slice %arg10[%c0_i32_8, %c0_i32_12, %c0_i32_13] : memref<2x32x128xbf16, #tpu.memory_space<vmem>> -> memref<1x32x128xbf16, #tpu.memory_space<vmem>>
    %9 = tpu.memref_squeeze %8 : memref<1x32x128xbf16, #tpu.memory_space<vmem>> -> memref<32x128xbf16, #tpu.memory_space<vmem>>
    %10 = tpu.memref_slice %arg12[%c0_i32_9, %c1_i32] : memref<2x3x!tpu.dma_semaphore, #tpu.memory_space<semaphore_mem>> -> memref<1x1x!tpu.dma_semaphore, #tpu.memory_space<semaphore_mem>>
    %11 = tpu.memref_squeeze %10 : memref<1x1x!tpu.dma_semaphore, #tpu.memory_space<semaphore_mem>> -> memref<!tpu.dma_semaphore, #tpu.memory_space<semaphore_mem>>
    tpu.enqueue_dma source(%7 : memref<32x128xbf16, #tpu.memory_space<any>>) target(%9 : memref<32x128xbf16, #tpu.memory_space<vmem>>) target_semaphore(%11 : memref<!tpu.dma_semaphore, #tpu.memory_space<semaphore_mem>>)
    %c0_i32_14 = arith.constant 0 : i32
    %c0_i32_15 = arith.constant 0 : i32
    %c0_i32_16 = arith.constant 0 : i32
    %c2_i32 = arith.constant 2 : i32
    %c0_i32_17 = arith.constant 0 : i32
    %c0_i32_18 = arith.constant 0 : i32
    %12 = tpu.memref_slice %arg5[%c0_i32_14, %c0_i32_17, %c0_i32_18] : memref<16x8x128xf32, #tpu.memory_space<any>> -> memref<1x8x128xf32, #tpu.memory_space<any>>
    %13 = tpu.memref_squeeze %12 : memref<1x8x128xf32, #tpu.memory_space<any>> -> memref<8x128xf32, #tpu.memory_space<any>>
    %c0_i32_19 = arith.constant 0 : i32
    %c0_i32_20 = arith.constant 0 : i32
    %14 = tpu.memref_slice %arg11[%c0_i32_15, %c0_i32_19, %c0_i32_20] : memref<2x8x128xf32, #tpu.memory_space<vmem>> -> memref<1x8x128xf32, #tpu.memory_space<vmem>>
    %15 = tpu.memref_squeeze %14 : memref<1x8x128xf32, #tpu.memory_space<vmem>> -> memref<8x128xf32, #tpu.memory_space<vmem>>
    %16 = tpu.memref_slice %arg12[%c0_i32_16, %c2_i32] : memref<2x3x!tpu.dma_semaphore, #tpu.memory_space<semaphore_mem>> -> memref<1x1x!tpu.dma_semaphore, #tpu.memory_space<semaphore_mem>>
    %17 = tpu.memref_squeeze %16 : memref<1x1x!tpu.dma_semaphore, #tpu.memory_space<semaphore_mem>> -> memref<!tpu.dma_semaphore, #tpu.memory_space<semaphore_mem>>
    tpu.enqueue_dma source(%13 : memref<8x128xf32, #tpu.memory_space<any>>) target(%15 : memref<8x128xf32, #tpu.memory_space<vmem>>) target_semaphore(%17 : memref<!tpu.dma_semaphore, #tpu.memory_space<semaphore_mem>>)
    %c0 = arith.constant 0 : index
    %c0_21 = arith.constant 0 : index
    %18 = vector.load %arg1[%c0, %c0_21] : memref<16x128xf32, #tpu.memory_space<vmem>>, vector<16x128xf32>
    %c0_i32_22 = arith.constant 0 : i32
    %c0_i32_23 = arith.constant 0 : i32
    %c0_i32_24 = arith.constant 0 : i32
    %c0_i32_25 = arith.constant 0 : i32
    %c0_i32_26 = arith.constant 0 : i32
    %c0_i32_27 = arith.constant 0 : i32
    %19 = tpu.memref_slice %arg3[%c0_i32_22, %c0_i32_26, %c0_i32_27] : memref<2x32x256xbf16, #tpu.memory_space<any>> -> memref<1x32x256xbf16, #tpu.memory_space<any>>
    %20 = tpu.memref_squeeze %19 : memref<1x32x256xbf16, #tpu.memory_space<any>> -> memref<32x256xbf16, #tpu.memory_space<any>>
    %c0_i32_28 = arith.constant 0 : i32
    %c0_i32_29 = arith.constant 0 : i32
    %21 = tpu.memref_slice %arg9[%c0_i32_23, %c0_i32_28, %c0_i32_29] : memref<2x32x256xbf16, #tpu.memory_space<vmem>> -> memref<1x32x256xbf16, #tpu.memory_space<vmem>>
    %22 = tpu.memref_squeeze %21 : memref<1x32x256xbf16, #tpu.memory_space<vmem>> -> memref<32x256xbf16, #tpu.memory_space<vmem>>
    %23 = tpu.memref_slice %arg12[%c0_i32_24, %c0_i32_25] : memref<2x3x!tpu.dma_semaphore, #tpu.memory_space<semaphore_mem>> -> memref<1x1x!tpu.dma_semaphore, #tpu.memory_space<semaphore_mem>>
    %24 = tpu.memref_squeeze %23 : memref<1x1x!tpu.dma_semaphore, #tpu.memory_space<semaphore_mem>> -> memref<!tpu.dma_semaphore, #tpu.memory_space<semaphore_mem>>
    tpu.wait_dma2 semaphore(%24 : memref<!tpu.dma_semaphore, #tpu.memory_space<semaphore_mem>>) src(%20 : memref<32x256xbf16, #tpu.memory_space<any>>) dst(%22 : memref<32x256xbf16, #tpu.memory_space<vmem>>)
    %c0_i32_30 = arith.constant 0 : i32
    %c0_i32_31 = arith.constant 0 : i32
    %c0_i32_32 = arith.constant 0 : i32
    %c1_i32_33 = arith.constant 1 : i32
    %c0_i32_34 = arith.constant 0 : i32
    %c0_i32_35 = arith.constant 0 : i32
    %25 = tpu.memref_slice %arg4[%c0_i32_30, %c0_i32_34, %c0_i32_35] : memref<16x32x128xbf16, #tpu.memory_space<any>> -> memref<1x32x128xbf16, #tpu.memory_space<any>>
    %26 = tpu.memref_squeeze %25 : memref<1x32x128xbf16, #tpu.memory_space<any>> -> memref<32x128xbf16, #tpu.memory_space<any>>
    %c0_i32_36 = arith.constant 0 : i32
    %c0_i32_37 = arith.constant 0 : i32
    %27 = tpu.memref_slice %arg10[%c0_i32_31, %c0_i32_36, %c0_i32_37] : memref<2x32x128xbf16, #tpu.memory_space<vmem>> -> memref<1x32x128xbf16, #tpu.memory_space<vmem>>
    %28 = tpu.memref_squeeze %27 : memref<1x32x128xbf16, #tpu.memory_space<vmem>> -> memref<32x128xbf16, #tpu.memory_space<vmem>>
    %29 = tpu.memref_slice %arg12[%c0_i32_32, %c1_i32_33] : memref<2x3x!tpu.dma_semaphore, #tpu.memory_space<semaphore_mem>> -> memref<1x1x!tpu.dma_semaphore, #tpu.memory_space<semaphore_mem>>
    %30 = tpu.memref_squeeze %29 : memref<1x1x!tpu.dma_semaphore, #tpu.memory_space<semaphore_mem>> -> memref<!tpu.dma_semaphore, #tpu.memory_space<semaphore_mem>>
    tpu.wait_dma2 semaphore(%30 : memref<!tpu.dma_semaphore, #tpu.memory_space<semaphore_mem>>) src(%26 : memref<32x128xbf16, #tpu.memory_space<any>>) dst(%28 : memref<32x128xbf16, #tpu.memory_space<vmem>>)
    %c0_i32_38 = arith.constant 0 : i32
    %c0_i32_39 = arith.constant 0 : i32
    %c0_i32_40 = arith.constant 0 : i32
    %c2_i32_41 = arith.constant 2 : i32
    %c0_i32_42 = arith.constant 0 : i32
    %c0_i32_43 = arith.constant 0 : i32
    %31 = tpu.memref_slice %arg5[%c0_i32_38, %c0_i32_42, %c0_i32_43] : memref<16x8x128xf32, #tpu.memory_space<any>> -> memref<1x8x128xf32, #tpu.memory_space<any>>
    %32 = tpu.memref_squeeze %31 : memref<1x8x128xf32, #tpu.memory_space<any>> -> memref<8x128xf32, #tpu.memory_space<any>>
    %c0_i32_44 = arith.constant 0 : i32
    %c0_i32_45 = arith.constant 0 : i32
    %33 = tpu.memref_slice %arg11[%c0_i32_39, %c0_i32_44, %c0_i32_45] : memref<2x8x128xf32, #tpu.memory_space<vmem>> -> memref<1x8x128xf32, #tpu.memory_space<vmem>>
    %34 = tpu.memref_squeeze %33 : memref<1x8x128xf32, #tpu.memory_space<vmem>> -> memref<8x128xf32, #tpu.memory_space<vmem>>
    %35 = tpu.memref_slice %arg12[%c0_i32_40, %c2_i32_41] : memref<2x3x!tpu.dma_semaphore, #tpu.memory_space<semaphore_mem>> -> memref<1x1x!tpu.dma_semaphore, #tpu.memory_space<semaphore_mem>>
    %36 = tpu.memref_squeeze %35 : memref<1x1x!tpu.dma_semaphore, #tpu.memory_space<semaphore_mem>> -> memref<!tpu.dma_semaphore, #tpu.memory_space<semaphore_mem>>
    tpu.wait_dma2 semaphore(%36 : memref<!tpu.dma_semaphore, #tpu.memory_space<semaphore_mem>>) src(%32 : memref<8x128xf32, #tpu.memory_space<any>>) dst(%34 : memref<8x128xf32, #tpu.memory_space<vmem>>)
    %c0_i32_46 = arith.constant 0 : i32
    %c1_i32_47 = arith.constant 1 : i32
    %c1_i32_48 = arith.constant 1 : i32
    %c0_i32_49 = arith.constant 0 : i32
    %c0_i32_50 = arith.constant 0 : i32
    %c0_i32_51 = arith.constant 0 : i32
    %37 = tpu.memref_slice %arg2[%c0_i32_46, %c0_i32_50, %c0_i32_51] : memref<14x32x128xbf16, #tpu.memory_space<any>> -> memref<1x32x128xbf16, #tpu.memory_space<any>>
    %38 = tpu.memref_squeeze %37 : memref<1x32x128xbf16, #tpu.memory_space<any>> -> memref<32x128xbf16, #tpu.memory_space<any>>
    %c0_i32_52 = arith.constant 0 : i32
    %c0_i32_53 = arith.constant 0 : i32
    %39 = tpu.memref_slice %arg8[%c1_i32_47, %c0_i32_52, %c0_i32_53] : memref<2x32x128xbf16, #tpu.memory_space<vmem>> -> memref<1x32x128xbf16, #tpu.memory_space<vmem>>
    %40 = tpu.memref_squeeze %39 : memref<1x32x128xbf16, #tpu.memory_space<vmem>> -> memref<32x128xbf16, #tpu.memory_space<vmem>>
    %41 = tpu.memref_slice %arg12[%c1_i32_48, %c0_i32_49] : memref<2x3x!tpu.dma_semaphore, #tpu.memory_space<semaphore_mem>> -> memref<1x1x!tpu.dma_semaphore, #tpu.memory_space<semaphore_mem>>
    %42 = tpu.memref_squeeze %41 : memref<1x1x!tpu.dma_semaphore, #tpu.memory_space<semaphore_mem>> -> memref<!tpu.dma_semaphore, #tpu.memory_space<semaphore_mem>>
    tpu.enqueue_dma source(%38 : memref<32x128xbf16, #tpu.memory_space<any>>) target(%40 : memref<32x128xbf16, #tpu.memory_space<vmem>>) target_semaphore(%42 : memref<!tpu.dma_semaphore, #tpu.memory_space<semaphore_mem>>)
    %c1_i32_54 = arith.constant 1 : i32
    %c1_i32_55 = arith.constant 1 : i32
    %c1_i32_56 = arith.constant 1 : i32
    %c1_i32_57 = arith.constant 1 : i32
    %c0_i32_58 = arith.constant 0 : i32
    %c0_i32_59 = arith.constant 0 : i32
    %43 = tpu.memref_slice %arg4[%c1_i32_54, %c0_i32_58, %c0_i32_59] : memref<16x32x128xbf16, #tpu.memory_space<any>> -> memref<1x32x128xbf16, #tpu.memory_space<any>>
    %44 = tpu.memref_squeeze %43 : memref<1x32x128xbf16, #tpu.memory_space<any>> -> memref<32x128xbf16, #tpu.memory_space<any>>
    %c0_i32_60 = arith.constant 0 : i32
    %c0_i32_61 = arith.constant 0 : i32
    %45 = tpu.memref_slice %arg10[%c1_i32_55, %c0_i32_60, %c0_i32_61] : memref<2x32x128xbf16, #tpu.memory_space<vmem>> -> memref<1x32x128xbf16, #tpu.memory_space<vmem>>
    %46 = tpu.memref_squeeze %45 : memref<1x32x128xbf16, #tpu.memory_space<vmem>> -> memref<32x128xbf16, #tpu.memory_space<vmem>>
    %47 = tpu.memref_slice %arg12[%c1_i32_56, %c1_i32_57] : memref<2x3x!tpu.dma_semaphore, #tpu.memory_space<semaphore_mem>> -> memref<1x1x!tpu.dma_semaphore, #tpu.memory_space<semaphore_mem>>
    %48 = tpu.memref_squeeze %47 : memref<1x1x!tpu.dma_semaphore, #tpu.memory_space<semaphore_mem>> -> memref<!tpu.dma_semaphore, #tpu.memory_space<semaphore_mem>>
    tpu.enqueue_dma source(%44 : memref<32x128xbf16, #tpu.memory_space<any>>) target(%46 : memref<32x128xbf16, #tpu.memory_space<vmem>>) target_semaphore(%48 : memref<!tpu.dma_semaphore, #tpu.memory_space<semaphore_mem>>)
    %c1_i32_62 = arith.constant 1 : i32
    %c1_i32_63 = arith.constant 1 : i32
    %c1_i32_64 = arith.constant 1 : i32
    %c2_i32_65 = arith.constant 2 : i32
    %c0_i32_66 = arith.constant 0 : i32
    %c0_i32_67 = arith.constant 0 : i32
    %49 = tpu.memref_slice %arg5[%c1_i32_62, %c0_i32_66, %c0_i32_67] : memref<16x8x128xf32, #tpu.memory_space<any>> -> memref<1x8x128xf32, #tpu.memory_space<any>>
    %50 = tpu.memref_squeeze %49 : memref<1x8x128xf32, #tpu.memory_space<any>> -> memref<8x128xf32, #tpu.memory_space<any>>
    %c0_i32_68 = arith.constant 0 : i32
    %c0_i32_69 = arith.constant 0 : i32
    %51 = tpu.memref_slice %arg11[%c1_i32_63, %c0_i32_68, %c0_i32_69] : memref<2x8x128xf32, #tpu.memory_space<vmem>> -> memref<1x8x128xf32, #tpu.memory_space<vmem>>
    %52 = tpu.memref_squeeze %51 : memref<1x8x128xf32, #tpu.memory_space<vmem>> -> memref<8x128xf32, #tpu.memory_space<vmem>>
    %53 = tpu.memref_slice %arg12[%c1_i32_64, %c2_i32_65] : memref<2x3x!tpu.dma_semaphore, #tpu.memory_space<semaphore_mem>> -> memref<1x1x!tpu.dma_semaphore, #tpu.memory_space<semaphore_mem>>
    %54 = tpu.memref_squeeze %53 : memref<1x1x!tpu.dma_semaphore, #tpu.memory_space<semaphore_mem>> -> memref<!tpu.dma_semaphore, #tpu.memory_space<semaphore_mem>>
    tpu.enqueue_dma source(%50 : memref<8x128xf32, #tpu.memory_space<any>>) target(%52 : memref<8x128xf32, #tpu.memory_space<vmem>>) target_semaphore(%54 : memref<!tpu.dma_semaphore, #tpu.memory_space<semaphore_mem>>)
    %c0_70 = arith.constant 0 : index
    %c0_71 = arith.constant 0 : index
    %c0_72 = arith.constant 0 : index
    %55 = vector.load %arg11[%c0_70, %c0_71, %c0_72] : memref<2x8x128xf32, #tpu.memory_space<vmem>>, vector<1x8x128xf32>
    %56 = vector.shape_cast %55 : vector<1x8x128xf32> to vector<8x128xf32>
    %57 = vector.extract_strided_slice %18 {offsets = [0, 0], sizes = [16, 32], strides = [1, 1]} : vector<16x128xf32> to vector<16x32xf32>
    %58 = arith.truncf %57 : vector<16x32xf32> to vector<16x32xbf16>
    %c0_73 = arith.constant 0 : index
    %c0_74 = arith.constant 0 : index
    %c0_75 = arith.constant 0 : index
    %59 = vector.load %arg9[%c0_73, %c0_74, %c0_75] : memref<2x32x256xbf16, #tpu.memory_space<vmem>>, vector<1x32x256xbf16>
    %60 = vector.shape_cast %59 : vector<1x32x256xbf16> to vector<32x256xbf16>
    %cst = arith.constant dense<0.000000e+00> : vector<16x256xf32>
    %61 = tpu.matmul %58, %60, %cst {dimension_numbers = #tpu.dot_dimension_numbers<[1], [0], [0], [1], [0, 0, 1, 1], [], []>} : vector<16x32xbf16>, vector<32x256xbf16>, vector<16x256xf32> -> vector<16x256xf32>
    %62 = vector.extract_strided_slice %56 {offsets = [0, 0], sizes = [1, 128], strides = [1, 1]} : vector<8x128xf32> to vector<1x128xf32>
    %63 = vector.extract_strided_slice %56 {offsets = [4, 0], sizes = [1, 128], strides = [1, 1]} : vector<8x128xf32> to vector<1x128xf32>
    %64 = tpu.concatenate %62, %63 in 1 : vector<1x128xf32>, vector<1x128xf32> -> vector<1x256xf32>
    %65 = vector.extract_strided_slice %56 {offsets = [1, 0], sizes = [1, 128], strides = [1, 1]} : vector<8x128xf32> to vector<1x128xf32>
    %66 = vector.extract_strided_slice %56 {offsets = [5, 0], sizes = [1, 128], strides = [1, 1]} : vector<8x128xf32> to vector<1x128xf32>
    %67 = tpu.concatenate %65, %66 in 1 : vector<1x128xf32>, vector<1x128xf32> -> vector<1x256xf32>
    %cst_76 = arith.constant dense<0.000000e+00> : vector<256xf32>
    %68 = vector.multi_reduction <add>, %61, %cst_76 [0] : vector<16x256xf32> to vector<256xf32>
    %69 = vector.shape_cast %68 : vector<256xf32> to vector<1x256xf32>
    %70 = arith.mulf %61, %61 : vector<16x256xf32>
    %cst_77 = arith.constant dense<0.000000e+00> : vector<256xf32>
    %71 = vector.multi_reduction <add>, %70, %cst_77 [0] : vector<16x256xf32> to vector<256xf32>
    %72 = vector.shape_cast %71 : vector<256xf32> to vector<1x256xf32>
    %cst_78 = arith.constant 6.250000e-02 : f32
    %73 = vector.broadcast %cst_78 : f32 to vector<1x256xf32>
    %74 = arith.mulf %69, %73 : vector<1x256xf32>
    %cst_79 = arith.constant 6.250000e-02 : f32
    %75 = vector.broadcast %cst_79 : f32 to vector<1x256xf32>
    %76 = arith.mulf %72, %75 : vector<1x256xf32>
    %77 = arith.mulf %74, %74 : vector<1x256xf32>
    %78 = arith.subf %76, %77 : vector<1x256xf32>
    %cst_80 = arith.constant 0.000000e+00 : f32
    %79 = vector.broadcast %cst_80 : f32 to vector<1x256xf32>
    %80 = arith.maximumf %78, %79 : vector<1x256xf32>
    %cst_81 = arith.constant 9.99999974E-6 : f32
    %81 = vector.broadcast %cst_81 : f32 to vector<1x256xf32>
    %82 = arith.addf %80, %81 : vector<1x256xf32>
    %83 = math.rsqrt %82 : vector<1x256xf32>
    %84 = arith.mulf %64, %83 : vector<1x256xf32>
    %85 = arith.mulf %74, %84 : vector<1x256xf32>
    %86 = arith.subf %67, %85 : vector<1x256xf32>
    %87 = vector.broadcast %84 : vector<1x256xf32> to vector<16x256xf32>
    %88 = arith.mulf %61, %87 : vector<16x256xf32>
    %89 = vector.broadcast %86 : vector<1x256xf32> to vector<16x256xf32>
    %90 = arith.addf %88, %89 : vector<16x256xf32>
    %91 = vector.extract_strided_slice %90 {offsets = [0, 0], sizes = [16, 128], strides = [1, 1]} : vector<16x256xf32> to vector<16x128xf32>
    %cst_82 = arith.constant 0.000000e+00 : f32
    %92 = vector.broadcast %cst_82 : f32 to vector<16x128xf32>
    %93 = arith.maximumf %91, %92 : vector<16x128xf32>
    %94 = vector.extract_strided_slice %90 {offsets = [0, 128], sizes = [16, 128], strides = [1, 1]} : vector<16x256xf32> to vector<16x128xf32>
    %95 = vector.extract_strided_slice %93 {offsets = [0, 0], sizes = [16, 32], strides = [1, 1]} : vector<16x128xf32> to vector<16x32xf32>
    %96 = arith.truncf %95 : vector<16x32xf32> to vector<16x32xbf16>
    %c0_83 = arith.constant 0 : index
    %c0_84 = arith.constant 0 : index
    %c0_85 = arith.constant 0 : index
    %97 = vector.load %arg10[%c0_83, %c0_84, %c0_85] : memref<2x32x128xbf16, #tpu.memory_space<vmem>>, vector<1x32x128xbf16>
    %98 = vector.shape_cast %97 : vector<1x32x128xbf16> to vector<32x128xbf16>
    %cst_86 = arith.constant dense<0.000000e+00> : vector<16x128xf32>
    %99 = tpu.matmul %96, %98, %cst_86 {dimension_numbers = #tpu.dot_dimension_numbers<[1], [0], [0], [1], [0, 0, 1, 1], [], []>} : vector<16x32xbf16>, vector<32x128xbf16>, vector<16x128xf32> -> vector<16x128xf32>
    %100 = vector.extract_strided_slice %56 {offsets = [2, 0], sizes = [1, 128], strides = [1, 1]} : vector<8x128xf32> to vector<1x128xf32>
    %101 = vector.extract_strided_slice %56 {offsets = [3, 0], sizes = [1, 128], strides = [1, 1]} : vector<8x128xf32> to vector<1x128xf32>
    %cst_87 = arith.constant dense<0.000000e+00> : vector<128xf32>
    %102 = vector.multi_reduction <add>, %99, %cst_87 [0] : vector<16x128xf32> to vector<128xf32>
    %103 = vector.shape_cast %102 : vector<128xf32> to vector<1x128xf32>
    %104 = arith.mulf %99, %99 : vector<16x128xf32>
    %cst_88 = arith.constant dense<0.000000e+00> : vector<128xf32>
    %105 = vector.multi_reduction <add>, %104, %cst_88 [0] : vector<16x128xf32> to vector<128xf32>
    %106 = vector.shape_cast %105 : vector<128xf32> to vector<1x128xf32>
    %cst_89 = arith.constant 6.250000e-02 : f32
    %107 = vector.broadcast %cst_89 : f32 to vector<1x128xf32>
    %108 = arith.mulf %103, %107 : vector<1x128xf32>
    %cst_90 = arith.constant 6.250000e-02 : f32
    %109 = vector.broadcast %cst_90 : f32 to vector<1x128xf32>
    %110 = arith.mulf %106, %109 : vector<1x128xf32>
    %111 = arith.mulf %108, %108 : vector<1x128xf32>
    %112 = arith.subf %110, %111 : vector<1x128xf32>
    %cst_91 = arith.constant 0.000000e+00 : f32
    %113 = vector.broadcast %cst_91 : f32 to vector<1x128xf32>
    %114 = arith.maximumf %112, %113 : vector<1x128xf32>
    %cst_92 = arith.constant 9.99999974E-6 : f32
    %115 = vector.broadcast %cst_92 : f32 to vector<1x128xf32>
    %116 = arith.addf %114, %115 : vector<1x128xf32>
    %117 = math.rsqrt %116 : vector<1x128xf32>
    %118 = arith.mulf %100, %117 : vector<1x128xf32>
    %119 = arith.mulf %108, %118 : vector<1x128xf32>
    %120 = arith.subf %101, %119 : vector<1x128xf32>
    %121 = vector.broadcast %118 : vector<1x128xf32> to vector<16x128xf32>
    %122 = arith.mulf %99, %121 : vector<16x128xf32>
    %123 = vector.broadcast %120 : vector<1x128xf32> to vector<16x128xf32>
    %124 = arith.addf %122, %123 : vector<16x128xf32>
    %125 = arith.addf %124, %94 : vector<16x128xf32>
    %cst_93 = arith.constant 0.000000e+00 : f32
    %126 = vector.broadcast %cst_93 : f32 to vector<16x128xf32>
    %127 = arith.maximumf %125, %126 : vector<16x128xf32>
    %c0_i32_94 = arith.constant 0 : i32
    %c1_i32_95 = arith.constant 1 : i32
    %c1_i32_96 = arith.constant 1 : i32
    %c0_i32_97 = arith.constant 0 : i32
    %c0_i32_98 = arith.constant 0 : i32
    %c0_i32_99 = arith.constant 0 : i32
    %128 = tpu.memref_slice %arg2[%c0_i32_94, %c0_i32_98, %c0_i32_99] : memref<14x32x128xbf16, #tpu.memory_space<any>> -> memref<1x32x128xbf16, #tpu.memory_space<any>>
    %129 = tpu.memref_squeeze %128 : memref<1x32x128xbf16, #tpu.memory_space<any>> -> memref<32x128xbf16, #tpu.memory_space<any>>
    %c0_i32_100 = arith.constant 0 : i32
    %c0_i32_101 = arith.constant 0 : i32
    %130 = tpu.memref_slice %arg8[%c1_i32_95, %c0_i32_100, %c0_i32_101] : memref<2x32x128xbf16, #tpu.memory_space<vmem>> -> memref<1x32x128xbf16, #tpu.memory_space<vmem>>
    %131 = tpu.memref_squeeze %130 : memref<1x32x128xbf16, #tpu.memory_space<vmem>> -> memref<32x128xbf16, #tpu.memory_space<vmem>>
    %132 = tpu.memref_slice %arg12[%c1_i32_96, %c0_i32_97] : memref<2x3x!tpu.dma_semaphore, #tpu.memory_space<semaphore_mem>> -> memref<1x1x!tpu.dma_semaphore, #tpu.memory_space<semaphore_mem>>
    %133 = tpu.memref_squeeze %132 : memref<1x1x!tpu.dma_semaphore, #tpu.memory_space<semaphore_mem>> -> memref<!tpu.dma_semaphore, #tpu.memory_space<semaphore_mem>>
    tpu.wait_dma2 semaphore(%133 : memref<!tpu.dma_semaphore, #tpu.memory_space<semaphore_mem>>) src(%129 : memref<32x128xbf16, #tpu.memory_space<any>>) dst(%131 : memref<32x128xbf16, #tpu.memory_space<vmem>>)
    %c1_i32_102 = arith.constant 1 : i32
    %c1_i32_103 = arith.constant 1 : i32
    %c1_i32_104 = arith.constant 1 : i32
    %c1_i32_105 = arith.constant 1 : i32
    %c0_i32_106 = arith.constant 0 : i32
    %c0_i32_107 = arith.constant 0 : i32
    %134 = tpu.memref_slice %arg4[%c1_i32_102, %c0_i32_106, %c0_i32_107] : memref<16x32x128xbf16, #tpu.memory_space<any>> -> memref<1x32x128xbf16, #tpu.memory_space<any>>
    %135 = tpu.memref_squeeze %134 : memref<1x32x128xbf16, #tpu.memory_space<any>> -> memref<32x128xbf16, #tpu.memory_space<any>>
    %c0_i32_108 = arith.constant 0 : i32
    %c0_i32_109 = arith.constant 0 : i32
    %136 = tpu.memref_slice %arg10[%c1_i32_103, %c0_i32_108, %c0_i32_109] : memref<2x32x128xbf16, #tpu.memory_space<vmem>> -> memref<1x32x128xbf16, #tpu.memory_space<vmem>>
    %137 = tpu.memref_squeeze %136 : memref<1x32x128xbf16, #tpu.memory_space<vmem>> -> memref<32x128xbf16, #tpu.memory_space<vmem>>
    %138 = tpu.memref_slice %arg12[%c1_i32_104, %c1_i32_105] : memref<2x3x!tpu.dma_semaphore, #tpu.memory_space<semaphore_mem>> -> memref<1x1x!tpu.dma_semaphore, #tpu.memory_space<semaphore_mem>>
    %139 = tpu.memref_squeeze %138 : memref<1x1x!tpu.dma_semaphore, #tpu.memory_space<semaphore_mem>> -> memref<!tpu.dma_semaphore, #tpu.memory_space<semaphore_mem>>
    tpu.wait_dma2 semaphore(%139 : memref<!tpu.dma_semaphore, #tpu.memory_space<semaphore_mem>>) src(%135 : memref<32x128xbf16, #tpu.memory_space<any>>) dst(%137 : memref<32x128xbf16, #tpu.memory_space<vmem>>)
    %c1_i32_110 = arith.constant 1 : i32
    %c1_i32_111 = arith.constant 1 : i32
    %c1_i32_112 = arith.constant 1 : i32
    %c2_i32_113 = arith.constant 2 : i32
    %c0_i32_114 = arith.constant 0 : i32
    %c0_i32_115 = arith.constant 0 : i32
    %140 = tpu.memref_slice %arg5[%c1_i32_110, %c0_i32_114, %c0_i32_115] : memref<16x8x128xf32, #tpu.memory_space<any>> -> memref<1x8x128xf32, #tpu.memory_space<any>>
    %141 = tpu.memref_squeeze %140 : memref<1x8x128xf32, #tpu.memory_space<any>> -> memref<8x128xf32, #tpu.memory_space<any>>
    %c0_i32_116 = arith.constant 0 : i32
    %c0_i32_117 = arith.constant 0 : i32
    %142 = tpu.memref_slice %arg11[%c1_i32_111, %c0_i32_116, %c0_i32_117] : memref<2x8x128xf32, #tpu.memory_space<vmem>> -> memref<1x8x128xf32, #tpu.memory_space<vmem>>
    %143 = tpu.memref_squeeze %142 : memref<1x8x128xf32, #tpu.memory_space<vmem>> -> memref<8x128xf32, #tpu.memory_space<vmem>>
    %144 = tpu.memref_slice %arg12[%c1_i32_112, %c2_i32_113] : memref<2x3x!tpu.dma_semaphore, #tpu.memory_space<semaphore_mem>> -> memref<1x1x!tpu.dma_semaphore, #tpu.memory_space<semaphore_mem>>
    %145 = tpu.memref_squeeze %144 : memref<1x1x!tpu.dma_semaphore, #tpu.memory_space<semaphore_mem>> -> memref<!tpu.dma_semaphore, #tpu.memory_space<semaphore_mem>>
    tpu.wait_dma2 semaphore(%145 : memref<!tpu.dma_semaphore, #tpu.memory_space<semaphore_mem>>) src(%141 : memref<8x128xf32, #tpu.memory_space<any>>) dst(%143 : memref<8x128xf32, #tpu.memory_space<vmem>>)
    %c1_i32_118 = arith.constant 1 : i32
    %c0_i32_119 = arith.constant 0 : i32
    %c0_i32_120 = arith.constant 0 : i32
    %c0_i32_121 = arith.constant 0 : i32
    %c0_i32_122 = arith.constant 0 : i32
    %c0_i32_123 = arith.constant 0 : i32
    %146 = tpu.memref_slice %arg2[%c1_i32_118, %c0_i32_122, %c0_i32_123] : memref<14x32x128xbf16, #tpu.memory_space<any>> -> memref<1x32x128xbf16, #tpu.memory_space<any>>
    %147 = tpu.memref_squeeze %146 : memref<1x32x128xbf16, #tpu.memory_space<any>> -> memref<32x128xbf16, #tpu.memory_space<any>>
    %c0_i32_124 = arith.constant 0 : i32
    %c0_i32_125 = arith.constant 0 : i32
    %148 = tpu.memref_slice %arg8[%c0_i32_119, %c0_i32_124, %c0_i32_125] : memref<2x32x128xbf16, #tpu.memory_space<vmem>> -> memref<1x32x128xbf16, #tpu.memory_space<vmem>>
    %149 = tpu.memref_squeeze %148 : memref<1x32x128xbf16, #tpu.memory_space<vmem>> -> memref<32x128xbf16, #tpu.memory_space<vmem>>
    %150 = tpu.memref_slice %arg12[%c0_i32_120, %c0_i32_121] : memref<2x3x!tpu.dma_semaphore, #tpu.memory_space<semaphore_mem>> -> memref<1x1x!tpu.dma_semaphore, #tpu.memory_space<semaphore_mem>>
    %151 = tpu.memref_squeeze %150 : memref<1x1x!tpu.dma_semaphore, #tpu.memory_space<semaphore_mem>> -> memref<!tpu.dma_semaphore, #tpu.memory_space<semaphore_mem>>
    tpu.enqueue_dma source(%147 : memref<32x128xbf16, #tpu.memory_space<any>>) target(%149 : memref<32x128xbf16, #tpu.memory_space<vmem>>) target_semaphore(%151 : memref<!tpu.dma_semaphore, #tpu.memory_space<semaphore_mem>>)
    %c2_i32_126 = arith.constant 2 : i32
    %c0_i32_127 = arith.constant 0 : i32
    %c0_i32_128 = arith.constant 0 : i32
    %c1_i32_129 = arith.constant 1 : i32
    %c0_i32_130 = arith.constant 0 : i32
    %c0_i32_131 = arith.constant 0 : i32
    %152 = tpu.memref_slice %arg4[%c2_i32_126, %c0_i32_130, %c0_i32_131] : memref<16x32x128xbf16, #tpu.memory_space<any>> -> memref<1x32x128xbf16, #tpu.memory_space<any>>
    %153 = tpu.memref_squeeze %152 : memref<1x32x128xbf16, #tpu.memory_space<any>> -> memref<32x128xbf16, #tpu.memory_space<any>>
    %c0_i32_132 = arith.constant 0 : i32
    %c0_i32_133 = arith.constant 0 : i32
    %154 = tpu.memref_slice %arg10[%c0_i32_127, %c0_i32_132, %c0_i32_133] : memref<2x32x128xbf16, #tpu.memory_space<vmem>> -> memref<1x32x128xbf16, #tpu.memory_space<vmem>>
    %155 = tpu.memref_squeeze %154 : memref<1x32x128xbf16, #tpu.memory_space<vmem>> -> memref<32x128xbf16, #tpu.memory_space<vmem>>
    %156 = tpu.memref_slice %arg12[%c0_i32_128, %c1_i32_129] : memref<2x3x!tpu.dma_semaphore, #tpu.memory_space<semaphore_mem>> -> memref<1x1x!tpu.dma_semaphore, #tpu.memory_space<semaphore_mem>>
    %157 = tpu.memref_squeeze %156 : memref<1x1x!tpu.dma_semaphore, #tpu.memory_space<semaphore_mem>> -> memref<!tpu.dma_semaphore, #tpu.memory_space<semaphore_mem>>
    tpu.enqueue_dma source(%153 : memref<32x128xbf16, #tpu.memory_space<any>>) target(%155 : memref<32x128xbf16, #tpu.memory_space<vmem>>) target_semaphore(%157 : memref<!tpu.dma_semaphore, #tpu.memory_space<semaphore_mem>>)
    %c2_i32_134 = arith.constant 2 : i32
    %c0_i32_135 = arith.constant 0 : i32
    %c0_i32_136 = arith.constant 0 : i32
    %c2_i32_137 = arith.constant 2 : i32
    %c0_i32_138 = arith.constant 0 : i32
    %c0_i32_139 = arith.constant 0 : i32
    %158 = tpu.memref_slice %arg5[%c2_i32_134, %c0_i32_138, %c0_i32_139] : memref<16x8x128xf32, #tpu.memory_space<any>> -> memref<1x8x128xf32, #tpu.memory_space<any>>
    %159 = tpu.memref_squeeze %158 : memref<1x8x128xf32, #tpu.memory_space<any>> -> memref<8x128xf32, #tpu.memory_space<any>>
    %c0_i32_140 = arith.constant 0 : i32
    %c0_i32_141 = arith.constant 0 : i32
    %160 = tpu.memref_slice %arg11[%c0_i32_135, %c0_i32_140, %c0_i32_141] : memref<2x8x128xf32, #tpu.memory_space<vmem>> -> memref<1x8x128xf32, #tpu.memory_space<vmem>>
    %161 = tpu.memref_squeeze %160 : memref<1x8x128xf32, #tpu.memory_space<vmem>> -> memref<8x128xf32, #tpu.memory_space<vmem>>
    %162 = tpu.memref_slice %arg12[%c0_i32_136, %c2_i32_137] : memref<2x3x!tpu.dma_semaphore, #tpu.memory_space<semaphore_mem>> -> memref<1x1x!tpu.dma_semaphore, #tpu.memory_space<semaphore_mem>>
    %163 = tpu.memref_squeeze %162 : memref<1x1x!tpu.dma_semaphore, #tpu.memory_space<semaphore_mem>> -> memref<!tpu.dma_semaphore, #tpu.memory_space<semaphore_mem>>
    tpu.enqueue_dma source(%159 : memref<8x128xf32, #tpu.memory_space<any>>) target(%161 : memref<8x128xf32, #tpu.memory_space<vmem>>) target_semaphore(%163 : memref<!tpu.dma_semaphore, #tpu.memory_space<semaphore_mem>>)
    %c1 = arith.constant 1 : index
    %c0_142 = arith.constant 0 : index
    %c0_143 = arith.constant 0 : index
    %164 = vector.load %arg11[%c1, %c0_142, %c0_143] : memref<2x8x128xf32, #tpu.memory_space<vmem>>, vector<1x8x128xf32>
    %165 = vector.shape_cast %164 : vector<1x8x128xf32> to vector<8x128xf32>
    %166 = vector.extract_strided_slice %127 {offsets = [0, 0], sizes = [16, 32], strides = [1, 1]} : vector<16x128xf32> to vector<16x32xf32>
    %167 = arith.truncf %166 : vector<16x32xf32> to vector<16x32xbf16>
    %c1_144 = arith.constant 1 : index
    %c0_145 = arith.constant 0 : index
    %c0_146 = arith.constant 0 : index
    %168 = vector.load %arg8[%c1_144, %c0_145, %c0_146] : memref<2x32x128xbf16, #tpu.memory_space<vmem>>, vector<1x32x128xbf16>
    %169 = vector.shape_cast %168 : vector<1x32x128xbf16> to vector<32x128xbf16>
    %cst_147 = arith.constant dense<0.000000e+00> : vector<16x128xf32>
    %170 = tpu.matmul %167, %169, %cst_147 {dimension_numbers = #tpu.dot_dimension_numbers<[1], [0], [0], [1], [0, 0, 1, 1], [], []>} : vector<16x32xbf16>, vector<32x128xbf16>, vector<16x128xf32> -> vector<16x128xf32>
    %171 = vector.extract_strided_slice %165 {offsets = [0, 0], sizes = [1, 128], strides = [1, 1]} : vector<8x128xf32> to vector<1x128xf32>
    %172 = vector.extract_strided_slice %165 {offsets = [1, 0], sizes = [1, 128], strides = [1, 1]} : vector<8x128xf32> to vector<1x128xf32>
    %cst_148 = arith.constant dense<0.000000e+00> : vector<128xf32>
    %173 = vector.multi_reduction <add>, %170, %cst_148 [0] : vector<16x128xf32> to vector<128xf32>
    %174 = vector.shape_cast %173 : vector<128xf32> to vector<1x128xf32>
    %175 = arith.mulf %170, %170 : vector<16x128xf32>
    %cst_149 = arith.constant dense<0.000000e+00> : vector<128xf32>
    %176 = vector.multi_reduction <add>, %175, %cst_149 [0] : vector<16x128xf32> to vector<128xf32>
    %177 = vector.shape_cast %176 : vector<128xf32> to vector<1x128xf32>
    %cst_150 = arith.constant 6.250000e-02 : f32
    %178 = vector.broadcast %cst_150 : f32 to vector<1x128xf32>
    %179 = arith.mulf %174, %178 : vector<1x128xf32>
    %cst_151 = arith.constant 6.250000e-02 : f32
    %180 = vector.broadcast %cst_151 : f32 to vector<1x128xf32>
    %181 = arith.mulf %177, %180 : vector<1x128xf32>
    %182 = arith.mulf %179, %179 : vector<1x128xf32>
    %183 = arith.subf %181, %182 : vector<1x128xf32>
    %cst_152 = arith.constant 0.000000e+00 : f32
    %184 = vector.broadcast %cst_152 : f32 to vector<1x128xf32>
    %185 = arith.maximumf %183, %184 : vector<1x128xf32>
    %cst_153 = arith.constant 9.99999974E-6 : f32
    %186 = vector.broadcast %cst_153 : f32 to vector<1x128xf32>
    %187 = arith.addf %185, %186 : vector<1x128xf32>
    %188 = math.rsqrt %187 : vector<1x128xf32>
    %189 = arith.mulf %171, %188 : vector<1x128xf32>
    %190 = arith.mulf %179, %189 : vector<1x128xf32>
    %191 = arith.subf %172, %190 : vector<1x128xf32>
    %192 = vector.broadcast %189 : vector<1x128xf32> to vector<16x128xf32>
    %193 = arith.mulf %170, %192 : vector<16x128xf32>
    %194 = vector.broadcast %191 : vector<1x128xf32> to vector<16x128xf32>
    %195 = arith.addf %193, %194 : vector<16x128xf32>
    %cst_154 = arith.constant 0.000000e+00 : f32
    %196 = vector.broadcast %cst_154 : f32 to vector<16x128xf32>
    %197 = arith.maximumf %195, %196 : vector<16x128xf32>
    %198 = vector.extract_strided_slice %197 {offsets = [0, 0], sizes = [16, 32], strides = [1, 1]} : vector<16x128xf32> to vector<16x32xf32>
    %199 = arith.truncf %198 : vector<16x32xf32> to vector<16x32xbf16>
    %c1_155 = arith.constant 1 : index
    %c0_156 = arith.constant 0 : index
    %c0_157 = arith.constant 0 : index
    %200 = vector.load %arg10[%c1_155, %c0_156, %c0_157] : memref<2x32x128xbf16, #tpu.memory_space<vmem>>, vector<1x32x128xbf16>
    %201 = vector.shape_cast %200 : vector<1x32x128xbf16> to vector<32x128xbf16>
    %cst_158 = arith.constant dense<0.000000e+00> : vector<16x128xf32>
    %202 = tpu.matmul %199, %201, %cst_158 {dimension_numbers = #tpu.dot_dimension_numbers<[1], [0], [0], [1], [0, 0, 1, 1], [], []>} : vector<16x32xbf16>, vector<32x128xbf16>, vector<16x128xf32> -> vector<16x128xf32>
    %203 = vector.extract_strided_slice %165 {offsets = [2, 0], sizes = [1, 128], strides = [1, 1]} : vector<8x128xf32> to vector<1x128xf32>
    %204 = vector.extract_strided_slice %165 {offsets = [3, 0], sizes = [1, 128], strides = [1, 1]} : vector<8x128xf32> to vector<1x128xf32>
    %cst_159 = arith.constant dense<0.000000e+00> : vector<128xf32>
    %205 = vector.multi_reduction <add>, %202, %cst_159 [0] : vector<16x128xf32> to vector<128xf32>
    %206 = vector.shape_cast %205 : vector<128xf32> to vector<1x128xf32>
    %207 = arith.mulf %202, %202 : vector<16x128xf32>
    %cst_160 = arith.constant dense<0.000000e+00> : vector<128xf32>
    %208 = vector.multi_reduction <add>, %207, %cst_160 [0] : vector<16x128xf32> to vector<128xf32>
    %209 = vector.shape_cast %208 : vector<128xf32> to vector<1x128xf32>
    %cst_161 = arith.constant 6.250000e-02 : f32
    %210 = vector.broadcast %cst_161 : f32 to vector<1x128xf32>
    %211 = arith.mulf %206, %210 : vector<1x128xf32>
    %cst_162 = arith.constant 6.250000e-02 : f32
    %212 = vector.broadcast %cst_162 : f32 to vector<1x128xf32>
    %213 = arith.mulf %209, %212 : vector<1x128xf32>
    %214 = arith.mulf %211, %211 : vector<1x128xf32>
    %215 = arith.subf %213, %214 : vector<1x128xf32>
    %cst_163 = arith.constant 0.000000e+00 : f32
    %216 = vector.broadcast %cst_163 : f32 to vector<1x128xf32>
    %217 = arith.maximumf %215, %216 : vector<1x128xf32>
    %cst_164 = arith.constant 9.99999974E-6 : f32
    %218 = vector.broadcast %cst_164 : f32 to vector<1x128xf32>
    %219 = arith.addf %217, %218 : vector<1x128xf32>
    %220 = math.rsqrt %219 : vector<1x128xf32>
    %221 = arith.mulf %203, %220 : vector<1x128xf32>
    %222 = arith.mulf %211, %221 : vector<1x128xf32>
    %223 = arith.subf %204, %222 : vector<1x128xf32>
    %224 = vector.broadcast %221 : vector<1x128xf32> to vector<16x128xf32>
    %225 = arith.mulf %202, %224 : vector<16x128xf32>
    %226 = vector.broadcast %223 : vector<1x128xf32> to vector<16x128xf32>
    %227 = arith.addf %225, %226 : vector<16x128xf32>
    %228 = arith.addf %227, %127 : vector<16x128xf32>
    %cst_165 = arith.constant 0.000000e+00 : f32
    %229 = vector.broadcast %cst_165 : f32 to vector<16x128xf32>
    %230 = arith.maximumf %228, %229 : vector<16x128xf32>
    %c1_i32_166 = arith.constant 1 : i32
    %c0_i32_167 = arith.constant 0 : i32
    %c0_i32_168 = arith.constant 0 : i32
    %c0_i32_169 = arith.constant 0 : i32
    %c0_i32_170 = arith.constant 0 : i32
    %c0_i32_171 = arith.constant 0 : i32
    %231 = tpu.memref_slice %arg2[%c1_i32_166, %c0_i32_170, %c0_i32_171] : memref<14x32x128xbf16, #tpu.memory_space<any>> -> memref<1x32x128xbf16, #tpu.memory_space<any>>
    %232 = tpu.memref_squeeze %231 : memref<1x32x128xbf16, #tpu.memory_space<any>> -> memref<32x128xbf16, #tpu.memory_space<any>>
    %c0_i32_172 = arith.constant 0 : i32
    %c0_i32_173 = arith.constant 0 : i32
    %233 = tpu.memref_slice %arg8[%c0_i32_167, %c0_i32_172, %c0_i32_173] : memref<2x32x128xbf16, #tpu.memory_space<vmem>> -> memref<1x32x128xbf16, #tpu.memory_space<vmem>>
    %234 = tpu.memref_squeeze %233 : memref<1x32x128xbf16, #tpu.memory_space<vmem>> -> memref<32x128xbf16, #tpu.memory_space<vmem>>
    %235 = tpu.memref_slice %arg12[%c0_i32_168, %c0_i32_169] : memref<2x3x!tpu.dma_semaphore, #tpu.memory_space<semaphore_mem>> -> memref<1x1x!tpu.dma_semaphore, #tpu.memory_space<semaphore_mem>>
    %236 = tpu.memref_squeeze %235 : memref<1x1x!tpu.dma_semaphore, #tpu.memory_space<semaphore_mem>> -> memref<!tpu.dma_semaphore, #tpu.memory_space<semaphore_mem>>
    tpu.wait_dma2 semaphore(%236 : memref<!tpu.dma_semaphore, #tpu.memory_space<semaphore_mem>>) src(%232 : memref<32x128xbf16, #tpu.memory_space<any>>) dst(%234 : memref<32x128xbf16, #tpu.memory_space<vmem>>)
    %c2_i32_174 = arith.constant 2 : i32
    %c0_i32_175 = arith.constant 0 : i32
    %c0_i32_176 = arith.constant 0 : i32
    %c1_i32_177 = arith.constant 1 : i32
    %c0_i32_178 = arith.constant 0 : i32
    %c0_i32_179 = arith.constant 0 : i32
    %237 = tpu.memref_slice %arg4[%c2_i32_174, %c0_i32_178, %c0_i32_179] : memref<16x32x128xbf16, #tpu.memory_space<any>> -> memref<1x32x128xbf16, #tpu.memory_space<any>>
    %238 = tpu.memref_squeeze %237 : memref<1x32x128xbf16, #tpu.memory_space<any>> -> memref<32x128xbf16, #tpu.memory_space<any>>
    %c0_i32_180 = arith.constant 0 : i32
    %c0_i32_181 = arith.constant 0 : i32
    %239 = tpu.memref_slice %arg10[%c0_i32_175, %c0_i32_180, %c0_i32_181] : memref<2x32x128xbf16, #tpu.memory_space<vmem>> -> memref<1x32x128xbf16, #tpu.memory_space<vmem>>
    %240 = tpu.memref_squeeze %239 : memref<1x32x128xbf16, #tpu.memory_space<vmem>> -> memref<32x128xbf16, #tpu.memory_space<vmem>>
    %241 = tpu.memref_slice %arg12[%c0_i32_176, %c1_i32_177] : memref<2x3x!tpu.dma_semaphore, #tpu.memory_space<semaphore_mem>> -> memref<1x1x!tpu.dma_semaphore, #tpu.memory_space<semaphore_mem>>
    %242 = tpu.memref_squeeze %241 : memref<1x1x!tpu.dma_semaphore, #tpu.memory_space<semaphore_mem>> -> memref<!tpu.dma_semaphore, #tpu.memory_space<semaphore_mem>>
    tpu.wait_dma2 semaphore(%242 : memref<!tpu.dma_semaphore, #tpu.memory_space<semaphore_mem>>) src(%238 : memref<32x128xbf16, #tpu.memory_space<any>>) dst(%240 : memref<32x128xbf16, #tpu.memory_space<vmem>>)
    %c2_i32_182 = arith.constant 2 : i32
    %c0_i32_183 = arith.constant 0 : i32
    %c0_i32_184 = arith.constant 0 : i32
    %c2_i32_185 = arith.constant 2 : i32
    %c0_i32_186 = arith.constant 0 : i32
    %c0_i32_187 = arith.constant 0 : i32
    %243 = tpu.memref_slice %arg5[%c2_i32_182, %c0_i32_186, %c0_i32_187] : memref<16x8x128xf32, #tpu.memory_space<any>> -> memref<1x8x128xf32, #tpu.memory_space<any>>
    %244 = tpu.memref_squeeze %243 : memref<1x8x128xf32, #tpu.memory_space<any>> -> memref<8x128xf32, #tpu.memory_space<any>>
    %c0_i32_188 = arith.constant 0 : i32
    %c0_i32_189 = arith.constant 0 : i32
    %245 = tpu.memref_slice %arg11[%c0_i32_183, %c0_i32_188, %c0_i32_189] : memref<2x8x128xf32, #tpu.memory_space<vmem>> -> memref<1x8x128xf32, #tpu.memory_space<vmem>>
    %246 = tpu.memref_squeeze %245 : memref<1x8x128xf32, #tpu.memory_space<vmem>> -> memref<8x128xf32, #tpu.memory_space<vmem>>
    %247 = tpu.memref_slice %arg12[%c0_i32_184, %c2_i32_185] : memref<2x3x!tpu.dma_semaphore, #tpu.memory_space<semaphore_mem>> -> memref<1x1x!tpu.dma_semaphore, #tpu.memory_space<semaphore_mem>>
    %248 = tpu.memref_squeeze %247 : memref<1x1x!tpu.dma_semaphore, #tpu.memory_space<semaphore_mem>> -> memref<!tpu.dma_semaphore, #tpu.memory_space<semaphore_mem>>
    tpu.wait_dma2 semaphore(%248 : memref<!tpu.dma_semaphore, #tpu.memory_space<semaphore_mem>>) src(%244 : memref<8x128xf32, #tpu.memory_space<any>>) dst(%246 : memref<8x128xf32, #tpu.memory_space<vmem>>)
    %c1_i32_190 = arith.constant 1 : i32
    %c1_i32_191 = arith.constant 1 : i32
    %c1_i32_192 = arith.constant 1 : i32
    %c0_i32_193 = arith.constant 0 : i32
    %c0_i32_194 = arith.constant 0 : i32
    %c0_i32_195 = arith.constant 0 : i32
    %249 = tpu.memref_slice %arg3[%c1_i32_190, %c0_i32_194, %c0_i32_195] : memref<2x32x256xbf16, #tpu.memory_space<any>> -> memref<1x32x256xbf16, #tpu.memory_space<any>>
    %250 = tpu.memref_squeeze %249 : memref<1x32x256xbf16, #tpu.memory_space<any>> -> memref<32x256xbf16, #tpu.memory_space<any>>
    %c0_i32_196 = arith.constant 0 : i32
    %c0_i32_197 = arith.constant 0 : i32
    %251 = tpu.memref_slice %arg9[%c1_i32_191, %c0_i32_196, %c0_i32_197] : memref<2x32x256xbf16, #tpu.memory_space<vmem>> -> memref<1x32x256xbf16, #tpu.memory_space<vmem>>
    %252 = tpu.memref_squeeze %251 : memref<1x32x256xbf16, #tpu.memory_space<vmem>> -> memref<32x256xbf16, #tpu.memory_space<vmem>>
    %253 = tpu.memref_slice %arg12[%c1_i32_192, %c0_i32_193] : memref<2x3x!tpu.dma_semaphore, #tpu.memory_space<semaphore_mem>> -> memref<1x1x!tpu.dma_semaphore, #tpu.memory_space<semaphore_mem>>
    %254 = tpu.memref_squeeze %253 : memref<1x1x!tpu.dma_semaphore, #tpu.memory_space<semaphore_mem>> -> memref<!tpu.dma_semaphore, #tpu.memory_space<semaphore_mem>>
    tpu.enqueue_dma source(%250 : memref<32x256xbf16, #tpu.memory_space<any>>) target(%252 : memref<32x256xbf16, #tpu.memory_space<vmem>>) target_semaphore(%254 : memref<!tpu.dma_semaphore, #tpu.memory_space<semaphore_mem>>)
    %c3_i32 = arith.constant 3 : i32
    %c1_i32_198 = arith.constant 1 : i32
    %c1_i32_199 = arith.constant 1 : i32
    %c1_i32_200 = arith.constant 1 : i32
    %c0_i32_201 = arith.constant 0 : i32
    %c0_i32_202 = arith.constant 0 : i32
    %255 = tpu.memref_slice %arg4[%c3_i32, %c0_i32_201, %c0_i32_202] : memref<16x32x128xbf16, #tpu.memory_space<any>> -> memref<1x32x128xbf16, #tpu.memory_space<any>>
    %256 = tpu.memref_squeeze %255 : memref<1x32x128xbf16, #tpu.memory_space<any>> -> memref<32x128xbf16, #tpu.memory_space<any>>
    %c0_i32_203 = arith.constant 0 : i32
    %c0_i32_204 = arith.constant 0 : i32
    %257 = tpu.memref_slice %arg10[%c1_i32_198, %c0_i32_203, %c0_i32_204] : memref<2x32x128xbf16, #tpu.memory_space<vmem>> -> memref<1x32x128xbf16, #tpu.memory_space<vmem>>
    %258 = tpu.memref_squeeze %257 : memref<1x32x128xbf16, #tpu.memory_space<vmem>> -> memref<32x128xbf16, #tpu.memory_space<vmem>>
    %259 = tpu.memref_slice %arg12[%c1_i32_199, %c1_i32_200] : memref<2x3x!tpu.dma_semaphore, #tpu.memory_space<semaphore_mem>> -> memref<1x1x!tpu.dma_semaphore, #tpu.memory_space<semaphore_mem>>
    %260 = tpu.memref_squeeze %259 : memref<1x1x!tpu.dma_semaphore, #tpu.memory_space<semaphore_mem>> -> memref<!tpu.dma_semaphore, #tpu.memory_space<semaphore_mem>>
    tpu.enqueue_dma source(%256 : memref<32x128xbf16, #tpu.memory_space<any>>) target(%258 : memref<32x128xbf16, #tpu.memory_space<vmem>>) target_semaphore(%260 : memref<!tpu.dma_semaphore, #tpu.memory_space<semaphore_mem>>)
    %c3_i32_205 = arith.constant 3 : i32
    %c1_i32_206 = arith.constant 1 : i32
    %c1_i32_207 = arith.constant 1 : i32
    %c2_i32_208 = arith.constant 2 : i32
    %c0_i32_209 = arith.constant 0 : i32
    %c0_i32_210 = arith.constant 0 : i32
    %261 = tpu.memref_slice %arg5[%c3_i32_205, %c0_i32_209, %c0_i32_210] : memref<16x8x128xf32, #tpu.memory_space<any>> -> memref<1x8x128xf32, #tpu.memory_space<any>>
    %262 = tpu.memref_squeeze %261 : memref<1x8x128xf32, #tpu.memory_space<any>> -> memref<8x128xf32, #tpu.memory_space<any>>
    %c0_i32_211 = arith.constant 0 : i32
    %c0_i32_212 = arith.constant 0 : i32
    %263 = tpu.memref_slice %arg11[%c1_i32_206, %c0_i32_211, %c0_i32_212] : memref<2x8x128xf32, #tpu.memory_space<vmem>> -> memref<1x8x128xf32, #tpu.memory_space<vmem>>
    %264 = tpu.memref_squeeze %263 : memref<1x8x128xf32, #tpu.memory_space<vmem>> -> memref<8x128xf32, #tpu.memory_space<vmem>>
    %265 = tpu.memref_slice %arg12[%c1_i32_207, %c2_i32_208] : memref<2x3x!tpu.dma_semaphore, #tpu.memory_space<semaphore_mem>> -> memref<1x1x!tpu.dma_semaphore, #tpu.memory_space<semaphore_mem>>
    %266 = tpu.memref_squeeze %265 : memref<1x1x!tpu.dma_semaphore, #tpu.memory_space<semaphore_mem>> -> memref<!tpu.dma_semaphore, #tpu.memory_space<semaphore_mem>>
    tpu.enqueue_dma source(%262 : memref<8x128xf32, #tpu.memory_space<any>>) target(%264 : memref<8x128xf32, #tpu.memory_space<vmem>>) target_semaphore(%266 : memref<!tpu.dma_semaphore, #tpu.memory_space<semaphore_mem>>)
    %c0_213 = arith.constant 0 : index
    %c0_214 = arith.constant 0 : index
    %c0_215 = arith.constant 0 : index
    %267 = vector.load %arg11[%c0_213, %c0_214, %c0_215] : memref<2x8x128xf32, #tpu.memory_space<vmem>>, vector<1x8x128xf32>
    %268 = vector.shape_cast %267 : vector<1x8x128xf32> to vector<8x128xf32>
    %269 = vector.extract_strided_slice %230 {offsets = [0, 0], sizes = [16, 32], strides = [1, 1]} : vector<16x128xf32> to vector<16x32xf32>
    %270 = arith.truncf %269 : vector<16x32xf32> to vector<16x32xbf16>
    %c0_216 = arith.constant 0 : index
    %c0_217 = arith.constant 0 : index
    %c0_218 = arith.constant 0 : index
    %271 = vector.load %arg8[%c0_216, %c0_217, %c0_218] : memref<2x32x128xbf16, #tpu.memory_space<vmem>>, vector<1x32x128xbf16>
    %272 = vector.shape_cast %271 : vector<1x32x128xbf16> to vector<32x128xbf16>
    %cst_219 = arith.constant dense<0.000000e+00> : vector<16x128xf32>
    %273 = tpu.matmul %270, %272, %cst_219 {dimension_numbers = #tpu.dot_dimension_numbers<[1], [0], [0], [1], [0, 0, 1, 1], [], []>} : vector<16x32xbf16>, vector<32x128xbf16>, vector<16x128xf32> -> vector<16x128xf32>
    %274 = vector.extract_strided_slice %268 {offsets = [0, 0], sizes = [1, 128], strides = [1, 1]} : vector<8x128xf32> to vector<1x128xf32>
    %275 = vector.extract_strided_slice %268 {offsets = [1, 0], sizes = [1, 128], strides = [1, 1]} : vector<8x128xf32> to vector<1x128xf32>
    %cst_220 = arith.constant dense<0.000000e+00> : vector<128xf32>
    %276 = vector.multi_reduction <add>, %273, %cst_220 [0] : vector<16x128xf32> to vector<128xf32>
    %277 = vector.shape_cast %276 : vector<128xf32> to vector<1x128xf32>
    %278 = arith.mulf %273, %273 : vector<16x128xf32>
    %cst_221 = arith.constant dense<0.000000e+00> : vector<128xf32>
    %279 = vector.multi_reduction <add>, %278, %cst_221 [0] : vector<16x128xf32> to vector<128xf32>
    %280 = vector.shape_cast %279 : vector<128xf32> to vector<1x128xf32>
    %cst_222 = arith.constant 6.250000e-02 : f32
    %281 = vector.broadcast %cst_222 : f32 to vector<1x128xf32>
    %282 = arith.mulf %277, %281 : vector<1x128xf32>
    %cst_223 = arith.constant 6.250000e-02 : f32
    %283 = vector.broadcast %cst_223 : f32 to vector<1x128xf32>
    %284 = arith.mulf %280, %283 : vector<1x128xf32>
    %285 = arith.mulf %282, %282 : vector<1x128xf32>
    %286 = arith.subf %284, %285 : vector<1x128xf32>
    %cst_224 = arith.constant 0.000000e+00 : f32
    %287 = vector.broadcast %cst_224 : f32 to vector<1x128xf32>
    %288 = arith.maximumf %286, %287 : vector<1x128xf32>
    %cst_225 = arith.constant 9.99999974E-6 : f32
    %289 = vector.broadcast %cst_225 : f32 to vector<1x128xf32>
    %290 = arith.addf %288, %289 : vector<1x128xf32>
    %291 = math.rsqrt %290 : vector<1x128xf32>
    %292 = arith.mulf %274, %291 : vector<1x128xf32>
    %293 = arith.mulf %282, %292 : vector<1x128xf32>
    %294 = arith.subf %275, %293 : vector<1x128xf32>
    %295 = vector.broadcast %292 : vector<1x128xf32> to vector<16x128xf32>
    %296 = arith.mulf %273, %295 : vector<16x128xf32>
    %297 = vector.broadcast %294 : vector<1x128xf32> to vector<16x128xf32>
    %298 = arith.addf %296, %297 : vector<16x128xf32>
    %cst_226 = arith.constant 0.000000e+00 : f32
    %299 = vector.broadcast %cst_226 : f32 to vector<16x128xf32>
    %300 = arith.maximumf %298, %299 : vector<16x128xf32>
    %301 = vector.extract_strided_slice %300 {offsets = [0, 0], sizes = [16, 32], strides = [1, 1]} : vector<16x128xf32> to vector<16x32xf32>
    %302 = arith.truncf %301 : vector<16x32xf32> to vector<16x32xbf16>
    %c0_227 = arith.constant 0 : index
    %c0_228 = arith.constant 0 : index
    %c0_229 = arith.constant 0 : index
    %303 = vector.load %arg10[%c0_227, %c0_228, %c0_229] : memref<2x32x128xbf16, #tpu.memory_space<vmem>>, vector<1x32x128xbf16>
    %304 = vector.shape_cast %303 : vector<1x32x128xbf16> to vector<32x128xbf16>
    %cst_230 = arith.constant dense<0.000000e+00> : vector<16x128xf32>
    %305 = tpu.matmul %302, %304, %cst_230 {dimension_numbers = #tpu.dot_dimension_numbers<[1], [0], [0], [1], [0, 0, 1, 1], [], []>} : vector<16x32xbf16>, vector<32x128xbf16>, vector<16x128xf32> -> vector<16x128xf32>
    %306 = vector.extract_strided_slice %268 {offsets = [2, 0], sizes = [1, 128], strides = [1, 1]} : vector<8x128xf32> to vector<1x128xf32>
    %307 = vector.extract_strided_slice %268 {offsets = [3, 0], sizes = [1, 128], strides = [1, 1]} : vector<8x128xf32> to vector<1x128xf32>
    %cst_231 = arith.constant dense<0.000000e+00> : vector<128xf32>
    %308 = vector.multi_reduction <add>, %305, %cst_231 [0] : vector<16x128xf32> to vector<128xf32>
    %309 = vector.shape_cast %308 : vector<128xf32> to vector<1x128xf32>
    %310 = arith.mulf %305, %305 : vector<16x128xf32>
    %cst_232 = arith.constant dense<0.000000e+00> : vector<128xf32>
    %311 = vector.multi_reduction <add>, %310, %cst_232 [0] : vector<16x128xf32> to vector<128xf32>
    %312 = vector.shape_cast %311 : vector<128xf32> to vector<1x128xf32>
    %cst_233 = arith.constant 6.250000e-02 : f32
    %313 = vector.broadcast %cst_233 : f32 to vector<1x128xf32>
    %314 = arith.mulf %309, %313 : vector<1x128xf32>
    %cst_234 = arith.constant 6.250000e-02 : f32
    %315 = vector.broadcast %cst_234 : f32 to vector<1x128xf32>
    %316 = arith.mulf %312, %315 : vector<1x128xf32>
    %317 = arith.mulf %314, %314 : vector<1x128xf32>
    %318 = arith.subf %316, %317 : vector<1x128xf32>
    %cst_235 = arith.constant 0.000000e+00 : f32
    %319 = vector.broadcast %cst_235 : f32 to vector<1x128xf32>
    %320 = arith.maximumf %318, %319 : vector<1x128xf32>
    %cst_236 = arith.constant 9.99999974E-6 : f32
    %321 = vector.broadcast %cst_236 : f32 to vector<1x128xf32>
    %322 = arith.addf %320, %321 : vector<1x128xf32>
    %323 = math.rsqrt %322 : vector<1x128xf32>
    %324 = arith.mulf %306, %323 : vector<1x128xf32>
    %325 = arith.mulf %314, %324 : vector<1x128xf32>
    %326 = arith.subf %307, %325 : vector<1x128xf32>
    %327 = vector.broadcast %324 : vector<1x128xf32> to vector<16x128xf32>
    %328 = arith.mulf %305, %327 : vector<16x128xf32>
    %329 = vector.broadcast %326 : vector<1x128xf32> to vector<16x128xf32>
    %330 = arith.addf %328, %329 : vector<16x128xf32>
    %331 = arith.addf %330, %230 : vector<16x128xf32>
    %cst_237 = arith.constant 0.000000e+00 : f32
    %332 = vector.broadcast %cst_237 : f32 to vector<16x128xf32>
    %333 = arith.maximumf %331, %332 : vector<16x128xf32>
    %c1_i32_238 = arith.constant 1 : i32
    %c1_i32_239 = arith.constant 1 : i32
    %c1_i32_240 = arith.constant 1 : i32
    %c0_i32_241 = arith.constant 0 : i32
    %c0_i32_242 = arith.constant 0 : i32
    %c0_i32_243 = arith.constant 0 : i32
    %334 = tpu.memref_slice %arg3[%c1_i32_238, %c0_i32_242, %c0_i32_243] : memref<2x32x256xbf16, #tpu.memory_space<any>> -> memref<1x32x256xbf16, #tpu.memory_space<any>>
    %335 = tpu.memref_squeeze %334 : memref<1x32x256xbf16, #tpu.memory_space<any>> -> memref<32x256xbf16, #tpu.memory_space<any>>
    %c0_i32_244 = arith.constant 0 : i32
    %c0_i32_245 = arith.constant 0 : i32
    %336 = tpu.memref_slice %arg9[%c1_i32_239, %c0_i32_244, %c0_i32_245] : memref<2x32x256xbf16, #tpu.memory_space<vmem>> -> memref<1x32x256xbf16, #tpu.memory_space<vmem>>
    %337 = tpu.memref_squeeze %336 : memref<1x32x256xbf16, #tpu.memory_space<vmem>> -> memref<32x256xbf16, #tpu.memory_space<vmem>>
    %338 = tpu.memref_slice %arg12[%c1_i32_240, %c0_i32_241] : memref<2x3x!tpu.dma_semaphore, #tpu.memory_space<semaphore_mem>> -> memref<1x1x!tpu.dma_semaphore, #tpu.memory_space<semaphore_mem>>
    %339 = tpu.memref_squeeze %338 : memref<1x1x!tpu.dma_semaphore, #tpu.memory_space<semaphore_mem>> -> memref<!tpu.dma_semaphore, #tpu.memory_space<semaphore_mem>>
    tpu.wait_dma2 semaphore(%339 : memref<!tpu.dma_semaphore, #tpu.memory_space<semaphore_mem>>) src(%335 : memref<32x256xbf16, #tpu.memory_space<any>>) dst(%337 : memref<32x256xbf16, #tpu.memory_space<vmem>>)
    %c3_i32_246 = arith.constant 3 : i32
    %c1_i32_247 = arith.constant 1 : i32
    %c1_i32_248 = arith.constant 1 : i32
    %c1_i32_249 = arith.constant 1 : i32
    %c0_i32_250 = arith.constant 0 : i32
    %c0_i32_251 = arith.constant 0 : i32
    %340 = tpu.memref_slice %arg4[%c3_i32_246, %c0_i32_250, %c0_i32_251] : memref<16x32x128xbf16, #tpu.memory_space<any>> -> memref<1x32x128xbf16, #tpu.memory_space<any>>
    %341 = tpu.memref_squeeze %340 : memref<1x32x128xbf16, #tpu.memory_space<any>> -> memref<32x128xbf16, #tpu.memory_space<any>>
    %c0_i32_252 = arith.constant 0 : i32
    %c0_i32_253 = arith.constant 0 : i32
    %342 = tpu.memref_slice %arg10[%c1_i32_247, %c0_i32_252, %c0_i32_253] : memref<2x32x128xbf16, #tpu.memory_space<vmem>> -> memref<1x32x128xbf16, #tpu.memory_space<vmem>>
    %343 = tpu.memref_squeeze %342 : memref<1x32x128xbf16, #tpu.memory_space<vmem>> -> memref<32x128xbf16, #tpu.memory_space<vmem>>
    %344 = tpu.memref_slice %arg12[%c1_i32_248, %c1_i32_249] : memref<2x3x!tpu.dma_semaphore, #tpu.memory_space<semaphore_mem>> -> memref<1x1x!tpu.dma_semaphore, #tpu.memory_space<semaphore_mem>>
    %345 = tpu.memref_squeeze %344 : memref<1x1x!tpu.dma_semaphore, #tpu.memory_space<semaphore_mem>> -> memref<!tpu.dma_semaphore, #tpu.memory_space<semaphore_mem>>
    tpu.wait_dma2 semaphore(%345 : memref<!tpu.dma_semaphore, #tpu.memory_space<semaphore_mem>>) src(%341 : memref<32x128xbf16, #tpu.memory_space<any>>) dst(%343 : memref<32x128xbf16, #tpu.memory_space<vmem>>)
    %c3_i32_254 = arith.constant 3 : i32
    %c1_i32_255 = arith.constant 1 : i32
    %c1_i32_256 = arith.constant 1 : i32
    %c2_i32_257 = arith.constant 2 : i32
    %c0_i32_258 = arith.constant 0 : i32
    %c0_i32_259 = arith.constant 0 : i32
    %346 = tpu.memref_slice %arg5[%c3_i32_254, %c0_i32_258, %c0_i32_259] : memref<16x8x128xf32, #tpu.memory_space<any>> -> memref<1x8x128xf32, #tpu.memory_space<any>>
    %347 = tpu.memref_squeeze %346 : memref<1x8x128xf32, #tpu.memory_space<any>> -> memref<8x128xf32, #tpu.memory_space<any>>
    %c0_i32_260 = arith.constant 0 : i32
    %c0_i32_261 = arith.constant 0 : i32
    %348 = tpu.memref_slice %arg11[%c1_i32_255, %c0_i32_260, %c0_i32_261] : memref<2x8x128xf32, #tpu.memory_space<vmem>> -> memref<1x8x128xf32, #tpu.memory_space<vmem>>
    %349 = tpu.memref_squeeze %348 : memref<1x8x128xf32, #tpu.memory_space<vmem>> -> memref<8x128xf32, #tpu.memory_space<vmem>>
    %350 = tpu.memref_slice %arg12[%c1_i32_256, %c2_i32_257] : memref<2x3x!tpu.dma_semaphore, #tpu.memory_space<semaphore_mem>> -> memref<1x1x!tpu.dma_semaphore, #tpu.memory_space<semaphore_mem>>
    %351 = tpu.memref_squeeze %350 : memref<1x1x!tpu.dma_semaphore, #tpu.memory_space<semaphore_mem>> -> memref<!tpu.dma_semaphore, #tpu.memory_space<semaphore_mem>>
    tpu.wait_dma2 semaphore(%351 : memref<!tpu.dma_semaphore, #tpu.memory_space<semaphore_mem>>) src(%347 : memref<8x128xf32, #tpu.memory_space<any>>) dst(%349 : memref<8x128xf32, #tpu.memory_space<vmem>>)
    %c2_i32_262 = arith.constant 2 : i32
    %c0_i32_263 = arith.constant 0 : i32
    %c0_i32_264 = arith.constant 0 : i32
    %c0_i32_265 = arith.constant 0 : i32
    %c0_i32_266 = arith.constant 0 : i32
    %c0_i32_267 = arith.constant 0 : i32
    %352 = tpu.memref_slice %arg2[%c2_i32_262, %c0_i32_266, %c0_i32_267] : memref<14x32x128xbf16, #tpu.memory_space<any>> -> memref<1x32x128xbf16, #tpu.memory_space<any>>
    %353 = tpu.memref_squeeze %352 : memref<1x32x128xbf16, #tpu.memory_space<any>> -> memref<32x128xbf16, #tpu.memory_space<any>>
    %c0_i32_268 = arith.constant 0 : i32
    %c0_i32_269 = arith.constant 0 : i32
    %354 = tpu.memref_slice %arg8[%c0_i32_263, %c0_i32_268, %c0_i32_269] : memref<2x32x128xbf16, #tpu.memory_space<vmem>> -> memref<1x32x128xbf16, #tpu.memory_space<vmem>>
    %355 = tpu.memref_squeeze %354 : memref<1x32x128xbf16, #tpu.memory_space<vmem>> -> memref<32x128xbf16, #tpu.memory_space<vmem>>
    %356 = tpu.memref_slice %arg12[%c0_i32_264, %c0_i32_265] : memref<2x3x!tpu.dma_semaphore, #tpu.memory_space<semaphore_mem>> -> memref<1x1x!tpu.dma_semaphore, #tpu.memory_space<semaphore_mem>>
    %357 = tpu.memref_squeeze %356 : memref<1x1x!tpu.dma_semaphore, #tpu.memory_space<semaphore_mem>> -> memref<!tpu.dma_semaphore, #tpu.memory_space<semaphore_mem>>
    tpu.enqueue_dma source(%353 : memref<32x128xbf16, #tpu.memory_space<any>>) target(%355 : memref<32x128xbf16, #tpu.memory_space<vmem>>) target_semaphore(%357 : memref<!tpu.dma_semaphore, #tpu.memory_space<semaphore_mem>>)
    %c4_i32 = arith.constant 4 : i32
    %c0_i32_270 = arith.constant 0 : i32
    %c0_i32_271 = arith.constant 0 : i32
    %c1_i32_272 = arith.constant 1 : i32
    %c0_i32_273 = arith.constant 0 : i32
    %c0_i32_274 = arith.constant 0 : i32
    %358 = tpu.memref_slice %arg4[%c4_i32, %c0_i32_273, %c0_i32_274] : memref<16x32x128xbf16, #tpu.memory_space<any>> -> memref<1x32x128xbf16, #tpu.memory_space<any>>
    %359 = tpu.memref_squeeze %358 : memref<1x32x128xbf16, #tpu.memory_space<any>> -> memref<32x128xbf16, #tpu.memory_space<any>>
    %c0_i32_275 = arith.constant 0 : i32
    %c0_i32_276 = arith.constant 0 : i32
    %360 = tpu.memref_slice %arg10[%c0_i32_270, %c0_i32_275, %c0_i32_276] : memref<2x32x128xbf16, #tpu.memory_space<vmem>> -> memref<1x32x128xbf16, #tpu.memory_space<vmem>>
    %361 = tpu.memref_squeeze %360 : memref<1x32x128xbf16, #tpu.memory_space<vmem>> -> memref<32x128xbf16, #tpu.memory_space<vmem>>
    %362 = tpu.memref_slice %arg12[%c0_i32_271, %c1_i32_272] : memref<2x3x!tpu.dma_semaphore, #tpu.memory_space<semaphore_mem>> -> memref<1x1x!tpu.dma_semaphore, #tpu.memory_space<semaphore_mem>>
    %363 = tpu.memref_squeeze %362 : memref<1x1x!tpu.dma_semaphore, #tpu.memory_space<semaphore_mem>> -> memref<!tpu.dma_semaphore, #tpu.memory_space<semaphore_mem>>
    tpu.enqueue_dma source(%359 : memref<32x128xbf16, #tpu.memory_space<any>>) target(%361 : memref<32x128xbf16, #tpu.memory_space<vmem>>) target_semaphore(%363 : memref<!tpu.dma_semaphore, #tpu.memory_space<semaphore_mem>>)
    %c4_i32_277 = arith.constant 4 : i32
    %c0_i32_278 = arith.constant 0 : i32
    %c0_i32_279 = arith.constant 0 : i32
    %c2_i32_280 = arith.constant 2 : i32
    %c0_i32_281 = arith.constant 0 : i32
    %c0_i32_282 = arith.constant 0 : i32
    %364 = tpu.memref_slice %arg5[%c4_i32_277, %c0_i32_281, %c0_i32_282] : memref<16x8x128xf32, #tpu.memory_space<any>> -> memref<1x8x128xf32, #tpu.memory_space<any>>
    %365 = tpu.memref_squeeze %364 : memref<1x8x128xf32, #tpu.memory_space<any>> -> memref<8x128xf32, #tpu.memory_space<any>>
    %c0_i32_283 = arith.constant 0 : i32
    %c0_i32_284 = arith.constant 0 : i32
    %366 = tpu.memref_slice %arg11[%c0_i32_278, %c0_i32_283, %c0_i32_284] : memref<2x8x128xf32, #tpu.memory_space<vmem>> -> memref<1x8x128xf32, #tpu.memory_space<vmem>>
    %367 = tpu.memref_squeeze %366 : memref<1x8x128xf32, #tpu.memory_space<vmem>> -> memref<8x128xf32, #tpu.memory_space<vmem>>
    %368 = tpu.memref_slice %arg12[%c0_i32_279, %c2_i32_280] : memref<2x3x!tpu.dma_semaphore, #tpu.memory_space<semaphore_mem>> -> memref<1x1x!tpu.dma_semaphore, #tpu.memory_space<semaphore_mem>>
    %369 = tpu.memref_squeeze %368 : memref<1x1x!tpu.dma_semaphore, #tpu.memory_space<semaphore_mem>> -> memref<!tpu.dma_semaphore, #tpu.memory_space<semaphore_mem>>
    tpu.enqueue_dma source(%365 : memref<8x128xf32, #tpu.memory_space<any>>) target(%367 : memref<8x128xf32, #tpu.memory_space<vmem>>) target_semaphore(%369 : memref<!tpu.dma_semaphore, #tpu.memory_space<semaphore_mem>>)
    %c1_285 = arith.constant 1 : index
    %c0_286 = arith.constant 0 : index
    %c0_287 = arith.constant 0 : index
    %370 = vector.load %arg11[%c1_285, %c0_286, %c0_287] : memref<2x8x128xf32, #tpu.memory_space<vmem>>, vector<1x8x128xf32>
    %371 = vector.shape_cast %370 : vector<1x8x128xf32> to vector<8x128xf32>
    %372 = vector.extract_strided_slice %333 {offsets = [0, 0], sizes = [16, 32], strides = [1, 1]} : vector<16x128xf32> to vector<16x32xf32>
    %373 = arith.truncf %372 : vector<16x32xf32> to vector<16x32xbf16>
    %c1_288 = arith.constant 1 : index
    %c0_289 = arith.constant 0 : index
    %c0_290 = arith.constant 0 : index
    %374 = vector.load %arg9[%c1_288, %c0_289, %c0_290] : memref<2x32x256xbf16, #tpu.memory_space<vmem>>, vector<1x32x256xbf16>
    %375 = vector.shape_cast %374 : vector<1x32x256xbf16> to vector<32x256xbf16>
    %cst_291 = arith.constant dense<0.000000e+00> : vector<16x256xf32>
    %376 = tpu.matmul %373, %375, %cst_291 {dimension_numbers = #tpu.dot_dimension_numbers<[1], [0], [0], [1], [0, 0, 1, 1], [], []>} : vector<16x32xbf16>, vector<32x256xbf16>, vector<16x256xf32> -> vector<16x256xf32>
    %377 = vector.extract_strided_slice %371 {offsets = [0, 0], sizes = [1, 128], strides = [1, 1]} : vector<8x128xf32> to vector<1x128xf32>
    %378 = vector.extract_strided_slice %371 {offsets = [4, 0], sizes = [1, 128], strides = [1, 1]} : vector<8x128xf32> to vector<1x128xf32>
    %379 = tpu.concatenate %377, %378 in 1 : vector<1x128xf32>, vector<1x128xf32> -> vector<1x256xf32>
    %380 = vector.extract_strided_slice %371 {offsets = [1, 0], sizes = [1, 128], strides = [1, 1]} : vector<8x128xf32> to vector<1x128xf32>
    %381 = vector.extract_strided_slice %371 {offsets = [5, 0], sizes = [1, 128], strides = [1, 1]} : vector<8x128xf32> to vector<1x128xf32>
    %382 = tpu.concatenate %380, %381 in 1 : vector<1x128xf32>, vector<1x128xf32> -> vector<1x256xf32>
    %cst_292 = arith.constant dense<0.000000e+00> : vector<256xf32>
    %383 = vector.multi_reduction <add>, %376, %cst_292 [0] : vector<16x256xf32> to vector<256xf32>
    %384 = vector.shape_cast %383 : vector<256xf32> to vector<1x256xf32>
    %385 = arith.mulf %376, %376 : vector<16x256xf32>
    %cst_293 = arith.constant dense<0.000000e+00> : vector<256xf32>
    %386 = vector.multi_reduction <add>, %385, %cst_293 [0] : vector<16x256xf32> to vector<256xf32>
    %387 = vector.shape_cast %386 : vector<256xf32> to vector<1x256xf32>
    %cst_294 = arith.constant 6.250000e-02 : f32
    %388 = vector.broadcast %cst_294 : f32 to vector<1x256xf32>
    %389 = arith.mulf %384, %388 : vector<1x256xf32>
    %cst_295 = arith.constant 6.250000e-02 : f32
    %390 = vector.broadcast %cst_295 : f32 to vector<1x256xf32>
    %391 = arith.mulf %387, %390 : vector<1x256xf32>
    %392 = arith.mulf %389, %389 : vector<1x256xf32>
    %393 = arith.subf %391, %392 : vector<1x256xf32>
    %cst_296 = arith.constant 0.000000e+00 : f32
    %394 = vector.broadcast %cst_296 : f32 to vector<1x256xf32>
    %395 = arith.maximumf %393, %394 : vector<1x256xf32>
    %cst_297 = arith.constant 9.99999974E-6 : f32
    %396 = vector.broadcast %cst_297 : f32 to vector<1x256xf32>
    %397 = arith.addf %395, %396 : vector<1x256xf32>
    %398 = math.rsqrt %397 : vector<1x256xf32>
    %399 = arith.mulf %379, %398 : vector<1x256xf32>
    %400 = arith.mulf %389, %399 : vector<1x256xf32>
    %401 = arith.subf %382, %400 : vector<1x256xf32>
    %402 = vector.broadcast %399 : vector<1x256xf32> to vector<16x256xf32>
    %403 = arith.mulf %376, %402 : vector<16x256xf32>
    %404 = vector.broadcast %401 : vector<1x256xf32> to vector<16x256xf32>
    %405 = arith.addf %403, %404 : vector<16x256xf32>
    %406 = vector.extract_strided_slice %405 {offsets = [0, 0], sizes = [16, 128], strides = [1, 1]} : vector<16x256xf32> to vector<16x128xf32>
    %cst_298 = arith.constant 0.000000e+00 : f32
    %407 = vector.broadcast %cst_298 : f32 to vector<16x128xf32>
    %408 = arith.maximumf %406, %407 : vector<16x128xf32>
    %409 = vector.extract_strided_slice %405 {offsets = [0, 128], sizes = [16, 128], strides = [1, 1]} : vector<16x256xf32> to vector<16x128xf32>
    %410 = vector.extract_strided_slice %408 {offsets = [0, 0], sizes = [16, 32], strides = [1, 1]} : vector<16x128xf32> to vector<16x32xf32>
    %411 = arith.truncf %410 : vector<16x32xf32> to vector<16x32xbf16>
    %c1_299 = arith.constant 1 : index
    %c0_300 = arith.constant 0 : index
    %c0_301 = arith.constant 0 : index
    %412 = vector.load %arg10[%c1_299, %c0_300, %c0_301] : memref<2x32x128xbf16, #tpu.memory_space<vmem>>, vector<1x32x128xbf16>
    %413 = vector.shape_cast %412 : vector<1x32x128xbf16> to vector<32x128xbf16>
    %cst_302 = arith.constant dense<0.000000e+00> : vector<16x128xf32>
    %414 = tpu.matmul %411, %413, %cst_302 {dimension_numbers = #tpu.dot_dimension_numbers<[1], [0], [0], [1], [0, 0, 1, 1], [], []>} : vector<16x32xbf16>, vector<32x128xbf16>, vector<16x128xf32> -> vector<16x128xf32>
    %415 = vector.extract_strided_slice %371 {offsets = [2, 0], sizes = [1, 128], strides = [1, 1]} : vector<8x128xf32> to vector<1x128xf32>
    %416 = vector.extract_strided_slice %371 {offsets = [3, 0], sizes = [1, 128], strides = [1, 1]} : vector<8x128xf32> to vector<1x128xf32>
    %cst_303 = arith.constant dense<0.000000e+00> : vector<128xf32>
    %417 = vector.multi_reduction <add>, %414, %cst_303 [0] : vector<16x128xf32> to vector<128xf32>
    %418 = vector.shape_cast %417 : vector<128xf32> to vector<1x128xf32>
    %419 = arith.mulf %414, %414 : vector<16x128xf32>
    %cst_304 = arith.constant dense<0.000000e+00> : vector<128xf32>
    %420 = vector.multi_reduction <add>, %419, %cst_304 [0] : vector<16x128xf32> to vector<128xf32>
    %421 = vector.shape_cast %420 : vector<128xf32> to vector<1x128xf32>
    %cst_305 = arith.constant 6.250000e-02 : f32
    %422 = vector.broadcast %cst_305 : f32 to vector<1x128xf32>
    %423 = arith.mulf %418, %422 : vector<1x128xf32>
    %cst_306 = arith.constant 6.250000e-02 : f32
    %424 = vector.broadcast %cst_306 : f32 to vector<1x128xf32>
    %425 = arith.mulf %421, %424 : vector<1x128xf32>
    %426 = arith.mulf %423, %423 : vector<1x128xf32>
    %427 = arith.subf %425, %426 : vector<1x128xf32>
    %cst_307 = arith.constant 0.000000e+00 : f32
    %428 = vector.broadcast %cst_307 : f32 to vector<1x128xf32>
    %429 = arith.maximumf %427, %428 : vector<1x128xf32>
    %cst_308 = arith.constant 9.99999974E-6 : f32
    %430 = vector.broadcast %cst_308 : f32 to vector<1x128xf32>
    %431 = arith.addf %429, %430 : vector<1x128xf32>
    %432 = math.rsqrt %431 : vector<1x128xf32>
    %433 = arith.mulf %415, %432 : vector<1x128xf32>
    %434 = arith.mulf %423, %433 : vector<1x128xf32>
    %435 = arith.subf %416, %434 : vector<1x128xf32>
    %436 = vector.broadcast %433 : vector<1x128xf32> to vector<16x128xf32>
    %437 = arith.mulf %414, %436 : vector<16x128xf32>
    %438 = vector.broadcast %435 : vector<1x128xf32> to vector<16x128xf32>
    %439 = arith.addf %437, %438 : vector<16x128xf32>
    %440 = arith.addf %439, %409 : vector<16x128xf32>
    %cst_309 = arith.constant 0.000000e+00 : f32
    %441 = vector.broadcast %cst_309 : f32 to vector<16x128xf32>
    %442 = arith.maximumf %440, %441 : vector<16x128xf32>
    %c2_i32_310 = arith.constant 2 : i32
    %c0_i32_311 = arith.constant 0 : i32
    %c0_i32_312 = arith.constant 0 : i32
    %c0_i32_313 = arith.constant 0 : i32
    %c0_i32_314 = arith.constant 0 : i32
    %c0_i32_315 = arith.constant 0 : i32
    %443 = tpu.memref_slice %arg2[%c2_i32_310, %c0_i32_314, %c0_i32_315] : memref<14x32x128xbf16, #tpu.memory_space<any>> -> memref<1x32x128xbf16, #tpu.memory_space<any>>
    %444 = tpu.memref_squeeze %443 : memref<1x32x128xbf16, #tpu.memory_space<any>> -> memref<32x128xbf16, #tpu.memory_space<any>>
    %c0_i32_316 = arith.constant 0 : i32
    %c0_i32_317 = arith.constant 0 : i32
    %445 = tpu.memref_slice %arg8[%c0_i32_311, %c0_i32_316, %c0_i32_317] : memref<2x32x128xbf16, #tpu.memory_space<vmem>> -> memref<1x32x128xbf16, #tpu.memory_space<vmem>>
    %446 = tpu.memref_squeeze %445 : memref<1x32x128xbf16, #tpu.memory_space<vmem>> -> memref<32x128xbf16, #tpu.memory_space<vmem>>
    %447 = tpu.memref_slice %arg12[%c0_i32_312, %c0_i32_313] : memref<2x3x!tpu.dma_semaphore, #tpu.memory_space<semaphore_mem>> -> memref<1x1x!tpu.dma_semaphore, #tpu.memory_space<semaphore_mem>>
    %448 = tpu.memref_squeeze %447 : memref<1x1x!tpu.dma_semaphore, #tpu.memory_space<semaphore_mem>> -> memref<!tpu.dma_semaphore, #tpu.memory_space<semaphore_mem>>
    tpu.wait_dma2 semaphore(%448 : memref<!tpu.dma_semaphore, #tpu.memory_space<semaphore_mem>>) src(%444 : memref<32x128xbf16, #tpu.memory_space<any>>) dst(%446 : memref<32x128xbf16, #tpu.memory_space<vmem>>)
    %c4_i32_318 = arith.constant 4 : i32
    %c0_i32_319 = arith.constant 0 : i32
    %c0_i32_320 = arith.constant 0 : i32
    %c1_i32_321 = arith.constant 1 : i32
    %c0_i32_322 = arith.constant 0 : i32
    %c0_i32_323 = arith.constant 0 : i32
    %449 = tpu.memref_slice %arg4[%c4_i32_318, %c0_i32_322, %c0_i32_323] : memref<16x32x128xbf16, #tpu.memory_space<any>> -> memref<1x32x128xbf16, #tpu.memory_space<any>>
    %450 = tpu.memref_squeeze %449 : memref<1x32x128xbf16, #tpu.memory_space<any>> -> memref<32x128xbf16, #tpu.memory_space<any>>
    %c0_i32_324 = arith.constant 0 : i32
    %c0_i32_325 = arith.constant 0 : i32
    %451 = tpu.memref_slice %arg10[%c0_i32_319, %c0_i32_324, %c0_i32_325] : memref<2x32x128xbf16, #tpu.memory_space<vmem>> -> memref<1x32x128xbf16, #tpu.memory_space<vmem>>
    %452 = tpu.memref_squeeze %451 : memref<1x32x128xbf16, #tpu.memory_space<vmem>> -> memref<32x128xbf16, #tpu.memory_space<vmem>>
    %453 = tpu.memref_slice %arg12[%c0_i32_320, %c1_i32_321] : memref<2x3x!tpu.dma_semaphore, #tpu.memory_space<semaphore_mem>> -> memref<1x1x!tpu.dma_semaphore, #tpu.memory_space<semaphore_mem>>
    %454 = tpu.memref_squeeze %453 : memref<1x1x!tpu.dma_semaphore, #tpu.memory_space<semaphore_mem>> -> memref<!tpu.dma_semaphore, #tpu.memory_space<semaphore_mem>>
    tpu.wait_dma2 semaphore(%454 : memref<!tpu.dma_semaphore, #tpu.memory_space<semaphore_mem>>) src(%450 : memref<32x128xbf16, #tpu.memory_space<any>>) dst(%452 : memref<32x128xbf16, #tpu.memory_space<vmem>>)
    %c4_i32_326 = arith.constant 4 : i32
    %c0_i32_327 = arith.constant 0 : i32
    %c0_i32_328 = arith.constant 0 : i32
    %c2_i32_329 = arith.constant 2 : i32
    %c0_i32_330 = arith.constant 0 : i32
    %c0_i32_331 = arith.constant 0 : i32
    %455 = tpu.memref_slice %arg5[%c4_i32_326, %c0_i32_330, %c0_i32_331] : memref<16x8x128xf32, #tpu.memory_space<any>> -> memref<1x8x128xf32, #tpu.memory_space<any>>
    %456 = tpu.memref_squeeze %455 : memref<1x8x128xf32, #tpu.memory_space<any>> -> memref<8x128xf32, #tpu.memory_space<any>>
    %c0_i32_332 = arith.constant 0 : i32
    %c0_i32_333 = arith.constant 0 : i32
    %457 = tpu.memref_slice %arg11[%c0_i32_327, %c0_i32_332, %c0_i32_333] : memref<2x8x128xf32, #tpu.memory_space<vmem>> -> memref<1x8x128xf32, #tpu.memory_space<vmem>>
    %458 = tpu.memref_squeeze %457 : memref<1x8x128xf32, #tpu.memory_space<vmem>> -> memref<8x128xf32, #tpu.memory_space<vmem>>
    %459 = tpu.memref_slice %arg12[%c0_i32_328, %c2_i32_329] : memref<2x3x!tpu.dma_semaphore, #tpu.memory_space<semaphore_mem>> -> memref<1x1x!tpu.dma_semaphore, #tpu.memory_space<semaphore_mem>>
    %460 = tpu.memref_squeeze %459 : memref<1x1x!tpu.dma_semaphore, #tpu.memory_space<semaphore_mem>> -> memref<!tpu.dma_semaphore, #tpu.memory_space<semaphore_mem>>
    tpu.wait_dma2 semaphore(%460 : memref<!tpu.dma_semaphore, #tpu.memory_space<semaphore_mem>>) src(%456 : memref<8x128xf32, #tpu.memory_space<any>>) dst(%458 : memref<8x128xf32, #tpu.memory_space<vmem>>)
    %c3_i32_334 = arith.constant 3 : i32
    %c1_i32_335 = arith.constant 1 : i32
    %c1_i32_336 = arith.constant 1 : i32
    %c0_i32_337 = arith.constant 0 : i32
    %c0_i32_338 = arith.constant 0 : i32
    %c0_i32_339 = arith.constant 0 : i32
    %461 = tpu.memref_slice %arg2[%c3_i32_334, %c0_i32_338, %c0_i32_339] : memref<14x32x128xbf16, #tpu.memory_space<any>> -> memref<1x32x128xbf16, #tpu.memory_space<any>>
    %462 = tpu.memref_squeeze %461 : memref<1x32x128xbf16, #tpu.memory_space<any>> -> memref<32x128xbf16, #tpu.memory_space<any>>
    %c0_i32_340 = arith.constant 0 : i32
    %c0_i32_341 = arith.constant 0 : i32
    %463 = tpu.memref_slice %arg8[%c1_i32_335, %c0_i32_340, %c0_i32_341] : memref<2x32x128xbf16, #tpu.memory_space<vmem>> -> memref<1x32x128xbf16, #tpu.memory_space<vmem>>
    %464 = tpu.memref_squeeze %463 : memref<1x32x128xbf16, #tpu.memory_space<vmem>> -> memref<32x128xbf16, #tpu.memory_space<vmem>>
    %465 = tpu.memref_slice %arg12[%c1_i32_336, %c0_i32_337] : memref<2x3x!tpu.dma_semaphore, #tpu.memory_space<semaphore_mem>> -> memref<1x1x!tpu.dma_semaphore, #tpu.memory_space<semaphore_mem>>
    %466 = tpu.memref_squeeze %465 : memref<1x1x!tpu.dma_semaphore, #tpu.memory_space<semaphore_mem>> -> memref<!tpu.dma_semaphore, #tpu.memory_space<semaphore_mem>>
    tpu.enqueue_dma source(%462 : memref<32x128xbf16, #tpu.memory_space<any>>) target(%464 : memref<32x128xbf16, #tpu.memory_space<vmem>>) target_semaphore(%466 : memref<!tpu.dma_semaphore, #tpu.memory_space<semaphore_mem>>)
    %c5_i32 = arith.constant 5 : i32
    %c1_i32_342 = arith.constant 1 : i32
    %c1_i32_343 = arith.constant 1 : i32
    %c1_i32_344 = arith.constant 1 : i32
    %c0_i32_345 = arith.constant 0 : i32
    %c0_i32_346 = arith.constant 0 : i32
    %467 = tpu.memref_slice %arg4[%c5_i32, %c0_i32_345, %c0_i32_346] : memref<16x32x128xbf16, #tpu.memory_space<any>> -> memref<1x32x128xbf16, #tpu.memory_space<any>>
    %468 = tpu.memref_squeeze %467 : memref<1x32x128xbf16, #tpu.memory_space<any>> -> memref<32x128xbf16, #tpu.memory_space<any>>
    %c0_i32_347 = arith.constant 0 : i32
    %c0_i32_348 = arith.constant 0 : i32
    %469 = tpu.memref_slice %arg10[%c1_i32_342, %c0_i32_347, %c0_i32_348] : memref<2x32x128xbf16, #tpu.memory_space<vmem>> -> memref<1x32x128xbf16, #tpu.memory_space<vmem>>
    %470 = tpu.memref_squeeze %469 : memref<1x32x128xbf16, #tpu.memory_space<vmem>> -> memref<32x128xbf16, #tpu.memory_space<vmem>>
    %471 = tpu.memref_slice %arg12[%c1_i32_343, %c1_i32_344] : memref<2x3x!tpu.dma_semaphore, #tpu.memory_space<semaphore_mem>> -> memref<1x1x!tpu.dma_semaphore, #tpu.memory_space<semaphore_mem>>
    %472 = tpu.memref_squeeze %471 : memref<1x1x!tpu.dma_semaphore, #tpu.memory_space<semaphore_mem>> -> memref<!tpu.dma_semaphore, #tpu.memory_space<semaphore_mem>>
    tpu.enqueue_dma source(%468 : memref<32x128xbf16, #tpu.memory_space<any>>) target(%470 : memref<32x128xbf16, #tpu.memory_space<vmem>>) target_semaphore(%472 : memref<!tpu.dma_semaphore, #tpu.memory_space<semaphore_mem>>)
    %c5_i32_349 = arith.constant 5 : i32
    %c1_i32_350 = arith.constant 1 : i32
    %c1_i32_351 = arith.constant 1 : i32
    %c2_i32_352 = arith.constant 2 : i32
    %c0_i32_353 = arith.constant 0 : i32
    %c0_i32_354 = arith.constant 0 : i32
    %473 = tpu.memref_slice %arg5[%c5_i32_349, %c0_i32_353, %c0_i32_354] : memref<16x8x128xf32, #tpu.memory_space<any>> -> memref<1x8x128xf32, #tpu.memory_space<any>>
    %474 = tpu.memref_squeeze %473 : memref<1x8x128xf32, #tpu.memory_space<any>> -> memref<8x128xf32, #tpu.memory_space<any>>
    %c0_i32_355 = arith.constant 0 : i32
    %c0_i32_356 = arith.constant 0 : i32
    %475 = tpu.memref_slice %arg11[%c1_i32_350, %c0_i32_355, %c0_i32_356] : memref<2x8x128xf32, #tpu.memory_space<vmem>> -> memref<1x8x128xf32, #tpu.memory_space<vmem>>
    %476 = tpu.memref_squeeze %475 : memref<1x8x128xf32, #tpu.memory_space<vmem>> -> memref<8x128xf32, #tpu.memory_space<vmem>>
    %477 = tpu.memref_slice %arg12[%c1_i32_351, %c2_i32_352] : memref<2x3x!tpu.dma_semaphore, #tpu.memory_space<semaphore_mem>> -> memref<1x1x!tpu.dma_semaphore, #tpu.memory_space<semaphore_mem>>
    %478 = tpu.memref_squeeze %477 : memref<1x1x!tpu.dma_semaphore, #tpu.memory_space<semaphore_mem>> -> memref<!tpu.dma_semaphore, #tpu.memory_space<semaphore_mem>>
    tpu.enqueue_dma source(%474 : memref<8x128xf32, #tpu.memory_space<any>>) target(%476 : memref<8x128xf32, #tpu.memory_space<vmem>>) target_semaphore(%478 : memref<!tpu.dma_semaphore, #tpu.memory_space<semaphore_mem>>)
    %c0_357 = arith.constant 0 : index
    %c0_358 = arith.constant 0 : index
    %c0_359 = arith.constant 0 : index
    %479 = vector.load %arg11[%c0_357, %c0_358, %c0_359] : memref<2x8x128xf32, #tpu.memory_space<vmem>>, vector<1x8x128xf32>
    %480 = vector.shape_cast %479 : vector<1x8x128xf32> to vector<8x128xf32>
    %481 = vector.extract_strided_slice %442 {offsets = [0, 0], sizes = [16, 32], strides = [1, 1]} : vector<16x128xf32> to vector<16x32xf32>
    %482 = arith.truncf %481 : vector<16x32xf32> to vector<16x32xbf16>
    %c0_360 = arith.constant 0 : index
    %c0_361 = arith.constant 0 : index
    %c0_362 = arith.constant 0 : index
    %483 = vector.load %arg8[%c0_360, %c0_361, %c0_362] : memref<2x32x128xbf16, #tpu.memory_space<vmem>>, vector<1x32x128xbf16>
    %484 = vector.shape_cast %483 : vector<1x32x128xbf16> to vector<32x128xbf16>
    %cst_363 = arith.constant dense<0.000000e+00> : vector<16x128xf32>
    %485 = tpu.matmul %482, %484, %cst_363 {dimension_numbers = #tpu.dot_dimension_numbers<[1], [0], [0], [1], [0, 0, 1, 1], [], []>} : vector<16x32xbf16>, vector<32x128xbf16>, vector<16x128xf32> -> vector<16x128xf32>
    %486 = vector.extract_strided_slice %480 {offsets = [0, 0], sizes = [1, 128], strides = [1, 1]} : vector<8x128xf32> to vector<1x128xf32>
    %487 = vector.extract_strided_slice %480 {offsets = [1, 0], sizes = [1, 128], strides = [1, 1]} : vector<8x128xf32> to vector<1x128xf32>
    %cst_364 = arith.constant dense<0.000000e+00> : vector<128xf32>
    %488 = vector.multi_reduction <add>, %485, %cst_364 [0] : vector<16x128xf32> to vector<128xf32>
    %489 = vector.shape_cast %488 : vector<128xf32> to vector<1x128xf32>
    %490 = arith.mulf %485, %485 : vector<16x128xf32>
    %cst_365 = arith.constant dense<0.000000e+00> : vector<128xf32>
    %491 = vector.multi_reduction <add>, %490, %cst_365 [0] : vector<16x128xf32> to vector<128xf32>
    %492 = vector.shape_cast %491 : vector<128xf32> to vector<1x128xf32>
    %cst_366 = arith.constant 6.250000e-02 : f32
    %493 = vector.broadcast %cst_366 : f32 to vector<1x128xf32>
    %494 = arith.mulf %489, %493 : vector<1x128xf32>
    %cst_367 = arith.constant 6.250000e-02 : f32
    %495 = vector.broadcast %cst_367 : f32 to vector<1x128xf32>
    %496 = arith.mulf %492, %495 : vector<1x128xf32>
    %497 = arith.mulf %494, %494 : vector<1x128xf32>
    %498 = arith.subf %496, %497 : vector<1x128xf32>
    %cst_368 = arith.constant 0.000000e+00 : f32
    %499 = vector.broadcast %cst_368 : f32 to vector<1x128xf32>
    %500 = arith.maximumf %498, %499 : vector<1x128xf32>
    %cst_369 = arith.constant 9.99999974E-6 : f32
    %501 = vector.broadcast %cst_369 : f32 to vector<1x128xf32>
    %502 = arith.addf %500, %501 : vector<1x128xf32>
    %503 = math.rsqrt %502 : vector<1x128xf32>
    %504 = arith.mulf %486, %503 : vector<1x128xf32>
    %505 = arith.mulf %494, %504 : vector<1x128xf32>
    %506 = arith.subf %487, %505 : vector<1x128xf32>
    %507 = vector.broadcast %504 : vector<1x128xf32> to vector<16x128xf32>
    %508 = arith.mulf %485, %507 : vector<16x128xf32>
    %509 = vector.broadcast %506 : vector<1x128xf32> to vector<16x128xf32>
    %510 = arith.addf %508, %509 : vector<16x128xf32>
    %cst_370 = arith.constant 0.000000e+00 : f32
    %511 = vector.broadcast %cst_370 : f32 to vector<16x128xf32>
    %512 = arith.maximumf %510, %511 : vector<16x128xf32>
    %513 = vector.extract_strided_slice %512 {offsets = [0, 0], sizes = [16, 32], strides = [1, 1]} : vector<16x128xf32> to vector<16x32xf32>
    %514 = arith.truncf %513 : vector<16x32xf32> to vector<16x32xbf16>
    %c0_371 = arith.constant 0 : index
    %c0_372 = arith.constant 0 : index
    %c0_373 = arith.constant 0 : index
    %515 = vector.load %arg10[%c0_371, %c0_372, %c0_373] : memref<2x32x128xbf16, #tpu.memory_space<vmem>>, vector<1x32x128xbf16>
    %516 = vector.shape_cast %515 : vector<1x32x128xbf16> to vector<32x128xbf16>
    %cst_374 = arith.constant dense<0.000000e+00> : vector<16x128xf32>
    %517 = tpu.matmul %514, %516, %cst_374 {dimension_numbers = #tpu.dot_dimension_numbers<[1], [0], [0], [1], [0, 0, 1, 1], [], []>} : vector<16x32xbf16>, vector<32x128xbf16>, vector<16x128xf32> -> vector<16x128xf32>
    %518 = vector.extract_strided_slice %480 {offsets = [2, 0], sizes = [1, 128], strides = [1, 1]} : vector<8x128xf32> to vector<1x128xf32>
    %519 = vector.extract_strided_slice %480 {offsets = [3, 0], sizes = [1, 128], strides = [1, 1]} : vector<8x128xf32> to vector<1x128xf32>
    %cst_375 = arith.constant dense<0.000000e+00> : vector<128xf32>
    %520 = vector.multi_reduction <add>, %517, %cst_375 [0] : vector<16x128xf32> to vector<128xf32>
    %521 = vector.shape_cast %520 : vector<128xf32> to vector<1x128xf32>
    %522 = arith.mulf %517, %517 : vector<16x128xf32>
    %cst_376 = arith.constant dense<0.000000e+00> : vector<128xf32>
    %523 = vector.multi_reduction <add>, %522, %cst_376 [0] : vector<16x128xf32> to vector<128xf32>
    %524 = vector.shape_cast %523 : vector<128xf32> to vector<1x128xf32>
    %cst_377 = arith.constant 6.250000e-02 : f32
    %525 = vector.broadcast %cst_377 : f32 to vector<1x128xf32>
    %526 = arith.mulf %521, %525 : vector<1x128xf32>
    %cst_378 = arith.constant 6.250000e-02 : f32
    %527 = vector.broadcast %cst_378 : f32 to vector<1x128xf32>
    %528 = arith.mulf %524, %527 : vector<1x128xf32>
    %529 = arith.mulf %526, %526 : vector<1x128xf32>
    %530 = arith.subf %528, %529 : vector<1x128xf32>
    %cst_379 = arith.constant 0.000000e+00 : f32
    %531 = vector.broadcast %cst_379 : f32 to vector<1x128xf32>
    %532 = arith.maximumf %530, %531 : vector<1x128xf32>
    %cst_380 = arith.constant 9.99999974E-6 : f32
    %533 = vector.broadcast %cst_380 : f32 to vector<1x128xf32>
    %534 = arith.addf %532, %533 : vector<1x128xf32>
    %535 = math.rsqrt %534 : vector<1x128xf32>
    %536 = arith.mulf %518, %535 : vector<1x128xf32>
    %537 = arith.mulf %526, %536 : vector<1x128xf32>
    %538 = arith.subf %519, %537 : vector<1x128xf32>
    %539 = vector.broadcast %536 : vector<1x128xf32> to vector<16x128xf32>
    %540 = arith.mulf %517, %539 : vector<16x128xf32>
    %541 = vector.broadcast %538 : vector<1x128xf32> to vector<16x128xf32>
    %542 = arith.addf %540, %541 : vector<16x128xf32>
    %543 = arith.addf %542, %442 : vector<16x128xf32>
    %cst_381 = arith.constant 0.000000e+00 : f32
    %544 = vector.broadcast %cst_381 : f32 to vector<16x128xf32>
    %545 = arith.maximumf %543, %544 : vector<16x128xf32>
    %c3_i32_382 = arith.constant 3 : i32
    %c1_i32_383 = arith.constant 1 : i32
    %c1_i32_384 = arith.constant 1 : i32
    %c0_i32_385 = arith.constant 0 : i32
    %c0_i32_386 = arith.constant 0 : i32
    %c0_i32_387 = arith.constant 0 : i32
    %546 = tpu.memref_slice %arg2[%c3_i32_382, %c0_i32_386, %c0_i32_387] : memref<14x32x128xbf16, #tpu.memory_space<any>> -> memref<1x32x128xbf16, #tpu.memory_space<any>>
    %547 = tpu.memref_squeeze %546 : memref<1x32x128xbf16, #tpu.memory_space<any>> -> memref<32x128xbf16, #tpu.memory_space<any>>
    %c0_i32_388 = arith.constant 0 : i32
    %c0_i32_389 = arith.constant 0 : i32
    %548 = tpu.memref_slice %arg8[%c1_i32_383, %c0_i32_388, %c0_i32_389] : memref<2x32x128xbf16, #tpu.memory_space<vmem>> -> memref<1x32x128xbf16, #tpu.memory_space<vmem>>
    %549 = tpu.memref_squeeze %548 : memref<1x32x128xbf16, #tpu.memory_space<vmem>> -> memref<32x128xbf16, #tpu.memory_space<vmem>>
    %550 = tpu.memref_slice %arg12[%c1_i32_384, %c0_i32_385] : memref<2x3x!tpu.dma_semaphore, #tpu.memory_space<semaphore_mem>> -> memref<1x1x!tpu.dma_semaphore, #tpu.memory_space<semaphore_mem>>
    %551 = tpu.memref_squeeze %550 : memref<1x1x!tpu.dma_semaphore, #tpu.memory_space<semaphore_mem>> -> memref<!tpu.dma_semaphore, #tpu.memory_space<semaphore_mem>>
    tpu.wait_dma2 semaphore(%551 : memref<!tpu.dma_semaphore, #tpu.memory_space<semaphore_mem>>) src(%547 : memref<32x128xbf16, #tpu.memory_space<any>>) dst(%549 : memref<32x128xbf16, #tpu.memory_space<vmem>>)
    %c5_i32_390 = arith.constant 5 : i32
    %c1_i32_391 = arith.constant 1 : i32
    %c1_i32_392 = arith.constant 1 : i32
    %c1_i32_393 = arith.constant 1 : i32
    %c0_i32_394 = arith.constant 0 : i32
    %c0_i32_395 = arith.constant 0 : i32
    %552 = tpu.memref_slice %arg4[%c5_i32_390, %c0_i32_394, %c0_i32_395] : memref<16x32x128xbf16, #tpu.memory_space<any>> -> memref<1x32x128xbf16, #tpu.memory_space<any>>
    %553 = tpu.memref_squeeze %552 : memref<1x32x128xbf16, #tpu.memory_space<any>> -> memref<32x128xbf16, #tpu.memory_space<any>>
    %c0_i32_396 = arith.constant 0 : i32
    %c0_i32_397 = arith.constant 0 : i32
    %554 = tpu.memref_slice %arg10[%c1_i32_391, %c0_i32_396, %c0_i32_397] : memref<2x32x128xbf16, #tpu.memory_space<vmem>> -> memref<1x32x128xbf16, #tpu.memory_space<vmem>>
    %555 = tpu.memref_squeeze %554 : memref<1x32x128xbf16, #tpu.memory_space<vmem>> -> memref<32x128xbf16, #tpu.memory_space<vmem>>
    %556 = tpu.memref_slice %arg12[%c1_i32_392, %c1_i32_393] : memref<2x3x!tpu.dma_semaphore, #tpu.memory_space<semaphore_mem>> -> memref<1x1x!tpu.dma_semaphore, #tpu.memory_space<semaphore_mem>>
    %557 = tpu.memref_squeeze %556 : memref<1x1x!tpu.dma_semaphore, #tpu.memory_space<semaphore_mem>> -> memref<!tpu.dma_semaphore, #tpu.memory_space<semaphore_mem>>
    tpu.wait_dma2 semaphore(%557 : memref<!tpu.dma_semaphore, #tpu.memory_space<semaphore_mem>>) src(%553 : memref<32x128xbf16, #tpu.memory_space<any>>) dst(%555 : memref<32x128xbf16, #tpu.memory_space<vmem>>)
    %c5_i32_398 = arith.constant 5 : i32
    %c1_i32_399 = arith.constant 1 : i32
    %c1_i32_400 = arith.constant 1 : i32
    %c2_i32_401 = arith.constant 2 : i32
    %c0_i32_402 = arith.constant 0 : i32
    %c0_i32_403 = arith.constant 0 : i32
    %558 = tpu.memref_slice %arg5[%c5_i32_398, %c0_i32_402, %c0_i32_403] : memref<16x8x128xf32, #tpu.memory_space<any>> -> memref<1x8x128xf32, #tpu.memory_space<any>>
    %559 = tpu.memref_squeeze %558 : memref<1x8x128xf32, #tpu.memory_space<any>> -> memref<8x128xf32, #tpu.memory_space<any>>
    %c0_i32_404 = arith.constant 0 : i32
    %c0_i32_405 = arith.constant 0 : i32
    %560 = tpu.memref_slice %arg11[%c1_i32_399, %c0_i32_404, %c0_i32_405] : memref<2x8x128xf32, #tpu.memory_space<vmem>> -> memref<1x8x128xf32, #tpu.memory_space<vmem>>
    %561 = tpu.memref_squeeze %560 : memref<1x8x128xf32, #tpu.memory_space<vmem>> -> memref<8x128xf32, #tpu.memory_space<vmem>>
    %562 = tpu.memref_slice %arg12[%c1_i32_400, %c2_i32_401] : memref<2x3x!tpu.dma_semaphore, #tpu.memory_space<semaphore_mem>> -> memref<1x1x!tpu.dma_semaphore, #tpu.memory_space<semaphore_mem>>
    %563 = tpu.memref_squeeze %562 : memref<1x1x!tpu.dma_semaphore, #tpu.memory_space<semaphore_mem>> -> memref<!tpu.dma_semaphore, #tpu.memory_space<semaphore_mem>>
    tpu.wait_dma2 semaphore(%563 : memref<!tpu.dma_semaphore, #tpu.memory_space<semaphore_mem>>) src(%559 : memref<8x128xf32, #tpu.memory_space<any>>) dst(%561 : memref<8x128xf32, #tpu.memory_space<vmem>>)
    %c4_i32_406 = arith.constant 4 : i32
    %c0_i32_407 = arith.constant 0 : i32
    %c0_i32_408 = arith.constant 0 : i32
    %c0_i32_409 = arith.constant 0 : i32
    %c0_i32_410 = arith.constant 0 : i32
    %c0_i32_411 = arith.constant 0 : i32
    %564 = tpu.memref_slice %arg2[%c4_i32_406, %c0_i32_410, %c0_i32_411] : memref<14x32x128xbf16, #tpu.memory_space<any>> -> memref<1x32x128xbf16, #tpu.memory_space<any>>
    %565 = tpu.memref_squeeze %564 : memref<1x32x128xbf16, #tpu.memory_space<any>> -> memref<32x128xbf16, #tpu.memory_space<any>>
    %c0_i32_412 = arith.constant 0 : i32
    %c0_i32_413 = arith.constant 0 : i32
    %566 = tpu.memref_slice %arg8[%c0_i32_407, %c0_i32_412, %c0_i32_413] : memref<2x32x128xbf16, #tpu.memory_space<vmem>> -> memref<1x32x128xbf16, #tpu.memory_space<vmem>>
    %567 = tpu.memref_squeeze %566 : memref<1x32x128xbf16, #tpu.memory_space<vmem>> -> memref<32x128xbf16, #tpu.memory_space<vmem>>
    %568 = tpu.memref_slice %arg12[%c0_i32_408, %c0_i32_409] : memref<2x3x!tpu.dma_semaphore, #tpu.memory_space<semaphore_mem>> -> memref<1x1x!tpu.dma_semaphore, #tpu.memory_space<semaphore_mem>>
    %569 = tpu.memref_squeeze %568 : memref<1x1x!tpu.dma_semaphore, #tpu.memory_space<semaphore_mem>> -> memref<!tpu.dma_semaphore, #tpu.memory_space<semaphore_mem>>
    tpu.enqueue_dma source(%565 : memref<32x128xbf16, #tpu.memory_space<any>>) target(%567 : memref<32x128xbf16, #tpu.memory_space<vmem>>) target_semaphore(%569 : memref<!tpu.dma_semaphore, #tpu.memory_space<semaphore_mem>>)
    %c6_i32 = arith.constant 6 : i32
    %c0_i32_414 = arith.constant 0 : i32
    %c0_i32_415 = arith.constant 0 : i32
    %c1_i32_416 = arith.constant 1 : i32
    %c0_i32_417 = arith.constant 0 : i32
    %c0_i32_418 = arith.constant 0 : i32
    %570 = tpu.memref_slice %arg4[%c6_i32, %c0_i32_417, %c0_i32_418] : memref<16x32x128xbf16, #tpu.memory_space<any>> -> memref<1x32x128xbf16, #tpu.memory_space<any>>
    %571 = tpu.memref_squeeze %570 : memref<1x32x128xbf16, #tpu.memory_space<any>> -> memref<32x128xbf16, #tpu.memory_space<any>>
    %c0_i32_419 = arith.constant 0 : i32
    %c0_i32_420 = arith.constant 0 : i32
    %572 = tpu.memref_slice %arg10[%c0_i32_414, %c0_i32_419, %c0_i32_420] : memref<2x32x128xbf16, #tpu.memory_space<vmem>> -> memref<1x32x128xbf16, #tpu.memory_space<vmem>>
    %573 = tpu.memref_squeeze %572 : memref<1x32x128xbf16, #tpu.memory_space<vmem>> -> memref<32x128xbf16, #tpu.memory_space<vmem>>
    %574 = tpu.memref_slice %arg12[%c0_i32_415, %c1_i32_416] : memref<2x3x!tpu.dma_semaphore, #tpu.memory_space<semaphore_mem>> -> memref<1x1x!tpu.dma_semaphore, #tpu.memory_space<semaphore_mem>>
    %575 = tpu.memref_squeeze %574 : memref<1x1x!tpu.dma_semaphore, #tpu.memory_space<semaphore_mem>> -> memref<!tpu.dma_semaphore, #tpu.memory_space<semaphore_mem>>
    tpu.enqueue_dma source(%571 : memref<32x128xbf16, #tpu.memory_space<any>>) target(%573 : memref<32x128xbf16, #tpu.memory_space<vmem>>) target_semaphore(%575 : memref<!tpu.dma_semaphore, #tpu.memory_space<semaphore_mem>>)
    %c6_i32_421 = arith.constant 6 : i32
    %c0_i32_422 = arith.constant 0 : i32
    %c0_i32_423 = arith.constant 0 : i32
    %c2_i32_424 = arith.constant 2 : i32
    %c0_i32_425 = arith.constant 0 : i32
    %c0_i32_426 = arith.constant 0 : i32
    %576 = tpu.memref_slice %arg5[%c6_i32_421, %c0_i32_425, %c0_i32_426] : memref<16x8x128xf32, #tpu.memory_space<any>> -> memref<1x8x128xf32, #tpu.memory_space<any>>
    %577 = tpu.memref_squeeze %576 : memref<1x8x128xf32, #tpu.memory_space<any>> -> memref<8x128xf32, #tpu.memory_space<any>>
    %c0_i32_427 = arith.constant 0 : i32
    %c0_i32_428 = arith.constant 0 : i32
    %578 = tpu.memref_slice %arg11[%c0_i32_422, %c0_i32_427, %c0_i32_428] : memref<2x8x128xf32, #tpu.memory_space<vmem>> -> memref<1x8x128xf32, #tpu.memory_space<vmem>>
    %579 = tpu.memref_squeeze %578 : memref<1x8x128xf32, #tpu.memory_space<vmem>> -> memref<8x128xf32, #tpu.memory_space<vmem>>
    %580 = tpu.memref_slice %arg12[%c0_i32_423, %c2_i32_424] : memref<2x3x!tpu.dma_semaphore, #tpu.memory_space<semaphore_mem>> -> memref<1x1x!tpu.dma_semaphore, #tpu.memory_space<semaphore_mem>>
    %581 = tpu.memref_squeeze %580 : memref<1x1x!tpu.dma_semaphore, #tpu.memory_space<semaphore_mem>> -> memref<!tpu.dma_semaphore, #tpu.memory_space<semaphore_mem>>
    tpu.enqueue_dma source(%577 : memref<8x128xf32, #tpu.memory_space<any>>) target(%579 : memref<8x128xf32, #tpu.memory_space<vmem>>) target_semaphore(%581 : memref<!tpu.dma_semaphore, #tpu.memory_space<semaphore_mem>>)
    %c1_429 = arith.constant 1 : index
    %c0_430 = arith.constant 0 : index
    %c0_431 = arith.constant 0 : index
    %582 = vector.load %arg11[%c1_429, %c0_430, %c0_431] : memref<2x8x128xf32, #tpu.memory_space<vmem>>, vector<1x8x128xf32>
    %583 = vector.shape_cast %582 : vector<1x8x128xf32> to vector<8x128xf32>
    %584 = vector.extract_strided_slice %545 {offsets = [0, 0], sizes = [16, 32], strides = [1, 1]} : vector<16x128xf32> to vector<16x32xf32>
    %585 = arith.truncf %584 : vector<16x32xf32> to vector<16x32xbf16>
    %c1_432 = arith.constant 1 : index
    %c0_433 = arith.constant 0 : index
    %c0_434 = arith.constant 0 : index
    %586 = vector.load %arg8[%c1_432, %c0_433, %c0_434] : memref<2x32x128xbf16, #tpu.memory_space<vmem>>, vector<1x32x128xbf16>
    %587 = vector.shape_cast %586 : vector<1x32x128xbf16> to vector<32x128xbf16>
    %cst_435 = arith.constant dense<0.000000e+00> : vector<16x128xf32>
    %588 = tpu.matmul %585, %587, %cst_435 {dimension_numbers = #tpu.dot_dimension_numbers<[1], [0], [0], [1], [0, 0, 1, 1], [], []>} : vector<16x32xbf16>, vector<32x128xbf16>, vector<16x128xf32> -> vector<16x128xf32>
    %589 = vector.extract_strided_slice %583 {offsets = [0, 0], sizes = [1, 128], strides = [1, 1]} : vector<8x128xf32> to vector<1x128xf32>
    %590 = vector.extract_strided_slice %583 {offsets = [1, 0], sizes = [1, 128], strides = [1, 1]} : vector<8x128xf32> to vector<1x128xf32>
    %cst_436 = arith.constant dense<0.000000e+00> : vector<128xf32>
    %591 = vector.multi_reduction <add>, %588, %cst_436 [0] : vector<16x128xf32> to vector<128xf32>
    %592 = vector.shape_cast %591 : vector<128xf32> to vector<1x128xf32>
    %593 = arith.mulf %588, %588 : vector<16x128xf32>
    %cst_437 = arith.constant dense<0.000000e+00> : vector<128xf32>
    %594 = vector.multi_reduction <add>, %593, %cst_437 [0] : vector<16x128xf32> to vector<128xf32>
    %595 = vector.shape_cast %594 : vector<128xf32> to vector<1x128xf32>
    %cst_438 = arith.constant 6.250000e-02 : f32
    %596 = vector.broadcast %cst_438 : f32 to vector<1x128xf32>
    %597 = arith.mulf %592, %596 : vector<1x128xf32>
    %cst_439 = arith.constant 6.250000e-02 : f32
    %598 = vector.broadcast %cst_439 : f32 to vector<1x128xf32>
    %599 = arith.mulf %595, %598 : vector<1x128xf32>
    %600 = arith.mulf %597, %597 : vector<1x128xf32>
    %601 = arith.subf %599, %600 : vector<1x128xf32>
    %cst_440 = arith.constant 0.000000e+00 : f32
    %602 = vector.broadcast %cst_440 : f32 to vector<1x128xf32>
    %603 = arith.maximumf %601, %602 : vector<1x128xf32>
    %cst_441 = arith.constant 9.99999974E-6 : f32
    %604 = vector.broadcast %cst_441 : f32 to vector<1x128xf32>
    %605 = arith.addf %603, %604 : vector<1x128xf32>
    %606 = math.rsqrt %605 : vector<1x128xf32>
    %607 = arith.mulf %589, %606 : vector<1x128xf32>
    %608 = arith.mulf %597, %607 : vector<1x128xf32>
    %609 = arith.subf %590, %608 : vector<1x128xf32>
    %610 = vector.broadcast %607 : vector<1x128xf32> to vector<16x128xf32>
    %611 = arith.mulf %588, %610 : vector<16x128xf32>
    %612 = vector.broadcast %609 : vector<1x128xf32> to vector<16x128xf32>
    %613 = arith.addf %611, %612 : vector<16x128xf32>
    %cst_442 = arith.constant 0.000000e+00 : f32
    %614 = vector.broadcast %cst_442 : f32 to vector<16x128xf32>
    %615 = arith.maximumf %613, %614 : vector<16x128xf32>
    %616 = vector.extract_strided_slice %615 {offsets = [0, 0], sizes = [16, 32], strides = [1, 1]} : vector<16x128xf32> to vector<16x32xf32>
    %617 = arith.truncf %616 : vector<16x32xf32> to vector<16x32xbf16>
    %c1_443 = arith.constant 1 : index
    %c0_444 = arith.constant 0 : index
    %c0_445 = arith.constant 0 : index
    %618 = vector.load %arg10[%c1_443, %c0_444, %c0_445] : memref<2x32x128xbf16, #tpu.memory_space<vmem>>, vector<1x32x128xbf16>
    %619 = vector.shape_cast %618 : vector<1x32x128xbf16> to vector<32x128xbf16>
    %cst_446 = arith.constant dense<0.000000e+00> : vector<16x128xf32>
    %620 = tpu.matmul %617, %619, %cst_446 {dimension_numbers = #tpu.dot_dimension_numbers<[1], [0], [0], [1], [0, 0, 1, 1], [], []>} : vector<16x32xbf16>, vector<32x128xbf16>, vector<16x128xf32> -> vector<16x128xf32>
    %621 = vector.extract_strided_slice %583 {offsets = [2, 0], sizes = [1, 128], strides = [1, 1]} : vector<8x128xf32> to vector<1x128xf32>
    %622 = vector.extract_strided_slice %583 {offsets = [3, 0], sizes = [1, 128], strides = [1, 1]} : vector<8x128xf32> to vector<1x128xf32>
    %cst_447 = arith.constant dense<0.000000e+00> : vector<128xf32>
    %623 = vector.multi_reduction <add>, %620, %cst_447 [0] : vector<16x128xf32> to vector<128xf32>
    %624 = vector.shape_cast %623 : vector<128xf32> to vector<1x128xf32>
    %625 = arith.mulf %620, %620 : vector<16x128xf32>
    %cst_448 = arith.constant dense<0.000000e+00> : vector<128xf32>
    %626 = vector.multi_reduction <add>, %625, %cst_448 [0] : vector<16x128xf32> to vector<128xf32>
    %627 = vector.shape_cast %626 : vector<128xf32> to vector<1x128xf32>
    %cst_449 = arith.constant 6.250000e-02 : f32
    %628 = vector.broadcast %cst_449 : f32 to vector<1x128xf32>
    %629 = arith.mulf %624, %628 : vector<1x128xf32>
    %cst_450 = arith.constant 6.250000e-02 : f32
    %630 = vector.broadcast %cst_450 : f32 to vector<1x128xf32>
    %631 = arith.mulf %627, %630 : vector<1x128xf32>
    %632 = arith.mulf %629, %629 : vector<1x128xf32>
    %633 = arith.subf %631, %632 : vector<1x128xf32>
    %cst_451 = arith.constant 0.000000e+00 : f32
    %634 = vector.broadcast %cst_451 : f32 to vector<1x128xf32>
    %635 = arith.maximumf %633, %634 : vector<1x128xf32>
    %cst_452 = arith.constant 9.99999974E-6 : f32
    %636 = vector.broadcast %cst_452 : f32 to vector<1x128xf32>
    %637 = arith.addf %635, %636 : vector<1x128xf32>
    %638 = math.rsqrt %637 : vector<1x128xf32>
    %639 = arith.mulf %621, %638 : vector<1x128xf32>
    %640 = arith.mulf %629, %639 : vector<1x128xf32>
    %641 = arith.subf %622, %640 : vector<1x128xf32>
    %642 = vector.broadcast %639 : vector<1x128xf32> to vector<16x128xf32>
    %643 = arith.mulf %620, %642 : vector<16x128xf32>
    %644 = vector.broadcast %641 : vector<1x128xf32> to vector<16x128xf32>
    %645 = arith.addf %643, %644 : vector<16x128xf32>
    %646 = arith.addf %645, %545 : vector<16x128xf32>
    %cst_453 = arith.constant 0.000000e+00 : f32
    %647 = vector.broadcast %cst_453 : f32 to vector<16x128xf32>
    %648 = arith.maximumf %646, %647 : vector<16x128xf32>
    %c4_i32_454 = arith.constant 4 : i32
    %c0_i32_455 = arith.constant 0 : i32
    %c0_i32_456 = arith.constant 0 : i32
    %c0_i32_457 = arith.constant 0 : i32
    %c0_i32_458 = arith.constant 0 : i32
    %c0_i32_459 = arith.constant 0 : i32
    %649 = tpu.memref_slice %arg2[%c4_i32_454, %c0_i32_458, %c0_i32_459] : memref<14x32x128xbf16, #tpu.memory_space<any>> -> memref<1x32x128xbf16, #tpu.memory_space<any>>
    %650 = tpu.memref_squeeze %649 : memref<1x32x128xbf16, #tpu.memory_space<any>> -> memref<32x128xbf16, #tpu.memory_space<any>>
    %c0_i32_460 = arith.constant 0 : i32
    %c0_i32_461 = arith.constant 0 : i32
    %651 = tpu.memref_slice %arg8[%c0_i32_455, %c0_i32_460, %c0_i32_461] : memref<2x32x128xbf16, #tpu.memory_space<vmem>> -> memref<1x32x128xbf16, #tpu.memory_space<vmem>>
    %652 = tpu.memref_squeeze %651 : memref<1x32x128xbf16, #tpu.memory_space<vmem>> -> memref<32x128xbf16, #tpu.memory_space<vmem>>
    %653 = tpu.memref_slice %arg12[%c0_i32_456, %c0_i32_457] : memref<2x3x!tpu.dma_semaphore, #tpu.memory_space<semaphore_mem>> -> memref<1x1x!tpu.dma_semaphore, #tpu.memory_space<semaphore_mem>>
    %654 = tpu.memref_squeeze %653 : memref<1x1x!tpu.dma_semaphore, #tpu.memory_space<semaphore_mem>> -> memref<!tpu.dma_semaphore, #tpu.memory_space<semaphore_mem>>
    tpu.wait_dma2 semaphore(%654 : memref<!tpu.dma_semaphore, #tpu.memory_space<semaphore_mem>>) src(%650 : memref<32x128xbf16, #tpu.memory_space<any>>) dst(%652 : memref<32x128xbf16, #tpu.memory_space<vmem>>)
    %c6_i32_462 = arith.constant 6 : i32
    %c0_i32_463 = arith.constant 0 : i32
    %c0_i32_464 = arith.constant 0 : i32
    %c1_i32_465 = arith.constant 1 : i32
    %c0_i32_466 = arith.constant 0 : i32
    %c0_i32_467 = arith.constant 0 : i32
    %655 = tpu.memref_slice %arg4[%c6_i32_462, %c0_i32_466, %c0_i32_467] : memref<16x32x128xbf16, #tpu.memory_space<any>> -> memref<1x32x128xbf16, #tpu.memory_space<any>>
    %656 = tpu.memref_squeeze %655 : memref<1x32x128xbf16, #tpu.memory_space<any>> -> memref<32x128xbf16, #tpu.memory_space<any>>
    %c0_i32_468 = arith.constant 0 : i32
    %c0_i32_469 = arith.constant 0 : i32
    %657 = tpu.memref_slice %arg10[%c0_i32_463, %c0_i32_468, %c0_i32_469] : memref<2x32x128xbf16, #tpu.memory_space<vmem>> -> memref<1x32x128xbf16, #tpu.memory_space<vmem>>
    %658 = tpu.memref_squeeze %657 : memref<1x32x128xbf16, #tpu.memory_space<vmem>> -> memref<32x128xbf16, #tpu.memory_space<vmem>>
    %659 = tpu.memref_slice %arg12[%c0_i32_464, %c1_i32_465] : memref<2x3x!tpu.dma_semaphore, #tpu.memory_space<semaphore_mem>> -> memref<1x1x!tpu.dma_semaphore, #tpu.memory_space<semaphore_mem>>
    %660 = tpu.memref_squeeze %659 : memref<1x1x!tpu.dma_semaphore, #tpu.memory_space<semaphore_mem>> -> memref<!tpu.dma_semaphore, #tpu.memory_space<semaphore_mem>>
    tpu.wait_dma2 semaphore(%660 : memref<!tpu.dma_semaphore, #tpu.memory_space<semaphore_mem>>) src(%656 : memref<32x128xbf16, #tpu.memory_space<any>>) dst(%658 : memref<32x128xbf16, #tpu.memory_space<vmem>>)
    %c6_i32_470 = arith.constant 6 : i32
    %c0_i32_471 = arith.constant 0 : i32
    %c0_i32_472 = arith.constant 0 : i32
    %c2_i32_473 = arith.constant 2 : i32
    %c0_i32_474 = arith.constant 0 : i32
    %c0_i32_475 = arith.constant 0 : i32
    %661 = tpu.memref_slice %arg5[%c6_i32_470, %c0_i32_474, %c0_i32_475] : memref<16x8x128xf32, #tpu.memory_space<any>> -> memref<1x8x128xf32, #tpu.memory_space<any>>
    %662 = tpu.memref_squeeze %661 : memref<1x8x128xf32, #tpu.memory_space<any>> -> memref<8x128xf32, #tpu.memory_space<any>>
    %c0_i32_476 = arith.constant 0 : i32
    %c0_i32_477 = arith.constant 0 : i32
    %663 = tpu.memref_slice %arg11[%c0_i32_471, %c0_i32_476, %c0_i32_477] : memref<2x8x128xf32, #tpu.memory_space<vmem>> -> memref<1x8x128xf32, #tpu.memory_space<vmem>>
    %664 = tpu.memref_squeeze %663 : memref<1x8x128xf32, #tpu.memory_space<vmem>> -> memref<8x128xf32, #tpu.memory_space<vmem>>
    %665 = tpu.memref_slice %arg12[%c0_i32_472, %c2_i32_473] : memref<2x3x!tpu.dma_semaphore, #tpu.memory_space<semaphore_mem>> -> memref<1x1x!tpu.dma_semaphore, #tpu.memory_space<semaphore_mem>>
    %666 = tpu.memref_squeeze %665 : memref<1x1x!tpu.dma_semaphore, #tpu.memory_space<semaphore_mem>> -> memref<!tpu.dma_semaphore, #tpu.memory_space<semaphore_mem>>
    tpu.wait_dma2 semaphore(%666 : memref<!tpu.dma_semaphore, #tpu.memory_space<semaphore_mem>>) src(%662 : memref<8x128xf32, #tpu.memory_space<any>>) dst(%664 : memref<8x128xf32, #tpu.memory_space<vmem>>)
    %c5_i32_478 = arith.constant 5 : i32
    %c1_i32_479 = arith.constant 1 : i32
    %c1_i32_480 = arith.constant 1 : i32
    %c0_i32_481 = arith.constant 0 : i32
    %c0_i32_482 = arith.constant 0 : i32
    %c0_i32_483 = arith.constant 0 : i32
    %667 = tpu.memref_slice %arg2[%c5_i32_478, %c0_i32_482, %c0_i32_483] : memref<14x32x128xbf16, #tpu.memory_space<any>> -> memref<1x32x128xbf16, #tpu.memory_space<any>>
    %668 = tpu.memref_squeeze %667 : memref<1x32x128xbf16, #tpu.memory_space<any>> -> memref<32x128xbf16, #tpu.memory_space<any>>
    %c0_i32_484 = arith.constant 0 : i32
    %c0_i32_485 = arith.constant 0 : i32
    %669 = tpu.memref_slice %arg8[%c1_i32_479, %c0_i32_484, %c0_i32_485] : memref<2x32x128xbf16, #tpu.memory_space<vmem>> -> memref<1x32x128xbf16, #tpu.memory_space<vmem>>
    %670 = tpu.memref_squeeze %669 : memref<1x32x128xbf16, #tpu.memory_space<vmem>> -> memref<32x128xbf16, #tpu.memory_space<vmem>>
    %671 = tpu.memref_slice %arg12[%c1_i32_480, %c0_i32_481] : memref<2x3x!tpu.dma_semaphore, #tpu.memory_space<semaphore_mem>> -> memref<1x1x!tpu.dma_semaphore, #tpu.memory_space<semaphore_mem>>
    %672 = tpu.memref_squeeze %671 : memref<1x1x!tpu.dma_semaphore, #tpu.memory_space<semaphore_mem>> -> memref<!tpu.dma_semaphore, #tpu.memory_space<semaphore_mem>>
    tpu.enqueue_dma source(%668 : memref<32x128xbf16, #tpu.memory_space<any>>) target(%670 : memref<32x128xbf16, #tpu.memory_space<vmem>>) target_semaphore(%672 : memref<!tpu.dma_semaphore, #tpu.memory_space<semaphore_mem>>)
    %c7_i32 = arith.constant 7 : i32
    %c1_i32_486 = arith.constant 1 : i32
    %c1_i32_487 = arith.constant 1 : i32
    %c1_i32_488 = arith.constant 1 : i32
    %c0_i32_489 = arith.constant 0 : i32
    %c0_i32_490 = arith.constant 0 : i32
    %673 = tpu.memref_slice %arg4[%c7_i32, %c0_i32_489, %c0_i32_490] : memref<16x32x128xbf16, #tpu.memory_space<any>> -> memref<1x32x128xbf16, #tpu.memory_space<any>>
    %674 = tpu.memref_squeeze %673 : memref<1x32x128xbf16, #tpu.memory_space<any>> -> memref<32x128xbf16, #tpu.memory_space<any>>
    %c0_i32_491 = arith.constant 0 : i32
    %c0_i32_492 = arith.constant 0 : i32
    %675 = tpu.memref_slice %arg10[%c1_i32_486, %c0_i32_491, %c0_i32_492] : memref<2x32x128xbf16, #tpu.memory_space<vmem>> -> memref<1x32x128xbf16, #tpu.memory_space<vmem>>
    %676 = tpu.memref_squeeze %675 : memref<1x32x128xbf16, #tpu.memory_space<vmem>> -> memref<32x128xbf16, #tpu.memory_space<vmem>>
    %677 = tpu.memref_slice %arg12[%c1_i32_487, %c1_i32_488] : memref<2x3x!tpu.dma_semaphore, #tpu.memory_space<semaphore_mem>> -> memref<1x1x!tpu.dma_semaphore, #tpu.memory_space<semaphore_mem>>
    %678 = tpu.memref_squeeze %677 : memref<1x1x!tpu.dma_semaphore, #tpu.memory_space<semaphore_mem>> -> memref<!tpu.dma_semaphore, #tpu.memory_space<semaphore_mem>>
    tpu.enqueue_dma source(%674 : memref<32x128xbf16, #tpu.memory_space<any>>) target(%676 : memref<32x128xbf16, #tpu.memory_space<vmem>>) target_semaphore(%678 : memref<!tpu.dma_semaphore, #tpu.memory_space<semaphore_mem>>)
    %c7_i32_493 = arith.constant 7 : i32
    %c1_i32_494 = arith.constant 1 : i32
    %c1_i32_495 = arith.constant 1 : i32
    %c2_i32_496 = arith.constant 2 : i32
    %c0_i32_497 = arith.constant 0 : i32
    %c0_i32_498 = arith.constant 0 : i32
    %679 = tpu.memref_slice %arg5[%c7_i32_493, %c0_i32_497, %c0_i32_498] : memref<16x8x128xf32, #tpu.memory_space<any>> -> memref<1x8x128xf32, #tpu.memory_space<any>>
    %680 = tpu.memref_squeeze %679 : memref<1x8x128xf32, #tpu.memory_space<any>> -> memref<8x128xf32, #tpu.memory_space<any>>
    %c0_i32_499 = arith.constant 0 : i32
    %c0_i32_500 = arith.constant 0 : i32
    %681 = tpu.memref_slice %arg11[%c1_i32_494, %c0_i32_499, %c0_i32_500] : memref<2x8x128xf32, #tpu.memory_space<vmem>> -> memref<1x8x128xf32, #tpu.memory_space<vmem>>
    %682 = tpu.memref_squeeze %681 : memref<1x8x128xf32, #tpu.memory_space<vmem>> -> memref<8x128xf32, #tpu.memory_space<vmem>>
    %683 = tpu.memref_slice %arg12[%c1_i32_495, %c2_i32_496] : memref<2x3x!tpu.dma_semaphore, #tpu.memory_space<semaphore_mem>> -> memref<1x1x!tpu.dma_semaphore, #tpu.memory_space<semaphore_mem>>
    %684 = tpu.memref_squeeze %683 : memref<1x1x!tpu.dma_semaphore, #tpu.memory_space<semaphore_mem>> -> memref<!tpu.dma_semaphore, #tpu.memory_space<semaphore_mem>>
    tpu.enqueue_dma source(%680 : memref<8x128xf32, #tpu.memory_space<any>>) target(%682 : memref<8x128xf32, #tpu.memory_space<vmem>>) target_semaphore(%684 : memref<!tpu.dma_semaphore, #tpu.memory_space<semaphore_mem>>)
    %c0_501 = arith.constant 0 : index
    %c0_502 = arith.constant 0 : index
    %c0_503 = arith.constant 0 : index
    %685 = vector.load %arg11[%c0_501, %c0_502, %c0_503] : memref<2x8x128xf32, #tpu.memory_space<vmem>>, vector<1x8x128xf32>
    %686 = vector.shape_cast %685 : vector<1x8x128xf32> to vector<8x128xf32>
    %687 = vector.extract_strided_slice %648 {offsets = [0, 0], sizes = [16, 32], strides = [1, 1]} : vector<16x128xf32> to vector<16x32xf32>
    %688 = arith.truncf %687 : vector<16x32xf32> to vector<16x32xbf16>
    %c0_504 = arith.constant 0 : index
    %c0_505 = arith.constant 0 : index
    %c0_506 = arith.constant 0 : index
    %689 = vector.load %arg8[%c0_504, %c0_505, %c0_506] : memref<2x32x128xbf16, #tpu.memory_space<vmem>>, vector<1x32x128xbf16>
    %690 = vector.shape_cast %689 : vector<1x32x128xbf16> to vector<32x128xbf16>
    %cst_507 = arith.constant dense<0.000000e+00> : vector<16x128xf32>
    %691 = tpu.matmul %688, %690, %cst_507 {dimension_numbers = #tpu.dot_dimension_numbers<[1], [0], [0], [1], [0, 0, 1, 1], [], []>} : vector<16x32xbf16>, vector<32x128xbf16>, vector<16x128xf32> -> vector<16x128xf32>
    %692 = vector.extract_strided_slice %686 {offsets = [0, 0], sizes = [1, 128], strides = [1, 1]} : vector<8x128xf32> to vector<1x128xf32>
    %693 = vector.extract_strided_slice %686 {offsets = [1, 0], sizes = [1, 128], strides = [1, 1]} : vector<8x128xf32> to vector<1x128xf32>
    %cst_508 = arith.constant dense<0.000000e+00> : vector<128xf32>
    %694 = vector.multi_reduction <add>, %691, %cst_508 [0] : vector<16x128xf32> to vector<128xf32>
    %695 = vector.shape_cast %694 : vector<128xf32> to vector<1x128xf32>
    %696 = arith.mulf %691, %691 : vector<16x128xf32>
    %cst_509 = arith.constant dense<0.000000e+00> : vector<128xf32>
    %697 = vector.multi_reduction <add>, %696, %cst_509 [0] : vector<16x128xf32> to vector<128xf32>
    %698 = vector.shape_cast %697 : vector<128xf32> to vector<1x128xf32>
    %cst_510 = arith.constant 6.250000e-02 : f32
    %699 = vector.broadcast %cst_510 : f32 to vector<1x128xf32>
    %700 = arith.mulf %695, %699 : vector<1x128xf32>
    %cst_511 = arith.constant 6.250000e-02 : f32
    %701 = vector.broadcast %cst_511 : f32 to vector<1x128xf32>
    %702 = arith.mulf %698, %701 : vector<1x128xf32>
    %703 = arith.mulf %700, %700 : vector<1x128xf32>
    %704 = arith.subf %702, %703 : vector<1x128xf32>
    %cst_512 = arith.constant 0.000000e+00 : f32
    %705 = vector.broadcast %cst_512 : f32 to vector<1x128xf32>
    %706 = arith.maximumf %704, %705 : vector<1x128xf32>
    %cst_513 = arith.constant 9.99999974E-6 : f32
    %707 = vector.broadcast %cst_513 : f32 to vector<1x128xf32>
    %708 = arith.addf %706, %707 : vector<1x128xf32>
    %709 = math.rsqrt %708 : vector<1x128xf32>
    %710 = arith.mulf %692, %709 : vector<1x128xf32>
    %711 = arith.mulf %700, %710 : vector<1x128xf32>
    %712 = arith.subf %693, %711 : vector<1x128xf32>
    %713 = vector.broadcast %710 : vector<1x128xf32> to vector<16x128xf32>
    %714 = arith.mulf %691, %713 : vector<16x128xf32>
    %715 = vector.broadcast %712 : vector<1x128xf32> to vector<16x128xf32>
    %716 = arith.addf %714, %715 : vector<16x128xf32>
    %cst_514 = arith.constant 0.000000e+00 : f32
    %717 = vector.broadcast %cst_514 : f32 to vector<16x128xf32>
    %718 = arith.maximumf %716, %717 : vector<16x128xf32>
    %719 = vector.extract_strided_slice %718 {offsets = [0, 0], sizes = [16, 32], strides = [1, 1]} : vector<16x128xf32> to vector<16x32xf32>
    %720 = arith.truncf %719 : vector<16x32xf32> to vector<16x32xbf16>
    %c0_515 = arith.constant 0 : index
    %c0_516 = arith.constant 0 : index
    %c0_517 = arith.constant 0 : index
    %721 = vector.load %arg10[%c0_515, %c0_516, %c0_517] : memref<2x32x128xbf16, #tpu.memory_space<vmem>>, vector<1x32x128xbf16>
    %722 = vector.shape_cast %721 : vector<1x32x128xbf16> to vector<32x128xbf16>
    %cst_518 = arith.constant dense<0.000000e+00> : vector<16x128xf32>
    %723 = tpu.matmul %720, %722, %cst_518 {dimension_numbers = #tpu.dot_dimension_numbers<[1], [0], [0], [1], [0, 0, 1, 1], [], []>} : vector<16x32xbf16>, vector<32x128xbf16>, vector<16x128xf32> -> vector<16x128xf32>
    %724 = vector.extract_strided_slice %686 {offsets = [2, 0], sizes = [1, 128], strides = [1, 1]} : vector<8x128xf32> to vector<1x128xf32>
    %725 = vector.extract_strided_slice %686 {offsets = [3, 0], sizes = [1, 128], strides = [1, 1]} : vector<8x128xf32> to vector<1x128xf32>
    %cst_519 = arith.constant dense<0.000000e+00> : vector<128xf32>
    %726 = vector.multi_reduction <add>, %723, %cst_519 [0] : vector<16x128xf32> to vector<128xf32>
    %727 = vector.shape_cast %726 : vector<128xf32> to vector<1x128xf32>
    %728 = arith.mulf %723, %723 : vector<16x128xf32>
    %cst_520 = arith.constant dense<0.000000e+00> : vector<128xf32>
    %729 = vector.multi_reduction <add>, %728, %cst_520 [0] : vector<16x128xf32> to vector<128xf32>
    %730 = vector.shape_cast %729 : vector<128xf32> to vector<1x128xf32>
    %cst_521 = arith.constant 6.250000e-02 : f32
    %731 = vector.broadcast %cst_521 : f32 to vector<1x128xf32>
    %732 = arith.mulf %727, %731 : vector<1x128xf32>
    %cst_522 = arith.constant 6.250000e-02 : f32
    %733 = vector.broadcast %cst_522 : f32 to vector<1x128xf32>
    %734 = arith.mulf %730, %733 : vector<1x128xf32>
    %735 = arith.mulf %732, %732 : vector<1x128xf32>
    %736 = arith.subf %734, %735 : vector<1x128xf32>
    %cst_523 = arith.constant 0.000000e+00 : f32
    %737 = vector.broadcast %cst_523 : f32 to vector<1x128xf32>
    %738 = arith.maximumf %736, %737 : vector<1x128xf32>
    %cst_524 = arith.constant 9.99999974E-6 : f32
    %739 = vector.broadcast %cst_524 : f32 to vector<1x128xf32>
    %740 = arith.addf %738, %739 : vector<1x128xf32>
    %741 = math.rsqrt %740 : vector<1x128xf32>
    %742 = arith.mulf %724, %741 : vector<1x128xf32>
    %743 = arith.mulf %732, %742 : vector<1x128xf32>
    %744 = arith.subf %725, %743 : vector<1x128xf32>
    %745 = vector.broadcast %742 : vector<1x128xf32> to vector<16x128xf32>
    %746 = arith.mulf %723, %745 : vector<16x128xf32>
    %747 = vector.broadcast %744 : vector<1x128xf32> to vector<16x128xf32>
    %748 = arith.addf %746, %747 : vector<16x128xf32>
    %749 = arith.addf %748, %648 : vector<16x128xf32>
    %cst_525 = arith.constant 0.000000e+00 : f32
    %750 = vector.broadcast %cst_525 : f32 to vector<16x128xf32>
    %751 = arith.maximumf %749, %750 : vector<16x128xf32>
    %c5_i32_526 = arith.constant 5 : i32
    %c1_i32_527 = arith.constant 1 : i32
    %c1_i32_528 = arith.constant 1 : i32
    %c0_i32_529 = arith.constant 0 : i32
    %c0_i32_530 = arith.constant 0 : i32
    %c0_i32_531 = arith.constant 0 : i32
    %752 = tpu.memref_slice %arg2[%c5_i32_526, %c0_i32_530, %c0_i32_531] : memref<14x32x128xbf16, #tpu.memory_space<any>> -> memref<1x32x128xbf16, #tpu.memory_space<any>>
    %753 = tpu.memref_squeeze %752 : memref<1x32x128xbf16, #tpu.memory_space<any>> -> memref<32x128xbf16, #tpu.memory_space<any>>
    %c0_i32_532 = arith.constant 0 : i32
    %c0_i32_533 = arith.constant 0 : i32
    %754 = tpu.memref_slice %arg8[%c1_i32_527, %c0_i32_532, %c0_i32_533] : memref<2x32x128xbf16, #tpu.memory_space<vmem>> -> memref<1x32x128xbf16, #tpu.memory_space<vmem>>
    %755 = tpu.memref_squeeze %754 : memref<1x32x128xbf16, #tpu.memory_space<vmem>> -> memref<32x128xbf16, #tpu.memory_space<vmem>>
    %756 = tpu.memref_slice %arg12[%c1_i32_528, %c0_i32_529] : memref<2x3x!tpu.dma_semaphore, #tpu.memory_space<semaphore_mem>> -> memref<1x1x!tpu.dma_semaphore, #tpu.memory_space<semaphore_mem>>
    %757 = tpu.memref_squeeze %756 : memref<1x1x!tpu.dma_semaphore, #tpu.memory_space<semaphore_mem>> -> memref<!tpu.dma_semaphore, #tpu.memory_space<semaphore_mem>>
    tpu.wait_dma2 semaphore(%757 : memref<!tpu.dma_semaphore, #tpu.memory_space<semaphore_mem>>) src(%753 : memref<32x128xbf16, #tpu.memory_space<any>>) dst(%755 : memref<32x128xbf16, #tpu.memory_space<vmem>>)
    %c7_i32_534 = arith.constant 7 : i32
    %c1_i32_535 = arith.constant 1 : i32
    %c1_i32_536 = arith.constant 1 : i32
    %c1_i32_537 = arith.constant 1 : i32
    %c0_i32_538 = arith.constant 0 : i32
    %c0_i32_539 = arith.constant 0 : i32
    %758 = tpu.memref_slice %arg4[%c7_i32_534, %c0_i32_538, %c0_i32_539] : memref<16x32x128xbf16, #tpu.memory_space<any>> -> memref<1x32x128xbf16, #tpu.memory_space<any>>
    %759 = tpu.memref_squeeze %758 : memref<1x32x128xbf16, #tpu.memory_space<any>> -> memref<32x128xbf16, #tpu.memory_space<any>>
    %c0_i32_540 = arith.constant 0 : i32
    %c0_i32_541 = arith.constant 0 : i32
    %760 = tpu.memref_slice %arg10[%c1_i32_535, %c0_i32_540, %c0_i32_541] : memref<2x32x128xbf16, #tpu.memory_space<vmem>> -> memref<1x32x128xbf16, #tpu.memory_space<vmem>>
    %761 = tpu.memref_squeeze %760 : memref<1x32x128xbf16, #tpu.memory_space<vmem>> -> memref<32x128xbf16, #tpu.memory_space<vmem>>
    %762 = tpu.memref_slice %arg12[%c1_i32_536, %c1_i32_537] : memref<2x3x!tpu.dma_semaphore, #tpu.memory_space<semaphore_mem>> -> memref<1x1x!tpu.dma_semaphore, #tpu.memory_space<semaphore_mem>>
    %763 = tpu.memref_squeeze %762 : memref<1x1x!tpu.dma_semaphore, #tpu.memory_space<semaphore_mem>> -> memref<!tpu.dma_semaphore, #tpu.memory_space<semaphore_mem>>
    tpu.wait_dma2 semaphore(%763 : memref<!tpu.dma_semaphore, #tpu.memory_space<semaphore_mem>>) src(%759 : memref<32x128xbf16, #tpu.memory_space<any>>) dst(%761 : memref<32x128xbf16, #tpu.memory_space<vmem>>)
    %c7_i32_542 = arith.constant 7 : i32
    %c1_i32_543 = arith.constant 1 : i32
    %c1_i32_544 = arith.constant 1 : i32
    %c2_i32_545 = arith.constant 2 : i32
    %c0_i32_546 = arith.constant 0 : i32
    %c0_i32_547 = arith.constant 0 : i32
    %764 = tpu.memref_slice %arg5[%c7_i32_542, %c0_i32_546, %c0_i32_547] : memref<16x8x128xf32, #tpu.memory_space<any>> -> memref<1x8x128xf32, #tpu.memory_space<any>>
    %765 = tpu.memref_squeeze %764 : memref<1x8x128xf32, #tpu.memory_space<any>> -> memref<8x128xf32, #tpu.memory_space<any>>
    %c0_i32_548 = arith.constant 0 : i32
    %c0_i32_549 = arith.constant 0 : i32
    %766 = tpu.memref_slice %arg11[%c1_i32_543, %c0_i32_548, %c0_i32_549] : memref<2x8x128xf32, #tpu.memory_space<vmem>> -> memref<1x8x128xf32, #tpu.memory_space<vmem>>
    %767 = tpu.memref_squeeze %766 : memref<1x8x128xf32, #tpu.memory_space<vmem>> -> memref<8x128xf32, #tpu.memory_space<vmem>>
    %768 = tpu.memref_slice %arg12[%c1_i32_544, %c2_i32_545] : memref<2x3x!tpu.dma_semaphore, #tpu.memory_space<semaphore_mem>> -> memref<1x1x!tpu.dma_semaphore, #tpu.memory_space<semaphore_mem>>
    %769 = tpu.memref_squeeze %768 : memref<1x1x!tpu.dma_semaphore, #tpu.memory_space<semaphore_mem>> -> memref<!tpu.dma_semaphore, #tpu.memory_space<semaphore_mem>>
    tpu.wait_dma2 semaphore(%769 : memref<!tpu.dma_semaphore, #tpu.memory_space<semaphore_mem>>) src(%765 : memref<8x128xf32, #tpu.memory_space<any>>) dst(%767 : memref<8x128xf32, #tpu.memory_space<vmem>>)
    %c6_i32_550 = arith.constant 6 : i32
    %c0_i32_551 = arith.constant 0 : i32
    %c0_i32_552 = arith.constant 0 : i32
    %c0_i32_553 = arith.constant 0 : i32
    %c0_i32_554 = arith.constant 0 : i32
    %c0_i32_555 = arith.constant 0 : i32
    %770 = tpu.memref_slice %arg2[%c6_i32_550, %c0_i32_554, %c0_i32_555] : memref<14x32x128xbf16, #tpu.memory_space<any>> -> memref<1x32x128xbf16, #tpu.memory_space<any>>
    %771 = tpu.memref_squeeze %770 : memref<1x32x128xbf16, #tpu.memory_space<any>> -> memref<32x128xbf16, #tpu.memory_space<any>>
    %c0_i32_556 = arith.constant 0 : i32
    %c0_i32_557 = arith.constant 0 : i32
    %772 = tpu.memref_slice %arg8[%c0_i32_551, %c0_i32_556, %c0_i32_557] : memref<2x32x128xbf16, #tpu.memory_space<vmem>> -> memref<1x32x128xbf16, #tpu.memory_space<vmem>>
    %773 = tpu.memref_squeeze %772 : memref<1x32x128xbf16, #tpu.memory_space<vmem>> -> memref<32x128xbf16, #tpu.memory_space<vmem>>
    %774 = tpu.memref_slice %arg12[%c0_i32_552, %c0_i32_553] : memref<2x3x!tpu.dma_semaphore, #tpu.memory_space<semaphore_mem>> -> memref<1x1x!tpu.dma_semaphore, #tpu.memory_space<semaphore_mem>>
    %775 = tpu.memref_squeeze %774 : memref<1x1x!tpu.dma_semaphore, #tpu.memory_space<semaphore_mem>> -> memref<!tpu.dma_semaphore, #tpu.memory_space<semaphore_mem>>
    tpu.enqueue_dma source(%771 : memref<32x128xbf16, #tpu.memory_space<any>>) target(%773 : memref<32x128xbf16, #tpu.memory_space<vmem>>) target_semaphore(%775 : memref<!tpu.dma_semaphore, #tpu.memory_space<semaphore_mem>>)
    %c8_i32 = arith.constant 8 : i32
    %c0_i32_558 = arith.constant 0 : i32
    %c0_i32_559 = arith.constant 0 : i32
    %c1_i32_560 = arith.constant 1 : i32
    %c0_i32_561 = arith.constant 0 : i32
    %c0_i32_562 = arith.constant 0 : i32
    %776 = tpu.memref_slice %arg4[%c8_i32, %c0_i32_561, %c0_i32_562] : memref<16x32x128xbf16, #tpu.memory_space<any>> -> memref<1x32x128xbf16, #tpu.memory_space<any>>
    %777 = tpu.memref_squeeze %776 : memref<1x32x128xbf16, #tpu.memory_space<any>> -> memref<32x128xbf16, #tpu.memory_space<any>>
    %c0_i32_563 = arith.constant 0 : i32
    %c0_i32_564 = arith.constant 0 : i32
    %778 = tpu.memref_slice %arg10[%c0_i32_558, %c0_i32_563, %c0_i32_564] : memref<2x32x128xbf16, #tpu.memory_space<vmem>> -> memref<1x32x128xbf16, #tpu.memory_space<vmem>>
    %779 = tpu.memref_squeeze %778 : memref<1x32x128xbf16, #tpu.memory_space<vmem>> -> memref<32x128xbf16, #tpu.memory_space<vmem>>
    %780 = tpu.memref_slice %arg12[%c0_i32_559, %c1_i32_560] : memref<2x3x!tpu.dma_semaphore, #tpu.memory_space<semaphore_mem>> -> memref<1x1x!tpu.dma_semaphore, #tpu.memory_space<semaphore_mem>>
    %781 = tpu.memref_squeeze %780 : memref<1x1x!tpu.dma_semaphore, #tpu.memory_space<semaphore_mem>> -> memref<!tpu.dma_semaphore, #tpu.memory_space<semaphore_mem>>
    tpu.enqueue_dma source(%777 : memref<32x128xbf16, #tpu.memory_space<any>>) target(%779 : memref<32x128xbf16, #tpu.memory_space<vmem>>) target_semaphore(%781 : memref<!tpu.dma_semaphore, #tpu.memory_space<semaphore_mem>>)
    %c8_i32_565 = arith.constant 8 : i32
    %c0_i32_566 = arith.constant 0 : i32
    %c0_i32_567 = arith.constant 0 : i32
    %c2_i32_568 = arith.constant 2 : i32
    %c0_i32_569 = arith.constant 0 : i32
    %c0_i32_570 = arith.constant 0 : i32
    %782 = tpu.memref_slice %arg5[%c8_i32_565, %c0_i32_569, %c0_i32_570] : memref<16x8x128xf32, #tpu.memory_space<any>> -> memref<1x8x128xf32, #tpu.memory_space<any>>
    %783 = tpu.memref_squeeze %782 : memref<1x8x128xf32, #tpu.memory_space<any>> -> memref<8x128xf32, #tpu.memory_space<any>>
    %c0_i32_571 = arith.constant 0 : i32
    %c0_i32_572 = arith.constant 0 : i32
    %784 = tpu.memref_slice %arg11[%c0_i32_566, %c0_i32_571, %c0_i32_572] : memref<2x8x128xf32, #tpu.memory_space<vmem>> -> memref<1x8x128xf32, #tpu.memory_space<vmem>>
    %785 = tpu.memref_squeeze %784 : memref<1x8x128xf32, #tpu.memory_space<vmem>> -> memref<8x128xf32, #tpu.memory_space<vmem>>
    %786 = tpu.memref_slice %arg12[%c0_i32_567, %c2_i32_568] : memref<2x3x!tpu.dma_semaphore, #tpu.memory_space<semaphore_mem>> -> memref<1x1x!tpu.dma_semaphore, #tpu.memory_space<semaphore_mem>>
    %787 = tpu.memref_squeeze %786 : memref<1x1x!tpu.dma_semaphore, #tpu.memory_space<semaphore_mem>> -> memref<!tpu.dma_semaphore, #tpu.memory_space<semaphore_mem>>
    tpu.enqueue_dma source(%783 : memref<8x128xf32, #tpu.memory_space<any>>) target(%785 : memref<8x128xf32, #tpu.memory_space<vmem>>) target_semaphore(%787 : memref<!tpu.dma_semaphore, #tpu.memory_space<semaphore_mem>>)
    %c1_573 = arith.constant 1 : index
    %c0_574 = arith.constant 0 : index
    %c0_575 = arith.constant 0 : index
    %788 = vector.load %arg11[%c1_573, %c0_574, %c0_575] : memref<2x8x128xf32, #tpu.memory_space<vmem>>, vector<1x8x128xf32>
    %789 = vector.shape_cast %788 : vector<1x8x128xf32> to vector<8x128xf32>
    %790 = vector.extract_strided_slice %751 {offsets = [0, 0], sizes = [16, 32], strides = [1, 1]} : vector<16x128xf32> to vector<16x32xf32>
    %791 = arith.truncf %790 : vector<16x32xf32> to vector<16x32xbf16>
    %c1_576 = arith.constant 1 : index
    %c0_577 = arith.constant 0 : index
    %c0_578 = arith.constant 0 : index
    %792 = vector.load %arg8[%c1_576, %c0_577, %c0_578] : memref<2x32x128xbf16, #tpu.memory_space<vmem>>, vector<1x32x128xbf16>
    %793 = vector.shape_cast %792 : vector<1x32x128xbf16> to vector<32x128xbf16>
    %cst_579 = arith.constant dense<0.000000e+00> : vector<16x128xf32>
    %794 = tpu.matmul %791, %793, %cst_579 {dimension_numbers = #tpu.dot_dimension_numbers<[1], [0], [0], [1], [0, 0, 1, 1], [], []>} : vector<16x32xbf16>, vector<32x128xbf16>, vector<16x128xf32> -> vector<16x128xf32>
    %795 = vector.extract_strided_slice %789 {offsets = [0, 0], sizes = [1, 128], strides = [1, 1]} : vector<8x128xf32> to vector<1x128xf32>
    %796 = vector.extract_strided_slice %789 {offsets = [1, 0], sizes = [1, 128], strides = [1, 1]} : vector<8x128xf32> to vector<1x128xf32>
    %cst_580 = arith.constant dense<0.000000e+00> : vector<128xf32>
    %797 = vector.multi_reduction <add>, %794, %cst_580 [0] : vector<16x128xf32> to vector<128xf32>
    %798 = vector.shape_cast %797 : vector<128xf32> to vector<1x128xf32>
    %799 = arith.mulf %794, %794 : vector<16x128xf32>
    %cst_581 = arith.constant dense<0.000000e+00> : vector<128xf32>
    %800 = vector.multi_reduction <add>, %799, %cst_581 [0] : vector<16x128xf32> to vector<128xf32>
    %801 = vector.shape_cast %800 : vector<128xf32> to vector<1x128xf32>
    %cst_582 = arith.constant 6.250000e-02 : f32
    %802 = vector.broadcast %cst_582 : f32 to vector<1x128xf32>
    %803 = arith.mulf %798, %802 : vector<1x128xf32>
    %cst_583 = arith.constant 6.250000e-02 : f32
    %804 = vector.broadcast %cst_583 : f32 to vector<1x128xf32>
    %805 = arith.mulf %801, %804 : vector<1x128xf32>
    %806 = arith.mulf %803, %803 : vector<1x128xf32>
    %807 = arith.subf %805, %806 : vector<1x128xf32>
    %cst_584 = arith.constant 0.000000e+00 : f32
    %808 = vector.broadcast %cst_584 : f32 to vector<1x128xf32>
    %809 = arith.maximumf %807, %808 : vector<1x128xf32>
    %cst_585 = arith.constant 9.99999974E-6 : f32
    %810 = vector.broadcast %cst_585 : f32 to vector<1x128xf32>
    %811 = arith.addf %809, %810 : vector<1x128xf32>
    %812 = math.rsqrt %811 : vector<1x128xf32>
    %813 = arith.mulf %795, %812 : vector<1x128xf32>
    %814 = arith.mulf %803, %813 : vector<1x128xf32>
    %815 = arith.subf %796, %814 : vector<1x128xf32>
    %816 = vector.broadcast %813 : vector<1x128xf32> to vector<16x128xf32>
    %817 = arith.mulf %794, %816 : vector<16x128xf32>
    %818 = vector.broadcast %815 : vector<1x128xf32> to vector<16x128xf32>
    %819 = arith.addf %817, %818 : vector<16x128xf32>
    %cst_586 = arith.constant 0.000000e+00 : f32
    %820 = vector.broadcast %cst_586 : f32 to vector<16x128xf32>
    %821 = arith.maximumf %819, %820 : vector<16x128xf32>
    %822 = vector.extract_strided_slice %821 {offsets = [0, 0], sizes = [16, 32], strides = [1, 1]} : vector<16x128xf32> to vector<16x32xf32>
    %823 = arith.truncf %822 : vector<16x32xf32> to vector<16x32xbf16>
    %c1_587 = arith.constant 1 : index
    %c0_588 = arith.constant 0 : index
    %c0_589 = arith.constant 0 : index
    %824 = vector.load %arg10[%c1_587, %c0_588, %c0_589] : memref<2x32x128xbf16, #tpu.memory_space<vmem>>, vector<1x32x128xbf16>
    %825 = vector.shape_cast %824 : vector<1x32x128xbf16> to vector<32x128xbf16>
    %cst_590 = arith.constant dense<0.000000e+00> : vector<16x128xf32>
    %826 = tpu.matmul %823, %825, %cst_590 {dimension_numbers = #tpu.dot_dimension_numbers<[1], [0], [0], [1], [0, 0, 1, 1], [], []>} : vector<16x32xbf16>, vector<32x128xbf16>, vector<16x128xf32> -> vector<16x128xf32>
    %827 = vector.extract_strided_slice %789 {offsets = [2, 0], sizes = [1, 128], strides = [1, 1]} : vector<8x128xf32> to vector<1x128xf32>
    %828 = vector.extract_strided_slice %789 {offsets = [3, 0], sizes = [1, 128], strides = [1, 1]} : vector<8x128xf32> to vector<1x128xf32>
    %cst_591 = arith.constant dense<0.000000e+00> : vector<128xf32>
    %829 = vector.multi_reduction <add>, %826, %cst_591 [0] : vector<16x128xf32> to vector<128xf32>
    %830 = vector.shape_cast %829 : vector<128xf32> to vector<1x128xf32>
    %831 = arith.mulf %826, %826 : vector<16x128xf32>
    %cst_592 = arith.constant dense<0.000000e+00> : vector<128xf32>
    %832 = vector.multi_reduction <add>, %831, %cst_592 [0] : vector<16x128xf32> to vector<128xf32>
    %833 = vector.shape_cast %832 : vector<128xf32> to vector<1x128xf32>
    %cst_593 = arith.constant 6.250000e-02 : f32
    %834 = vector.broadcast %cst_593 : f32 to vector<1x128xf32>
    %835 = arith.mulf %830, %834 : vector<1x128xf32>
    %cst_594 = arith.constant 6.250000e-02 : f32
    %836 = vector.broadcast %cst_594 : f32 to vector<1x128xf32>
    %837 = arith.mulf %833, %836 : vector<1x128xf32>
    %838 = arith.mulf %835, %835 : vector<1x128xf32>
    %839 = arith.subf %837, %838 : vector<1x128xf32>
    %cst_595 = arith.constant 0.000000e+00 : f32
    %840 = vector.broadcast %cst_595 : f32 to vector<1x128xf32>
    %841 = arith.maximumf %839, %840 : vector<1x128xf32>
    %cst_596 = arith.constant 9.99999974E-6 : f32
    %842 = vector.broadcast %cst_596 : f32 to vector<1x128xf32>
    %843 = arith.addf %841, %842 : vector<1x128xf32>
    %844 = math.rsqrt %843 : vector<1x128xf32>
    %845 = arith.mulf %827, %844 : vector<1x128xf32>
    %846 = arith.mulf %835, %845 : vector<1x128xf32>
    %847 = arith.subf %828, %846 : vector<1x128xf32>
    %848 = vector.broadcast %845 : vector<1x128xf32> to vector<16x128xf32>
    %849 = arith.mulf %826, %848 : vector<16x128xf32>
    %850 = vector.broadcast %847 : vector<1x128xf32> to vector<16x128xf32>
    %851 = arith.addf %849, %850 : vector<16x128xf32>
    %852 = arith.addf %851, %751 : vector<16x128xf32>
    %cst_597 = arith.constant 0.000000e+00 : f32
    %853 = vector.broadcast %cst_597 : f32 to vector<16x128xf32>
    %854 = arith.maximumf %852, %853 : vector<16x128xf32>
    %c6_i32_598 = arith.constant 6 : i32
    %c0_i32_599 = arith.constant 0 : i32
    %c0_i32_600 = arith.constant 0 : i32
    %c0_i32_601 = arith.constant 0 : i32
    %c0_i32_602 = arith.constant 0 : i32
    %c0_i32_603 = arith.constant 0 : i32
    %855 = tpu.memref_slice %arg2[%c6_i32_598, %c0_i32_602, %c0_i32_603] : memref<14x32x128xbf16, #tpu.memory_space<any>> -> memref<1x32x128xbf16, #tpu.memory_space<any>>
    %856 = tpu.memref_squeeze %855 : memref<1x32x128xbf16, #tpu.memory_space<any>> -> memref<32x128xbf16, #tpu.memory_space<any>>
    %c0_i32_604 = arith.constant 0 : i32
    %c0_i32_605 = arith.constant 0 : i32
    %857 = tpu.memref_slice %arg8[%c0_i32_599, %c0_i32_604, %c0_i32_605] : memref<2x32x128xbf16, #tpu.memory_space<vmem>> -> memref<1x32x128xbf16, #tpu.memory_space<vmem>>
    %858 = tpu.memref_squeeze %857 : memref<1x32x128xbf16, #tpu.memory_space<vmem>> -> memref<32x128xbf16, #tpu.memory_space<vmem>>
    %859 = tpu.memref_slice %arg12[%c0_i32_600, %c0_i32_601] : memref<2x3x!tpu.dma_semaphore, #tpu.memory_space<semaphore_mem>> -> memref<1x1x!tpu.dma_semaphore, #tpu.memory_space<semaphore_mem>>
    %860 = tpu.memref_squeeze %859 : memref<1x1x!tpu.dma_semaphore, #tpu.memory_space<semaphore_mem>> -> memref<!tpu.dma_semaphore, #tpu.memory_space<semaphore_mem>>
    tpu.wait_dma2 semaphore(%860 : memref<!tpu.dma_semaphore, #tpu.memory_space<semaphore_mem>>) src(%856 : memref<32x128xbf16, #tpu.memory_space<any>>) dst(%858 : memref<32x128xbf16, #tpu.memory_space<vmem>>)
    %c8_i32_606 = arith.constant 8 : i32
    %c0_i32_607 = arith.constant 0 : i32
    %c0_i32_608 = arith.constant 0 : i32
    %c1_i32_609 = arith.constant 1 : i32
    %c0_i32_610 = arith.constant 0 : i32
    %c0_i32_611 = arith.constant 0 : i32
    %861 = tpu.memref_slice %arg4[%c8_i32_606, %c0_i32_610, %c0_i32_611] : memref<16x32x128xbf16, #tpu.memory_space<any>> -> memref<1x32x128xbf16, #tpu.memory_space<any>>
    %862 = tpu.memref_squeeze %861 : memref<1x32x128xbf16, #tpu.memory_space<any>> -> memref<32x128xbf16, #tpu.memory_space<any>>
    %c0_i32_612 = arith.constant 0 : i32
    %c0_i32_613 = arith.constant 0 : i32
    %863 = tpu.memref_slice %arg10[%c0_i32_607, %c0_i32_612, %c0_i32_613] : memref<2x32x128xbf16, #tpu.memory_space<vmem>> -> memref<1x32x128xbf16, #tpu.memory_space<vmem>>
    %864 = tpu.memref_squeeze %863 : memref<1x32x128xbf16, #tpu.memory_space<vmem>> -> memref<32x128xbf16, #tpu.memory_space<vmem>>
    %865 = tpu.memref_slice %arg12[%c0_i32_608, %c1_i32_609] : memref<2x3x!tpu.dma_semaphore, #tpu.memory_space<semaphore_mem>> -> memref<1x1x!tpu.dma_semaphore, #tpu.memory_space<semaphore_mem>>
    %866 = tpu.memref_squeeze %865 : memref<1x1x!tpu.dma_semaphore, #tpu.memory_space<semaphore_mem>> -> memref<!tpu.dma_semaphore, #tpu.memory_space<semaphore_mem>>
    tpu.wait_dma2 semaphore(%866 : memref<!tpu.dma_semaphore, #tpu.memory_space<semaphore_mem>>) src(%862 : memref<32x128xbf16, #tpu.memory_space<any>>) dst(%864 : memref<32x128xbf16, #tpu.memory_space<vmem>>)
    %c8_i32_614 = arith.constant 8 : i32
    %c0_i32_615 = arith.constant 0 : i32
    %c0_i32_616 = arith.constant 0 : i32
    %c2_i32_617 = arith.constant 2 : i32
    %c0_i32_618 = arith.constant 0 : i32
    %c0_i32_619 = arith.constant 0 : i32
    %867 = tpu.memref_slice %arg5[%c8_i32_614, %c0_i32_618, %c0_i32_619] : memref<16x8x128xf32, #tpu.memory_space<any>> -> memref<1x8x128xf32, #tpu.memory_space<any>>
    %868 = tpu.memref_squeeze %867 : memref<1x8x128xf32, #tpu.memory_space<any>> -> memref<8x128xf32, #tpu.memory_space<any>>
    %c0_i32_620 = arith.constant 0 : i32
    %c0_i32_621 = arith.constant 0 : i32
    %869 = tpu.memref_slice %arg11[%c0_i32_615, %c0_i32_620, %c0_i32_621] : memref<2x8x128xf32, #tpu.memory_space<vmem>> -> memref<1x8x128xf32, #tpu.memory_space<vmem>>
    %870 = tpu.memref_squeeze %869 : memref<1x8x128xf32, #tpu.memory_space<vmem>> -> memref<8x128xf32, #tpu.memory_space<vmem>>
    %871 = tpu.memref_slice %arg12[%c0_i32_616, %c2_i32_617] : memref<2x3x!tpu.dma_semaphore, #tpu.memory_space<semaphore_mem>> -> memref<1x1x!tpu.dma_semaphore, #tpu.memory_space<semaphore_mem>>
    %872 = tpu.memref_squeeze %871 : memref<1x1x!tpu.dma_semaphore, #tpu.memory_space<semaphore_mem>> -> memref<!tpu.dma_semaphore, #tpu.memory_space<semaphore_mem>>
    tpu.wait_dma2 semaphore(%872 : memref<!tpu.dma_semaphore, #tpu.memory_space<semaphore_mem>>) src(%868 : memref<8x128xf32, #tpu.memory_space<any>>) dst(%870 : memref<8x128xf32, #tpu.memory_space<vmem>>)
    %c7_i32_622 = arith.constant 7 : i32
    %c1_i32_623 = arith.constant 1 : i32
    %c1_i32_624 = arith.constant 1 : i32
    %c0_i32_625 = arith.constant 0 : i32
    %c0_i32_626 = arith.constant 0 : i32
    %c0_i32_627 = arith.constant 0 : i32
    %873 = tpu.memref_slice %arg2[%c7_i32_622, %c0_i32_626, %c0_i32_627] : memref<14x32x128xbf16, #tpu.memory_space<any>> -> memref<1x32x128xbf16, #tpu.memory_space<any>>
    %874 = tpu.memref_squeeze %873 : memref<1x32x128xbf16, #tpu.memory_space<any>> -> memref<32x128xbf16, #tpu.memory_space<any>>
    %c0_i32_628 = arith.constant 0 : i32
    %c0_i32_629 = arith.constant 0 : i32
    %875 = tpu.memref_slice %arg8[%c1_i32_623, %c0_i32_628, %c0_i32_629] : memref<2x32x128xbf16, #tpu.memory_space<vmem>> -> memref<1x32x128xbf16, #tpu.memory_space<vmem>>
    %876 = tpu.memref_squeeze %875 : memref<1x32x128xbf16, #tpu.memory_space<vmem>> -> memref<32x128xbf16, #tpu.memory_space<vmem>>
    %877 = tpu.memref_slice %arg12[%c1_i32_624, %c0_i32_625] : memref<2x3x!tpu.dma_semaphore, #tpu.memory_space<semaphore_mem>> -> memref<1x1x!tpu.dma_semaphore, #tpu.memory_space<semaphore_mem>>
    %878 = tpu.memref_squeeze %877 : memref<1x1x!tpu.dma_semaphore, #tpu.memory_space<semaphore_mem>> -> memref<!tpu.dma_semaphore, #tpu.memory_space<semaphore_mem>>
    tpu.enqueue_dma source(%874 : memref<32x128xbf16, #tpu.memory_space<any>>) target(%876 : memref<32x128xbf16, #tpu.memory_space<vmem>>) target_semaphore(%878 : memref<!tpu.dma_semaphore, #tpu.memory_space<semaphore_mem>>)
    %c9_i32 = arith.constant 9 : i32
    %c1_i32_630 = arith.constant 1 : i32
    %c1_i32_631 = arith.constant 1 : i32
    %c1_i32_632 = arith.constant 1 : i32
    %c0_i32_633 = arith.constant 0 : i32
    %c0_i32_634 = arith.constant 0 : i32
    %879 = tpu.memref_slice %arg4[%c9_i32, %c0_i32_633, %c0_i32_634] : memref<16x32x128xbf16, #tpu.memory_space<any>> -> memref<1x32x128xbf16, #tpu.memory_space<any>>
    %880 = tpu.memref_squeeze %879 : memref<1x32x128xbf16, #tpu.memory_space<any>> -> memref<32x128xbf16, #tpu.memory_space<any>>
    %c0_i32_635 = arith.constant 0 : i32
    %c0_i32_636 = arith.constant 0 : i32
    %881 = tpu.memref_slice %arg10[%c1_i32_630, %c0_i32_635, %c0_i32_636] : memref<2x32x128xbf16, #tpu.memory_space<vmem>> -> memref<1x32x128xbf16, #tpu.memory_space<vmem>>
    %882 = tpu.memref_squeeze %881 : memref<1x32x128xbf16, #tpu.memory_space<vmem>> -> memref<32x128xbf16, #tpu.memory_space<vmem>>
    %883 = tpu.memref_slice %arg12[%c1_i32_631, %c1_i32_632] : memref<2x3x!tpu.dma_semaphore, #tpu.memory_space<semaphore_mem>> -> memref<1x1x!tpu.dma_semaphore, #tpu.memory_space<semaphore_mem>>
    %884 = tpu.memref_squeeze %883 : memref<1x1x!tpu.dma_semaphore, #tpu.memory_space<semaphore_mem>> -> memref<!tpu.dma_semaphore, #tpu.memory_space<semaphore_mem>>
    tpu.enqueue_dma source(%880 : memref<32x128xbf16, #tpu.memory_space<any>>) target(%882 : memref<32x128xbf16, #tpu.memory_space<vmem>>) target_semaphore(%884 : memref<!tpu.dma_semaphore, #tpu.memory_space<semaphore_mem>>)
    %c9_i32_637 = arith.constant 9 : i32
    %c1_i32_638 = arith.constant 1 : i32
    %c1_i32_639 = arith.constant 1 : i32
    %c2_i32_640 = arith.constant 2 : i32
    %c0_i32_641 = arith.constant 0 : i32
    %c0_i32_642 = arith.constant 0 : i32
    %885 = tpu.memref_slice %arg5[%c9_i32_637, %c0_i32_641, %c0_i32_642] : memref<16x8x128xf32, #tpu.memory_space<any>> -> memref<1x8x128xf32, #tpu.memory_space<any>>
    %886 = tpu.memref_squeeze %885 : memref<1x8x128xf32, #tpu.memory_space<any>> -> memref<8x128xf32, #tpu.memory_space<any>>
    %c0_i32_643 = arith.constant 0 : i32
    %c0_i32_644 = arith.constant 0 : i32
    %887 = tpu.memref_slice %arg11[%c1_i32_638, %c0_i32_643, %c0_i32_644] : memref<2x8x128xf32, #tpu.memory_space<vmem>> -> memref<1x8x128xf32, #tpu.memory_space<vmem>>
    %888 = tpu.memref_squeeze %887 : memref<1x8x128xf32, #tpu.memory_space<vmem>> -> memref<8x128xf32, #tpu.memory_space<vmem>>
    %889 = tpu.memref_slice %arg12[%c1_i32_639, %c2_i32_640] : memref<2x3x!tpu.dma_semaphore, #tpu.memory_space<semaphore_mem>> -> memref<1x1x!tpu.dma_semaphore, #tpu.memory_space<semaphore_mem>>
    %890 = tpu.memref_squeeze %889 : memref<1x1x!tpu.dma_semaphore, #tpu.memory_space<semaphore_mem>> -> memref<!tpu.dma_semaphore, #tpu.memory_space<semaphore_mem>>
    tpu.enqueue_dma source(%886 : memref<8x128xf32, #tpu.memory_space<any>>) target(%888 : memref<8x128xf32, #tpu.memory_space<vmem>>) target_semaphore(%890 : memref<!tpu.dma_semaphore, #tpu.memory_space<semaphore_mem>>)
    %c0_645 = arith.constant 0 : index
    %c0_646 = arith.constant 0 : index
    %c0_647 = arith.constant 0 : index
    %891 = vector.load %arg11[%c0_645, %c0_646, %c0_647] : memref<2x8x128xf32, #tpu.memory_space<vmem>>, vector<1x8x128xf32>
    %892 = vector.shape_cast %891 : vector<1x8x128xf32> to vector<8x128xf32>
    %893 = vector.extract_strided_slice %854 {offsets = [0, 0], sizes = [16, 32], strides = [1, 1]} : vector<16x128xf32> to vector<16x32xf32>
    %894 = arith.truncf %893 : vector<16x32xf32> to vector<16x32xbf16>
    %c0_648 = arith.constant 0 : index
    %c0_649 = arith.constant 0 : index
    %c0_650 = arith.constant 0 : index
    %895 = vector.load %arg8[%c0_648, %c0_649, %c0_650] : memref<2x32x128xbf16, #tpu.memory_space<vmem>>, vector<1x32x128xbf16>
    %896 = vector.shape_cast %895 : vector<1x32x128xbf16> to vector<32x128xbf16>
    %cst_651 = arith.constant dense<0.000000e+00> : vector<16x128xf32>
    %897 = tpu.matmul %894, %896, %cst_651 {dimension_numbers = #tpu.dot_dimension_numbers<[1], [0], [0], [1], [0, 0, 1, 1], [], []>} : vector<16x32xbf16>, vector<32x128xbf16>, vector<16x128xf32> -> vector<16x128xf32>
    %898 = vector.extract_strided_slice %892 {offsets = [0, 0], sizes = [1, 128], strides = [1, 1]} : vector<8x128xf32> to vector<1x128xf32>
    %899 = vector.extract_strided_slice %892 {offsets = [1, 0], sizes = [1, 128], strides = [1, 1]} : vector<8x128xf32> to vector<1x128xf32>
    %cst_652 = arith.constant dense<0.000000e+00> : vector<128xf32>
    %900 = vector.multi_reduction <add>, %897, %cst_652 [0] : vector<16x128xf32> to vector<128xf32>
    %901 = vector.shape_cast %900 : vector<128xf32> to vector<1x128xf32>
    %902 = arith.mulf %897, %897 : vector<16x128xf32>
    %cst_653 = arith.constant dense<0.000000e+00> : vector<128xf32>
    %903 = vector.multi_reduction <add>, %902, %cst_653 [0] : vector<16x128xf32> to vector<128xf32>
    %904 = vector.shape_cast %903 : vector<128xf32> to vector<1x128xf32>
    %cst_654 = arith.constant 6.250000e-02 : f32
    %905 = vector.broadcast %cst_654 : f32 to vector<1x128xf32>
    %906 = arith.mulf %901, %905 : vector<1x128xf32>
    %cst_655 = arith.constant 6.250000e-02 : f32
    %907 = vector.broadcast %cst_655 : f32 to vector<1x128xf32>
    %908 = arith.mulf %904, %907 : vector<1x128xf32>
    %909 = arith.mulf %906, %906 : vector<1x128xf32>
    %910 = arith.subf %908, %909 : vector<1x128xf32>
    %cst_656 = arith.constant 0.000000e+00 : f32
    %911 = vector.broadcast %cst_656 : f32 to vector<1x128xf32>
    %912 = arith.maximumf %910, %911 : vector<1x128xf32>
    %cst_657 = arith.constant 9.99999974E-6 : f32
    %913 = vector.broadcast %cst_657 : f32 to vector<1x128xf32>
    %914 = arith.addf %912, %913 : vector<1x128xf32>
    %915 = math.rsqrt %914 : vector<1x128xf32>
    %916 = arith.mulf %898, %915 : vector<1x128xf32>
    %917 = arith.mulf %906, %916 : vector<1x128xf32>
    %918 = arith.subf %899, %917 : vector<1x128xf32>
    %919 = vector.broadcast %916 : vector<1x128xf32> to vector<16x128xf32>
    %920 = arith.mulf %897, %919 : vector<16x128xf32>
    %921 = vector.broadcast %918 : vector<1x128xf32> to vector<16x128xf32>
    %922 = arith.addf %920, %921 : vector<16x128xf32>
    %cst_658 = arith.constant 0.000000e+00 : f32
    %923 = vector.broadcast %cst_658 : f32 to vector<16x128xf32>
    %924 = arith.maximumf %922, %923 : vector<16x128xf32>
    %925 = vector.extract_strided_slice %924 {offsets = [0, 0], sizes = [16, 32], strides = [1, 1]} : vector<16x128xf32> to vector<16x32xf32>
    %926 = arith.truncf %925 : vector<16x32xf32> to vector<16x32xbf16>
    %c0_659 = arith.constant 0 : index
    %c0_660 = arith.constant 0 : index
    %c0_661 = arith.constant 0 : index
    %927 = vector.load %arg10[%c0_659, %c0_660, %c0_661] : memref<2x32x128xbf16, #tpu.memory_space<vmem>>, vector<1x32x128xbf16>
    %928 = vector.shape_cast %927 : vector<1x32x128xbf16> to vector<32x128xbf16>
    %cst_662 = arith.constant dense<0.000000e+00> : vector<16x128xf32>
    %929 = tpu.matmul %926, %928, %cst_662 {dimension_numbers = #tpu.dot_dimension_numbers<[1], [0], [0], [1], [0, 0, 1, 1], [], []>} : vector<16x32xbf16>, vector<32x128xbf16>, vector<16x128xf32> -> vector<16x128xf32>
    %930 = vector.extract_strided_slice %892 {offsets = [2, 0], sizes = [1, 128], strides = [1, 1]} : vector<8x128xf32> to vector<1x128xf32>
    %931 = vector.extract_strided_slice %892 {offsets = [3, 0], sizes = [1, 128], strides = [1, 1]} : vector<8x128xf32> to vector<1x128xf32>
    %cst_663 = arith.constant dense<0.000000e+00> : vector<128xf32>
    %932 = vector.multi_reduction <add>, %929, %cst_663 [0] : vector<16x128xf32> to vector<128xf32>
    %933 = vector.shape_cast %932 : vector<128xf32> to vector<1x128xf32>
    %934 = arith.mulf %929, %929 : vector<16x128xf32>
    %cst_664 = arith.constant dense<0.000000e+00> : vector<128xf32>
    %935 = vector.multi_reduction <add>, %934, %cst_664 [0] : vector<16x128xf32> to vector<128xf32>
    %936 = vector.shape_cast %935 : vector<128xf32> to vector<1x128xf32>
    %cst_665 = arith.constant 6.250000e-02 : f32
    %937 = vector.broadcast %cst_665 : f32 to vector<1x128xf32>
    %938 = arith.mulf %933, %937 : vector<1x128xf32>
    %cst_666 = arith.constant 6.250000e-02 : f32
    %939 = vector.broadcast %cst_666 : f32 to vector<1x128xf32>
    %940 = arith.mulf %936, %939 : vector<1x128xf32>
    %941 = arith.mulf %938, %938 : vector<1x128xf32>
    %942 = arith.subf %940, %941 : vector<1x128xf32>
    %cst_667 = arith.constant 0.000000e+00 : f32
    %943 = vector.broadcast %cst_667 : f32 to vector<1x128xf32>
    %944 = arith.maximumf %942, %943 : vector<1x128xf32>
    %cst_668 = arith.constant 9.99999974E-6 : f32
    %945 = vector.broadcast %cst_668 : f32 to vector<1x128xf32>
    %946 = arith.addf %944, %945 : vector<1x128xf32>
    %947 = math.rsqrt %946 : vector<1x128xf32>
    %948 = arith.mulf %930, %947 : vector<1x128xf32>
    %949 = arith.mulf %938, %948 : vector<1x128xf32>
    %950 = arith.subf %931, %949 : vector<1x128xf32>
    %951 = vector.broadcast %948 : vector<1x128xf32> to vector<16x128xf32>
    %952 = arith.mulf %929, %951 : vector<16x128xf32>
    %953 = vector.broadcast %950 : vector<1x128xf32> to vector<16x128xf32>
    %954 = arith.addf %952, %953 : vector<16x128xf32>
    %955 = arith.addf %954, %854 : vector<16x128xf32>
    %cst_669 = arith.constant 0.000000e+00 : f32
    %956 = vector.broadcast %cst_669 : f32 to vector<16x128xf32>
    %957 = arith.maximumf %955, %956 : vector<16x128xf32>
    %c7_i32_670 = arith.constant 7 : i32
    %c1_i32_671 = arith.constant 1 : i32
    %c1_i32_672 = arith.constant 1 : i32
    %c0_i32_673 = arith.constant 0 : i32
    %c0_i32_674 = arith.constant 0 : i32
    %c0_i32_675 = arith.constant 0 : i32
    %958 = tpu.memref_slice %arg2[%c7_i32_670, %c0_i32_674, %c0_i32_675] : memref<14x32x128xbf16, #tpu.memory_space<any>> -> memref<1x32x128xbf16, #tpu.memory_space<any>>
    %959 = tpu.memref_squeeze %958 : memref<1x32x128xbf16, #tpu.memory_space<any>> -> memref<32x128xbf16, #tpu.memory_space<any>>
    %c0_i32_676 = arith.constant 0 : i32
    %c0_i32_677 = arith.constant 0 : i32
    %960 = tpu.memref_slice %arg8[%c1_i32_671, %c0_i32_676, %c0_i32_677] : memref<2x32x128xbf16, #tpu.memory_space<vmem>> -> memref<1x32x128xbf16, #tpu.memory_space<vmem>>
    %961 = tpu.memref_squeeze %960 : memref<1x32x128xbf16, #tpu.memory_space<vmem>> -> memref<32x128xbf16, #tpu.memory_space<vmem>>
    %962 = tpu.memref_slice %arg12[%c1_i32_672, %c0_i32_673] : memref<2x3x!tpu.dma_semaphore, #tpu.memory_space<semaphore_mem>> -> memref<1x1x!tpu.dma_semaphore, #tpu.memory_space<semaphore_mem>>
    %963 = tpu.memref_squeeze %962 : memref<1x1x!tpu.dma_semaphore, #tpu.memory_space<semaphore_mem>> -> memref<!tpu.dma_semaphore, #tpu.memory_space<semaphore_mem>>
    tpu.wait_dma2 semaphore(%963 : memref<!tpu.dma_semaphore, #tpu.memory_space<semaphore_mem>>) src(%959 : memref<32x128xbf16, #tpu.memory_space<any>>) dst(%961 : memref<32x128xbf16, #tpu.memory_space<vmem>>)
    %c9_i32_678 = arith.constant 9 : i32
    %c1_i32_679 = arith.constant 1 : i32
    %c1_i32_680 = arith.constant 1 : i32
    %c1_i32_681 = arith.constant 1 : i32
    %c0_i32_682 = arith.constant 0 : i32
    %c0_i32_683 = arith.constant 0 : i32
    %964 = tpu.memref_slice %arg4[%c9_i32_678, %c0_i32_682, %c0_i32_683] : memref<16x32x128xbf16, #tpu.memory_space<any>> -> memref<1x32x128xbf16, #tpu.memory_space<any>>
    %965 = tpu.memref_squeeze %964 : memref<1x32x128xbf16, #tpu.memory_space<any>> -> memref<32x128xbf16, #tpu.memory_space<any>>
    %c0_i32_684 = arith.constant 0 : i32
    %c0_i32_685 = arith.constant 0 : i32
    %966 = tpu.memref_slice %arg10[%c1_i32_679, %c0_i32_684, %c0_i32_685] : memref<2x32x128xbf16, #tpu.memory_space<vmem>> -> memref<1x32x128xbf16, #tpu.memory_space<vmem>>
    %967 = tpu.memref_squeeze %966 : memref<1x32x128xbf16, #tpu.memory_space<vmem>> -> memref<32x128xbf16, #tpu.memory_space<vmem>>
    %968 = tpu.memref_slice %arg12[%c1_i32_680, %c1_i32_681] : memref<2x3x!tpu.dma_semaphore, #tpu.memory_space<semaphore_mem>> -> memref<1x1x!tpu.dma_semaphore, #tpu.memory_space<semaphore_mem>>
    %969 = tpu.memref_squeeze %968 : memref<1x1x!tpu.dma_semaphore, #tpu.memory_space<semaphore_mem>> -> memref<!tpu.dma_semaphore, #tpu.memory_space<semaphore_mem>>
    tpu.wait_dma2 semaphore(%969 : memref<!tpu.dma_semaphore, #tpu.memory_space<semaphore_mem>>) src(%965 : memref<32x128xbf16, #tpu.memory_space<any>>) dst(%967 : memref<32x128xbf16, #tpu.memory_space<vmem>>)
    %c9_i32_686 = arith.constant 9 : i32
    %c1_i32_687 = arith.constant 1 : i32
    %c1_i32_688 = arith.constant 1 : i32
    %c2_i32_689 = arith.constant 2 : i32
    %c0_i32_690 = arith.constant 0 : i32
    %c0_i32_691 = arith.constant 0 : i32
    %970 = tpu.memref_slice %arg5[%c9_i32_686, %c0_i32_690, %c0_i32_691] : memref<16x8x128xf32, #tpu.memory_space<any>> -> memref<1x8x128xf32, #tpu.memory_space<any>>
    %971 = tpu.memref_squeeze %970 : memref<1x8x128xf32, #tpu.memory_space<any>> -> memref<8x128xf32, #tpu.memory_space<any>>
    %c0_i32_692 = arith.constant 0 : i32
    %c0_i32_693 = arith.constant 0 : i32
    %972 = tpu.memref_slice %arg11[%c1_i32_687, %c0_i32_692, %c0_i32_693] : memref<2x8x128xf32, #tpu.memory_space<vmem>> -> memref<1x8x128xf32, #tpu.memory_space<vmem>>
    %973 = tpu.memref_squeeze %972 : memref<1x8x128xf32, #tpu.memory_space<vmem>> -> memref<8x128xf32, #tpu.memory_space<vmem>>
    %974 = tpu.memref_slice %arg12[%c1_i32_688, %c2_i32_689] : memref<2x3x!tpu.dma_semaphore, #tpu.memory_space<semaphore_mem>> -> memref<1x1x!tpu.dma_semaphore, #tpu.memory_space<semaphore_mem>>
    %975 = tpu.memref_squeeze %974 : memref<1x1x!tpu.dma_semaphore, #tpu.memory_space<semaphore_mem>> -> memref<!tpu.dma_semaphore, #tpu.memory_space<semaphore_mem>>
    tpu.wait_dma2 semaphore(%975 : memref<!tpu.dma_semaphore, #tpu.memory_space<semaphore_mem>>) src(%971 : memref<8x128xf32, #tpu.memory_space<any>>) dst(%973 : memref<8x128xf32, #tpu.memory_space<vmem>>)
    %c8_i32_694 = arith.constant 8 : i32
    %c0_i32_695 = arith.constant 0 : i32
    %c0_i32_696 = arith.constant 0 : i32
    %c0_i32_697 = arith.constant 0 : i32
    %c0_i32_698 = arith.constant 0 : i32
    %c0_i32_699 = arith.constant 0 : i32
    %976 = tpu.memref_slice %arg2[%c8_i32_694, %c0_i32_698, %c0_i32_699] : memref<14x32x128xbf16, #tpu.memory_space<any>> -> memref<1x32x128xbf16, #tpu.memory_space<any>>
    %977 = tpu.memref_squeeze %976 : memref<1x32x128xbf16, #tpu.memory_space<any>> -> memref<32x128xbf16, #tpu.memory_space<any>>
    %c0_i32_700 = arith.constant 0 : i32
    %c0_i32_701 = arith.constant 0 : i32
    %978 = tpu.memref_slice %arg8[%c0_i32_695, %c0_i32_700, %c0_i32_701] : memref<2x32x128xbf16, #tpu.memory_space<vmem>> -> memref<1x32x128xbf16, #tpu.memory_space<vmem>>
    %979 = tpu.memref_squeeze %978 : memref<1x32x128xbf16, #tpu.memory_space<vmem>> -> memref<32x128xbf16, #tpu.memory_space<vmem>>
    %980 = tpu.memref_slice %arg12[%c0_i32_696, %c0_i32_697] : memref<2x3x!tpu.dma_semaphore, #tpu.memory_space<semaphore_mem>> -> memref<1x1x!tpu.dma_semaphore, #tpu.memory_space<semaphore_mem>>
    %981 = tpu.memref_squeeze %980 : memref<1x1x!tpu.dma_semaphore, #tpu.memory_space<semaphore_mem>> -> memref<!tpu.dma_semaphore, #tpu.memory_space<semaphore_mem>>
    tpu.enqueue_dma source(%977 : memref<32x128xbf16, #tpu.memory_space<any>>) target(%979 : memref<32x128xbf16, #tpu.memory_space<vmem>>) target_semaphore(%981 : memref<!tpu.dma_semaphore, #tpu.memory_space<semaphore_mem>>)
    %c10_i32 = arith.constant 10 : i32
    %c0_i32_702 = arith.constant 0 : i32
    %c0_i32_703 = arith.constant 0 : i32
    %c1_i32_704 = arith.constant 1 : i32
    %c0_i32_705 = arith.constant 0 : i32
    %c0_i32_706 = arith.constant 0 : i32
    %982 = tpu.memref_slice %arg4[%c10_i32, %c0_i32_705, %c0_i32_706] : memref<16x32x128xbf16, #tpu.memory_space<any>> -> memref<1x32x128xbf16, #tpu.memory_space<any>>
    %983 = tpu.memref_squeeze %982 : memref<1x32x128xbf16, #tpu.memory_space<any>> -> memref<32x128xbf16, #tpu.memory_space<any>>
    %c0_i32_707 = arith.constant 0 : i32
    %c0_i32_708 = arith.constant 0 : i32
    %984 = tpu.memref_slice %arg10[%c0_i32_702, %c0_i32_707, %c0_i32_708] : memref<2x32x128xbf16, #tpu.memory_space<vmem>> -> memref<1x32x128xbf16, #tpu.memory_space<vmem>>
    %985 = tpu.memref_squeeze %984 : memref<1x32x128xbf16, #tpu.memory_space<vmem>> -> memref<32x128xbf16, #tpu.memory_space<vmem>>
    %986 = tpu.memref_slice %arg12[%c0_i32_703, %c1_i32_704] : memref<2x3x!tpu.dma_semaphore, #tpu.memory_space<semaphore_mem>> -> memref<1x1x!tpu.dma_semaphore, #tpu.memory_space<semaphore_mem>>
    %987 = tpu.memref_squeeze %986 : memref<1x1x!tpu.dma_semaphore, #tpu.memory_space<semaphore_mem>> -> memref<!tpu.dma_semaphore, #tpu.memory_space<semaphore_mem>>
    tpu.enqueue_dma source(%983 : memref<32x128xbf16, #tpu.memory_space<any>>) target(%985 : memref<32x128xbf16, #tpu.memory_space<vmem>>) target_semaphore(%987 : memref<!tpu.dma_semaphore, #tpu.memory_space<semaphore_mem>>)
    %c10_i32_709 = arith.constant 10 : i32
    %c0_i32_710 = arith.constant 0 : i32
    %c0_i32_711 = arith.constant 0 : i32
    %c2_i32_712 = arith.constant 2 : i32
    %c0_i32_713 = arith.constant 0 : i32
    %c0_i32_714 = arith.constant 0 : i32
    %988 = tpu.memref_slice %arg5[%c10_i32_709, %c0_i32_713, %c0_i32_714] : memref<16x8x128xf32, #tpu.memory_space<any>> -> memref<1x8x128xf32, #tpu.memory_space<any>>
    %989 = tpu.memref_squeeze %988 : memref<1x8x128xf32, #tpu.memory_space<any>> -> memref<8x128xf32, #tpu.memory_space<any>>
    %c0_i32_715 = arith.constant 0 : i32
    %c0_i32_716 = arith.constant 0 : i32
    %990 = tpu.memref_slice %arg11[%c0_i32_710, %c0_i32_715, %c0_i32_716] : memref<2x8x128xf32, #tpu.memory_space<vmem>> -> memref<1x8x128xf32, #tpu.memory_space<vmem>>
    %991 = tpu.memref_squeeze %990 : memref<1x8x128xf32, #tpu.memory_space<vmem>> -> memref<8x128xf32, #tpu.memory_space<vmem>>
    %992 = tpu.memref_slice %arg12[%c0_i32_711, %c2_i32_712] : memref<2x3x!tpu.dma_semaphore, #tpu.memory_space<semaphore_mem>> -> memref<1x1x!tpu.dma_semaphore, #tpu.memory_space<semaphore_mem>>
    %993 = tpu.memref_squeeze %992 : memref<1x1x!tpu.dma_semaphore, #tpu.memory_space<semaphore_mem>> -> memref<!tpu.dma_semaphore, #tpu.memory_space<semaphore_mem>>
    tpu.enqueue_dma source(%989 : memref<8x128xf32, #tpu.memory_space<any>>) target(%991 : memref<8x128xf32, #tpu.memory_space<vmem>>) target_semaphore(%993 : memref<!tpu.dma_semaphore, #tpu.memory_space<semaphore_mem>>)
    %c1_717 = arith.constant 1 : index
    %c0_718 = arith.constant 0 : index
    %c0_719 = arith.constant 0 : index
    %994 = vector.load %arg11[%c1_717, %c0_718, %c0_719] : memref<2x8x128xf32, #tpu.memory_space<vmem>>, vector<1x8x128xf32>
    %995 = vector.shape_cast %994 : vector<1x8x128xf32> to vector<8x128xf32>
    %996 = vector.extract_strided_slice %957 {offsets = [0, 0], sizes = [16, 32], strides = [1, 1]} : vector<16x128xf32> to vector<16x32xf32>
    %997 = arith.truncf %996 : vector<16x32xf32> to vector<16x32xbf16>
    %c1_720 = arith.constant 1 : index
    %c0_721 = arith.constant 0 : index
    %c0_722 = arith.constant 0 : index
    %998 = vector.load %arg8[%c1_720, %c0_721, %c0_722] : memref<2x32x128xbf16, #tpu.memory_space<vmem>>, vector<1x32x128xbf16>
    %999 = vector.shape_cast %998 : vector<1x32x128xbf16> to vector<32x128xbf16>
    %cst_723 = arith.constant dense<0.000000e+00> : vector<16x128xf32>
    %1000 = tpu.matmul %997, %999, %cst_723 {dimension_numbers = #tpu.dot_dimension_numbers<[1], [0], [0], [1], [0, 0, 1, 1], [], []>} : vector<16x32xbf16>, vector<32x128xbf16>, vector<16x128xf32> -> vector<16x128xf32>
    %1001 = vector.extract_strided_slice %995 {offsets = [0, 0], sizes = [1, 128], strides = [1, 1]} : vector<8x128xf32> to vector<1x128xf32>
    %1002 = vector.extract_strided_slice %995 {offsets = [1, 0], sizes = [1, 128], strides = [1, 1]} : vector<8x128xf32> to vector<1x128xf32>
    %cst_724 = arith.constant dense<0.000000e+00> : vector<128xf32>
    %1003 = vector.multi_reduction <add>, %1000, %cst_724 [0] : vector<16x128xf32> to vector<128xf32>
    %1004 = vector.shape_cast %1003 : vector<128xf32> to vector<1x128xf32>
    %1005 = arith.mulf %1000, %1000 : vector<16x128xf32>
    %cst_725 = arith.constant dense<0.000000e+00> : vector<128xf32>
    %1006 = vector.multi_reduction <add>, %1005, %cst_725 [0] : vector<16x128xf32> to vector<128xf32>
    %1007 = vector.shape_cast %1006 : vector<128xf32> to vector<1x128xf32>
    %cst_726 = arith.constant 6.250000e-02 : f32
    %1008 = vector.broadcast %cst_726 : f32 to vector<1x128xf32>
    %1009 = arith.mulf %1004, %1008 : vector<1x128xf32>
    %cst_727 = arith.constant 6.250000e-02 : f32
    %1010 = vector.broadcast %cst_727 : f32 to vector<1x128xf32>
    %1011 = arith.mulf %1007, %1010 : vector<1x128xf32>
    %1012 = arith.mulf %1009, %1009 : vector<1x128xf32>
    %1013 = arith.subf %1011, %1012 : vector<1x128xf32>
    %cst_728 = arith.constant 0.000000e+00 : f32
    %1014 = vector.broadcast %cst_728 : f32 to vector<1x128xf32>
    %1015 = arith.maximumf %1013, %1014 : vector<1x128xf32>
    %cst_729 = arith.constant 9.99999974E-6 : f32
    %1016 = vector.broadcast %cst_729 : f32 to vector<1x128xf32>
    %1017 = arith.addf %1015, %1016 : vector<1x128xf32>
    %1018 = math.rsqrt %1017 : vector<1x128xf32>
    %1019 = arith.mulf %1001, %1018 : vector<1x128xf32>
    %1020 = arith.mulf %1009, %1019 : vector<1x128xf32>
    %1021 = arith.subf %1002, %1020 : vector<1x128xf32>
    %1022 = vector.broadcast %1019 : vector<1x128xf32> to vector<16x128xf32>
    %1023 = arith.mulf %1000, %1022 : vector<16x128xf32>
    %1024 = vector.broadcast %1021 : vector<1x128xf32> to vector<16x128xf32>
    %1025 = arith.addf %1023, %1024 : vector<16x128xf32>
    %cst_730 = arith.constant 0.000000e+00 : f32
    %1026 = vector.broadcast %cst_730 : f32 to vector<16x128xf32>
    %1027 = arith.maximumf %1025, %1026 : vector<16x128xf32>
    %1028 = vector.extract_strided_slice %1027 {offsets = [0, 0], sizes = [16, 32], strides = [1, 1]} : vector<16x128xf32> to vector<16x32xf32>
    %1029 = arith.truncf %1028 : vector<16x32xf32> to vector<16x32xbf16>
    %c1_731 = arith.constant 1 : index
    %c0_732 = arith.constant 0 : index
    %c0_733 = arith.constant 0 : index
    %1030 = vector.load %arg10[%c1_731, %c0_732, %c0_733] : memref<2x32x128xbf16, #tpu.memory_space<vmem>>, vector<1x32x128xbf16>
    %1031 = vector.shape_cast %1030 : vector<1x32x128xbf16> to vector<32x128xbf16>
    %cst_734 = arith.constant dense<0.000000e+00> : vector<16x128xf32>
    %1032 = tpu.matmul %1029, %1031, %cst_734 {dimension_numbers = #tpu.dot_dimension_numbers<[1], [0], [0], [1], [0, 0, 1, 1], [], []>} : vector<16x32xbf16>, vector<32x128xbf16>, vector<16x128xf32> -> vector<16x128xf32>
    %1033 = vector.extract_strided_slice %995 {offsets = [2, 0], sizes = [1, 128], strides = [1, 1]} : vector<8x128xf32> to vector<1x128xf32>
    %1034 = vector.extract_strided_slice %995 {offsets = [3, 0], sizes = [1, 128], strides = [1, 1]} : vector<8x128xf32> to vector<1x128xf32>
    %cst_735 = arith.constant dense<0.000000e+00> : vector<128xf32>
    %1035 = vector.multi_reduction <add>, %1032, %cst_735 [0] : vector<16x128xf32> to vector<128xf32>
    %1036 = vector.shape_cast %1035 : vector<128xf32> to vector<1x128xf32>
    %1037 = arith.mulf %1032, %1032 : vector<16x128xf32>
    %cst_736 = arith.constant dense<0.000000e+00> : vector<128xf32>
    %1038 = vector.multi_reduction <add>, %1037, %cst_736 [0] : vector<16x128xf32> to vector<128xf32>
    %1039 = vector.shape_cast %1038 : vector<128xf32> to vector<1x128xf32>
    %cst_737 = arith.constant 6.250000e-02 : f32
    %1040 = vector.broadcast %cst_737 : f32 to vector<1x128xf32>
    %1041 = arith.mulf %1036, %1040 : vector<1x128xf32>
    %cst_738 = arith.constant 6.250000e-02 : f32
    %1042 = vector.broadcast %cst_738 : f32 to vector<1x128xf32>
    %1043 = arith.mulf %1039, %1042 : vector<1x128xf32>
    %1044 = arith.mulf %1041, %1041 : vector<1x128xf32>
    %1045 = arith.subf %1043, %1044 : vector<1x128xf32>
    %cst_739 = arith.constant 0.000000e+00 : f32
    %1046 = vector.broadcast %cst_739 : f32 to vector<1x128xf32>
    %1047 = arith.maximumf %1045, %1046 : vector<1x128xf32>
    %cst_740 = arith.constant 9.99999974E-6 : f32
    %1048 = vector.broadcast %cst_740 : f32 to vector<1x128xf32>
    %1049 = arith.addf %1047, %1048 : vector<1x128xf32>
    %1050 = math.rsqrt %1049 : vector<1x128xf32>
    %1051 = arith.mulf %1033, %1050 : vector<1x128xf32>
    %1052 = arith.mulf %1041, %1051 : vector<1x128xf32>
    %1053 = arith.subf %1034, %1052 : vector<1x128xf32>
    %1054 = vector.broadcast %1051 : vector<1x128xf32> to vector<16x128xf32>
    %1055 = arith.mulf %1032, %1054 : vector<16x128xf32>
    %1056 = vector.broadcast %1053 : vector<1x128xf32> to vector<16x128xf32>
    %1057 = arith.addf %1055, %1056 : vector<16x128xf32>
    %1058 = arith.addf %1057, %957 : vector<16x128xf32>
    %cst_741 = arith.constant 0.000000e+00 : f32
    %1059 = vector.broadcast %cst_741 : f32 to vector<16x128xf32>
    %1060 = arith.maximumf %1058, %1059 : vector<16x128xf32>
    %c8_i32_742 = arith.constant 8 : i32
    %c0_i32_743 = arith.constant 0 : i32
    %c0_i32_744 = arith.constant 0 : i32
    %c0_i32_745 = arith.constant 0 : i32
    %c0_i32_746 = arith.constant 0 : i32
    %c0_i32_747 = arith.constant 0 : i32
    %1061 = tpu.memref_slice %arg2[%c8_i32_742, %c0_i32_746, %c0_i32_747] : memref<14x32x128xbf16, #tpu.memory_space<any>> -> memref<1x32x128xbf16, #tpu.memory_space<any>>
    %1062 = tpu.memref_squeeze %1061 : memref<1x32x128xbf16, #tpu.memory_space<any>> -> memref<32x128xbf16, #tpu.memory_space<any>>
    %c0_i32_748 = arith.constant 0 : i32
    %c0_i32_749 = arith.constant 0 : i32
    %1063 = tpu.memref_slice %arg8[%c0_i32_743, %c0_i32_748, %c0_i32_749] : memref<2x32x128xbf16, #tpu.memory_space<vmem>> -> memref<1x32x128xbf16, #tpu.memory_space<vmem>>
    %1064 = tpu.memref_squeeze %1063 : memref<1x32x128xbf16, #tpu.memory_space<vmem>> -> memref<32x128xbf16, #tpu.memory_space<vmem>>
    %1065 = tpu.memref_slice %arg12[%c0_i32_744, %c0_i32_745] : memref<2x3x!tpu.dma_semaphore, #tpu.memory_space<semaphore_mem>> -> memref<1x1x!tpu.dma_semaphore, #tpu.memory_space<semaphore_mem>>
    %1066 = tpu.memref_squeeze %1065 : memref<1x1x!tpu.dma_semaphore, #tpu.memory_space<semaphore_mem>> -> memref<!tpu.dma_semaphore, #tpu.memory_space<semaphore_mem>>
    tpu.wait_dma2 semaphore(%1066 : memref<!tpu.dma_semaphore, #tpu.memory_space<semaphore_mem>>) src(%1062 : memref<32x128xbf16, #tpu.memory_space<any>>) dst(%1064 : memref<32x128xbf16, #tpu.memory_space<vmem>>)
    %c10_i32_750 = arith.constant 10 : i32
    %c0_i32_751 = arith.constant 0 : i32
    %c0_i32_752 = arith.constant 0 : i32
    %c1_i32_753 = arith.constant 1 : i32
    %c0_i32_754 = arith.constant 0 : i32
    %c0_i32_755 = arith.constant 0 : i32
    %1067 = tpu.memref_slice %arg4[%c10_i32_750, %c0_i32_754, %c0_i32_755] : memref<16x32x128xbf16, #tpu.memory_space<any>> -> memref<1x32x128xbf16, #tpu.memory_space<any>>
    %1068 = tpu.memref_squeeze %1067 : memref<1x32x128xbf16, #tpu.memory_space<any>> -> memref<32x128xbf16, #tpu.memory_space<any>>
    %c0_i32_756 = arith.constant 0 : i32
    %c0_i32_757 = arith.constant 0 : i32
    %1069 = tpu.memref_slice %arg10[%c0_i32_751, %c0_i32_756, %c0_i32_757] : memref<2x32x128xbf16, #tpu.memory_space<vmem>> -> memref<1x32x128xbf16, #tpu.memory_space<vmem>>
    %1070 = tpu.memref_squeeze %1069 : memref<1x32x128xbf16, #tpu.memory_space<vmem>> -> memref<32x128xbf16, #tpu.memory_space<vmem>>
    %1071 = tpu.memref_slice %arg12[%c0_i32_752, %c1_i32_753] : memref<2x3x!tpu.dma_semaphore, #tpu.memory_space<semaphore_mem>> -> memref<1x1x!tpu.dma_semaphore, #tpu.memory_space<semaphore_mem>>
    %1072 = tpu.memref_squeeze %1071 : memref<1x1x!tpu.dma_semaphore, #tpu.memory_space<semaphore_mem>> -> memref<!tpu.dma_semaphore, #tpu.memory_space<semaphore_mem>>
    tpu.wait_dma2 semaphore(%1072 : memref<!tpu.dma_semaphore, #tpu.memory_space<semaphore_mem>>) src(%1068 : memref<32x128xbf16, #tpu.memory_space<any>>) dst(%1070 : memref<32x128xbf16, #tpu.memory_space<vmem>>)
    %c10_i32_758 = arith.constant 10 : i32
    %c0_i32_759 = arith.constant 0 : i32
    %c0_i32_760 = arith.constant 0 : i32
    %c2_i32_761 = arith.constant 2 : i32
    %c0_i32_762 = arith.constant 0 : i32
    %c0_i32_763 = arith.constant 0 : i32
    %1073 = tpu.memref_slice %arg5[%c10_i32_758, %c0_i32_762, %c0_i32_763] : memref<16x8x128xf32, #tpu.memory_space<any>> -> memref<1x8x128xf32, #tpu.memory_space<any>>
    %1074 = tpu.memref_squeeze %1073 : memref<1x8x128xf32, #tpu.memory_space<any>> -> memref<8x128xf32, #tpu.memory_space<any>>
    %c0_i32_764 = arith.constant 0 : i32
    %c0_i32_765 = arith.constant 0 : i32
    %1075 = tpu.memref_slice %arg11[%c0_i32_759, %c0_i32_764, %c0_i32_765] : memref<2x8x128xf32, #tpu.memory_space<vmem>> -> memref<1x8x128xf32, #tpu.memory_space<vmem>>
    %1076 = tpu.memref_squeeze %1075 : memref<1x8x128xf32, #tpu.memory_space<vmem>> -> memref<8x128xf32, #tpu.memory_space<vmem>>
    %1077 = tpu.memref_slice %arg12[%c0_i32_760, %c2_i32_761] : memref<2x3x!tpu.dma_semaphore, #tpu.memory_space<semaphore_mem>> -> memref<1x1x!tpu.dma_semaphore, #tpu.memory_space<semaphore_mem>>
    %1078 = tpu.memref_squeeze %1077 : memref<1x1x!tpu.dma_semaphore, #tpu.memory_space<semaphore_mem>> -> memref<!tpu.dma_semaphore, #tpu.memory_space<semaphore_mem>>
    tpu.wait_dma2 semaphore(%1078 : memref<!tpu.dma_semaphore, #tpu.memory_space<semaphore_mem>>) src(%1074 : memref<8x128xf32, #tpu.memory_space<any>>) dst(%1076 : memref<8x128xf32, #tpu.memory_space<vmem>>)
    %c9_i32_766 = arith.constant 9 : i32
    %c1_i32_767 = arith.constant 1 : i32
    %c1_i32_768 = arith.constant 1 : i32
    %c0_i32_769 = arith.constant 0 : i32
    %c0_i32_770 = arith.constant 0 : i32
    %c0_i32_771 = arith.constant 0 : i32
    %1079 = tpu.memref_slice %arg2[%c9_i32_766, %c0_i32_770, %c0_i32_771] : memref<14x32x128xbf16, #tpu.memory_space<any>> -> memref<1x32x128xbf16, #tpu.memory_space<any>>
    %1080 = tpu.memref_squeeze %1079 : memref<1x32x128xbf16, #tpu.memory_space<any>> -> memref<32x128xbf16, #tpu.memory_space<any>>
    %c0_i32_772 = arith.constant 0 : i32
    %c0_i32_773 = arith.constant 0 : i32
    %1081 = tpu.memref_slice %arg8[%c1_i32_767, %c0_i32_772, %c0_i32_773] : memref<2x32x128xbf16, #tpu.memory_space<vmem>> -> memref<1x32x128xbf16, #tpu.memory_space<vmem>>
    %1082 = tpu.memref_squeeze %1081 : memref<1x32x128xbf16, #tpu.memory_space<vmem>> -> memref<32x128xbf16, #tpu.memory_space<vmem>>
    %1083 = tpu.memref_slice %arg12[%c1_i32_768, %c0_i32_769] : memref<2x3x!tpu.dma_semaphore, #tpu.memory_space<semaphore_mem>> -> memref<1x1x!tpu.dma_semaphore, #tpu.memory_space<semaphore_mem>>
    %1084 = tpu.memref_squeeze %1083 : memref<1x1x!tpu.dma_semaphore, #tpu.memory_space<semaphore_mem>> -> memref<!tpu.dma_semaphore, #tpu.memory_space<semaphore_mem>>
    tpu.enqueue_dma source(%1080 : memref<32x128xbf16, #tpu.memory_space<any>>) target(%1082 : memref<32x128xbf16, #tpu.memory_space<vmem>>) target_semaphore(%1084 : memref<!tpu.dma_semaphore, #tpu.memory_space<semaphore_mem>>)
    %c11_i32 = arith.constant 11 : i32
    %c1_i32_774 = arith.constant 1 : i32
    %c1_i32_775 = arith.constant 1 : i32
    %c1_i32_776 = arith.constant 1 : i32
    %c0_i32_777 = arith.constant 0 : i32
    %c0_i32_778 = arith.constant 0 : i32
    %1085 = tpu.memref_slice %arg4[%c11_i32, %c0_i32_777, %c0_i32_778] : memref<16x32x128xbf16, #tpu.memory_space<any>> -> memref<1x32x128xbf16, #tpu.memory_space<any>>
    %1086 = tpu.memref_squeeze %1085 : memref<1x32x128xbf16, #tpu.memory_space<any>> -> memref<32x128xbf16, #tpu.memory_space<any>>
    %c0_i32_779 = arith.constant 0 : i32
    %c0_i32_780 = arith.constant 0 : i32
    %1087 = tpu.memref_slice %arg10[%c1_i32_774, %c0_i32_779, %c0_i32_780] : memref<2x32x128xbf16, #tpu.memory_space<vmem>> -> memref<1x32x128xbf16, #tpu.memory_space<vmem>>
    %1088 = tpu.memref_squeeze %1087 : memref<1x32x128xbf16, #tpu.memory_space<vmem>> -> memref<32x128xbf16, #tpu.memory_space<vmem>>
    %1089 = tpu.memref_slice %arg12[%c1_i32_775, %c1_i32_776] : memref<2x3x!tpu.dma_semaphore, #tpu.memory_space<semaphore_mem>> -> memref<1x1x!tpu.dma_semaphore, #tpu.memory_space<semaphore_mem>>
    %1090 = tpu.memref_squeeze %1089 : memref<1x1x!tpu.dma_semaphore, #tpu.memory_space<semaphore_mem>> -> memref<!tpu.dma_semaphore, #tpu.memory_space<semaphore_mem>>
    tpu.enqueue_dma source(%1086 : memref<32x128xbf16, #tpu.memory_space<any>>) target(%1088 : memref<32x128xbf16, #tpu.memory_space<vmem>>) target_semaphore(%1090 : memref<!tpu.dma_semaphore, #tpu.memory_space<semaphore_mem>>)
    %c11_i32_781 = arith.constant 11 : i32
    %c1_i32_782 = arith.constant 1 : i32
    %c1_i32_783 = arith.constant 1 : i32
    %c2_i32_784 = arith.constant 2 : i32
    %c0_i32_785 = arith.constant 0 : i32
    %c0_i32_786 = arith.constant 0 : i32
    %1091 = tpu.memref_slice %arg5[%c11_i32_781, %c0_i32_785, %c0_i32_786] : memref<16x8x128xf32, #tpu.memory_space<any>> -> memref<1x8x128xf32, #tpu.memory_space<any>>
    %1092 = tpu.memref_squeeze %1091 : memref<1x8x128xf32, #tpu.memory_space<any>> -> memref<8x128xf32, #tpu.memory_space<any>>
    %c0_i32_787 = arith.constant 0 : i32
    %c0_i32_788 = arith.constant 0 : i32
    %1093 = tpu.memref_slice %arg11[%c1_i32_782, %c0_i32_787, %c0_i32_788] : memref<2x8x128xf32, #tpu.memory_space<vmem>> -> memref<1x8x128xf32, #tpu.memory_space<vmem>>
    %1094 = tpu.memref_squeeze %1093 : memref<1x8x128xf32, #tpu.memory_space<vmem>> -> memref<8x128xf32, #tpu.memory_space<vmem>>
    %1095 = tpu.memref_slice %arg12[%c1_i32_783, %c2_i32_784] : memref<2x3x!tpu.dma_semaphore, #tpu.memory_space<semaphore_mem>> -> memref<1x1x!tpu.dma_semaphore, #tpu.memory_space<semaphore_mem>>
    %1096 = tpu.memref_squeeze %1095 : memref<1x1x!tpu.dma_semaphore, #tpu.memory_space<semaphore_mem>> -> memref<!tpu.dma_semaphore, #tpu.memory_space<semaphore_mem>>
    tpu.enqueue_dma source(%1092 : memref<8x128xf32, #tpu.memory_space<any>>) target(%1094 : memref<8x128xf32, #tpu.memory_space<vmem>>) target_semaphore(%1096 : memref<!tpu.dma_semaphore, #tpu.memory_space<semaphore_mem>>)
    %c0_789 = arith.constant 0 : index
    %c0_790 = arith.constant 0 : index
    %c0_791 = arith.constant 0 : index
    %1097 = vector.load %arg11[%c0_789, %c0_790, %c0_791] : memref<2x8x128xf32, #tpu.memory_space<vmem>>, vector<1x8x128xf32>
    %1098 = vector.shape_cast %1097 : vector<1x8x128xf32> to vector<8x128xf32>
    %1099 = vector.extract_strided_slice %1060 {offsets = [0, 0], sizes = [16, 32], strides = [1, 1]} : vector<16x128xf32> to vector<16x32xf32>
    %1100 = arith.truncf %1099 : vector<16x32xf32> to vector<16x32xbf16>
    %c0_792 = arith.constant 0 : index
    %c0_793 = arith.constant 0 : index
    %c0_794 = arith.constant 0 : index
    %1101 = vector.load %arg8[%c0_792, %c0_793, %c0_794] : memref<2x32x128xbf16, #tpu.memory_space<vmem>>, vector<1x32x128xbf16>
    %1102 = vector.shape_cast %1101 : vector<1x32x128xbf16> to vector<32x128xbf16>
    %cst_795 = arith.constant dense<0.000000e+00> : vector<16x128xf32>
    %1103 = tpu.matmul %1100, %1102, %cst_795 {dimension_numbers = #tpu.dot_dimension_numbers<[1], [0], [0], [1], [0, 0, 1, 1], [], []>} : vector<16x32xbf16>, vector<32x128xbf16>, vector<16x128xf32> -> vector<16x128xf32>
    %1104 = vector.extract_strided_slice %1098 {offsets = [0, 0], sizes = [1, 128], strides = [1, 1]} : vector<8x128xf32> to vector<1x128xf32>
    %1105 = vector.extract_strided_slice %1098 {offsets = [1, 0], sizes = [1, 128], strides = [1, 1]} : vector<8x128xf32> to vector<1x128xf32>
    %cst_796 = arith.constant dense<0.000000e+00> : vector<128xf32>
    %1106 = vector.multi_reduction <add>, %1103, %cst_796 [0] : vector<16x128xf32> to vector<128xf32>
    %1107 = vector.shape_cast %1106 : vector<128xf32> to vector<1x128xf32>
    %1108 = arith.mulf %1103, %1103 : vector<16x128xf32>
    %cst_797 = arith.constant dense<0.000000e+00> : vector<128xf32>
    %1109 = vector.multi_reduction <add>, %1108, %cst_797 [0] : vector<16x128xf32> to vector<128xf32>
    %1110 = vector.shape_cast %1109 : vector<128xf32> to vector<1x128xf32>
    %cst_798 = arith.constant 6.250000e-02 : f32
    %1111 = vector.broadcast %cst_798 : f32 to vector<1x128xf32>
    %1112 = arith.mulf %1107, %1111 : vector<1x128xf32>
    %cst_799 = arith.constant 6.250000e-02 : f32
    %1113 = vector.broadcast %cst_799 : f32 to vector<1x128xf32>
    %1114 = arith.mulf %1110, %1113 : vector<1x128xf32>
    %1115 = arith.mulf %1112, %1112 : vector<1x128xf32>
    %1116 = arith.subf %1114, %1115 : vector<1x128xf32>
    %cst_800 = arith.constant 0.000000e+00 : f32
    %1117 = vector.broadcast %cst_800 : f32 to vector<1x128xf32>
    %1118 = arith.maximumf %1116, %1117 : vector<1x128xf32>
    %cst_801 = arith.constant 9.99999974E-6 : f32
    %1119 = vector.broadcast %cst_801 : f32 to vector<1x128xf32>
    %1120 = arith.addf %1118, %1119 : vector<1x128xf32>
    %1121 = math.rsqrt %1120 : vector<1x128xf32>
    %1122 = arith.mulf %1104, %1121 : vector<1x128xf32>
    %1123 = arith.mulf %1112, %1122 : vector<1x128xf32>
    %1124 = arith.subf %1105, %1123 : vector<1x128xf32>
    %1125 = vector.broadcast %1122 : vector<1x128xf32> to vector<16x128xf32>
    %1126 = arith.mulf %1103, %1125 : vector<16x128xf32>
    %1127 = vector.broadcast %1124 : vector<1x128xf32> to vector<16x128xf32>
    %1128 = arith.addf %1126, %1127 : vector<16x128xf32>
    %cst_802 = arith.constant 0.000000e+00 : f32
    %1129 = vector.broadcast %cst_802 : f32 to vector<16x128xf32>
    %1130 = arith.maximumf %1128, %1129 : vector<16x128xf32>
    %1131 = vector.extract_strided_slice %1130 {offsets = [0, 0], sizes = [16, 32], strides = [1, 1]} : vector<16x128xf32> to vector<16x32xf32>
    %1132 = arith.truncf %1131 : vector<16x32xf32> to vector<16x32xbf16>
    %c0_803 = arith.constant 0 : index
    %c0_804 = arith.constant 0 : index
    %c0_805 = arith.constant 0 : index
    %1133 = vector.load %arg10[%c0_803, %c0_804, %c0_805] : memref<2x32x128xbf16, #tpu.memory_space<vmem>>, vector<1x32x128xbf16>
    %1134 = vector.shape_cast %1133 : vector<1x32x128xbf16> to vector<32x128xbf16>
    %cst_806 = arith.constant dense<0.000000e+00> : vector<16x128xf32>
    %1135 = tpu.matmul %1132, %1134, %cst_806 {dimension_numbers = #tpu.dot_dimension_numbers<[1], [0], [0], [1], [0, 0, 1, 1], [], []>} : vector<16x32xbf16>, vector<32x128xbf16>, vector<16x128xf32> -> vector<16x128xf32>
    %1136 = vector.extract_strided_slice %1098 {offsets = [2, 0], sizes = [1, 128], strides = [1, 1]} : vector<8x128xf32> to vector<1x128xf32>
    %1137 = vector.extract_strided_slice %1098 {offsets = [3, 0], sizes = [1, 128], strides = [1, 1]} : vector<8x128xf32> to vector<1x128xf32>
    %cst_807 = arith.constant dense<0.000000e+00> : vector<128xf32>
    %1138 = vector.multi_reduction <add>, %1135, %cst_807 [0] : vector<16x128xf32> to vector<128xf32>
    %1139 = vector.shape_cast %1138 : vector<128xf32> to vector<1x128xf32>
    %1140 = arith.mulf %1135, %1135 : vector<16x128xf32>
    %cst_808 = arith.constant dense<0.000000e+00> : vector<128xf32>
    %1141 = vector.multi_reduction <add>, %1140, %cst_808 [0] : vector<16x128xf32> to vector<128xf32>
    %1142 = vector.shape_cast %1141 : vector<128xf32> to vector<1x128xf32>
    %cst_809 = arith.constant 6.250000e-02 : f32
    %1143 = vector.broadcast %cst_809 : f32 to vector<1x128xf32>
    %1144 = arith.mulf %1139, %1143 : vector<1x128xf32>
    %cst_810 = arith.constant 6.250000e-02 : f32
    %1145 = vector.broadcast %cst_810 : f32 to vector<1x128xf32>
    %1146 = arith.mulf %1142, %1145 : vector<1x128xf32>
    %1147 = arith.mulf %1144, %1144 : vector<1x128xf32>
    %1148 = arith.subf %1146, %1147 : vector<1x128xf32>
    %cst_811 = arith.constant 0.000000e+00 : f32
    %1149 = vector.broadcast %cst_811 : f32 to vector<1x128xf32>
    %1150 = arith.maximumf %1148, %1149 : vector<1x128xf32>
    %cst_812 = arith.constant 9.99999974E-6 : f32
    %1151 = vector.broadcast %cst_812 : f32 to vector<1x128xf32>
    %1152 = arith.addf %1150, %1151 : vector<1x128xf32>
    %1153 = math.rsqrt %1152 : vector<1x128xf32>
    %1154 = arith.mulf %1136, %1153 : vector<1x128xf32>
    %1155 = arith.mulf %1144, %1154 : vector<1x128xf32>
    %1156 = arith.subf %1137, %1155 : vector<1x128xf32>
    %1157 = vector.broadcast %1154 : vector<1x128xf32> to vector<16x128xf32>
    %1158 = arith.mulf %1135, %1157 : vector<16x128xf32>
    %1159 = vector.broadcast %1156 : vector<1x128xf32> to vector<16x128xf32>
    %1160 = arith.addf %1158, %1159 : vector<16x128xf32>
    %1161 = arith.addf %1160, %1060 : vector<16x128xf32>
    %cst_813 = arith.constant 0.000000e+00 : f32
    %1162 = vector.broadcast %cst_813 : f32 to vector<16x128xf32>
    %1163 = arith.maximumf %1161, %1162 : vector<16x128xf32>
    %c9_i32_814 = arith.constant 9 : i32
    %c1_i32_815 = arith.constant 1 : i32
    %c1_i32_816 = arith.constant 1 : i32
    %c0_i32_817 = arith.constant 0 : i32
    %c0_i32_818 = arith.constant 0 : i32
    %c0_i32_819 = arith.constant 0 : i32
    %1164 = tpu.memref_slice %arg2[%c9_i32_814, %c0_i32_818, %c0_i32_819] : memref<14x32x128xbf16, #tpu.memory_space<any>> -> memref<1x32x128xbf16, #tpu.memory_space<any>>
    %1165 = tpu.memref_squeeze %1164 : memref<1x32x128xbf16, #tpu.memory_space<any>> -> memref<32x128xbf16, #tpu.memory_space<any>>
    %c0_i32_820 = arith.constant 0 : i32
    %c0_i32_821 = arith.constant 0 : i32
    %1166 = tpu.memref_slice %arg8[%c1_i32_815, %c0_i32_820, %c0_i32_821] : memref<2x32x128xbf16, #tpu.memory_space<vmem>> -> memref<1x32x128xbf16, #tpu.memory_space<vmem>>
    %1167 = tpu.memref_squeeze %1166 : memref<1x32x128xbf16, #tpu.memory_space<vmem>> -> memref<32x128xbf16, #tpu.memory_space<vmem>>
    %1168 = tpu.memref_slice %arg12[%c1_i32_816, %c0_i32_817] : memref<2x3x!tpu.dma_semaphore, #tpu.memory_space<semaphore_mem>> -> memref<1x1x!tpu.dma_semaphore, #tpu.memory_space<semaphore_mem>>
    %1169 = tpu.memref_squeeze %1168 : memref<1x1x!tpu.dma_semaphore, #tpu.memory_space<semaphore_mem>> -> memref<!tpu.dma_semaphore, #tpu.memory_space<semaphore_mem>>
    tpu.wait_dma2 semaphore(%1169 : memref<!tpu.dma_semaphore, #tpu.memory_space<semaphore_mem>>) src(%1165 : memref<32x128xbf16, #tpu.memory_space<any>>) dst(%1167 : memref<32x128xbf16, #tpu.memory_space<vmem>>)
    %c11_i32_822 = arith.constant 11 : i32
    %c1_i32_823 = arith.constant 1 : i32
    %c1_i32_824 = arith.constant 1 : i32
    %c1_i32_825 = arith.constant 1 : i32
    %c0_i32_826 = arith.constant 0 : i32
    %c0_i32_827 = arith.constant 0 : i32
    %1170 = tpu.memref_slice %arg4[%c11_i32_822, %c0_i32_826, %c0_i32_827] : memref<16x32x128xbf16, #tpu.memory_space<any>> -> memref<1x32x128xbf16, #tpu.memory_space<any>>
    %1171 = tpu.memref_squeeze %1170 : memref<1x32x128xbf16, #tpu.memory_space<any>> -> memref<32x128xbf16, #tpu.memory_space<any>>
    %c0_i32_828 = arith.constant 0 : i32
    %c0_i32_829 = arith.constant 0 : i32
    %1172 = tpu.memref_slice %arg10[%c1_i32_823, %c0_i32_828, %c0_i32_829] : memref<2x32x128xbf16, #tpu.memory_space<vmem>> -> memref<1x32x128xbf16, #tpu.memory_space<vmem>>
    %1173 = tpu.memref_squeeze %1172 : memref<1x32x128xbf16, #tpu.memory_space<vmem>> -> memref<32x128xbf16, #tpu.memory_space<vmem>>
    %1174 = tpu.memref_slice %arg12[%c1_i32_824, %c1_i32_825] : memref<2x3x!tpu.dma_semaphore, #tpu.memory_space<semaphore_mem>> -> memref<1x1x!tpu.dma_semaphore, #tpu.memory_space<semaphore_mem>>
    %1175 = tpu.memref_squeeze %1174 : memref<1x1x!tpu.dma_semaphore, #tpu.memory_space<semaphore_mem>> -> memref<!tpu.dma_semaphore, #tpu.memory_space<semaphore_mem>>
    tpu.wait_dma2 semaphore(%1175 : memref<!tpu.dma_semaphore, #tpu.memory_space<semaphore_mem>>) src(%1171 : memref<32x128xbf16, #tpu.memory_space<any>>) dst(%1173 : memref<32x128xbf16, #tpu.memory_space<vmem>>)
    %c11_i32_830 = arith.constant 11 : i32
    %c1_i32_831 = arith.constant 1 : i32
    %c1_i32_832 = arith.constant 1 : i32
    %c2_i32_833 = arith.constant 2 : i32
    %c0_i32_834 = arith.constant 0 : i32
    %c0_i32_835 = arith.constant 0 : i32
    %1176 = tpu.memref_slice %arg5[%c11_i32_830, %c0_i32_834, %c0_i32_835] : memref<16x8x128xf32, #tpu.memory_space<any>> -> memref<1x8x128xf32, #tpu.memory_space<any>>
    %1177 = tpu.memref_squeeze %1176 : memref<1x8x128xf32, #tpu.memory_space<any>> -> memref<8x128xf32, #tpu.memory_space<any>>
    %c0_i32_836 = arith.constant 0 : i32
    %c0_i32_837 = arith.constant 0 : i32
    %1178 = tpu.memref_slice %arg11[%c1_i32_831, %c0_i32_836, %c0_i32_837] : memref<2x8x128xf32, #tpu.memory_space<vmem>> -> memref<1x8x128xf32, #tpu.memory_space<vmem>>
    %1179 = tpu.memref_squeeze %1178 : memref<1x8x128xf32, #tpu.memory_space<vmem>> -> memref<8x128xf32, #tpu.memory_space<vmem>>
    %1180 = tpu.memref_slice %arg12[%c1_i32_832, %c2_i32_833] : memref<2x3x!tpu.dma_semaphore, #tpu.memory_space<semaphore_mem>> -> memref<1x1x!tpu.dma_semaphore, #tpu.memory_space<semaphore_mem>>
    %1181 = tpu.memref_squeeze %1180 : memref<1x1x!tpu.dma_semaphore, #tpu.memory_space<semaphore_mem>> -> memref<!tpu.dma_semaphore, #tpu.memory_space<semaphore_mem>>
    tpu.wait_dma2 semaphore(%1181 : memref<!tpu.dma_semaphore, #tpu.memory_space<semaphore_mem>>) src(%1177 : memref<8x128xf32, #tpu.memory_space<any>>) dst(%1179 : memref<8x128xf32, #tpu.memory_space<vmem>>)
    %c10_i32_838 = arith.constant 10 : i32
    %c0_i32_839 = arith.constant 0 : i32
    %c0_i32_840 = arith.constant 0 : i32
    %c0_i32_841 = arith.constant 0 : i32
    %c0_i32_842 = arith.constant 0 : i32
    %c0_i32_843 = arith.constant 0 : i32
    %1182 = tpu.memref_slice %arg2[%c10_i32_838, %c0_i32_842, %c0_i32_843] : memref<14x32x128xbf16, #tpu.memory_space<any>> -> memref<1x32x128xbf16, #tpu.memory_space<any>>
    %1183 = tpu.memref_squeeze %1182 : memref<1x32x128xbf16, #tpu.memory_space<any>> -> memref<32x128xbf16, #tpu.memory_space<any>>
    %c0_i32_844 = arith.constant 0 : i32
    %c0_i32_845 = arith.constant 0 : i32
    %1184 = tpu.memref_slice %arg8[%c0_i32_839, %c0_i32_844, %c0_i32_845] : memref<2x32x128xbf16, #tpu.memory_space<vmem>> -> memref<1x32x128xbf16, #tpu.memory_space<vmem>>
    %1185 = tpu.memref_squeeze %1184 : memref<1x32x128xbf16, #tpu.memory_space<vmem>> -> memref<32x128xbf16, #tpu.memory_space<vmem>>
    %1186 = tpu.memref_slice %arg12[%c0_i32_840, %c0_i32_841] : memref<2x3x!tpu.dma_semaphore, #tpu.memory_space<semaphore_mem>> -> memref<1x1x!tpu.dma_semaphore, #tpu.memory_space<semaphore_mem>>
    %1187 = tpu.memref_squeeze %1186 : memref<1x1x!tpu.dma_semaphore, #tpu.memory_space<semaphore_mem>> -> memref<!tpu.dma_semaphore, #tpu.memory_space<semaphore_mem>>
    tpu.enqueue_dma source(%1183 : memref<32x128xbf16, #tpu.memory_space<any>>) target(%1185 : memref<32x128xbf16, #tpu.memory_space<vmem>>) target_semaphore(%1187 : memref<!tpu.dma_semaphore, #tpu.memory_space<semaphore_mem>>)
    %c12_i32 = arith.constant 12 : i32
    %c0_i32_846 = arith.constant 0 : i32
    %c0_i32_847 = arith.constant 0 : i32
    %c1_i32_848 = arith.constant 1 : i32
    %c0_i32_849 = arith.constant 0 : i32
    %c0_i32_850 = arith.constant 0 : i32
    %1188 = tpu.memref_slice %arg4[%c12_i32, %c0_i32_849, %c0_i32_850] : memref<16x32x128xbf16, #tpu.memory_space<any>> -> memref<1x32x128xbf16, #tpu.memory_space<any>>
    %1189 = tpu.memref_squeeze %1188 : memref<1x32x128xbf16, #tpu.memory_space<any>> -> memref<32x128xbf16, #tpu.memory_space<any>>
    %c0_i32_851 = arith.constant 0 : i32
    %c0_i32_852 = arith.constant 0 : i32
    %1190 = tpu.memref_slice %arg10[%c0_i32_846, %c0_i32_851, %c0_i32_852] : memref<2x32x128xbf16, #tpu.memory_space<vmem>> -> memref<1x32x128xbf16, #tpu.memory_space<vmem>>
    %1191 = tpu.memref_squeeze %1190 : memref<1x32x128xbf16, #tpu.memory_space<vmem>> -> memref<32x128xbf16, #tpu.memory_space<vmem>>
    %1192 = tpu.memref_slice %arg12[%c0_i32_847, %c1_i32_848] : memref<2x3x!tpu.dma_semaphore, #tpu.memory_space<semaphore_mem>> -> memref<1x1x!tpu.dma_semaphore, #tpu.memory_space<semaphore_mem>>
    %1193 = tpu.memref_squeeze %1192 : memref<1x1x!tpu.dma_semaphore, #tpu.memory_space<semaphore_mem>> -> memref<!tpu.dma_semaphore, #tpu.memory_space<semaphore_mem>>
    tpu.enqueue_dma source(%1189 : memref<32x128xbf16, #tpu.memory_space<any>>) target(%1191 : memref<32x128xbf16, #tpu.memory_space<vmem>>) target_semaphore(%1193 : memref<!tpu.dma_semaphore, #tpu.memory_space<semaphore_mem>>)
    %c12_i32_853 = arith.constant 12 : i32
    %c0_i32_854 = arith.constant 0 : i32
    %c0_i32_855 = arith.constant 0 : i32
    %c2_i32_856 = arith.constant 2 : i32
    %c0_i32_857 = arith.constant 0 : i32
    %c0_i32_858 = arith.constant 0 : i32
    %1194 = tpu.memref_slice %arg5[%c12_i32_853, %c0_i32_857, %c0_i32_858] : memref<16x8x128xf32, #tpu.memory_space<any>> -> memref<1x8x128xf32, #tpu.memory_space<any>>
    %1195 = tpu.memref_squeeze %1194 : memref<1x8x128xf32, #tpu.memory_space<any>> -> memref<8x128xf32, #tpu.memory_space<any>>
    %c0_i32_859 = arith.constant 0 : i32
    %c0_i32_860 = arith.constant 0 : i32
    %1196 = tpu.memref_slice %arg11[%c0_i32_854, %c0_i32_859, %c0_i32_860] : memref<2x8x128xf32, #tpu.memory_space<vmem>> -> memref<1x8x128xf32, #tpu.memory_space<vmem>>
    %1197 = tpu.memref_squeeze %1196 : memref<1x8x128xf32, #tpu.memory_space<vmem>> -> memref<8x128xf32, #tpu.memory_space<vmem>>
    %1198 = tpu.memref_slice %arg12[%c0_i32_855, %c2_i32_856] : memref<2x3x!tpu.dma_semaphore, #tpu.memory_space<semaphore_mem>> -> memref<1x1x!tpu.dma_semaphore, #tpu.memory_space<semaphore_mem>>
    %1199 = tpu.memref_squeeze %1198 : memref<1x1x!tpu.dma_semaphore, #tpu.memory_space<semaphore_mem>> -> memref<!tpu.dma_semaphore, #tpu.memory_space<semaphore_mem>>
    tpu.enqueue_dma source(%1195 : memref<8x128xf32, #tpu.memory_space<any>>) target(%1197 : memref<8x128xf32, #tpu.memory_space<vmem>>) target_semaphore(%1199 : memref<!tpu.dma_semaphore, #tpu.memory_space<semaphore_mem>>)
    %c1_861 = arith.constant 1 : index
    %c0_862 = arith.constant 0 : index
    %c0_863 = arith.constant 0 : index
    %1200 = vector.load %arg11[%c1_861, %c0_862, %c0_863] : memref<2x8x128xf32, #tpu.memory_space<vmem>>, vector<1x8x128xf32>
    %1201 = vector.shape_cast %1200 : vector<1x8x128xf32> to vector<8x128xf32>
    %1202 = vector.extract_strided_slice %1163 {offsets = [0, 0], sizes = [16, 32], strides = [1, 1]} : vector<16x128xf32> to vector<16x32xf32>
    %1203 = arith.truncf %1202 : vector<16x32xf32> to vector<16x32xbf16>
    %c1_864 = arith.constant 1 : index
    %c0_865 = arith.constant 0 : index
    %c0_866 = arith.constant 0 : index
    %1204 = vector.load %arg8[%c1_864, %c0_865, %c0_866] : memref<2x32x128xbf16, #tpu.memory_space<vmem>>, vector<1x32x128xbf16>
    %1205 = vector.shape_cast %1204 : vector<1x32x128xbf16> to vector<32x128xbf16>
    %cst_867 = arith.constant dense<0.000000e+00> : vector<16x128xf32>
    %1206 = tpu.matmul %1203, %1205, %cst_867 {dimension_numbers = #tpu.dot_dimension_numbers<[1], [0], [0], [1], [0, 0, 1, 1], [], []>} : vector<16x32xbf16>, vector<32x128xbf16>, vector<16x128xf32> -> vector<16x128xf32>
    %1207 = vector.extract_strided_slice %1201 {offsets = [0, 0], sizes = [1, 128], strides = [1, 1]} : vector<8x128xf32> to vector<1x128xf32>
    %1208 = vector.extract_strided_slice %1201 {offsets = [1, 0], sizes = [1, 128], strides = [1, 1]} : vector<8x128xf32> to vector<1x128xf32>
    %cst_868 = arith.constant dense<0.000000e+00> : vector<128xf32>
    %1209 = vector.multi_reduction <add>, %1206, %cst_868 [0] : vector<16x128xf32> to vector<128xf32>
    %1210 = vector.shape_cast %1209 : vector<128xf32> to vector<1x128xf32>
    %1211 = arith.mulf %1206, %1206 : vector<16x128xf32>
    %cst_869 = arith.constant dense<0.000000e+00> : vector<128xf32>
    %1212 = vector.multi_reduction <add>, %1211, %cst_869 [0] : vector<16x128xf32> to vector<128xf32>
    %1213 = vector.shape_cast %1212 : vector<128xf32> to vector<1x128xf32>
    %cst_870 = arith.constant 6.250000e-02 : f32
    %1214 = vector.broadcast %cst_870 : f32 to vector<1x128xf32>
    %1215 = arith.mulf %1210, %1214 : vector<1x128xf32>
    %cst_871 = arith.constant 6.250000e-02 : f32
    %1216 = vector.broadcast %cst_871 : f32 to vector<1x128xf32>
    %1217 = arith.mulf %1213, %1216 : vector<1x128xf32>
    %1218 = arith.mulf %1215, %1215 : vector<1x128xf32>
    %1219 = arith.subf %1217, %1218 : vector<1x128xf32>
    %cst_872 = arith.constant 0.000000e+00 : f32
    %1220 = vector.broadcast %cst_872 : f32 to vector<1x128xf32>
    %1221 = arith.maximumf %1219, %1220 : vector<1x128xf32>
    %cst_873 = arith.constant 9.99999974E-6 : f32
    %1222 = vector.broadcast %cst_873 : f32 to vector<1x128xf32>
    %1223 = arith.addf %1221, %1222 : vector<1x128xf32>
    %1224 = math.rsqrt %1223 : vector<1x128xf32>
    %1225 = arith.mulf %1207, %1224 : vector<1x128xf32>
    %1226 = arith.mulf %1215, %1225 : vector<1x128xf32>
    %1227 = arith.subf %1208, %1226 : vector<1x128xf32>
    %1228 = vector.broadcast %1225 : vector<1x128xf32> to vector<16x128xf32>
    %1229 = arith.mulf %1206, %1228 : vector<16x128xf32>
    %1230 = vector.broadcast %1227 : vector<1x128xf32> to vector<16x128xf32>
    %1231 = arith.addf %1229, %1230 : vector<16x128xf32>
    %cst_874 = arith.constant 0.000000e+00 : f32
    %1232 = vector.broadcast %cst_874 : f32 to vector<16x128xf32>
    %1233 = arith.maximumf %1231, %1232 : vector<16x128xf32>
    %1234 = vector.extract_strided_slice %1233 {offsets = [0, 0], sizes = [16, 32], strides = [1, 1]} : vector<16x128xf32> to vector<16x32xf32>
    %1235 = arith.truncf %1234 : vector<16x32xf32> to vector<16x32xbf16>
    %c1_875 = arith.constant 1 : index
    %c0_876 = arith.constant 0 : index
    %c0_877 = arith.constant 0 : index
    %1236 = vector.load %arg10[%c1_875, %c0_876, %c0_877] : memref<2x32x128xbf16, #tpu.memory_space<vmem>>, vector<1x32x128xbf16>
    %1237 = vector.shape_cast %1236 : vector<1x32x128xbf16> to vector<32x128xbf16>
    %cst_878 = arith.constant dense<0.000000e+00> : vector<16x128xf32>
    %1238 = tpu.matmul %1235, %1237, %cst_878 {dimension_numbers = #tpu.dot_dimension_numbers<[1], [0], [0], [1], [0, 0, 1, 1], [], []>} : vector<16x32xbf16>, vector<32x128xbf16>, vector<16x128xf32> -> vector<16x128xf32>
    %1239 = vector.extract_strided_slice %1201 {offsets = [2, 0], sizes = [1, 128], strides = [1, 1]} : vector<8x128xf32> to vector<1x128xf32>
    %1240 = vector.extract_strided_slice %1201 {offsets = [3, 0], sizes = [1, 128], strides = [1, 1]} : vector<8x128xf32> to vector<1x128xf32>
    %cst_879 = arith.constant dense<0.000000e+00> : vector<128xf32>
    %1241 = vector.multi_reduction <add>, %1238, %cst_879 [0] : vector<16x128xf32> to vector<128xf32>
    %1242 = vector.shape_cast %1241 : vector<128xf32> to vector<1x128xf32>
    %1243 = arith.mulf %1238, %1238 : vector<16x128xf32>
    %cst_880 = arith.constant dense<0.000000e+00> : vector<128xf32>
    %1244 = vector.multi_reduction <add>, %1243, %cst_880 [0] : vector<16x128xf32> to vector<128xf32>
    %1245 = vector.shape_cast %1244 : vector<128xf32> to vector<1x128xf32>
    %cst_881 = arith.constant 6.250000e-02 : f32
    %1246 = vector.broadcast %cst_881 : f32 to vector<1x128xf32>
    %1247 = arith.mulf %1242, %1246 : vector<1x128xf32>
    %cst_882 = arith.constant 6.250000e-02 : f32
    %1248 = vector.broadcast %cst_882 : f32 to vector<1x128xf32>
    %1249 = arith.mulf %1245, %1248 : vector<1x128xf32>
    %1250 = arith.mulf %1247, %1247 : vector<1x128xf32>
    %1251 = arith.subf %1249, %1250 : vector<1x128xf32>
    %cst_883 = arith.constant 0.000000e+00 : f32
    %1252 = vector.broadcast %cst_883 : f32 to vector<1x128xf32>
    %1253 = arith.maximumf %1251, %1252 : vector<1x128xf32>
    %cst_884 = arith.constant 9.99999974E-6 : f32
    %1254 = vector.broadcast %cst_884 : f32 to vector<1x128xf32>
    %1255 = arith.addf %1253, %1254 : vector<1x128xf32>
    %1256 = math.rsqrt %1255 : vector<1x128xf32>
    %1257 = arith.mulf %1239, %1256 : vector<1x128xf32>
    %1258 = arith.mulf %1247, %1257 : vector<1x128xf32>
    %1259 = arith.subf %1240, %1258 : vector<1x128xf32>
    %1260 = vector.broadcast %1257 : vector<1x128xf32> to vector<16x128xf32>
    %1261 = arith.mulf %1238, %1260 : vector<16x128xf32>
    %1262 = vector.broadcast %1259 : vector<1x128xf32> to vector<16x128xf32>
    %1263 = arith.addf %1261, %1262 : vector<16x128xf32>
    %1264 = arith.addf %1263, %1163 : vector<16x128xf32>
    %cst_885 = arith.constant 0.000000e+00 : f32
    %1265 = vector.broadcast %cst_885 : f32 to vector<16x128xf32>
    %1266 = arith.maximumf %1264, %1265 : vector<16x128xf32>
    %c10_i32_886 = arith.constant 10 : i32
    %c0_i32_887 = arith.constant 0 : i32
    %c0_i32_888 = arith.constant 0 : i32
    %c0_i32_889 = arith.constant 0 : i32
    %c0_i32_890 = arith.constant 0 : i32
    %c0_i32_891 = arith.constant 0 : i32
    %1267 = tpu.memref_slice %arg2[%c10_i32_886, %c0_i32_890, %c0_i32_891] : memref<14x32x128xbf16, #tpu.memory_space<any>> -> memref<1x32x128xbf16, #tpu.memory_space<any>>
    %1268 = tpu.memref_squeeze %1267 : memref<1x32x128xbf16, #tpu.memory_space<any>> -> memref<32x128xbf16, #tpu.memory_space<any>>
    %c0_i32_892 = arith.constant 0 : i32
    %c0_i32_893 = arith.constant 0 : i32
    %1269 = tpu.memref_slice %arg8[%c0_i32_887, %c0_i32_892, %c0_i32_893] : memref<2x32x128xbf16, #tpu.memory_space<vmem>> -> memref<1x32x128xbf16, #tpu.memory_space<vmem>>
    %1270 = tpu.memref_squeeze %1269 : memref<1x32x128xbf16, #tpu.memory_space<vmem>> -> memref<32x128xbf16, #tpu.memory_space<vmem>>
    %1271 = tpu.memref_slice %arg12[%c0_i32_888, %c0_i32_889] : memref<2x3x!tpu.dma_semaphore, #tpu.memory_space<semaphore_mem>> -> memref<1x1x!tpu.dma_semaphore, #tpu.memory_space<semaphore_mem>>
    %1272 = tpu.memref_squeeze %1271 : memref<1x1x!tpu.dma_semaphore, #tpu.memory_space<semaphore_mem>> -> memref<!tpu.dma_semaphore, #tpu.memory_space<semaphore_mem>>
    tpu.wait_dma2 semaphore(%1272 : memref<!tpu.dma_semaphore, #tpu.memory_space<semaphore_mem>>) src(%1268 : memref<32x128xbf16, #tpu.memory_space<any>>) dst(%1270 : memref<32x128xbf16, #tpu.memory_space<vmem>>)
    %c12_i32_894 = arith.constant 12 : i32
    %c0_i32_895 = arith.constant 0 : i32
    %c0_i32_896 = arith.constant 0 : i32
    %c1_i32_897 = arith.constant 1 : i32
    %c0_i32_898 = arith.constant 0 : i32
    %c0_i32_899 = arith.constant 0 : i32
    %1273 = tpu.memref_slice %arg4[%c12_i32_894, %c0_i32_898, %c0_i32_899] : memref<16x32x128xbf16, #tpu.memory_space<any>> -> memref<1x32x128xbf16, #tpu.memory_space<any>>
    %1274 = tpu.memref_squeeze %1273 : memref<1x32x128xbf16, #tpu.memory_space<any>> -> memref<32x128xbf16, #tpu.memory_space<any>>
    %c0_i32_900 = arith.constant 0 : i32
    %c0_i32_901 = arith.constant 0 : i32
    %1275 = tpu.memref_slice %arg10[%c0_i32_895, %c0_i32_900, %c0_i32_901] : memref<2x32x128xbf16, #tpu.memory_space<vmem>> -> memref<1x32x128xbf16, #tpu.memory_space<vmem>>
    %1276 = tpu.memref_squeeze %1275 : memref<1x32x128xbf16, #tpu.memory_space<vmem>> -> memref<32x128xbf16, #tpu.memory_space<vmem>>
    %1277 = tpu.memref_slice %arg12[%c0_i32_896, %c1_i32_897] : memref<2x3x!tpu.dma_semaphore, #tpu.memory_space<semaphore_mem>> -> memref<1x1x!tpu.dma_semaphore, #tpu.memory_space<semaphore_mem>>
    %1278 = tpu.memref_squeeze %1277 : memref<1x1x!tpu.dma_semaphore, #tpu.memory_space<semaphore_mem>> -> memref<!tpu.dma_semaphore, #tpu.memory_space<semaphore_mem>>
    tpu.wait_dma2 semaphore(%1278 : memref<!tpu.dma_semaphore, #tpu.memory_space<semaphore_mem>>) src(%1274 : memref<32x128xbf16, #tpu.memory_space<any>>) dst(%1276 : memref<32x128xbf16, #tpu.memory_space<vmem>>)
    %c12_i32_902 = arith.constant 12 : i32
    %c0_i32_903 = arith.constant 0 : i32
    %c0_i32_904 = arith.constant 0 : i32
    %c2_i32_905 = arith.constant 2 : i32
    %c0_i32_906 = arith.constant 0 : i32
    %c0_i32_907 = arith.constant 0 : i32
    %1279 = tpu.memref_slice %arg5[%c12_i32_902, %c0_i32_906, %c0_i32_907] : memref<16x8x128xf32, #tpu.memory_space<any>> -> memref<1x8x128xf32, #tpu.memory_space<any>>
    %1280 = tpu.memref_squeeze %1279 : memref<1x8x128xf32, #tpu.memory_space<any>> -> memref<8x128xf32, #tpu.memory_space<any>>
    %c0_i32_908 = arith.constant 0 : i32
    %c0_i32_909 = arith.constant 0 : i32
    %1281 = tpu.memref_slice %arg11[%c0_i32_903, %c0_i32_908, %c0_i32_909] : memref<2x8x128xf32, #tpu.memory_space<vmem>> -> memref<1x8x128xf32, #tpu.memory_space<vmem>>
    %1282 = tpu.memref_squeeze %1281 : memref<1x8x128xf32, #tpu.memory_space<vmem>> -> memref<8x128xf32, #tpu.memory_space<vmem>>
    %1283 = tpu.memref_slice %arg12[%c0_i32_904, %c2_i32_905] : memref<2x3x!tpu.dma_semaphore, #tpu.memory_space<semaphore_mem>> -> memref<1x1x!tpu.dma_semaphore, #tpu.memory_space<semaphore_mem>>
    %1284 = tpu.memref_squeeze %1283 : memref<1x1x!tpu.dma_semaphore, #tpu.memory_space<semaphore_mem>> -> memref<!tpu.dma_semaphore, #tpu.memory_space<semaphore_mem>>
    tpu.wait_dma2 semaphore(%1284 : memref<!tpu.dma_semaphore, #tpu.memory_space<semaphore_mem>>) src(%1280 : memref<8x128xf32, #tpu.memory_space<any>>) dst(%1282 : memref<8x128xf32, #tpu.memory_space<vmem>>)
    %c11_i32_910 = arith.constant 11 : i32
    %c1_i32_911 = arith.constant 1 : i32
    %c1_i32_912 = arith.constant 1 : i32
    %c0_i32_913 = arith.constant 0 : i32
    %c0_i32_914 = arith.constant 0 : i32
    %c0_i32_915 = arith.constant 0 : i32
    %1285 = tpu.memref_slice %arg2[%c11_i32_910, %c0_i32_914, %c0_i32_915] : memref<14x32x128xbf16, #tpu.memory_space<any>> -> memref<1x32x128xbf16, #tpu.memory_space<any>>
    %1286 = tpu.memref_squeeze %1285 : memref<1x32x128xbf16, #tpu.memory_space<any>> -> memref<32x128xbf16, #tpu.memory_space<any>>
    %c0_i32_916 = arith.constant 0 : i32
    %c0_i32_917 = arith.constant 0 : i32
    %1287 = tpu.memref_slice %arg8[%c1_i32_911, %c0_i32_916, %c0_i32_917] : memref<2x32x128xbf16, #tpu.memory_space<vmem>> -> memref<1x32x128xbf16, #tpu.memory_space<vmem>>
    %1288 = tpu.memref_squeeze %1287 : memref<1x32x128xbf16, #tpu.memory_space<vmem>> -> memref<32x128xbf16, #tpu.memory_space<vmem>>
    %1289 = tpu.memref_slice %arg12[%c1_i32_912, %c0_i32_913] : memref<2x3x!tpu.dma_semaphore, #tpu.memory_space<semaphore_mem>> -> memref<1x1x!tpu.dma_semaphore, #tpu.memory_space<semaphore_mem>>
    %1290 = tpu.memref_squeeze %1289 : memref<1x1x!tpu.dma_semaphore, #tpu.memory_space<semaphore_mem>> -> memref<!tpu.dma_semaphore, #tpu.memory_space<semaphore_mem>>
    tpu.enqueue_dma source(%1286 : memref<32x128xbf16, #tpu.memory_space<any>>) target(%1288 : memref<32x128xbf16, #tpu.memory_space<vmem>>) target_semaphore(%1290 : memref<!tpu.dma_semaphore, #tpu.memory_space<semaphore_mem>>)
    %c13_i32 = arith.constant 13 : i32
    %c1_i32_918 = arith.constant 1 : i32
    %c1_i32_919 = arith.constant 1 : i32
    %c1_i32_920 = arith.constant 1 : i32
    %c0_i32_921 = arith.constant 0 : i32
    %c0_i32_922 = arith.constant 0 : i32
    %1291 = tpu.memref_slice %arg4[%c13_i32, %c0_i32_921, %c0_i32_922] : memref<16x32x128xbf16, #tpu.memory_space<any>> -> memref<1x32x128xbf16, #tpu.memory_space<any>>
    %1292 = tpu.memref_squeeze %1291 : memref<1x32x128xbf16, #tpu.memory_space<any>> -> memref<32x128xbf16, #tpu.memory_space<any>>
    %c0_i32_923 = arith.constant 0 : i32
    %c0_i32_924 = arith.constant 0 : i32
    %1293 = tpu.memref_slice %arg10[%c1_i32_918, %c0_i32_923, %c0_i32_924] : memref<2x32x128xbf16, #tpu.memory_space<vmem>> -> memref<1x32x128xbf16, #tpu.memory_space<vmem>>
    %1294 = tpu.memref_squeeze %1293 : memref<1x32x128xbf16, #tpu.memory_space<vmem>> -> memref<32x128xbf16, #tpu.memory_space<vmem>>
    %1295 = tpu.memref_slice %arg12[%c1_i32_919, %c1_i32_920] : memref<2x3x!tpu.dma_semaphore, #tpu.memory_space<semaphore_mem>> -> memref<1x1x!tpu.dma_semaphore, #tpu.memory_space<semaphore_mem>>
    %1296 = tpu.memref_squeeze %1295 : memref<1x1x!tpu.dma_semaphore, #tpu.memory_space<semaphore_mem>> -> memref<!tpu.dma_semaphore, #tpu.memory_space<semaphore_mem>>
    tpu.enqueue_dma source(%1292 : memref<32x128xbf16, #tpu.memory_space<any>>) target(%1294 : memref<32x128xbf16, #tpu.memory_space<vmem>>) target_semaphore(%1296 : memref<!tpu.dma_semaphore, #tpu.memory_space<semaphore_mem>>)
    %c13_i32_925 = arith.constant 13 : i32
    %c1_i32_926 = arith.constant 1 : i32
    %c1_i32_927 = arith.constant 1 : i32
    %c2_i32_928 = arith.constant 2 : i32
    %c0_i32_929 = arith.constant 0 : i32
    %c0_i32_930 = arith.constant 0 : i32
    %1297 = tpu.memref_slice %arg5[%c13_i32_925, %c0_i32_929, %c0_i32_930] : memref<16x8x128xf32, #tpu.memory_space<any>> -> memref<1x8x128xf32, #tpu.memory_space<any>>
    %1298 = tpu.memref_squeeze %1297 : memref<1x8x128xf32, #tpu.memory_space<any>> -> memref<8x128xf32, #tpu.memory_space<any>>
    %c0_i32_931 = arith.constant 0 : i32
    %c0_i32_932 = arith.constant 0 : i32
    %1299 = tpu.memref_slice %arg11[%c1_i32_926, %c0_i32_931, %c0_i32_932] : memref<2x8x128xf32, #tpu.memory_space<vmem>> -> memref<1x8x128xf32, #tpu.memory_space<vmem>>
    %1300 = tpu.memref_squeeze %1299 : memref<1x8x128xf32, #tpu.memory_space<vmem>> -> memref<8x128xf32, #tpu.memory_space<vmem>>
    %1301 = tpu.memref_slice %arg12[%c1_i32_927, %c2_i32_928] : memref<2x3x!tpu.dma_semaphore, #tpu.memory_space<semaphore_mem>> -> memref<1x1x!tpu.dma_semaphore, #tpu.memory_space<semaphore_mem>>
    %1302 = tpu.memref_squeeze %1301 : memref<1x1x!tpu.dma_semaphore, #tpu.memory_space<semaphore_mem>> -> memref<!tpu.dma_semaphore, #tpu.memory_space<semaphore_mem>>
    tpu.enqueue_dma source(%1298 : memref<8x128xf32, #tpu.memory_space<any>>) target(%1300 : memref<8x128xf32, #tpu.memory_space<vmem>>) target_semaphore(%1302 : memref<!tpu.dma_semaphore, #tpu.memory_space<semaphore_mem>>)
    %c0_933 = arith.constant 0 : index
    %c0_934 = arith.constant 0 : index
    %c0_935 = arith.constant 0 : index
    %1303 = vector.load %arg11[%c0_933, %c0_934, %c0_935] : memref<2x8x128xf32, #tpu.memory_space<vmem>>, vector<1x8x128xf32>
    %1304 = vector.shape_cast %1303 : vector<1x8x128xf32> to vector<8x128xf32>
    %1305 = vector.extract_strided_slice %1266 {offsets = [0, 0], sizes = [16, 32], strides = [1, 1]} : vector<16x128xf32> to vector<16x32xf32>
    %1306 = arith.truncf %1305 : vector<16x32xf32> to vector<16x32xbf16>
    %c0_936 = arith.constant 0 : index
    %c0_937 = arith.constant 0 : index
    %c0_938 = arith.constant 0 : index
    %1307 = vector.load %arg8[%c0_936, %c0_937, %c0_938] : memref<2x32x128xbf16, #tpu.memory_space<vmem>>, vector<1x32x128xbf16>
    %1308 = vector.shape_cast %1307 : vector<1x32x128xbf16> to vector<32x128xbf16>
    %cst_939 = arith.constant dense<0.000000e+00> : vector<16x128xf32>
    %1309 = tpu.matmul %1306, %1308, %cst_939 {dimension_numbers = #tpu.dot_dimension_numbers<[1], [0], [0], [1], [0, 0, 1, 1], [], []>} : vector<16x32xbf16>, vector<32x128xbf16>, vector<16x128xf32> -> vector<16x128xf32>
    %1310 = vector.extract_strided_slice %1304 {offsets = [0, 0], sizes = [1, 128], strides = [1, 1]} : vector<8x128xf32> to vector<1x128xf32>
    %1311 = vector.extract_strided_slice %1304 {offsets = [1, 0], sizes = [1, 128], strides = [1, 1]} : vector<8x128xf32> to vector<1x128xf32>
    %cst_940 = arith.constant dense<0.000000e+00> : vector<128xf32>
    %1312 = vector.multi_reduction <add>, %1309, %cst_940 [0] : vector<16x128xf32> to vector<128xf32>
    %1313 = vector.shape_cast %1312 : vector<128xf32> to vector<1x128xf32>
    %1314 = arith.mulf %1309, %1309 : vector<16x128xf32>
    %cst_941 = arith.constant dense<0.000000e+00> : vector<128xf32>
    %1315 = vector.multi_reduction <add>, %1314, %cst_941 [0] : vector<16x128xf32> to vector<128xf32>
    %1316 = vector.shape_cast %1315 : vector<128xf32> to vector<1x128xf32>
    %cst_942 = arith.constant 6.250000e-02 : f32
    %1317 = vector.broadcast %cst_942 : f32 to vector<1x128xf32>
    %1318 = arith.mulf %1313, %1317 : vector<1x128xf32>
    %cst_943 = arith.constant 6.250000e-02 : f32
    %1319 = vector.broadcast %cst_943 : f32 to vector<1x128xf32>
    %1320 = arith.mulf %1316, %1319 : vector<1x128xf32>
    %1321 = arith.mulf %1318, %1318 : vector<1x128xf32>
    %1322 = arith.subf %1320, %1321 : vector<1x128xf32>
    %cst_944 = arith.constant 0.000000e+00 : f32
    %1323 = vector.broadcast %cst_944 : f32 to vector<1x128xf32>
    %1324 = arith.maximumf %1322, %1323 : vector<1x128xf32>
    %cst_945 = arith.constant 9.99999974E-6 : f32
    %1325 = vector.broadcast %cst_945 : f32 to vector<1x128xf32>
    %1326 = arith.addf %1324, %1325 : vector<1x128xf32>
    %1327 = math.rsqrt %1326 : vector<1x128xf32>
    %1328 = arith.mulf %1310, %1327 : vector<1x128xf32>
    %1329 = arith.mulf %1318, %1328 : vector<1x128xf32>
    %1330 = arith.subf %1311, %1329 : vector<1x128xf32>
    %1331 = vector.broadcast %1328 : vector<1x128xf32> to vector<16x128xf32>
    %1332 = arith.mulf %1309, %1331 : vector<16x128xf32>
    %1333 = vector.broadcast %1330 : vector<1x128xf32> to vector<16x128xf32>
    %1334 = arith.addf %1332, %1333 : vector<16x128xf32>
    %cst_946 = arith.constant 0.000000e+00 : f32
    %1335 = vector.broadcast %cst_946 : f32 to vector<16x128xf32>
    %1336 = arith.maximumf %1334, %1335 : vector<16x128xf32>
    %1337 = vector.extract_strided_slice %1336 {offsets = [0, 0], sizes = [16, 32], strides = [1, 1]} : vector<16x128xf32> to vector<16x32xf32>
    %1338 = arith.truncf %1337 : vector<16x32xf32> to vector<16x32xbf16>
    %c0_947 = arith.constant 0 : index
    %c0_948 = arith.constant 0 : index
    %c0_949 = arith.constant 0 : index
    %1339 = vector.load %arg10[%c0_947, %c0_948, %c0_949] : memref<2x32x128xbf16, #tpu.memory_space<vmem>>, vector<1x32x128xbf16>
    %1340 = vector.shape_cast %1339 : vector<1x32x128xbf16> to vector<32x128xbf16>
    %cst_950 = arith.constant dense<0.000000e+00> : vector<16x128xf32>
    %1341 = tpu.matmul %1338, %1340, %cst_950 {dimension_numbers = #tpu.dot_dimension_numbers<[1], [0], [0], [1], [0, 0, 1, 1], [], []>} : vector<16x32xbf16>, vector<32x128xbf16>, vector<16x128xf32> -> vector<16x128xf32>
    %1342 = vector.extract_strided_slice %1304 {offsets = [2, 0], sizes = [1, 128], strides = [1, 1]} : vector<8x128xf32> to vector<1x128xf32>
    %1343 = vector.extract_strided_slice %1304 {offsets = [3, 0], sizes = [1, 128], strides = [1, 1]} : vector<8x128xf32> to vector<1x128xf32>
    %cst_951 = arith.constant dense<0.000000e+00> : vector<128xf32>
    %1344 = vector.multi_reduction <add>, %1341, %cst_951 [0] : vector<16x128xf32> to vector<128xf32>
    %1345 = vector.shape_cast %1344 : vector<128xf32> to vector<1x128xf32>
    %1346 = arith.mulf %1341, %1341 : vector<16x128xf32>
    %cst_952 = arith.constant dense<0.000000e+00> : vector<128xf32>
    %1347 = vector.multi_reduction <add>, %1346, %cst_952 [0] : vector<16x128xf32> to vector<128xf32>
    %1348 = vector.shape_cast %1347 : vector<128xf32> to vector<1x128xf32>
    %cst_953 = arith.constant 6.250000e-02 : f32
    %1349 = vector.broadcast %cst_953 : f32 to vector<1x128xf32>
    %1350 = arith.mulf %1345, %1349 : vector<1x128xf32>
    %cst_954 = arith.constant 6.250000e-02 : f32
    %1351 = vector.broadcast %cst_954 : f32 to vector<1x128xf32>
    %1352 = arith.mulf %1348, %1351 : vector<1x128xf32>
    %1353 = arith.mulf %1350, %1350 : vector<1x128xf32>
    %1354 = arith.subf %1352, %1353 : vector<1x128xf32>
    %cst_955 = arith.constant 0.000000e+00 : f32
    %1355 = vector.broadcast %cst_955 : f32 to vector<1x128xf32>
    %1356 = arith.maximumf %1354, %1355 : vector<1x128xf32>
    %cst_956 = arith.constant 9.99999974E-6 : f32
    %1357 = vector.broadcast %cst_956 : f32 to vector<1x128xf32>
    %1358 = arith.addf %1356, %1357 : vector<1x128xf32>
    %1359 = math.rsqrt %1358 : vector<1x128xf32>
    %1360 = arith.mulf %1342, %1359 : vector<1x128xf32>
    %1361 = arith.mulf %1350, %1360 : vector<1x128xf32>
    %1362 = arith.subf %1343, %1361 : vector<1x128xf32>
    %1363 = vector.broadcast %1360 : vector<1x128xf32> to vector<16x128xf32>
    %1364 = arith.mulf %1341, %1363 : vector<16x128xf32>
    %1365 = vector.broadcast %1362 : vector<1x128xf32> to vector<16x128xf32>
    %1366 = arith.addf %1364, %1365 : vector<16x128xf32>
    %1367 = arith.addf %1366, %1266 : vector<16x128xf32>
    %cst_957 = arith.constant 0.000000e+00 : f32
    %1368 = vector.broadcast %cst_957 : f32 to vector<16x128xf32>
    %1369 = arith.maximumf %1367, %1368 : vector<16x128xf32>
    %c11_i32_958 = arith.constant 11 : i32
    %c1_i32_959 = arith.constant 1 : i32
    %c1_i32_960 = arith.constant 1 : i32
    %c0_i32_961 = arith.constant 0 : i32
    %c0_i32_962 = arith.constant 0 : i32
    %c0_i32_963 = arith.constant 0 : i32
    %1370 = tpu.memref_slice %arg2[%c11_i32_958, %c0_i32_962, %c0_i32_963] : memref<14x32x128xbf16, #tpu.memory_space<any>> -> memref<1x32x128xbf16, #tpu.memory_space<any>>
    %1371 = tpu.memref_squeeze %1370 : memref<1x32x128xbf16, #tpu.memory_space<any>> -> memref<32x128xbf16, #tpu.memory_space<any>>
    %c0_i32_964 = arith.constant 0 : i32
    %c0_i32_965 = arith.constant 0 : i32
    %1372 = tpu.memref_slice %arg8[%c1_i32_959, %c0_i32_964, %c0_i32_965] : memref<2x32x128xbf16, #tpu.memory_space<vmem>> -> memref<1x32x128xbf16, #tpu.memory_space<vmem>>
    %1373 = tpu.memref_squeeze %1372 : memref<1x32x128xbf16, #tpu.memory_space<vmem>> -> memref<32x128xbf16, #tpu.memory_space<vmem>>
    %1374 = tpu.memref_slice %arg12[%c1_i32_960, %c0_i32_961] : memref<2x3x!tpu.dma_semaphore, #tpu.memory_space<semaphore_mem>> -> memref<1x1x!tpu.dma_semaphore, #tpu.memory_space<semaphore_mem>>
    %1375 = tpu.memref_squeeze %1374 : memref<1x1x!tpu.dma_semaphore, #tpu.memory_space<semaphore_mem>> -> memref<!tpu.dma_semaphore, #tpu.memory_space<semaphore_mem>>
    tpu.wait_dma2 semaphore(%1375 : memref<!tpu.dma_semaphore, #tpu.memory_space<semaphore_mem>>) src(%1371 : memref<32x128xbf16, #tpu.memory_space<any>>) dst(%1373 : memref<32x128xbf16, #tpu.memory_space<vmem>>)
    %c13_i32_966 = arith.constant 13 : i32
    %c1_i32_967 = arith.constant 1 : i32
    %c1_i32_968 = arith.constant 1 : i32
    %c1_i32_969 = arith.constant 1 : i32
    %c0_i32_970 = arith.constant 0 : i32
    %c0_i32_971 = arith.constant 0 : i32
    %1376 = tpu.memref_slice %arg4[%c13_i32_966, %c0_i32_970, %c0_i32_971] : memref<16x32x128xbf16, #tpu.memory_space<any>> -> memref<1x32x128xbf16, #tpu.memory_space<any>>
    %1377 = tpu.memref_squeeze %1376 : memref<1x32x128xbf16, #tpu.memory_space<any>> -> memref<32x128xbf16, #tpu.memory_space<any>>
    %c0_i32_972 = arith.constant 0 : i32
    %c0_i32_973 = arith.constant 0 : i32
    %1378 = tpu.memref_slice %arg10[%c1_i32_967, %c0_i32_972, %c0_i32_973] : memref<2x32x128xbf16, #tpu.memory_space<vmem>> -> memref<1x32x128xbf16, #tpu.memory_space<vmem>>
    %1379 = tpu.memref_squeeze %1378 : memref<1x32x128xbf16, #tpu.memory_space<vmem>> -> memref<32x128xbf16, #tpu.memory_space<vmem>>
    %1380 = tpu.memref_slice %arg12[%c1_i32_968, %c1_i32_969] : memref<2x3x!tpu.dma_semaphore, #tpu.memory_space<semaphore_mem>> -> memref<1x1x!tpu.dma_semaphore, #tpu.memory_space<semaphore_mem>>
    %1381 = tpu.memref_squeeze %1380 : memref<1x1x!tpu.dma_semaphore, #tpu.memory_space<semaphore_mem>> -> memref<!tpu.dma_semaphore, #tpu.memory_space<semaphore_mem>>
    tpu.wait_dma2 semaphore(%1381 : memref<!tpu.dma_semaphore, #tpu.memory_space<semaphore_mem>>) src(%1377 : memref<32x128xbf16, #tpu.memory_space<any>>) dst(%1379 : memref<32x128xbf16, #tpu.memory_space<vmem>>)
    %c13_i32_974 = arith.constant 13 : i32
    %c1_i32_975 = arith.constant 1 : i32
    %c1_i32_976 = arith.constant 1 : i32
    %c2_i32_977 = arith.constant 2 : i32
    %c0_i32_978 = arith.constant 0 : i32
    %c0_i32_979 = arith.constant 0 : i32
    %1382 = tpu.memref_slice %arg5[%c13_i32_974, %c0_i32_978, %c0_i32_979] : memref<16x8x128xf32, #tpu.memory_space<any>> -> memref<1x8x128xf32, #tpu.memory_space<any>>
    %1383 = tpu.memref_squeeze %1382 : memref<1x8x128xf32, #tpu.memory_space<any>> -> memref<8x128xf32, #tpu.memory_space<any>>
    %c0_i32_980 = arith.constant 0 : i32
    %c0_i32_981 = arith.constant 0 : i32
    %1384 = tpu.memref_slice %arg11[%c1_i32_975, %c0_i32_980, %c0_i32_981] : memref<2x8x128xf32, #tpu.memory_space<vmem>> -> memref<1x8x128xf32, #tpu.memory_space<vmem>>
    %1385 = tpu.memref_squeeze %1384 : memref<1x8x128xf32, #tpu.memory_space<vmem>> -> memref<8x128xf32, #tpu.memory_space<vmem>>
    %1386 = tpu.memref_slice %arg12[%c1_i32_976, %c2_i32_977] : memref<2x3x!tpu.dma_semaphore, #tpu.memory_space<semaphore_mem>> -> memref<1x1x!tpu.dma_semaphore, #tpu.memory_space<semaphore_mem>>
    %1387 = tpu.memref_squeeze %1386 : memref<1x1x!tpu.dma_semaphore, #tpu.memory_space<semaphore_mem>> -> memref<!tpu.dma_semaphore, #tpu.memory_space<semaphore_mem>>
    tpu.wait_dma2 semaphore(%1387 : memref<!tpu.dma_semaphore, #tpu.memory_space<semaphore_mem>>) src(%1383 : memref<8x128xf32, #tpu.memory_space<any>>) dst(%1385 : memref<8x128xf32, #tpu.memory_space<vmem>>)
    %c12_i32_982 = arith.constant 12 : i32
    %c0_i32_983 = arith.constant 0 : i32
    %c0_i32_984 = arith.constant 0 : i32
    %c0_i32_985 = arith.constant 0 : i32
    %c0_i32_986 = arith.constant 0 : i32
    %c0_i32_987 = arith.constant 0 : i32
    %1388 = tpu.memref_slice %arg2[%c12_i32_982, %c0_i32_986, %c0_i32_987] : memref<14x32x128xbf16, #tpu.memory_space<any>> -> memref<1x32x128xbf16, #tpu.memory_space<any>>
    %1389 = tpu.memref_squeeze %1388 : memref<1x32x128xbf16, #tpu.memory_space<any>> -> memref<32x128xbf16, #tpu.memory_space<any>>
    %c0_i32_988 = arith.constant 0 : i32
    %c0_i32_989 = arith.constant 0 : i32
    %1390 = tpu.memref_slice %arg8[%c0_i32_983, %c0_i32_988, %c0_i32_989] : memref<2x32x128xbf16, #tpu.memory_space<vmem>> -> memref<1x32x128xbf16, #tpu.memory_space<vmem>>
    %1391 = tpu.memref_squeeze %1390 : memref<1x32x128xbf16, #tpu.memory_space<vmem>> -> memref<32x128xbf16, #tpu.memory_space<vmem>>
    %1392 = tpu.memref_slice %arg12[%c0_i32_984, %c0_i32_985] : memref<2x3x!tpu.dma_semaphore, #tpu.memory_space<semaphore_mem>> -> memref<1x1x!tpu.dma_semaphore, #tpu.memory_space<semaphore_mem>>
    %1393 = tpu.memref_squeeze %1392 : memref<1x1x!tpu.dma_semaphore, #tpu.memory_space<semaphore_mem>> -> memref<!tpu.dma_semaphore, #tpu.memory_space<semaphore_mem>>
    tpu.enqueue_dma source(%1389 : memref<32x128xbf16, #tpu.memory_space<any>>) target(%1391 : memref<32x128xbf16, #tpu.memory_space<vmem>>) target_semaphore(%1393 : memref<!tpu.dma_semaphore, #tpu.memory_space<semaphore_mem>>)
    %c14_i32 = arith.constant 14 : i32
    %c0_i32_990 = arith.constant 0 : i32
    %c0_i32_991 = arith.constant 0 : i32
    %c1_i32_992 = arith.constant 1 : i32
    %c0_i32_993 = arith.constant 0 : i32
    %c0_i32_994 = arith.constant 0 : i32
    %1394 = tpu.memref_slice %arg4[%c14_i32, %c0_i32_993, %c0_i32_994] : memref<16x32x128xbf16, #tpu.memory_space<any>> -> memref<1x32x128xbf16, #tpu.memory_space<any>>
    %1395 = tpu.memref_squeeze %1394 : memref<1x32x128xbf16, #tpu.memory_space<any>> -> memref<32x128xbf16, #tpu.memory_space<any>>
    %c0_i32_995 = arith.constant 0 : i32
    %c0_i32_996 = arith.constant 0 : i32
    %1396 = tpu.memref_slice %arg10[%c0_i32_990, %c0_i32_995, %c0_i32_996] : memref<2x32x128xbf16, #tpu.memory_space<vmem>> -> memref<1x32x128xbf16, #tpu.memory_space<vmem>>
    %1397 = tpu.memref_squeeze %1396 : memref<1x32x128xbf16, #tpu.memory_space<vmem>> -> memref<32x128xbf16, #tpu.memory_space<vmem>>
    %1398 = tpu.memref_slice %arg12[%c0_i32_991, %c1_i32_992] : memref<2x3x!tpu.dma_semaphore, #tpu.memory_space<semaphore_mem>> -> memref<1x1x!tpu.dma_semaphore, #tpu.memory_space<semaphore_mem>>
    %1399 = tpu.memref_squeeze %1398 : memref<1x1x!tpu.dma_semaphore, #tpu.memory_space<semaphore_mem>> -> memref<!tpu.dma_semaphore, #tpu.memory_space<semaphore_mem>>
    tpu.enqueue_dma source(%1395 : memref<32x128xbf16, #tpu.memory_space<any>>) target(%1397 : memref<32x128xbf16, #tpu.memory_space<vmem>>) target_semaphore(%1399 : memref<!tpu.dma_semaphore, #tpu.memory_space<semaphore_mem>>)
    %c14_i32_997 = arith.constant 14 : i32
    %c0_i32_998 = arith.constant 0 : i32
    %c0_i32_999 = arith.constant 0 : i32
    %c2_i32_1000 = arith.constant 2 : i32
    %c0_i32_1001 = arith.constant 0 : i32
    %c0_i32_1002 = arith.constant 0 : i32
    %1400 = tpu.memref_slice %arg5[%c14_i32_997, %c0_i32_1001, %c0_i32_1002] : memref<16x8x128xf32, #tpu.memory_space<any>> -> memref<1x8x128xf32, #tpu.memory_space<any>>
    %1401 = tpu.memref_squeeze %1400 : memref<1x8x128xf32, #tpu.memory_space<any>> -> memref<8x128xf32, #tpu.memory_space<any>>
    %c0_i32_1003 = arith.constant 0 : i32
    %c0_i32_1004 = arith.constant 0 : i32
    %1402 = tpu.memref_slice %arg11[%c0_i32_998, %c0_i32_1003, %c0_i32_1004] : memref<2x8x128xf32, #tpu.memory_space<vmem>> -> memref<1x8x128xf32, #tpu.memory_space<vmem>>
    %1403 = tpu.memref_squeeze %1402 : memref<1x8x128xf32, #tpu.memory_space<vmem>> -> memref<8x128xf32, #tpu.memory_space<vmem>>
    %1404 = tpu.memref_slice %arg12[%c0_i32_999, %c2_i32_1000] : memref<2x3x!tpu.dma_semaphore, #tpu.memory_space<semaphore_mem>> -> memref<1x1x!tpu.dma_semaphore, #tpu.memory_space<semaphore_mem>>
    %1405 = tpu.memref_squeeze %1404 : memref<1x1x!tpu.dma_semaphore, #tpu.memory_space<semaphore_mem>> -> memref<!tpu.dma_semaphore, #tpu.memory_space<semaphore_mem>>
    tpu.enqueue_dma source(%1401 : memref<8x128xf32, #tpu.memory_space<any>>) target(%1403 : memref<8x128xf32, #tpu.memory_space<vmem>>) target_semaphore(%1405 : memref<!tpu.dma_semaphore, #tpu.memory_space<semaphore_mem>>)
    %c1_1005 = arith.constant 1 : index
    %c0_1006 = arith.constant 0 : index
    %c0_1007 = arith.constant 0 : index
    %1406 = vector.load %arg11[%c1_1005, %c0_1006, %c0_1007] : memref<2x8x128xf32, #tpu.memory_space<vmem>>, vector<1x8x128xf32>
    %1407 = vector.shape_cast %1406 : vector<1x8x128xf32> to vector<8x128xf32>
    %1408 = vector.extract_strided_slice %1369 {offsets = [0, 0], sizes = [16, 32], strides = [1, 1]} : vector<16x128xf32> to vector<16x32xf32>
    %1409 = arith.truncf %1408 : vector<16x32xf32> to vector<16x32xbf16>
    %c1_1008 = arith.constant 1 : index
    %c0_1009 = arith.constant 0 : index
    %c0_1010 = arith.constant 0 : index
    %1410 = vector.load %arg8[%c1_1008, %c0_1009, %c0_1010] : memref<2x32x128xbf16, #tpu.memory_space<vmem>>, vector<1x32x128xbf16>
    %1411 = vector.shape_cast %1410 : vector<1x32x128xbf16> to vector<32x128xbf16>
    %cst_1011 = arith.constant dense<0.000000e+00> : vector<16x128xf32>
    %1412 = tpu.matmul %1409, %1411, %cst_1011 {dimension_numbers = #tpu.dot_dimension_numbers<[1], [0], [0], [1], [0, 0, 1, 1], [], []>} : vector<16x32xbf16>, vector<32x128xbf16>, vector<16x128xf32> -> vector<16x128xf32>
    %1413 = vector.extract_strided_slice %1407 {offsets = [0, 0], sizes = [1, 128], strides = [1, 1]} : vector<8x128xf32> to vector<1x128xf32>
    %1414 = vector.extract_strided_slice %1407 {offsets = [1, 0], sizes = [1, 128], strides = [1, 1]} : vector<8x128xf32> to vector<1x128xf32>
    %cst_1012 = arith.constant dense<0.000000e+00> : vector<128xf32>
    %1415 = vector.multi_reduction <add>, %1412, %cst_1012 [0] : vector<16x128xf32> to vector<128xf32>
    %1416 = vector.shape_cast %1415 : vector<128xf32> to vector<1x128xf32>
    %1417 = arith.mulf %1412, %1412 : vector<16x128xf32>
    %cst_1013 = arith.constant dense<0.000000e+00> : vector<128xf32>
    %1418 = vector.multi_reduction <add>, %1417, %cst_1013 [0] : vector<16x128xf32> to vector<128xf32>
    %1419 = vector.shape_cast %1418 : vector<128xf32> to vector<1x128xf32>
    %cst_1014 = arith.constant 6.250000e-02 : f32
    %1420 = vector.broadcast %cst_1014 : f32 to vector<1x128xf32>
    %1421 = arith.mulf %1416, %1420 : vector<1x128xf32>
    %cst_1015 = arith.constant 6.250000e-02 : f32
    %1422 = vector.broadcast %cst_1015 : f32 to vector<1x128xf32>
    %1423 = arith.mulf %1419, %1422 : vector<1x128xf32>
    %1424 = arith.mulf %1421, %1421 : vector<1x128xf32>
    %1425 = arith.subf %1423, %1424 : vector<1x128xf32>
    %cst_1016 = arith.constant 0.000000e+00 : f32
    %1426 = vector.broadcast %cst_1016 : f32 to vector<1x128xf32>
    %1427 = arith.maximumf %1425, %1426 : vector<1x128xf32>
    %cst_1017 = arith.constant 9.99999974E-6 : f32
    %1428 = vector.broadcast %cst_1017 : f32 to vector<1x128xf32>
    %1429 = arith.addf %1427, %1428 : vector<1x128xf32>
    %1430 = math.rsqrt %1429 : vector<1x128xf32>
    %1431 = arith.mulf %1413, %1430 : vector<1x128xf32>
    %1432 = arith.mulf %1421, %1431 : vector<1x128xf32>
    %1433 = arith.subf %1414, %1432 : vector<1x128xf32>
    %1434 = vector.broadcast %1431 : vector<1x128xf32> to vector<16x128xf32>
    %1435 = arith.mulf %1412, %1434 : vector<16x128xf32>
    %1436 = vector.broadcast %1433 : vector<1x128xf32> to vector<16x128xf32>
    %1437 = arith.addf %1435, %1436 : vector<16x128xf32>
    %cst_1018 = arith.constant 0.000000e+00 : f32
    %1438 = vector.broadcast %cst_1018 : f32 to vector<16x128xf32>
    %1439 = arith.maximumf %1437, %1438 : vector<16x128xf32>
    %1440 = vector.extract_strided_slice %1439 {offsets = [0, 0], sizes = [16, 32], strides = [1, 1]} : vector<16x128xf32> to vector<16x32xf32>
    %1441 = arith.truncf %1440 : vector<16x32xf32> to vector<16x32xbf16>
    %c1_1019 = arith.constant 1 : index
    %c0_1020 = arith.constant 0 : index
    %c0_1021 = arith.constant 0 : index
    %1442 = vector.load %arg10[%c1_1019, %c0_1020, %c0_1021] : memref<2x32x128xbf16, #tpu.memory_space<vmem>>, vector<1x32x128xbf16>
    %1443 = vector.shape_cast %1442 : vector<1x32x128xbf16> to vector<32x128xbf16>
    %cst_1022 = arith.constant dense<0.000000e+00> : vector<16x128xf32>
    %1444 = tpu.matmul %1441, %1443, %cst_1022 {dimension_numbers = #tpu.dot_dimension_numbers<[1], [0], [0], [1], [0, 0, 1, 1], [], []>} : vector<16x32xbf16>, vector<32x128xbf16>, vector<16x128xf32> -> vector<16x128xf32>
    %1445 = vector.extract_strided_slice %1407 {offsets = [2, 0], sizes = [1, 128], strides = [1, 1]} : vector<8x128xf32> to vector<1x128xf32>
    %1446 = vector.extract_strided_slice %1407 {offsets = [3, 0], sizes = [1, 128], strides = [1, 1]} : vector<8x128xf32> to vector<1x128xf32>
    %cst_1023 = arith.constant dense<0.000000e+00> : vector<128xf32>
    %1447 = vector.multi_reduction <add>, %1444, %cst_1023 [0] : vector<16x128xf32> to vector<128xf32>
    %1448 = vector.shape_cast %1447 : vector<128xf32> to vector<1x128xf32>
    %1449 = arith.mulf %1444, %1444 : vector<16x128xf32>
    %cst_1024 = arith.constant dense<0.000000e+00> : vector<128xf32>
    %1450 = vector.multi_reduction <add>, %1449, %cst_1024 [0] : vector<16x128xf32> to vector<128xf32>
    %1451 = vector.shape_cast %1450 : vector<128xf32> to vector<1x128xf32>
    %cst_1025 = arith.constant 6.250000e-02 : f32
    %1452 = vector.broadcast %cst_1025 : f32 to vector<1x128xf32>
    %1453 = arith.mulf %1448, %1452 : vector<1x128xf32>
    %cst_1026 = arith.constant 6.250000e-02 : f32
    %1454 = vector.broadcast %cst_1026 : f32 to vector<1x128xf32>
    %1455 = arith.mulf %1451, %1454 : vector<1x128xf32>
    %1456 = arith.mulf %1453, %1453 : vector<1x128xf32>
    %1457 = arith.subf %1455, %1456 : vector<1x128xf32>
    %cst_1027 = arith.constant 0.000000e+00 : f32
    %1458 = vector.broadcast %cst_1027 : f32 to vector<1x128xf32>
    %1459 = arith.maximumf %1457, %1458 : vector<1x128xf32>
    %cst_1028 = arith.constant 9.99999974E-6 : f32
    %1460 = vector.broadcast %cst_1028 : f32 to vector<1x128xf32>
    %1461 = arith.addf %1459, %1460 : vector<1x128xf32>
    %1462 = math.rsqrt %1461 : vector<1x128xf32>
    %1463 = arith.mulf %1445, %1462 : vector<1x128xf32>
    %1464 = arith.mulf %1453, %1463 : vector<1x128xf32>
    %1465 = arith.subf %1446, %1464 : vector<1x128xf32>
    %1466 = vector.broadcast %1463 : vector<1x128xf32> to vector<16x128xf32>
    %1467 = arith.mulf %1444, %1466 : vector<16x128xf32>
    %1468 = vector.broadcast %1465 : vector<1x128xf32> to vector<16x128xf32>
    %1469 = arith.addf %1467, %1468 : vector<16x128xf32>
    %1470 = arith.addf %1469, %1369 : vector<16x128xf32>
    %cst_1029 = arith.constant 0.000000e+00 : f32
    %1471 = vector.broadcast %cst_1029 : f32 to vector<16x128xf32>
    %1472 = arith.maximumf %1470, %1471 : vector<16x128xf32>
    %c12_i32_1030 = arith.constant 12 : i32
    %c0_i32_1031 = arith.constant 0 : i32
    %c0_i32_1032 = arith.constant 0 : i32
    %c0_i32_1033 = arith.constant 0 : i32
    %c0_i32_1034 = arith.constant 0 : i32
    %c0_i32_1035 = arith.constant 0 : i32
    %1473 = tpu.memref_slice %arg2[%c12_i32_1030, %c0_i32_1034, %c0_i32_1035] : memref<14x32x128xbf16, #tpu.memory_space<any>> -> memref<1x32x128xbf16, #tpu.memory_space<any>>
    %1474 = tpu.memref_squeeze %1473 : memref<1x32x128xbf16, #tpu.memory_space<any>> -> memref<32x128xbf16, #tpu.memory_space<any>>
    %c0_i32_1036 = arith.constant 0 : i32
    %c0_i32_1037 = arith.constant 0 : i32
    %1475 = tpu.memref_slice %arg8[%c0_i32_1031, %c0_i32_1036, %c0_i32_1037] : memref<2x32x128xbf16, #tpu.memory_space<vmem>> -> memref<1x32x128xbf16, #tpu.memory_space<vmem>>
    %1476 = tpu.memref_squeeze %1475 : memref<1x32x128xbf16, #tpu.memory_space<vmem>> -> memref<32x128xbf16, #tpu.memory_space<vmem>>
    %1477 = tpu.memref_slice %arg12[%c0_i32_1032, %c0_i32_1033] : memref<2x3x!tpu.dma_semaphore, #tpu.memory_space<semaphore_mem>> -> memref<1x1x!tpu.dma_semaphore, #tpu.memory_space<semaphore_mem>>
    %1478 = tpu.memref_squeeze %1477 : memref<1x1x!tpu.dma_semaphore, #tpu.memory_space<semaphore_mem>> -> memref<!tpu.dma_semaphore, #tpu.memory_space<semaphore_mem>>
    tpu.wait_dma2 semaphore(%1478 : memref<!tpu.dma_semaphore, #tpu.memory_space<semaphore_mem>>) src(%1474 : memref<32x128xbf16, #tpu.memory_space<any>>) dst(%1476 : memref<32x128xbf16, #tpu.memory_space<vmem>>)
    %c14_i32_1038 = arith.constant 14 : i32
    %c0_i32_1039 = arith.constant 0 : i32
    %c0_i32_1040 = arith.constant 0 : i32
    %c1_i32_1041 = arith.constant 1 : i32
    %c0_i32_1042 = arith.constant 0 : i32
    %c0_i32_1043 = arith.constant 0 : i32
    %1479 = tpu.memref_slice %arg4[%c14_i32_1038, %c0_i32_1042, %c0_i32_1043] : memref<16x32x128xbf16, #tpu.memory_space<any>> -> memref<1x32x128xbf16, #tpu.memory_space<any>>
    %1480 = tpu.memref_squeeze %1479 : memref<1x32x128xbf16, #tpu.memory_space<any>> -> memref<32x128xbf16, #tpu.memory_space<any>>
    %c0_i32_1044 = arith.constant 0 : i32
    %c0_i32_1045 = arith.constant 0 : i32
    %1481 = tpu.memref_slice %arg10[%c0_i32_1039, %c0_i32_1044, %c0_i32_1045] : memref<2x32x128xbf16, #tpu.memory_space<vmem>> -> memref<1x32x128xbf16, #tpu.memory_space<vmem>>
    %1482 = tpu.memref_squeeze %1481 : memref<1x32x128xbf16, #tpu.memory_space<vmem>> -> memref<32x128xbf16, #tpu.memory_space<vmem>>
    %1483 = tpu.memref_slice %arg12[%c0_i32_1040, %c1_i32_1041] : memref<2x3x!tpu.dma_semaphore, #tpu.memory_space<semaphore_mem>> -> memref<1x1x!tpu.dma_semaphore, #tpu.memory_space<semaphore_mem>>
    %1484 = tpu.memref_squeeze %1483 : memref<1x1x!tpu.dma_semaphore, #tpu.memory_space<semaphore_mem>> -> memref<!tpu.dma_semaphore, #tpu.memory_space<semaphore_mem>>
    tpu.wait_dma2 semaphore(%1484 : memref<!tpu.dma_semaphore, #tpu.memory_space<semaphore_mem>>) src(%1480 : memref<32x128xbf16, #tpu.memory_space<any>>) dst(%1482 : memref<32x128xbf16, #tpu.memory_space<vmem>>)
    %c14_i32_1046 = arith.constant 14 : i32
    %c0_i32_1047 = arith.constant 0 : i32
    %c0_i32_1048 = arith.constant 0 : i32
    %c2_i32_1049 = arith.constant 2 : i32
    %c0_i32_1050 = arith.constant 0 : i32
    %c0_i32_1051 = arith.constant 0 : i32
    %1485 = tpu.memref_slice %arg5[%c14_i32_1046, %c0_i32_1050, %c0_i32_1051] : memref<16x8x128xf32, #tpu.memory_space<any>> -> memref<1x8x128xf32, #tpu.memory_space<any>>
    %1486 = tpu.memref_squeeze %1485 : memref<1x8x128xf32, #tpu.memory_space<any>> -> memref<8x128xf32, #tpu.memory_space<any>>
    %c0_i32_1052 = arith.constant 0 : i32
    %c0_i32_1053 = arith.constant 0 : i32
    %1487 = tpu.memref_slice %arg11[%c0_i32_1047, %c0_i32_1052, %c0_i32_1053] : memref<2x8x128xf32, #tpu.memory_space<vmem>> -> memref<1x8x128xf32, #tpu.memory_space<vmem>>
    %1488 = tpu.memref_squeeze %1487 : memref<1x8x128xf32, #tpu.memory_space<vmem>> -> memref<8x128xf32, #tpu.memory_space<vmem>>
    %1489 = tpu.memref_slice %arg12[%c0_i32_1048, %c2_i32_1049] : memref<2x3x!tpu.dma_semaphore, #tpu.memory_space<semaphore_mem>> -> memref<1x1x!tpu.dma_semaphore, #tpu.memory_space<semaphore_mem>>
    %1490 = tpu.memref_squeeze %1489 : memref<1x1x!tpu.dma_semaphore, #tpu.memory_space<semaphore_mem>> -> memref<!tpu.dma_semaphore, #tpu.memory_space<semaphore_mem>>
    tpu.wait_dma2 semaphore(%1490 : memref<!tpu.dma_semaphore, #tpu.memory_space<semaphore_mem>>) src(%1486 : memref<8x128xf32, #tpu.memory_space<any>>) dst(%1488 : memref<8x128xf32, #tpu.memory_space<vmem>>)
    %c13_i32_1054 = arith.constant 13 : i32
    %c1_i32_1055 = arith.constant 1 : i32
    %c1_i32_1056 = arith.constant 1 : i32
    %c0_i32_1057 = arith.constant 0 : i32
    %c0_i32_1058 = arith.constant 0 : i32
    %c0_i32_1059 = arith.constant 0 : i32
    %1491 = tpu.memref_slice %arg2[%c13_i32_1054, %c0_i32_1058, %c0_i32_1059] : memref<14x32x128xbf16, #tpu.memory_space<any>> -> memref<1x32x128xbf16, #tpu.memory_space<any>>
    %1492 = tpu.memref_squeeze %1491 : memref<1x32x128xbf16, #tpu.memory_space<any>> -> memref<32x128xbf16, #tpu.memory_space<any>>
    %c0_i32_1060 = arith.constant 0 : i32
    %c0_i32_1061 = arith.constant 0 : i32
    %1493 = tpu.memref_slice %arg8[%c1_i32_1055, %c0_i32_1060, %c0_i32_1061] : memref<2x32x128xbf16, #tpu.memory_space<vmem>> -> memref<1x32x128xbf16, #tpu.memory_space<vmem>>
    %1494 = tpu.memref_squeeze %1493 : memref<1x32x128xbf16, #tpu.memory_space<vmem>> -> memref<32x128xbf16, #tpu.memory_space<vmem>>
    %1495 = tpu.memref_slice %arg12[%c1_i32_1056, %c0_i32_1057] : memref<2x3x!tpu.dma_semaphore, #tpu.memory_space<semaphore_mem>> -> memref<1x1x!tpu.dma_semaphore, #tpu.memory_space<semaphore_mem>>
    %1496 = tpu.memref_squeeze %1495 : memref<1x1x!tpu.dma_semaphore, #tpu.memory_space<semaphore_mem>> -> memref<!tpu.dma_semaphore, #tpu.memory_space<semaphore_mem>>
    tpu.enqueue_dma source(%1492 : memref<32x128xbf16, #tpu.memory_space<any>>) target(%1494 : memref<32x128xbf16, #tpu.memory_space<vmem>>) target_semaphore(%1496 : memref<!tpu.dma_semaphore, #tpu.memory_space<semaphore_mem>>)
    %c15_i32 = arith.constant 15 : i32
    %c1_i32_1062 = arith.constant 1 : i32
    %c1_i32_1063 = arith.constant 1 : i32
    %c1_i32_1064 = arith.constant 1 : i32
    %c0_i32_1065 = arith.constant 0 : i32
    %c0_i32_1066 = arith.constant 0 : i32
    %1497 = tpu.memref_slice %arg4[%c15_i32, %c0_i32_1065, %c0_i32_1066] : memref<16x32x128xbf16, #tpu.memory_space<any>> -> memref<1x32x128xbf16, #tpu.memory_space<any>>
    %1498 = tpu.memref_squeeze %1497 : memref<1x32x128xbf16, #tpu.memory_space<any>> -> memref<32x128xbf16, #tpu.memory_space<any>>
    %c0_i32_1067 = arith.constant 0 : i32
    %c0_i32_1068 = arith.constant 0 : i32
    %1499 = tpu.memref_slice %arg10[%c1_i32_1062, %c0_i32_1067, %c0_i32_1068] : memref<2x32x128xbf16, #tpu.memory_space<vmem>> -> memref<1x32x128xbf16, #tpu.memory_space<vmem>>
    %1500 = tpu.memref_squeeze %1499 : memref<1x32x128xbf16, #tpu.memory_space<vmem>> -> memref<32x128xbf16, #tpu.memory_space<vmem>>
    %1501 = tpu.memref_slice %arg12[%c1_i32_1063, %c1_i32_1064] : memref<2x3x!tpu.dma_semaphore, #tpu.memory_space<semaphore_mem>> -> memref<1x1x!tpu.dma_semaphore, #tpu.memory_space<semaphore_mem>>
    %1502 = tpu.memref_squeeze %1501 : memref<1x1x!tpu.dma_semaphore, #tpu.memory_space<semaphore_mem>> -> memref<!tpu.dma_semaphore, #tpu.memory_space<semaphore_mem>>
    tpu.enqueue_dma source(%1498 : memref<32x128xbf16, #tpu.memory_space<any>>) target(%1500 : memref<32x128xbf16, #tpu.memory_space<vmem>>) target_semaphore(%1502 : memref<!tpu.dma_semaphore, #tpu.memory_space<semaphore_mem>>)
    %c15_i32_1069 = arith.constant 15 : i32
    %c1_i32_1070 = arith.constant 1 : i32
    %c1_i32_1071 = arith.constant 1 : i32
    %c2_i32_1072 = arith.constant 2 : i32
    %c0_i32_1073 = arith.constant 0 : i32
    %c0_i32_1074 = arith.constant 0 : i32
    %1503 = tpu.memref_slice %arg5[%c15_i32_1069, %c0_i32_1073, %c0_i32_1074] : memref<16x8x128xf32, #tpu.memory_space<any>> -> memref<1x8x128xf32, #tpu.memory_space<any>>
    %1504 = tpu.memref_squeeze %1503 : memref<1x8x128xf32, #tpu.memory_space<any>> -> memref<8x128xf32, #tpu.memory_space<any>>
    %c0_i32_1075 = arith.constant 0 : i32
    %c0_i32_1076 = arith.constant 0 : i32
    %1505 = tpu.memref_slice %arg11[%c1_i32_1070, %c0_i32_1075, %c0_i32_1076] : memref<2x8x128xf32, #tpu.memory_space<vmem>> -> memref<1x8x128xf32, #tpu.memory_space<vmem>>
    %1506 = tpu.memref_squeeze %1505 : memref<1x8x128xf32, #tpu.memory_space<vmem>> -> memref<8x128xf32, #tpu.memory_space<vmem>>
    %1507 = tpu.memref_slice %arg12[%c1_i32_1071, %c2_i32_1072] : memref<2x3x!tpu.dma_semaphore, #tpu.memory_space<semaphore_mem>> -> memref<1x1x!tpu.dma_semaphore, #tpu.memory_space<semaphore_mem>>
    %1508 = tpu.memref_squeeze %1507 : memref<1x1x!tpu.dma_semaphore, #tpu.memory_space<semaphore_mem>> -> memref<!tpu.dma_semaphore, #tpu.memory_space<semaphore_mem>>
    tpu.enqueue_dma source(%1504 : memref<8x128xf32, #tpu.memory_space<any>>) target(%1506 : memref<8x128xf32, #tpu.memory_space<vmem>>) target_semaphore(%1508 : memref<!tpu.dma_semaphore, #tpu.memory_space<semaphore_mem>>)
    %c0_1077 = arith.constant 0 : index
    %c0_1078 = arith.constant 0 : index
    %c0_1079 = arith.constant 0 : index
    %1509 = vector.load %arg11[%c0_1077, %c0_1078, %c0_1079] : memref<2x8x128xf32, #tpu.memory_space<vmem>>, vector<1x8x128xf32>
    %1510 = vector.shape_cast %1509 : vector<1x8x128xf32> to vector<8x128xf32>
    %1511 = vector.extract_strided_slice %1472 {offsets = [0, 0], sizes = [16, 32], strides = [1, 1]} : vector<16x128xf32> to vector<16x32xf32>
    %1512 = arith.truncf %1511 : vector<16x32xf32> to vector<16x32xbf16>
    %c0_1080 = arith.constant 0 : index
    %c0_1081 = arith.constant 0 : index
    %c0_1082 = arith.constant 0 : index
    %1513 = vector.load %arg8[%c0_1080, %c0_1081, %c0_1082] : memref<2x32x128xbf16, #tpu.memory_space<vmem>>, vector<1x32x128xbf16>
    %1514 = vector.shape_cast %1513 : vector<1x32x128xbf16> to vector<32x128xbf16>
    %cst_1083 = arith.constant dense<0.000000e+00> : vector<16x128xf32>
    %1515 = tpu.matmul %1512, %1514, %cst_1083 {dimension_numbers = #tpu.dot_dimension_numbers<[1], [0], [0], [1], [0, 0, 1, 1], [], []>} : vector<16x32xbf16>, vector<32x128xbf16>, vector<16x128xf32> -> vector<16x128xf32>
    %1516 = vector.extract_strided_slice %1510 {offsets = [0, 0], sizes = [1, 128], strides = [1, 1]} : vector<8x128xf32> to vector<1x128xf32>
    %1517 = vector.extract_strided_slice %1510 {offsets = [1, 0], sizes = [1, 128], strides = [1, 1]} : vector<8x128xf32> to vector<1x128xf32>
    %cst_1084 = arith.constant dense<0.000000e+00> : vector<128xf32>
    %1518 = vector.multi_reduction <add>, %1515, %cst_1084 [0] : vector<16x128xf32> to vector<128xf32>
    %1519 = vector.shape_cast %1518 : vector<128xf32> to vector<1x128xf32>
    %1520 = arith.mulf %1515, %1515 : vector<16x128xf32>
    %cst_1085 = arith.constant dense<0.000000e+00> : vector<128xf32>
    %1521 = vector.multi_reduction <add>, %1520, %cst_1085 [0] : vector<16x128xf32> to vector<128xf32>
    %1522 = vector.shape_cast %1521 : vector<128xf32> to vector<1x128xf32>
    %cst_1086 = arith.constant 6.250000e-02 : f32
    %1523 = vector.broadcast %cst_1086 : f32 to vector<1x128xf32>
    %1524 = arith.mulf %1519, %1523 : vector<1x128xf32>
    %cst_1087 = arith.constant 6.250000e-02 : f32
    %1525 = vector.broadcast %cst_1087 : f32 to vector<1x128xf32>
    %1526 = arith.mulf %1522, %1525 : vector<1x128xf32>
    %1527 = arith.mulf %1524, %1524 : vector<1x128xf32>
    %1528 = arith.subf %1526, %1527 : vector<1x128xf32>
    %cst_1088 = arith.constant 0.000000e+00 : f32
    %1529 = vector.broadcast %cst_1088 : f32 to vector<1x128xf32>
    %1530 = arith.maximumf %1528, %1529 : vector<1x128xf32>
    %cst_1089 = arith.constant 9.99999974E-6 : f32
    %1531 = vector.broadcast %cst_1089 : f32 to vector<1x128xf32>
    %1532 = arith.addf %1530, %1531 : vector<1x128xf32>
    %1533 = math.rsqrt %1532 : vector<1x128xf32>
    %1534 = arith.mulf %1516, %1533 : vector<1x128xf32>
    %1535 = arith.mulf %1524, %1534 : vector<1x128xf32>
    %1536 = arith.subf %1517, %1535 : vector<1x128xf32>
    %1537 = vector.broadcast %1534 : vector<1x128xf32> to vector<16x128xf32>
    %1538 = arith.mulf %1515, %1537 : vector<16x128xf32>
    %1539 = vector.broadcast %1536 : vector<1x128xf32> to vector<16x128xf32>
    %1540 = arith.addf %1538, %1539 : vector<16x128xf32>
    %cst_1090 = arith.constant 0.000000e+00 : f32
    %1541 = vector.broadcast %cst_1090 : f32 to vector<16x128xf32>
    %1542 = arith.maximumf %1540, %1541 : vector<16x128xf32>
    %1543 = vector.extract_strided_slice %1542 {offsets = [0, 0], sizes = [16, 32], strides = [1, 1]} : vector<16x128xf32> to vector<16x32xf32>
    %1544 = arith.truncf %1543 : vector<16x32xf32> to vector<16x32xbf16>
    %c0_1091 = arith.constant 0 : index
    %c0_1092 = arith.constant 0 : index
    %c0_1093 = arith.constant 0 : index
    %1545 = vector.load %arg10[%c0_1091, %c0_1092, %c0_1093] : memref<2x32x128xbf16, #tpu.memory_space<vmem>>, vector<1x32x128xbf16>
    %1546 = vector.shape_cast %1545 : vector<1x32x128xbf16> to vector<32x128xbf16>
    %cst_1094 = arith.constant dense<0.000000e+00> : vector<16x128xf32>
    %1547 = tpu.matmul %1544, %1546, %cst_1094 {dimension_numbers = #tpu.dot_dimension_numbers<[1], [0], [0], [1], [0, 0, 1, 1], [], []>} : vector<16x32xbf16>, vector<32x128xbf16>, vector<16x128xf32> -> vector<16x128xf32>
    %1548 = vector.extract_strided_slice %1510 {offsets = [2, 0], sizes = [1, 128], strides = [1, 1]} : vector<8x128xf32> to vector<1x128xf32>
    %1549 = vector.extract_strided_slice %1510 {offsets = [3, 0], sizes = [1, 128], strides = [1, 1]} : vector<8x128xf32> to vector<1x128xf32>
    %cst_1095 = arith.constant dense<0.000000e+00> : vector<128xf32>
    %1550 = vector.multi_reduction <add>, %1547, %cst_1095 [0] : vector<16x128xf32> to vector<128xf32>
    %1551 = vector.shape_cast %1550 : vector<128xf32> to vector<1x128xf32>
    %1552 = arith.mulf %1547, %1547 : vector<16x128xf32>
    %cst_1096 = arith.constant dense<0.000000e+00> : vector<128xf32>
    %1553 = vector.multi_reduction <add>, %1552, %cst_1096 [0] : vector<16x128xf32> to vector<128xf32>
    %1554 = vector.shape_cast %1553 : vector<128xf32> to vector<1x128xf32>
    %cst_1097 = arith.constant 6.250000e-02 : f32
    %1555 = vector.broadcast %cst_1097 : f32 to vector<1x128xf32>
    %1556 = arith.mulf %1551, %1555 : vector<1x128xf32>
    %cst_1098 = arith.constant 6.250000e-02 : f32
    %1557 = vector.broadcast %cst_1098 : f32 to vector<1x128xf32>
    %1558 = arith.mulf %1554, %1557 : vector<1x128xf32>
    %1559 = arith.mulf %1556, %1556 : vector<1x128xf32>
    %1560 = arith.subf %1558, %1559 : vector<1x128xf32>
    %cst_1099 = arith.constant 0.000000e+00 : f32
    %1561 = vector.broadcast %cst_1099 : f32 to vector<1x128xf32>
    %1562 = arith.maximumf %1560, %1561 : vector<1x128xf32>
    %cst_1100 = arith.constant 9.99999974E-6 : f32
    %1563 = vector.broadcast %cst_1100 : f32 to vector<1x128xf32>
    %1564 = arith.addf %1562, %1563 : vector<1x128xf32>
    %1565 = math.rsqrt %1564 : vector<1x128xf32>
    %1566 = arith.mulf %1548, %1565 : vector<1x128xf32>
    %1567 = arith.mulf %1556, %1566 : vector<1x128xf32>
    %1568 = arith.subf %1549, %1567 : vector<1x128xf32>
    %1569 = vector.broadcast %1566 : vector<1x128xf32> to vector<16x128xf32>
    %1570 = arith.mulf %1547, %1569 : vector<16x128xf32>
    %1571 = vector.broadcast %1568 : vector<1x128xf32> to vector<16x128xf32>
    %1572 = arith.addf %1570, %1571 : vector<16x128xf32>
    %1573 = arith.addf %1572, %1472 : vector<16x128xf32>
    %cst_1101 = arith.constant 0.000000e+00 : f32
    %1574 = vector.broadcast %cst_1101 : f32 to vector<16x128xf32>
    %1575 = arith.maximumf %1573, %1574 : vector<16x128xf32>
    %c13_i32_1102 = arith.constant 13 : i32
    %c1_i32_1103 = arith.constant 1 : i32
    %c1_i32_1104 = arith.constant 1 : i32
    %c0_i32_1105 = arith.constant 0 : i32
    %c0_i32_1106 = arith.constant 0 : i32
    %c0_i32_1107 = arith.constant 0 : i32
    %1576 = tpu.memref_slice %arg2[%c13_i32_1102, %c0_i32_1106, %c0_i32_1107] : memref<14x32x128xbf16, #tpu.memory_space<any>> -> memref<1x32x128xbf16, #tpu.memory_space<any>>
    %1577 = tpu.memref_squeeze %1576 : memref<1x32x128xbf16, #tpu.memory_space<any>> -> memref<32x128xbf16, #tpu.memory_space<any>>
    %c0_i32_1108 = arith.constant 0 : i32
    %c0_i32_1109 = arith.constant 0 : i32
    %1578 = tpu.memref_slice %arg8[%c1_i32_1103, %c0_i32_1108, %c0_i32_1109] : memref<2x32x128xbf16, #tpu.memory_space<vmem>> -> memref<1x32x128xbf16, #tpu.memory_space<vmem>>
    %1579 = tpu.memref_squeeze %1578 : memref<1x32x128xbf16, #tpu.memory_space<vmem>> -> memref<32x128xbf16, #tpu.memory_space<vmem>>
    %1580 = tpu.memref_slice %arg12[%c1_i32_1104, %c0_i32_1105] : memref<2x3x!tpu.dma_semaphore, #tpu.memory_space<semaphore_mem>> -> memref<1x1x!tpu.dma_semaphore, #tpu.memory_space<semaphore_mem>>
    %1581 = tpu.memref_squeeze %1580 : memref<1x1x!tpu.dma_semaphore, #tpu.memory_space<semaphore_mem>> -> memref<!tpu.dma_semaphore, #tpu.memory_space<semaphore_mem>>
    tpu.wait_dma2 semaphore(%1581 : memref<!tpu.dma_semaphore, #tpu.memory_space<semaphore_mem>>) src(%1577 : memref<32x128xbf16, #tpu.memory_space<any>>) dst(%1579 : memref<32x128xbf16, #tpu.memory_space<vmem>>)
    %c15_i32_1110 = arith.constant 15 : i32
    %c1_i32_1111 = arith.constant 1 : i32
    %c1_i32_1112 = arith.constant 1 : i32
    %c1_i32_1113 = arith.constant 1 : i32
    %c0_i32_1114 = arith.constant 0 : i32
    %c0_i32_1115 = arith.constant 0 : i32
    %1582 = tpu.memref_slice %arg4[%c15_i32_1110, %c0_i32_1114, %c0_i32_1115] : memref<16x32x128xbf16, #tpu.memory_space<any>> -> memref<1x32x128xbf16, #tpu.memory_space<any>>
    %1583 = tpu.memref_squeeze %1582 : memref<1x32x128xbf16, #tpu.memory_space<any>> -> memref<32x128xbf16, #tpu.memory_space<any>>
    %c0_i32_1116 = arith.constant 0 : i32
    %c0_i32_1117 = arith.constant 0 : i32
    %1584 = tpu.memref_slice %arg10[%c1_i32_1111, %c0_i32_1116, %c0_i32_1117] : memref<2x32x128xbf16, #tpu.memory_space<vmem>> -> memref<1x32x128xbf16, #tpu.memory_space<vmem>>
    %1585 = tpu.memref_squeeze %1584 : memref<1x32x128xbf16, #tpu.memory_space<vmem>> -> memref<32x128xbf16, #tpu.memory_space<vmem>>
    %1586 = tpu.memref_slice %arg12[%c1_i32_1112, %c1_i32_1113] : memref<2x3x!tpu.dma_semaphore, #tpu.memory_space<semaphore_mem>> -> memref<1x1x!tpu.dma_semaphore, #tpu.memory_space<semaphore_mem>>
    %1587 = tpu.memref_squeeze %1586 : memref<1x1x!tpu.dma_semaphore, #tpu.memory_space<semaphore_mem>> -> memref<!tpu.dma_semaphore, #tpu.memory_space<semaphore_mem>>
    tpu.wait_dma2 semaphore(%1587 : memref<!tpu.dma_semaphore, #tpu.memory_space<semaphore_mem>>) src(%1583 : memref<32x128xbf16, #tpu.memory_space<any>>) dst(%1585 : memref<32x128xbf16, #tpu.memory_space<vmem>>)
    %c15_i32_1118 = arith.constant 15 : i32
    %c1_i32_1119 = arith.constant 1 : i32
    %c1_i32_1120 = arith.constant 1 : i32
    %c2_i32_1121 = arith.constant 2 : i32
    %c0_i32_1122 = arith.constant 0 : i32
    %c0_i32_1123 = arith.constant 0 : i32
    %1588 = tpu.memref_slice %arg5[%c15_i32_1118, %c0_i32_1122, %c0_i32_1123] : memref<16x8x128xf32, #tpu.memory_space<any>> -> memref<1x8x128xf32, #tpu.memory_space<any>>
    %1589 = tpu.memref_squeeze %1588 : memref<1x8x128xf32, #tpu.memory_space<any>> -> memref<8x128xf32, #tpu.memory_space<any>>
    %c0_i32_1124 = arith.constant 0 : i32
    %c0_i32_1125 = arith.constant 0 : i32
    %1590 = tpu.memref_slice %arg11[%c1_i32_1119, %c0_i32_1124, %c0_i32_1125] : memref<2x8x128xf32, #tpu.memory_space<vmem>> -> memref<1x8x128xf32, #tpu.memory_space<vmem>>
    %1591 = tpu.memref_squeeze %1590 : memref<1x8x128xf32, #tpu.memory_space<vmem>> -> memref<8x128xf32, #tpu.memory_space<vmem>>
    %1592 = tpu.memref_slice %arg12[%c1_i32_1120, %c2_i32_1121] : memref<2x3x!tpu.dma_semaphore, #tpu.memory_space<semaphore_mem>> -> memref<1x1x!tpu.dma_semaphore, #tpu.memory_space<semaphore_mem>>
    %1593 = tpu.memref_squeeze %1592 : memref<1x1x!tpu.dma_semaphore, #tpu.memory_space<semaphore_mem>> -> memref<!tpu.dma_semaphore, #tpu.memory_space<semaphore_mem>>
    tpu.wait_dma2 semaphore(%1593 : memref<!tpu.dma_semaphore, #tpu.memory_space<semaphore_mem>>) src(%1589 : memref<8x128xf32, #tpu.memory_space<any>>) dst(%1591 : memref<8x128xf32, #tpu.memory_space<vmem>>)
    %c1_1126 = arith.constant 1 : index
    %c0_1127 = arith.constant 0 : index
    %c0_1128 = arith.constant 0 : index
    %1594 = vector.load %arg11[%c1_1126, %c0_1127, %c0_1128] : memref<2x8x128xf32, #tpu.memory_space<vmem>>, vector<1x8x128xf32>
    %1595 = vector.shape_cast %1594 : vector<1x8x128xf32> to vector<8x128xf32>
    %1596 = vector.extract_strided_slice %1575 {offsets = [0, 0], sizes = [16, 32], strides = [1, 1]} : vector<16x128xf32> to vector<16x32xf32>
    %1597 = arith.truncf %1596 : vector<16x32xf32> to vector<16x32xbf16>
    %c1_1129 = arith.constant 1 : index
    %c0_1130 = arith.constant 0 : index
    %c0_1131 = arith.constant 0 : index
    %1598 = vector.load %arg8[%c1_1129, %c0_1130, %c0_1131] : memref<2x32x128xbf16, #tpu.memory_space<vmem>>, vector<1x32x128xbf16>
    %1599 = vector.shape_cast %1598 : vector<1x32x128xbf16> to vector<32x128xbf16>
    %cst_1132 = arith.constant dense<0.000000e+00> : vector<16x128xf32>
    %1600 = tpu.matmul %1597, %1599, %cst_1132 {dimension_numbers = #tpu.dot_dimension_numbers<[1], [0], [0], [1], [0, 0, 1, 1], [], []>} : vector<16x32xbf16>, vector<32x128xbf16>, vector<16x128xf32> -> vector<16x128xf32>
    %1601 = vector.extract_strided_slice %1595 {offsets = [0, 0], sizes = [1, 128], strides = [1, 1]} : vector<8x128xf32> to vector<1x128xf32>
    %1602 = vector.extract_strided_slice %1595 {offsets = [1, 0], sizes = [1, 128], strides = [1, 1]} : vector<8x128xf32> to vector<1x128xf32>
    %cst_1133 = arith.constant dense<0.000000e+00> : vector<128xf32>
    %1603 = vector.multi_reduction <add>, %1600, %cst_1133 [0] : vector<16x128xf32> to vector<128xf32>
    %1604 = vector.shape_cast %1603 : vector<128xf32> to vector<1x128xf32>
    %1605 = arith.mulf %1600, %1600 : vector<16x128xf32>
    %cst_1134 = arith.constant dense<0.000000e+00> : vector<128xf32>
    %1606 = vector.multi_reduction <add>, %1605, %cst_1134 [0] : vector<16x128xf32> to vector<128xf32>
    %1607 = vector.shape_cast %1606 : vector<128xf32> to vector<1x128xf32>
    %cst_1135 = arith.constant 6.250000e-02 : f32
    %1608 = vector.broadcast %cst_1135 : f32 to vector<1x128xf32>
    %1609 = arith.mulf %1604, %1608 : vector<1x128xf32>
    %cst_1136 = arith.constant 6.250000e-02 : f32
    %1610 = vector.broadcast %cst_1136 : f32 to vector<1x128xf32>
    %1611 = arith.mulf %1607, %1610 : vector<1x128xf32>
    %1612 = arith.mulf %1609, %1609 : vector<1x128xf32>
    %1613 = arith.subf %1611, %1612 : vector<1x128xf32>
    %cst_1137 = arith.constant 0.000000e+00 : f32
    %1614 = vector.broadcast %cst_1137 : f32 to vector<1x128xf32>
    %1615 = arith.maximumf %1613, %1614 : vector<1x128xf32>
    %cst_1138 = arith.constant 9.99999974E-6 : f32
    %1616 = vector.broadcast %cst_1138 : f32 to vector<1x128xf32>
    %1617 = arith.addf %1615, %1616 : vector<1x128xf32>
    %1618 = math.rsqrt %1617 : vector<1x128xf32>
    %1619 = arith.mulf %1601, %1618 : vector<1x128xf32>
    %1620 = arith.mulf %1609, %1619 : vector<1x128xf32>
    %1621 = arith.subf %1602, %1620 : vector<1x128xf32>
    %1622 = vector.broadcast %1619 : vector<1x128xf32> to vector<16x128xf32>
    %1623 = arith.mulf %1600, %1622 : vector<16x128xf32>
    %1624 = vector.broadcast %1621 : vector<1x128xf32> to vector<16x128xf32>
    %1625 = arith.addf %1623, %1624 : vector<16x128xf32>
    %cst_1139 = arith.constant 0.000000e+00 : f32
    %1626 = vector.broadcast %cst_1139 : f32 to vector<16x128xf32>
    %1627 = arith.maximumf %1625, %1626 : vector<16x128xf32>
    %1628 = vector.extract_strided_slice %1627 {offsets = [0, 0], sizes = [16, 32], strides = [1, 1]} : vector<16x128xf32> to vector<16x32xf32>
    %1629 = arith.truncf %1628 : vector<16x32xf32> to vector<16x32xbf16>
    %c1_1140 = arith.constant 1 : index
    %c0_1141 = arith.constant 0 : index
    %c0_1142 = arith.constant 0 : index
    %1630 = vector.load %arg10[%c1_1140, %c0_1141, %c0_1142] : memref<2x32x128xbf16, #tpu.memory_space<vmem>>, vector<1x32x128xbf16>
    %1631 = vector.shape_cast %1630 : vector<1x32x128xbf16> to vector<32x128xbf16>
    %cst_1143 = arith.constant dense<0.000000e+00> : vector<16x128xf32>
    %1632 = tpu.matmul %1629, %1631, %cst_1143 {dimension_numbers = #tpu.dot_dimension_numbers<[1], [0], [0], [1], [0, 0, 1, 1], [], []>} : vector<16x32xbf16>, vector<32x128xbf16>, vector<16x128xf32> -> vector<16x128xf32>
    %1633 = vector.extract_strided_slice %1595 {offsets = [2, 0], sizes = [1, 128], strides = [1, 1]} : vector<8x128xf32> to vector<1x128xf32>
    %1634 = vector.extract_strided_slice %1595 {offsets = [3, 0], sizes = [1, 128], strides = [1, 1]} : vector<8x128xf32> to vector<1x128xf32>
    %cst_1144 = arith.constant dense<0.000000e+00> : vector<128xf32>
    %1635 = vector.multi_reduction <add>, %1632, %cst_1144 [0] : vector<16x128xf32> to vector<128xf32>
    %1636 = vector.shape_cast %1635 : vector<128xf32> to vector<1x128xf32>
    %1637 = arith.mulf %1632, %1632 : vector<16x128xf32>
    %cst_1145 = arith.constant dense<0.000000e+00> : vector<128xf32>
    %1638 = vector.multi_reduction <add>, %1637, %cst_1145 [0] : vector<16x128xf32> to vector<128xf32>
    %1639 = vector.shape_cast %1638 : vector<128xf32> to vector<1x128xf32>
    %cst_1146 = arith.constant 6.250000e-02 : f32
    %1640 = vector.broadcast %cst_1146 : f32 to vector<1x128xf32>
    %1641 = arith.mulf %1636, %1640 : vector<1x128xf32>
    %cst_1147 = arith.constant 6.250000e-02 : f32
    %1642 = vector.broadcast %cst_1147 : f32 to vector<1x128xf32>
    %1643 = arith.mulf %1639, %1642 : vector<1x128xf32>
    %1644 = arith.mulf %1641, %1641 : vector<1x128xf32>
    %1645 = arith.subf %1643, %1644 : vector<1x128xf32>
    %cst_1148 = arith.constant 0.000000e+00 : f32
    %1646 = vector.broadcast %cst_1148 : f32 to vector<1x128xf32>
    %1647 = arith.maximumf %1645, %1646 : vector<1x128xf32>
    %cst_1149 = arith.constant 9.99999974E-6 : f32
    %1648 = vector.broadcast %cst_1149 : f32 to vector<1x128xf32>
    %1649 = arith.addf %1647, %1648 : vector<1x128xf32>
    %1650 = math.rsqrt %1649 : vector<1x128xf32>
    %1651 = arith.mulf %1633, %1650 : vector<1x128xf32>
    %1652 = arith.mulf %1641, %1651 : vector<1x128xf32>
    %1653 = arith.subf %1634, %1652 : vector<1x128xf32>
    %1654 = vector.broadcast %1651 : vector<1x128xf32> to vector<16x128xf32>
    %1655 = arith.mulf %1632, %1654 : vector<16x128xf32>
    %1656 = vector.broadcast %1653 : vector<1x128xf32> to vector<16x128xf32>
    %1657 = arith.addf %1655, %1656 : vector<16x128xf32>
    %1658 = arith.addf %1657, %1575 : vector<16x128xf32>
    %cst_1150 = arith.constant 0.000000e+00 : f32
    %1659 = vector.broadcast %cst_1150 : f32 to vector<16x128xf32>
    %1660 = arith.maximumf %1658, %1659 : vector<16x128xf32>
    %c0_1151 = arith.constant 0 : index
    %c0_1152 = arith.constant 0 : index
    %1661 = vector.load %arg6[%c0_1151, %c0_1152] : memref<8x16xf32, #tpu.memory_space<vmem>>, vector<8x16xf32>
    %1662 = arith.truncf %1661 : vector<8x16xf32> to vector<8x16xbf16>
    %1663 = arith.truncf %1660 : vector<16x128xf32> to vector<16x128xbf16>
    %cst_1153 = arith.constant dense<0.000000e+00> : vector<8x128xf32>
    %1664 = tpu.matmul %1662, %1663, %cst_1153 {dimension_numbers = #tpu.dot_dimension_numbers<[1], [0], [0], [1], [0, 0, 1, 1], [], []>} : vector<8x16xbf16>, vector<16x128xbf16>, vector<8x128xf32> -> vector<8x128xf32>
    %c0_1154 = arith.constant 0 : index
    %c0_1155 = arith.constant 0 : index
    %1665 = vector.load %arg7[%c0_1154, %c0_1155] : memref<8x128xf32, #tpu.memory_space<vmem>>, vector<8x128xf32>
    tpu.vector_store %arg7[%c0_1154, %c0_1155], %1664 {strides = array<i32>} : memref<8x128xf32, #tpu.memory_space<vmem>>, vector<8x128xf32>,
    return
  }
  func.func @transform_0(%arg0: i32) -> (i32, i32) {
    %c0_i32 = arith.constant 0 : i32
    %c0_i32_0 = arith.constant 0 : i32
    %c0_i32_1 = arith.constant 0 : i32
    return %c0_i32, %c0_i32_0 : i32, i32
  }
  func.func @transform_5(%arg0: i32) -> (i32, i32) {
    %c0_i32 = arith.constant 0 : i32
    %c0_i32_0 = arith.constant 0 : i32
    %c0_i32_1 = arith.constant 0 : i32
    return %c0_i32, %c0_i32_0 : i32, i32
  }
  func.func @transform_6(%arg0: i32) -> (i32, i32) {
    %c0_i32 = arith.constant 0 : i32
    %c0_i32_0 = arith.constant 0 : i32
    %c0_i32_1 = arith.constant 0 : i32
    return %c0_i32, %c0_i32_0 : i32, i32
  }
}

</mosaic_0001>

<llo_original>
// kernel: _lambda_.1
$region0: #{_lambda_.1}
  #allocation0 [shape = 'u32[]', space=smem, size = 0x4, offset = 0x4, fixed_abs, tag = 'smem constant byte address 0x4 - core index']
  #allocation1 [shape = 'u32[144,128]{1,0:T(1,128)}', space=vmem, size = 0x12000, scoped, tag = 'internal scratch']
  #allocation2 [shape = 'bf16[2,32,128]{2,1,0:T(16,128)(2,1)}', space=vmem, size = 0x4000, scoped, tag = 'scratch operand']
  #allocation3 [shape = 'bf16[2,32,256]{2,1,0:T(16,128)(2,1)}', space=vmem, size = 0x8000, scoped, tag = 'scratch operand']
  #allocation4 [shape = 'bf16[2,32,128]{2,1,0:T(16,128)(2,1)}', space=vmem, size = 0x4000, scoped, tag = 'scratch operand']
  #allocation5 [shape = 'f32[2,8,128]{2,1,0:T(8,128)}', space=vmem, size = 0x2000, scoped, tag = 'scratch operand']
  #allocation6 [shape = 's32[6]{0}', space=sflag, size = 0x18, scoped, tag = 'scratch operand']
  #allocation7 [shape = 's32[]', space=sflag, size = 0x4, offset = 0, fixed_abs, tag = 'sflag constant byte address 0x0 - dummy sync flag']
  #allocation8 [shape = 's32[]', space=sflag, size = 0x4, offset = 0, fixed_abs, tag = 'sflag constant byte address 0x0 - dummy sync flag']
  #allocation9 [shape = 's32[]', space=sflag, size = 0x4, offset = 0, fixed_abs, tag = 'sflag constant byte address 0x0 - dummy sync flag']
  #allocation10 [shape = 'u32[]', space=smem, size = 0x4, offset = 0x44, fixed_abs, tag = 'smem constant byte address 0x44 - assertion arg 0']
  #allocation11 [shape = 'u32[]', space=smem, size = 0x4, offset = 0x48, fixed_abs, tag = 'smem constant byte address 0x48 - assertion arg 1']
  #allocation12 [shape = 's32[]', space=sflag, size = 0x4, offset = 0, fixed_abs, tag = 'sflag constant byte address 0x0 - dummy sync flag']
  #allocation13 [shape = 's32[]', space=sflag, size = 0x4, offset = 0, fixed_abs, tag = 'sflag constant byte address 0x0 - dummy sync flag']
  #allocation14 [shape = 's32[]', space=sflag, size = 0x4, offset = 0, fixed_abs, tag = 'sflag constant byte address 0x0 - dummy sync flag']
  #allocation15 [shape = 's32[]', space=sflag, size = 0x4, offset = 0, fixed_abs, tag = 'sflag constant byte address 0x0 - dummy sync flag']
  #allocation16 [shape = 's32[]', space=sflag, size = 0x4, offset = 0, fixed_abs, tag = 'sflag constant byte address 0x0 - dummy sync flag']
  #allocation17 [shape = 's32[]', space=sflag, size = 0x4, offset = 0, fixed_abs, tag = 'sflag constant byte address 0x0 - dummy sync flag']
  #allocation18 [shape = 's32[]', space=sflag, size = 0x4, offset = 0, fixed_abs, tag = 'sflag constant byte address 0x0 - dummy sync flag']
  #allocation19 [shape = 's32[]', space=sflag, size = 0x4, offset = 0, fixed_abs, tag = 'sflag constant byte address 0x0 - dummy sync flag']
  #allocation20 [shape = 's32[]', space=sflag, size = 0x4, offset = 0, fixed_abs, tag = 'sflag constant byte address 0x0 - dummy sync flag']
  #allocation21 [shape = 's32[]', space=sflag, size = 0x4, offset = 0, fixed_abs, tag = 'sflag constant byte address 0x0 - dummy sync flag']
  #allocation22 [shape = 's32[]', space=sflag, size = 0x4, offset = 0, fixed_abs, tag = 'sflag constant byte address 0x0 - dummy sync flag']
  #allocation23 [shape = 's32[]', space=sflag, size = 0x4, offset = 0, fixed_abs, tag = 'sflag constant byte address 0x0 - dummy sync flag']
  #allocation24 [shape = 's32[]', space=sflag, size = 0x4, offset = 0, fixed_abs, tag = 'sflag constant byte address 0x0 - dummy sync flag']
  #allocation25 [shape = 's32[]', space=sflag, size = 0x4, offset = 0, fixed_abs, tag = 'sflag constant byte address 0x0 - dummy sync flag']
  #allocation26 [shape = 's32[]', space=sflag, size = 0x4, offset = 0, fixed_abs, tag = 'sflag constant byte address 0x0 - dummy sync flag']
  #allocation27 [shape = 's32[]', space=sflag, size = 0x4, offset = 0, fixed_abs, tag = 'sflag constant byte address 0x0 - dummy sync flag']
  #allocation28 [shape = 's32[]', space=sflag, size = 0x4, offset = 0, fixed_abs, tag = 'sflag constant byte address 0x0 - dummy sync flag']
  #allocation29 [shape = 's32[]', space=sflag, size = 0x4, offset = 0, fixed_abs, tag = 'sflag constant byte address 0x0 - dummy sync flag']
  #allocation30 [shape = 's32[]', space=sflag, size = 0x4, offset = 0, fixed_abs, tag = 'sflag constant byte address 0x0 - dummy sync flag']
  #allocation31 [shape = 's32[]', space=sflag, size = 0x4, offset = 0, fixed_abs, tag = 'sflag constant byte address 0x0 - dummy sync flag']
  #allocation32 [shape = 's32[]', space=sflag, size = 0x4, offset = 0, fixed_abs, tag = 'sflag constant byte address 0x0 - dummy sync flag']
  #allocation33 [shape = 's32[]', space=sflag, size = 0x4, offset = 0, fixed_abs, tag = 'sflag constant byte address 0x0 - dummy sync flag']
  #allocation34 [shape = 's32[]', space=sflag, size = 0x4, offset = 0, fixed_abs, tag = 'sflag constant byte address 0x0 - dummy sync flag']
  #allocation35 [shape = 's32[]', space=sflag, size = 0x4, offset = 0, fixed_abs, tag = 'sflag constant byte address 0x0 - dummy sync flag']
  #allocation36 [shape = 's32[]', space=sflag, size = 0x4, offset = 0, fixed_abs, tag = 'sflag constant byte address 0x0 - dummy sync flag']
  #allocation37 [shape = 's32[]', space=sflag, size = 0x4, offset = 0, fixed_abs, tag = 'sflag constant byte address 0x0 - dummy sync flag']
  #allocation38 [shape = 's32[]', space=sflag, size = 0x4, offset = 0, fixed_abs, tag = 'sflag constant byte address 0x0 - dummy sync flag']
  #allocation39 [shape = 's32[]', space=sflag, size = 0x4, offset = 0, fixed_abs, tag = 'sflag constant byte address 0x0 - dummy sync flag']
  #allocation40 [shape = 's32[]', space=sflag, size = 0x4, offset = 0, fixed_abs, tag = 'sflag constant byte address 0x0 - dummy sync flag']
  #allocation41 [shape = 's32[]', space=sflag, size = 0x4, offset = 0, fixed_abs, tag = 'sflag constant byte address 0x0 - dummy sync flag']
  #allocation42 [shape = 's32[]', space=sflag, size = 0x4, offset = 0, fixed_abs, tag = 'sflag constant byte address 0x0 - dummy sync flag']
  #allocation43 [shape = 's32[]', space=sflag, size = 0x4, offset = 0, fixed_abs, tag = 'sflag constant byte address 0x0 - dummy sync flag']
  #allocation44 [shape = 's32[]', space=sflag, size = 0x4, offset = 0, fixed_abs, tag = 'sflag constant byte address 0x0 - dummy sync flag']
  #allocation45 [shape = 's32[]', space=sflag, size = 0x4, offset = 0, fixed_abs, tag = 'sflag constant byte address 0x0 - dummy sync flag']
  #allocation46 [shape = 's32[]', space=sflag, size = 0x4, offset = 0, fixed_abs, tag = 'sflag constant byte address 0x0 - dummy sync flag']
  #allocation47 [shape = 's32[]', space=sflag, size = 0x4, offset = 0, fixed_abs, tag = 'sflag constant byte address 0x0 - dummy sync flag']
  #allocation48 [shape = 's32[]', space=sflag, size = 0x4, offset = 0, fixed_abs, tag = 'sflag constant byte address 0x0 - dummy sync flag']
  #allocation49 [shape = 's32[]', space=sflag, size = 0x4, offset = 0, fixed_abs, tag = 'sflag constant byte address 0x0 - dummy sync flag']
  #allocation50 [shape = 's32[]', space=sflag, size = 0x4, offset = 0, fixed_abs, tag = 'sflag constant byte address 0x0 - dummy sync flag']
  #allocation51 [shape = 's32[]', space=sflag, size = 0x4, offset = 0, fixed_abs, tag = 'sflag constant byte address 0x0 - dummy sync flag']
  #allocation52 [shape = 's32[]', space=sflag, size = 0x4, offset = 0, fixed_abs, tag = 'sflag constant byte address 0x0 - dummy sync flag']
  #allocation53 [shape = 's32[]', space=sflag, size = 0x4, offset = 0, fixed_abs, tag = 'sflag constant byte address 0x0 - dummy sync flag']
  #allocation54 [shape = 's32[]', space=sflag, size = 0x4, offset = 0, fixed_abs, tag = 'sflag constant byte address 0x0 - dummy sync flag']
  #allocation55 [shape = 's32[]', space=sflag, size = 0x4, offset = 0, fixed_abs, tag = 'sflag constant byte address 0x0 - dummy sync flag']
  #allocation56 [shape = 's32[]', space=sflag, size = 0x4, offset = 0, fixed_abs, tag = 'sflag constant byte address 0x0 - dummy sync flag']
  #allocation57 [shape = 's32[]', space=sflag, size = 0x4, offset = 0, fixed_abs, tag = 'sflag constant byte address 0x0 - dummy sync flag']
  #allocation58 [shape = 's32[]', space=sflag, size = 0x4, offset = 0, fixed_abs, tag = 'sflag constant byte address 0x0 - dummy sync flag']
  #allocation59 [shape = 's32[]', space=sflag, size = 0x4, offset = 0, fixed_abs, tag = 'sflag constant byte address 0x0 - dummy sync flag']
  #allocation60 [shape = 's32[]', space=sflag, size = 0x4, offset = 0, fixed_abs, tag = 'sflag constant byte address 0x0 - dummy sync flag']
  #allocation61 [shape = 's32[]', space=sflag, size = 0x4, offset = 0, fixed_abs, tag = 'sflag constant byte address 0x0 - dummy sync flag']
  #allocation62 [shape = 's32[]', space=sflag, size = 0x4, offset = 0, fixed_abs, tag = 'sflag constant byte address 0x0 - dummy sync flag']
  #allocation63 [shape = 's32[]', space=sflag, size = 0x4, offset = 0, fixed_abs, tag = 'sflag constant byte address 0x0 - dummy sync flag']
  #allocation64 [shape = 's32[]', space=sflag, size = 0x4, offset = 0, fixed_abs, tag = 'sflag constant byte address 0x0 - dummy sync flag']
  #allocation65 [shape = 's32[]', space=sflag, size = 0x4, offset = 0, fixed_abs, tag = 'sflag constant byte address 0x0 - dummy sync flag']
  #allocation66 [shape = 's32[]', space=sflag, size = 0x4, offset = 0, fixed_abs, tag = 'sflag constant byte address 0x0 - dummy sync flag']
  #allocation67 [shape = 's32[]', space=sflag, size = 0x4, offset = 0, fixed_abs, tag = 'sflag constant byte address 0x0 - dummy sync flag']
  #allocation68 [shape = 's32[]', space=sflag, size = 0x4, offset = 0, fixed_abs, tag = 'sflag constant byte address 0x0 - dummy sync flag']
  #allocation69 [shape = 's32[]', space=sflag, size = 0x4, offset = 0, fixed_abs, tag = 'sflag constant byte address 0x0 - dummy sync flag']
  #allocation70 [shape = 's32[]', space=sflag, size = 0x4, offset = 0, fixed_abs, tag = 'sflag constant byte address 0x0 - dummy sync flag']
  #allocation71 [shape = 's32[]', space=sflag, size = 0x4, offset = 0, fixed_abs, tag = 'sflag constant byte address 0x0 - dummy sync flag']
  #allocation72 [shape = 's32[]', space=sflag, size = 0x4, offset = 0, fixed_abs, tag = 'sflag constant byte address 0x0 - dummy sync flag']
  #allocation73 [shape = 's32[]', space=sflag, size = 0x4, offset = 0, fixed_abs, tag = 'sflag constant byte address 0x0 - dummy sync flag']
  #allocation74 [shape = 's32[]', space=sflag, size = 0x4, offset = 0, fixed_abs, tag = 'sflag constant byte address 0x0 - dummy sync flag']
  #allocation75 [shape = 's32[]', space=sflag, size = 0x4, offset = 0, fixed_abs, tag = 'sflag constant byte address 0x0 - dummy sync flag']
  #allocation76 [shape = 's32[]', space=sflag, size = 0x4, offset = 0, fixed_abs, tag = 'sflag constant byte address 0x0 - dummy sync flag']
  #allocation77 [shape = 's32[]', space=sflag, size = 0x4, offset = 0, fixed_abs, tag = 'sflag constant byte address 0x0 - dummy sync flag']
  #allocation78 [shape = 's32[]', space=sflag, size = 0x4, offset = 0, fixed_abs, tag = 'sflag constant byte address 0x0 - dummy sync flag']
  #allocation79 [shape = 's32[]', space=sflag, size = 0x4, offset = 0, fixed_abs, tag = 'sflag constant byte address 0x0 - dummy sync flag']
  #allocation80 [shape = 's32[]', space=sflag, size = 0x4, offset = 0, fixed_abs, tag = 'sflag constant byte address 0x0 - dummy sync flag']
  #allocation81 [shape = 's32[]', space=sflag, size = 0x4, offset = 0, fixed_abs, tag = 'sflag constant byte address 0x0 - dummy sync flag']
  #allocation82 [shape = 's32[]', space=sflag, size = 0x4, offset = 0, fixed_abs, tag = 'sflag constant byte address 0x0 - dummy sync flag']
  #allocation83 [shape = 's32[]', space=sflag, size = 0x4, offset = 0, fixed_abs, tag = 'sflag constant byte address 0x0 - dummy sync flag']
  #allocation84 [shape = 's32[]', space=sflag, size = 0x4, offset = 0, fixed_abs, tag = 'sflag constant byte address 0x0 - dummy sync flag']
  #allocation85 [shape = 's32[]', space=sflag, size = 0x4, offset = 0, fixed_abs, tag = 'sflag constant byte address 0x0 - dummy sync flag']
  #allocation86 [shape = 's32[]', space=sflag, size = 0x4, offset = 0, fixed_abs, tag = 'sflag constant byte address 0x0 - dummy sync flag']
  #allocation87 [shape = 's32[]', space=sflag, size = 0x4, offset = 0, fixed_abs, tag = 'sflag constant byte address 0x0 - dummy sync flag']
  #allocation88 [shape = 's32[]', space=sflag, size = 0x4, offset = 0, fixed_abs, tag = 'sflag constant byte address 0x0 - dummy sync flag']
  #allocation89 [shape = 's32[]', space=sflag, size = 0x4, offset = 0, fixed_abs, tag = 'sflag constant byte address 0x0 - dummy sync flag']
  #allocation90 [shape = 's32[]', space=sflag, size = 0x4, offset = 0, fixed_abs, tag = 'sflag constant byte address 0x0 - dummy sync flag']
  #allocation91 [shape = 's32[]', space=sflag, size = 0x4, offset = 0, fixed_abs, tag = 'sflag constant byte address 0x0 - dummy sync flag']
  #allocation92 [shape = 's32[]', space=sflag, size = 0x4, offset = 0, fixed_abs, tag = 'sflag constant byte address 0x0 - dummy sync flag']
  #allocation93 [shape = 's32[]', space=sflag, size = 0x4, offset = 0, fixed_abs, tag = 'sflag constant byte address 0x0 - dummy sync flag']
  #allocation94 [shape = 's32[]', space=sflag, size = 0x4, offset = 0, fixed_abs, tag = 'sflag constant byte address 0x0 - dummy sync flag']
  #allocation95 [shape = 's32[]', space=sflag, size = 0x4, offset = 0, fixed_abs, tag = 'sflag constant byte address 0x0 - dummy sync flag']
  #allocation96 [shape = 's32[]', space=sflag, size = 0x4, offset = 0, fixed_abs, tag = 'sflag constant byte address 0x0 - dummy sync flag']
  #allocation97 [shape = 's32[]', space=sflag, size = 0x4, offset = 0, fixed_abs, tag = 'sflag constant byte address 0x0 - dummy sync flag']
  #allocation98 [shape = 's32[]', space=sflag, size = 0x4, offset = 0, fixed_abs, tag = 'sflag constant byte address 0x0 - dummy sync flag']
  #allocation99 [shape = 's32[]', space=sflag, size = 0x4, offset = 0, fixed_abs, tag = 'sflag constant byte address 0x0 - dummy sync flag']
  #allocation100 [shape = 's32[]', space=sflag, size = 0x4, offset = 0, fixed_abs, tag = 'sflag constant byte address 0x0 - dummy sync flag']
  #allocation101 [shape = 's32[]', space=sflag, size = 0x4, offset = 0, fixed_abs, tag = 'sflag constant byte address 0x0 - dummy sync flag']
  #allocation102 [shape = 's32[]', space=sflag, size = 0x4, offset = 0, fixed_abs, tag = 'sflag constant byte address 0x0 - dummy sync flag']
  %s0 = inlined_call_operand.vmem [shape: f32[16,128], index: 0, kind: input, shape index: {}]
  %s1 = inlined_call_operand.hbm [shape: bf16[14,32,128], index: 1, kind: input, shape index: {}]
  %s2 = inlined_call_operand.vmem [shape: bf16[2,32,256], index: 2, kind: input, shape index: {}]
  %s3 = inlined_call_operand.hbm [shape: bf16[16,32,128], index: 3, kind: input, shape index: {}]
  %s4 = inlined_call_operand.hbm [shape: f32[16,8,128], index: 4, kind: input, shape index: {}]
  %s5 = inlined_call_operand.vmem [shape: f32[8,16], index: 5, kind: input, shape index: {}]
  %s6 = inlined_call_operand.vmem [shape: f32[8,128], index: 6, kind: output, shape index: {}]
  %s7 = sld [smem:[#allocation0]]
  $region276: #{_lambda_.1} parent=0
    _
  %s9 = ssub.s32 1, %s7
  %s10 = scalar_select 0, %s9, %s7
  // Predicated region
  $region2: #{_lambda_.1} parent=0 // pred_check
    _
  $region3: #{_lambda_.1} parent=0 // pred_check_branch
    %12 = sbr.rel (0) target = $region5
  $region4: #{_lambda_.1} parent=0 // pred_region
    _
  $region5: #{_lambda_.1} parent=0 // pred_fallthru
    _
  // Predicated region
  $region6: #{_lambda_.1} parent=0 // pred_check
    _
  $region7: #{_lambda_.1} parent=0 // pred_check_branch
    %14 = sbr.rel (0) target = $region9
  $region8: #{_lambda_.1} parent=0 // pred_region
    _
  $region9: #{_lambda_.1} parent=0 // pred_fallthru
    _
  %p17 = scmp.lt.u32.totalorder 4, 8
  %p18 = pneg %p17
  // Predicated region
  $region10: #{_lambda_.1} parent=0 // pred_check
    _
  $region11: #{_lambda_.1} parent=0 // pred_check_branch
    %20 = sbr.rel (%p17) target = $region13
  $region12: #{_lambda_.1} parent=0 // pred_region
    %s49 = sand.u32 4, 7
    %p50 = scmp.eq.s32.totalorder %s49, 0
    %p51 = pneg %p50
    // Predicated region
    $region25: #{_lambda_.1} parent=12 // pred_check
      _
    $region26: #{_lambda_.1} parent=12 // pred_check_branch
      %53 = sbr.rel (%p50) target = $region28
    $region27: #{_lambda_.1} parent=12 // pred_region
      %s54 = sand.u32 4, 7
      %s55 = ssub.s32 4, %s54
      %s56 = scalar_lea.vmem %s2, %s55
      %s57 = ssub.s32 4, %s54
      %s58 = scalar_lea.vmem [#allocation3], %s57
      loop: start=0, step=1, limit=1
      $region29: #{_lambda_.1} parent=27 // loop_pre_header
        _
      $region30: #{_lambda_.1} parent=27 // loop_header
        %s60 = sphi 0, %s64
        %p61 = scmp.ge.s32.totalorder %s60, 1
        %s65 = sphi %s2, %s2
        %s66 = sphi [#allocation3], [#allocation3]
      $region31: #{_lambda_.1} parent=27 // loop_header_branch
        %63 = sbr.rel (%p61) target = $region35
      $region32: #{_lambda_.1} parent=27 // loop_body
        _
      $region33: #{_lambda_.1} parent=27 // loop_footer
        %s64 = sadd.s32 1, %s60
      $region34: #{_lambda_.1} parent=27 // loop_footer_branch
        %59 = sbr.rel target = $region30
      $region35: #{_lambda_.1} parent=27 // loop_exit
        _
      %s67 = sshllo.u32 0, %s54
      loop: start=0, step=1, limit=1
      $region36: #{_lambda_.1} parent=27 // loop_pre_header
        _
      $region37: #{_lambda_.1} parent=27 // loop_header
        %s69 = sphi 0, %s73
        %p70 = scmp.ge.s32.totalorder %s69, 1
        %s74 = sphi %s56, %s56
        %s75 = sphi %s58, %s58
      $region38: #{_lambda_.1} parent=27 // loop_header_branch
        %72 = sbr.rel (%p70) target = $region42
      $region39: #{_lambda_.1} parent=27 // loop_body
        %v76 = vld [vmem:[%s74] sm:%s67]
        %77 = vst [vmem:[%s75] sm:%s67] %v76
        %v78 = vld [vmem:[%s74 + $0x8] sm:%s67]
        %79 = vst [vmem:[%s75 + $0x4] sm:%s67] %v78
        %v80 = vld [vmem:[%s74 + $0x4] sm:%s67]
        %81 = vst [vmem:[%s75 + $0x8] sm:%s67] %v80
        %v82 = vld [vmem:[%s74 + $0xc] sm:%s67]
        %83 = vst [vmem:[%s75 + $0xc] sm:%s67] %v82
        %v84 = vld [vmem:[%s74 + $0x10] sm:%s67]
        %85 = vst [vmem:[%s75 + $0x10] sm:%s67] %v84
        %v86 = vld [vmem:[%s74 + $0x18] sm:%s67]
        %87 = vst [vmem:[%s75 + $0x14] sm:%s67] %v86
        %v88 = vld [vmem:[%s74 + $0x14] sm:%s67]
        %89 = vst [vmem:[%s75 + $0x18] sm:%s67] %v88
        %v90 = vld [vmem:[%s74 + $0x1c] sm:%s67]
        %91 = vst [vmem:[%s75 + $0x1c] sm:%s67] %v90
      $region40: #{_lambda_.1} parent=27 // loop_footer
        %s73 = sadd.s32 1, %s69
      $region41: #{_lambda_.1} parent=27 // loop_footer_branch
        %68 = sbr.rel target = $region37
      $region42: #{_lambda_.1} parent=27 // loop_exit
        _
    $region28: #{_lambda_.1} parent=12 // pred_fallthru
      _
  $region13: #{_lambda_.1} parent=0 // pred_fallthru
    _
  // Predicated region
  $region14: #{_lambda_.1} parent=0 // pred_check
    %p21 = pneg %p17
  $region15: #{_lambda_.1} parent=0 // pred_check_branch
    %23 = sbr.rel (%p21) target = $region17
  $region16: #{_lambda_.1} parent=0 // pred_region
    %s24 = sshllo.u32 0, 4
    loop: start=0, step=1, limit=1
    $region18: #{_lambda_.1} parent=16 // loop_pre_header
      _
    $region19: #{_lambda_.1} parent=16 // loop_header
      %s26 = sphi 0, %s30
      %p27 = scmp.ge.s32.totalorder %s26, 1
      %s31 = sphi %s2, %s2
      %s32 = sphi [#allocation3], [#allocation3]
    $region20: #{_lambda_.1} parent=16 // loop_header_branch
      %29 = sbr.rel (%p27) target = $region24
    $region21: #{_lambda_.1} parent=16 // loop_body
      %v33 = vld [vmem:[%s31] sm:%s24]
      %34 = vst [vmem:[%s32] sm:%s24] %v33
      %v35 = vld [vmem:[%s31 + $0x8] sm:%s24]
      %36 = vst [vmem:[%s32 + $0x4] sm:%s24] %v35
      %v37 = vld [vmem:[%s31 + $0x4] sm:%s24]
      %38 = vst [vmem:[%s32 + $0x8] sm:%s24] %v37
      %v39 = vld [vmem:[%s31 + $0xc] sm:%s24]
      %40 = vst [vmem:[%s32 + $0xc] sm:%s24] %v39
      %v41 = vld [vmem:[%s31 + $0x10] sm:%s24]
      %42 = vst [vmem:[%s32 + $0x10] sm:%s24] %v41
      %v43 = vld [vmem:[%s31 + $0x18] sm:%s24]
      %44 = vst [vmem:[%s32 + $0x14] sm:%s24] %v43
      %v45 = vld [vmem:[%s31 + $0x14] sm:%s24]
      %46 = vst [vmem:[%s32 + $0x18] sm:%s24] %v45
      %v47 = vld [vmem:[%s31 + $0x1c] sm:%s24]
      %48 = vst [vmem:[%s32 + $0x1c] sm:%s24] %v47
    $region22: #{_lambda_.1} parent=16 // loop_footer
      %s30 = sadd.s32 1, %s26
    $region23: #{_lambda_.1} parent=16 // loop_footer_branch
      %25 = sbr.rel target = $region19
    $region24: #{_lambda_.1} parent=16 // loop_exit
      _
  $region17: #{_lambda_.1} parent=0 // pred_fallthru
    _
  // Predicated region
  $region43: #{_lambda_.1} parent=0 // pred_check
    _
  $region44: #{_lambda_.1} parent=0 // pred_check_branch
    %94 = sbr.rel (0) target = $region46
  $region45: #{_lambda_.1} parent=0 // pred_region
    %95 = vsyncadd [#allocation6], 512
  $region46: #{_lambda_.1} parent=0 // pred_fallthru
    _
  %s96 = scalar_lea.sflag [#allocation6], 1
  // Predicated region
  $region47: #{_lambda_.1} parent=0 // pred_check
    _
  $region48: #{_lambda_.1} parent=0 // pred_check_branch
    %98 = sbr.rel target = $region50
  $region49: #{_lambda_.1} parent=0 // pred_region
    %99 = sst [smem:[#allocation10]] [#allocation9]
    %100 = sst [smem:[#allocation11]] [#allocation8]
  $region50: #{_lambda_.1} parent=0 // pred_fallthru
    _
  %102 = shalt.err (0)
  %s104 = sshll.u32 [#allocation4], 4
  %s105 = int_to_ptr.vmem [resolvable:$true] %s104
  %107 = dma.hbm_to_vmem [thread:$0]  %s3, 256, %s105, %s96
  %s108 = scalar_lea.sflag [#allocation6], 2
  // Predicated region
  $region51: #{_lambda_.1} parent=0 // pred_check
    _
  $region52: #{_lambda_.1} parent=0 // pred_check_branch
    %110 = sbr.rel target = $region54
  $region53: #{_lambda_.1} parent=0 // pred_region
    %111 = sst [smem:[#allocation10]] [#allocation13]
    %112 = sst [smem:[#allocation11]] [#allocation12]
  $region54: #{_lambda_.1} parent=0 // pred_fallthru
    _
  %114 = shalt.err (0)
  %s116 = sshll.u32 [#allocation5], 4
  %s117 = int_to_ptr.vmem [resolvable:$true] %s116
  %119 = dma.hbm_to_vmem [thread:$0]  %s4, 128, %s117, %s108
  %v120 = vld [vmem:[%s0] sm:$0xff]
  %v121 = vld [vmem:[%s0 + $0x8] sm:$0xff]
  %s122 = smul.u32 4, 4
  %s123 = smul.u32 %s122, 2
  %s124 = sshll.u32 %s123, 4
  %125 = dma.done [#allocation6], %s124
  %s126 = smul.u32 %s122, 1
  %s127 = sshll.u32 %s126, 4
  %128 = dma.done %s96, %s127
  %s129 = smul.u32 8, 1
  %s130 = sshll.u32 %s129, 4
  %131 = dma.done %s108, %s130
  %s132 = scalar_lea.vmem [#allocation2], 16
  %s133 = scalar_lea.sflag [#allocation6], 3
  // Predicated region
  $region55: #{_lambda_.1} parent=0 // pred_check
    _
  $region56: #{_lambda_.1} parent=0 // pred_check_branch
    %135 = sbr.rel target = $region58
  $region57: #{_lambda_.1} parent=0 // pred_region
    %136 = sst [smem:[#allocation10]] [#allocation15]
    %137 = sst [smem:[#allocation11]] [#allocation14]
  $region58: #{_lambda_.1} parent=0 // pred_fallthru
    _
  %139 = shalt.err (0)
  %s141 = sshll.u32 %s132, 4
  %s142 = int_to_ptr.vmem [resolvable:$true] %s141
  %144 = dma.hbm_to_vmem [thread:$0]  %s1, 256, %s142, %s133
  %s145 = scalar_lea.hbm %s3, 256
  %s146 = scalar_lea.vmem [#allocation4], 16
  %s147 = scalar_lea.sflag [#allocation6], 4
  // Predicated region
  $region59: #{_lambda_.1} parent=0 // pred_check
    _
  $region60: #{_lambda_.1} parent=0 // pred_check_branch
    %149 = sbr.rel target = $region62
  $region61: #{_lambda_.1} parent=0 // pred_region
    %150 = sst [smem:[#allocation10]] [#allocation17]
    %151 = sst [smem:[#allocation11]] [#allocation16]
  $region62: #{_lambda_.1} parent=0 // pred_fallthru
    _
  %153 = shalt.err (0)
  %s155 = sshll.u32 %s146, 4
  %s156 = int_to_ptr.vmem [resolvable:$true] %s155
  %158 = dma.hbm_to_vmem [thread:$0]  %s145, 256, %s156, %s147
  %s159 = scalar_lea.hbm %s4, 128
  %s160 = scalar_lea.vmem [#allocation5], 8
  %s161 = scalar_lea.sflag [#allocation6], 5
  // Predicated region
  $region63: #{_lambda_.1} parent=0 // pred_check
    _
  $region64: #{_lambda_.1} parent=0 // pred_check_branch
    %163 = sbr.rel target = $region66
  $region65: #{_lambda_.1} parent=0 // pred_region
    %164 = sst [smem:[#allocation10]] [#allocation19]
    %165 = sst [smem:[#allocation11]] [#allocation18]
  $region66: #{_lambda_.1} parent=0 // pred_fallthru
    _
  %167 = shalt.err (0)
  %s169 = sshll.u32 %s160, 4
  %s170 = int_to_ptr.vmem [resolvable:$true] %s169
  %172 = dma.hbm_to_vmem [thread:$0]  %s159, 128, %s170, %s161
  %v173 = vld [vmem:[#allocation5] sm:$0xff]
  %v174 = vpack.c.bf16 %v121, %v120
  %v175 = vld [vmem:[#allocation3] sm:$0xff]
  %v176 = vld [vmem:[#allocation3 + $0x8] sm:$0xff]
  %v177 = vld [vmem:[#allocation3 + $0x10] sm:$0xff]
  %v178 = vld [vmem:[#allocation3 + $0x18] sm:$0xff]
  %vm179 = vcmask 261120
  %v181 = vsel %vm179, %v174, 0
  %183 = vmatprep.subr.bf16.mxu0 %v176
  %184 = vmatpush1.bf16.msra.mxu0 %v175
  %185 = vmatprep.subr.bf16.mxu0 %v178
  %186 = vmatpush1.bf16.msra.mxu0 %v177
  %187 = vmatprep.subr.bf16.mxu0 0
  %188 = vmatpush1.bf16.msra.mxu0 0
  %189 = vmatprep.subr.bf16.mxu0 0
  %190 = vmatpush1.bf16.msra.mxu0 0
  %191 = vmatprep.subr.bf16.mxu0 0
  %192 = vmatpush1.bf16.msra.mxu0 0
  %193 = vmatprep.subr.bf16.mxu0 0
  %194 = vmatpush1.bf16.msra.mxu0 0
  %195 = vmatprep.subr.bf16.mxu0 0
  %196 = vmatpush1.bf16.msra.mxu0 0
  %197 = vmatprep.subr.bf16.mxu0 0
  %198 = vmatpush1.bf16.msra.mxu0 0
  %199 = vmatprep.subr.bf16.mxu0 0
  %200 = vmatpush1.bf16.msra.mxu0 0
  %201 = vmatprep.subr.bf16.mxu0 0
  %202 = vmatpush1.bf16.msra.mxu0 0
  %203 = vmatprep.subr.bf16.mxu0 0
  %204 = vmatpush1.bf16.msra.mxu0 0
  %205 = vmatprep.subr.bf16.mxu0 0
  %206 = vmatpush1.bf16.msra.mxu0 0
  %207 = vmatprep.subr.bf16.mxu0 0
  %208 = vmatpush1.bf16.msra.mxu0 0
  %209 = vmatprep.subr.bf16.mxu0 0
  %210 = vmatpush1.bf16.msra.mxu0 0
  %211 = vmatprep.subr.bf16.mxu0 0
  %212 = vmatpush1.bf16.msra.mxu0 0
  %213 = vmatprep.subr.bf16.mxu0 0
  %214 = vmatpush1.bf16.msra.mxu0 0
  %215 = vmatprep.mubr.bf16.mxu0 0
  %216 = vmatmul.mubr.bf16.gmra.mrb[0].mxu0 %v181
  %v217 = vpop.f32.mrb[0].mxu0
  %v218 = vadd.f32 0.0, %v217
  %v219 = vpop.f32.mrb[0].mxu0
  %v220 = vadd.f32 0.0, %v219
  %v221 = vpop.f32.mrb[0].mxu0
  %v222 = vadd.f32 0.0, %v221
  %v223 = vpop.f32.mrb[0].mxu0
  %v224 = vadd.f32 0.0, %v223
  %225 = vdwg.mxu0
  %v227 = vrot.slane %v173, 4
  %v229 = vadd.f32 %v218, %v222
  %v230 = vrot.slane %v229, 4
  %v231 = vadd.f32 %v229, %v230
  %v232 = vrot.slane %v231, 2
  %v233 = vadd.f32 %v231, %v232
  %v234 = vrot.slane %v233, 1
  %v235 = vadd.f32 %v233, %v234
  %v236 = vadd.f32 %v220, %v224
  %v237 = vrot.slane %v236, 4
  %v238 = vadd.f32 %v236, %v237
  %v239 = vrot.slane %v238, 2
  %v240 = vadd.f32 %v238, %v239
  %v241 = vrot.slane %v240, 1
  %v242 = vadd.f32 %v240, %v241
  %v243 = vmul.f32 %v218, %v218
  %v244 = vmul.f32 %v220, %v220
  %v245 = vmul.f32 %v222, %v222
  %v246 = vmul.f32 %v224, %v224
  %v247 = vadd.f32 %v243, %v245
  %v248 = vrot.slane %v247, 4
  %v249 = vadd.f32 %v247, %v248
  %v250 = vrot.slane %v249, 2
  %v251 = vadd.f32 %v249, %v250
  %v252 = vrot.slane %v251, 1
  %v253 = vadd.f32 %v251, %v252
  %v254 = vadd.f32 %v244, %v246
  %v255 = vrot.slane %v254, 4
  %v256 = vadd.f32 %v254, %v255
  %v257 = vrot.slane %v256, 2
  %v258 = vadd.f32 %v256, %v257
  %v259 = vrot.slane %v258, 1
  %v260 = vadd.f32 %v258, %v259
  %v261 = vmul.f32 %v235, 0.0625
  %v262 = vmul.f32 %v242, 0.0625
  %v263 = vmul.f32 %v253, 0.0625
  %v264 = vmul.f32 %v260, 0.0625
  %v265 = vmul.f32 %v261, %v261
  %v266 = vmul.f32 %v262, %v262
  %v267 = vsub.f32 %v263, %v265
  %v268 = vsub.f32 %v264, %v266
  %v269 = vmax.f32 %v267, 0.0
  %v270 = vmax.f32 %v268, 0.0
  %v271 = vadd.f32 %v269, 1e-05
  %v272 = vadd.f32 %v270, 1e-05
  %v273 = vrsqrt.pop %v271
  %v274 = vrsqrt.pop %v272
  %v275 = vmul.f32 %v173, %v273
  %v276 = vmul.f32 %v227, %v274
  %v277 = vmul.f32 %v261, %v275
  %v278 = vmul.f32 %v262, %v276
  %v281 = vrot.slane %v277, 7
  %v282 = vrot.slane %v278, 7
  %v285 = vsub.f32 %v173, %v281
  %v286 = vsub.f32 %v227, %v282
  %v287 = vlaneseq
  %v288 = vshrl.u32 %v287, 7
  %v289 = vsub.s32 0, %v288
  %v290 = vrot.slane %v275, %v289
  %v291 = vlaneseq
  %v292 = vshrl.u32 %v291, 7
  %v293 = vsub.s32 0, %v292
  %v294 = vrot.slane %v276, %v293
  %v295 = vmul.f32 %v218, %v290
  %v296 = vmul.f32 %v220, %v294
  %v297 = vmul.f32 %v222, %v290
  %v298 = vmul.f32 %v224, %v294
  %v299 = vlaneseq
  %v300 = vshrl.u32 %v299, 7
  %v301 = vsub.s32 1, %v300
  %v302 = vrot.slane %v285, %v301
  %v303 = vlaneseq
  %v304 = vshrl.u32 %v303, 7
  %v305 = vsub.s32 1, %v304
  %v306 = vrot.slane %v286, %v305
  %v307 = vadd.f32 %v295, %v302
  %v308 = vadd.f32 %v296, %v306
  %v309 = vadd.f32 %v297, %v302
  %v310 = vadd.f32 %v298, %v306
  %v311 = vmax.f32 %v307, 0.0
  %v312 = vmax.f32 %v309, 0.0
  %v313 = vpack.c.bf16 %v312, %v311
  %v314 = vld [vmem:[#allocation4] sm:$0xff]
  %v315 = vld [vmem:[#allocation4 + $0x8] sm:$0xff]
  %v317 = vsel %vm179, %v313, 0
  %319 = vmatprep.subr.bf16.mxu0 0
  %320 = vmatpush1.bf16.msra.mxu0 %v314
  %321 = vmatprep.subr.bf16.mxu0 0
  %322 = vmatpush1.bf16.msra.mxu0 %v315
  %323 = vmatprep.subr.bf16.mxu0 0
  %324 = vmatpush1.bf16.msra.mxu0 0
  %325 = vmatprep.subr.bf16.mxu0 0
  %326 = vmatpush1.bf16.msra.mxu0 0
  %327 = vmatprep.subr.bf16.mxu0 0
  %328 = vmatpush1.bf16.msra.mxu0 0
  %329 = vmatprep.subr.bf16.mxu0 0
  %330 = vmatpush1.bf16.msra.mxu0 0
  %331 = vmatprep.subr.bf16.mxu0 0
  %332 = vmatpush1.bf16.msra.mxu0 0
  %333 = vmatprep.subr.bf16.mxu0 0
  %334 = vmatpush1.bf16.msra.mxu0 0
  %335 = vmatprep.subr.bf16.mxu0 0
  %336 = vmatpush1.bf16.msra.mxu0 0
  %337 = vmatprep.subr.bf16.mxu0 0
  %338 = vmatpush1.bf16.msra.mxu0 0
  %339 = vmatprep.subr.bf16.mxu0 0
  %340 = vmatpush1.bf16.msra.mxu0 0
  %341 = vmatprep.subr.bf16.mxu0 0
  %342 = vmatpush1.bf16.msra.mxu0 0
  %343 = vmatprep.subr.bf16.mxu0 0
  %344 = vmatpush1.bf16.msra.mxu0 0
  %345 = vmatprep.subr.bf16.mxu0 0
  %346 = vmatpush1.bf16.msra.mxu0 0
  %347 = vmatprep.subr.bf16.mxu0 0
  %348 = vmatpush1.bf16.msra.mxu0 0
  %349 = vmatprep.subr.bf16.mxu0 0
  %350 = vmatpush1.bf16.msra.mxu0 0
  %351 = vmatprep.mubr.bf16.mxu0 0
  %352 = vmatmul.mubr.bf16.gmra.mrb[0].mxu0 %v317
  %v353 = vpop.f32.mrb[0].mxu0
  %v354 = vadd.f32 0.0, %v353
  %v355 = vpop.f32.mrb[0].mxu0
  %v356 = vpop.f32.mrb[0].mxu0
  %v357 = vadd.f32 0.0, %v356
  %v358 = vpop.f32.mrb[0].mxu0
  %359 = vdwg.mxu0
  %v360 = vadd.f32 %v354, %v357
  %v361 = vrot.slane %v360, 4
  %v362 = vadd.f32 %v360, %v361
  %v363 = vrot.slane %v362, 2
  %v364 = vadd.f32 %v362, %v363
  %v365 = vrot.slane %v364, 1
  %v366 = vadd.f32 %v364, %v365
  %v367 = vmul.f32 %v354, %v354
  %v368 = vmul.f32 %v357, %v357
  %v369 = vadd.f32 %v367, %v368
  %v370 = vrot.slane %v369, 4
  %v371 = vadd.f32 %v369, %v370
  %v372 = vrot.slane %v371, 2
  %v373 = vadd.f32 %v371, %v372
  %v374 = vrot.slane %v373, 1
  %v375 = vadd.f32 %v373, %v374
  %v376 = vmul.f32 %v366, 0.0625
  %v377 = vmul.f32 %v375, 0.0625
  %v378 = vmul.f32 %v376, %v376
  %v379 = vsub.f32 %v377, %v378
  %v380 = vmax.f32 %v379, 0.0
  %v381 = vadd.f32 %v380, 1e-05
  %v382 = vrsqrt.pop %v381
  %v383 = vmul.f32 %v173, %v382
  %v384 = vmul.f32 %v376, %v383
  %v386 = vrot.slane %v384, 7
  %v388 = vsub.f32 %v173, %v386
  %v389 = vlaneseq
  %v390 = vshrl.u32 %v389, 7
  %v391 = vsub.s32 2, %v390
  %v392 = vrot.slane %v383, %v391
  %v393 = vmul.f32 %v354, %v392
  %v394 = vmul.f32 %v357, %v392
  %v395 = vlaneseq
  %v396 = vshrl.u32 %v395, 7
  %v397 = vsub.s32 3, %v396
  %v398 = vrot.slane %v388, %v397
  %v399 = vadd.f32 %v393, %v398
  %v400 = vadd.f32 %v394, %v398
  %v401 = vadd.f32 %v399, %v308
  %v402 = vadd.f32 %v400, %v310
  %v403 = vmax.f32 %v401, 0.0
  %v404 = vmax.f32 %v402, 0.0
  %s405 = sshll.u32 %s126, 4
  %406 = dma.done %s133, %s405
  %s407 = sshll.u32 %s126, 4
  %408 = dma.done %s147, %s407
  %s409 = sshll.u32 %s129, 4
  %410 = dma.done %s161, %s409
  %s411 = scalar_lea.hbm %s1, 256
  // Predicated region
  $region67: #{_lambda_.1} parent=0 // pred_check
    _
  $region68: #{_lambda_.1} parent=0 // pred_check_branch
    %413 = sbr.rel target = $region70
  $region69: #{_lambda_.1} parent=0 // pred_region
    %414 = sst [smem:[#allocation10]] [#allocation21]
    %415 = sst [smem:[#allocation11]] [#allocation20]
  $region70: #{_lambda_.1} parent=0 // pred_fallthru
    _
  %417 = shalt.err (0)
  %s419 = sshll.u32 [#allocation2], 4
  %s420 = int_to_ptr.vmem [resolvable:$true] %s419
  %422 = dma.hbm_to_vmem [thread:$0]  %s411, 256, %s420, [#allocation6]
  %s423 = scalar_lea.hbm %s3, 512
  // Predicated region
  $region71: #{_lambda_.1} parent=0 // pred_check
    _
  $region72: #{_lambda_.1} parent=0 // pred_check_branch
    %425 = sbr.rel target = $region74
  $region73: #{_lambda_.1} parent=0 // pred_region
    %426 = sst [smem:[#allocation10]] [#allocation23]
    %427 = sst [smem:[#allocation11]] [#allocation22]
  $region74: #{_lambda_.1} parent=0 // pred_fallthru
    _
  %429 = shalt.err (0)
  %s431 = sshll.u32 [#allocation4], 4
  %s432 = int_to_ptr.vmem [resolvable:$true] %s431
  %434 = dma.hbm_to_vmem [thread:$0]  %s423, 256, %s432, %s96
  %s435 = scalar_lea.hbm %s4, 256
  // Predicated region
  $region75: #{_lambda_.1} parent=0 // pred_check
    _
  $region76: #{_lambda_.1} parent=0 // pred_check_branch
    %437 = sbr.rel target = $region78
  $region77: #{_lambda_.1} parent=0 // pred_region
    %438 = sst [smem:[#allocation10]] [#allocation25]
    %439 = sst [smem:[#allocation11]] [#allocation24]
  $region78: #{_lambda_.1} parent=0 // pred_fallthru
    _
  %441 = shalt.err (0)
  %s443 = sshll.u32 [#allocation5], 4
  %s444 = int_to_ptr.vmem [resolvable:$true] %s443
  %446 = dma.hbm_to_vmem [thread:$0]  %s435, 128, %s444, %s108
  %v447 = vld [vmem:[%s160] sm:$0xff]
  %v448 = vpack.c.bf16 %v404, %v403
  %v449 = vld [vmem:[%s132] sm:$0xff]
  %v450 = vld [vmem:[%s132 + $0x8] sm:$0xff]
  %v452 = vsel %vm179, %v448, 0
  %454 = vmatprep.subr.bf16.mxu0 0
  %455 = vmatpush1.bf16.msra.mxu0 %v449
  %456 = vmatprep.subr.bf16.mxu0 0
  %457 = vmatpush1.bf16.msra.mxu0 %v450
  %458 = vmatprep.subr.bf16.mxu0 0
  %459 = vmatpush1.bf16.msra.mxu0 0
  %460 = vmatprep.subr.bf16.mxu0 0
  %461 = vmatpush1.bf16.msra.mxu0 0
  %462 = vmatprep.subr.bf16.mxu0 0
  %463 = vmatpush1.bf16.msra.mxu0 0
  %464 = vmatprep.subr.bf16.mxu0 0
  %465 = vmatpush1.bf16.msra.mxu0 0
  %466 = vmatprep.subr.bf16.mxu0 0
  %467 = vmatpush1.bf16.msra.mxu0 0
  %468 = vmatprep.subr.bf16.mxu0 0
  %469 = vmatpush1.bf16.msra.mxu0 0
  %470 = vmatprep.subr.bf16.mxu0 0
  %471 = vmatpush1.bf16.msra.mxu0 0
  %472 = vmatprep.subr.bf16.mxu0 0
  %473 = vmatpush1.bf16.msra.mxu0 0
  %474 = vmatprep.subr.bf16.mxu0 0
  %475 = vmatpush1.bf16.msra.mxu0 0
  %476 = vmatprep.subr.bf16.mxu0 0
  %477 = vmatpush1.bf16.msra.mxu0 0
  %478 = vmatprep.subr.bf16.mxu0 0
  %479 = vmatpush1.bf16.msra.mxu0 0
  %480 = vmatprep.subr.bf16.mxu0 0
  %481 = vmatpush1.bf16.msra.mxu0 0
  %482 = vmatprep.subr.bf16.mxu0 0
  %483 = vmatpush1.bf16.msra.mxu0 0
  %484 = vmatprep.subr.bf16.mxu0 0
  %485 = vmatpush1.bf16.msra.mxu0 0
  %486 = vmatprep.mubr.bf16.mxu0 0
  %487 = vmatmul.mubr.bf16.gmra.mrb[0].mxu0 %v452
  %v488 = vpop.f32.mrb[0].mxu0
  %v489 = vadd.f32 0.0, %v488
  %v490 = vpop.f32.mrb[0].mxu0
  %v491 = vpop.f32.mrb[0].mxu0
  %v492 = vadd.f32 0.0, %v491
  %v493 = vpop.f32.mrb[0].mxu0
  %494 = vdwg.mxu0
  %v495 = vadd.f32 %v489, %v492
  %v496 = vrot.slane %v495, 4
  %v497 = vadd.f32 %v495, %v496
  %v498 = vrot.slane %v497, 2
  %v499 = vadd.f32 %v497, %v498
  %v500 = vrot.slane %v499, 1
  %v501 = vadd.f32 %v499, %v500
  %v502 = vmul.f32 %v489, %v489
  %v503 = vmul.f32 %v492, %v492
  %v504 = vadd.f32 %v502, %v503
  %v505 = vrot.slane %v504, 4
  %v506 = vadd.f32 %v504, %v505
  %v507 = vrot.slane %v506, 2
  %v508 = vadd.f32 %v506, %v507
  %v509 = vrot.slane %v508, 1
  %v510 = vadd.f32 %v508, %v509
  %v511 = vmul.f32 %v501, 0.0625
  %v512 = vmul.f32 %v510, 0.0625
  %v513 = vmul.f32 %v511, %v511
  %v514 = vsub.f32 %v512, %v513
  %v515 = vmax.f32 %v514, 0.0
  %v516 = vadd.f32 %v515, 1e-05
  %v517 = vrsqrt.pop %v516
  %v518 = vmul.f32 %v447, %v517
  %v519 = vmul.f32 %v511, %v518
  %v521 = vrot.slane %v519, 7
  %v523 = vsub.f32 %v447, %v521
  %v524 = vlaneseq
  %v525 = vshrl.u32 %v524, 7
  %v526 = vsub.s32 0, %v525
  %v527 = vrot.slane %v518, %v526
  %v528 = vmul.f32 %v489, %v527
  %v529 = vmul.f32 %v492, %v527
  %v530 = vlaneseq
  %v531 = vshrl.u32 %v530, 7
  %v532 = vsub.s32 1, %v531
  %v533 = vrot.slane %v523, %v532
  %v534 = vadd.f32 %v528, %v533
  %v535 = vadd.f32 %v529, %v533
  %v536 = vmax.f32 %v534, 0.0
  %v537 = vmax.f32 %v535, 0.0
  %v538 = vpack.c.bf16 %v537, %v536
  %v539 = vld [vmem:[%s146] sm:$0xff]
  %v540 = vld [vmem:[%s146 + $0x8] sm:$0xff]
  %v542 = vsel %vm179, %v538, 0
  %544 = vmatprep.subr.bf16.mxu0 0
  %545 = vmatpush1.bf16.msra.mxu0 %v539
  %546 = vmatprep.subr.bf16.mxu0 0
  %547 = vmatpush1.bf16.msra.mxu0 %v540
  %548 = vmatprep.subr.bf16.mxu0 0
  %549 = vmatpush1.bf16.msra.mxu0 0
  %550 = vmatprep.subr.bf16.mxu0 0
  %551 = vmatpush1.bf16.msra.mxu0 0
  %552 = vmatprep.subr.bf16.mxu0 0
  %553 = vmatpush1.bf16.msra.mxu0 0
  %554 = vmatprep.subr.bf16.mxu0 0
  %555 = vmatpush1.bf16.msra.mxu0 0
  %556 = vmatprep.subr.bf16.mxu0 0
  %557 = vmatpush1.bf16.msra.mxu0 0
  %558 = vmatprep.subr.bf16.mxu0 0
  %559 = vmatpush1.bf16.msra.mxu0 0
  %560 = vmatprep.subr.bf16.mxu0 0
  %561 = vmatpush1.bf16.msra.mxu0 0
  %562 = vmatprep.subr.bf16.mxu0 0
  %563 = vmatpush1.bf16.msra.mxu0 0
  %564 = vmatprep.subr.bf16.mxu0 0
  %565 = vmatpush1.bf16.msra.mxu0 0
  %566 = vmatprep.subr.bf16.mxu0 0
  %567 = vmatpush1.bf16.msra.mxu0 0
  %568 = vmatprep.subr.bf16.mxu0 0
  %569 = vmatpush1.bf16.msra.mxu0 0
  %570 = vmatprep.subr.bf16.mxu0 0
  %571 = vmatpush1.bf16.msra.mxu0 0
  %572 = vmatprep.subr.bf16.mxu0 0
  %573 = vmatpush1.bf16.msra.mxu0 0
  %574 = vmatprep.subr.bf16.mxu0 0
  %575 = vmatpush1.bf16.msra.mxu0 0
  %576 = vmatprep.mubr.bf16.mxu0 0
  %577 = vmatmul.mubr.bf16.gmra.mrb[0].mxu0 %v542
  %v578 = vpop.f32.mrb[0].mxu0
  %v579 = vadd.f32 0.0, %v578
  %v580 = vpop.f32.mrb[0].mxu0
  %v581 = vpop.f32.mrb[0].mxu0
  %v582 = vadd.f32 0.0, %v581
  %v583 = vpop.f32.mrb[0].mxu0
  %584 = vdwg.mxu0
  %v585 = vadd.f32 %v579, %v582
  %v586 = vrot.slane %v585, 4
  %v587 = vadd.f32 %v585, %v586
  %v588 = vrot.slane %v587, 2
  %v589 = vadd.f32 %v587, %v588
  %v590 = vrot.slane %v589, 1
  %v591 = vadd.f32 %v589, %v590
  %v592 = vmul.f32 %v579, %v579
  %v593 = vmul.f32 %v582, %v582
  %v594 = vadd.f32 %v592, %v593
  %v595 = vrot.slane %v594, 4
  %v596 = vadd.f32 %v594, %v595
  %v597 = vrot.slane %v596, 2
  %v598 = vadd.f32 %v596, %v597
  %v599 = vrot.slane %v598, 1
  %v600 = vadd.f32 %v598, %v599
  %v601 = vmul.f32 %v591, 0.0625
  %v602 = vmul.f32 %v600, 0.0625
  %v603 = vmul.f32 %v601, %v601
  %v604 = vsub.f32 %v602, %v603
  %v605 = vmax.f32 %v604, 0.0
  %v606 = vadd.f32 %v605, 1e-05
  %v607 = vrsqrt.pop %v606
  %v608 = vmul.f32 %v447, %v607
  %v609 = vmul.f32 %v601, %v608
  %v611 = vrot.slane %v609, 7
  %v613 = vsub.f32 %v447, %v611
  %v614 = vlaneseq
  %v615 = vshrl.u32 %v614, 7
  %v616 = vsub.s32 2, %v615
  %v617 = vrot.slane %v608, %v616
  %v618 = vmul.f32 %v579, %v617
  %v619 = vmul.f32 %v582, %v617
  %v620 = vlaneseq
  %v621 = vshrl.u32 %v620, 7
  %v622 = vsub.s32 3, %v621
  %v623 = vrot.slane %v613, %v622
  %v624 = vadd.f32 %v618, %v623
  %v625 = vadd.f32 %v619, %v623
  %v626 = vadd.f32 %v624, %v403
  %v627 = vadd.f32 %v625, %v404
  %v628 = vmax.f32 %v626, 0.0
  %v629 = vmax.f32 %v627, 0.0
  %s630 = sshll.u32 %s126, 4
  %631 = dma.done [#allocation6], %s630
  %s632 = sshll.u32 %s126, 4
  %633 = dma.done %s96, %s632
  %s634 = sshll.u32 %s129, 4
  %635 = dma.done %s108, %s634
  %s636 = scalar_lea.vmem %s2, 32
  %s637 = scalar_lea.vmem [#allocation3], 32
  %p639 = scmp.lt.u32.totalorder 4, 8
  %p640 = pneg %p639
  // Predicated region
  $region79: #{_lambda_.1} parent=0 // pred_check
    _
  $region80: #{_lambda_.1} parent=0 // pred_check_branch
    %642 = sbr.rel (%p639) target = $region82
  $region81: #{_lambda_.1} parent=0 // pred_region
    %s671 = sand.u32 4, 7
    %p672 = scmp.eq.s32.totalorder %s671, 0
    %p673 = pneg %p672
    // Predicated region
    $region94: #{_lambda_.1} parent=81 // pred_check
      _
    $region95: #{_lambda_.1} parent=81 // pred_check_branch
      %675 = sbr.rel (%p672) target = $region97
    $region96: #{_lambda_.1} parent=81 // pred_region
      %s676 = sand.u32 4, 7
      %s677 = ssub.s32 4, %s676
      %s678 = scalar_lea.vmem %s636, %s677
      %s679 = ssub.s32 4, %s676
      %s680 = scalar_lea.vmem %s637, %s679 [#allocation3]
      loop: start=0, step=1, limit=1
      $region98: #{_lambda_.1} parent=96 // loop_pre_header
        _
      $region99: #{_lambda_.1} parent=96 // loop_header
        %s682 = sphi 0, %s686
        %p683 = scmp.ge.s32.totalorder %s682, 1
        %s687 = sphi %s636, %s636
        %s688 = sphi %s637, %s637
      $region100: #{_lambda_.1} parent=96 // loop_header_branch
        %685 = sbr.rel (%p683) target = $region104
      $region101: #{_lambda_.1} parent=96 // loop_body
        _
      $region102: #{_lambda_.1} parent=96 // loop_footer
        %s686 = sadd.s32 1, %s682
      $region103: #{_lambda_.1} parent=96 // loop_footer_branch
        %681 = sbr.rel target = $region99
      $region104: #{_lambda_.1} parent=96 // loop_exit
        _
      %s689 = sshllo.u32 0, %s676
      loop: start=0, step=1, limit=1
      $region105: #{_lambda_.1} parent=96 // loop_pre_header
        _
      $region106: #{_lambda_.1} parent=96 // loop_header
        %s691 = sphi 0, %s695
        %p692 = scmp.ge.s32.totalorder %s691, 1
        %s696 = sphi %s678, %s678
        %s697 = sphi %s680, %s680
      $region107: #{_lambda_.1} parent=96 // loop_header_branch
        %694 = sbr.rel (%p692) target = $region111
      $region108: #{_lambda_.1} parent=96 // loop_body
        %v698 = vld [vmem:[%s696] sm:%s689]
        %699 = vst [vmem:[%s697] sm:%s689] %v698
        %v700 = vld [vmem:[%s696 + $0x8] sm:%s689]
        %701 = vst [vmem:[%s697 + $0x4] sm:%s689] %v700
        %v702 = vld [vmem:[%s696 + $0x4] sm:%s689]
        %703 = vst [vmem:[%s697 + $0x8] sm:%s689] %v702
        %v704 = vld [vmem:[%s696 + $0xc] sm:%s689]
        %705 = vst [vmem:[%s697 + $0xc] sm:%s689] %v704
        %v706 = vld [vmem:[%s696 + $0x10] sm:%s689]
        %707 = vst [vmem:[%s697 + $0x10] sm:%s689] %v706
        %v708 = vld [vmem:[%s696 + $0x18] sm:%s689]
        %709 = vst [vmem:[%s697 + $0x14] sm:%s689] %v708
        %v710 = vld [vmem:[%s696 + $0x14] sm:%s689]
        %711 = vst [vmem:[%s697 + $0x18] sm:%s689] %v710
        %v712 = vld [vmem:[%s696 + $0x1c] sm:%s689]
        %713 = vst [vmem:[%s697 + $0x1c] sm:%s689] %v712
      $region109: #{_lambda_.1} parent=96 // loop_footer
        %s695 = sadd.s32 1, %s691
      $region110: #{_lambda_.1} parent=96 // loop_footer_branch
        %690 = sbr.rel target = $region106
      $region111: #{_lambda_.1} parent=96 // loop_exit
        _
    $region97: #{_lambda_.1} parent=81 // pred_fallthru
      _
  $region82: #{_lambda_.1} parent=0 // pred_fallthru
    _
  // Predicated region
  $region83: #{_lambda_.1} parent=0 // pred_check
    %p643 = pneg %p639
  $region84: #{_lambda_.1} parent=0 // pred_check_branch
    %645 = sbr.rel (%p643) target = $region86
  $region85: #{_lambda_.1} parent=0 // pred_region
    %s646 = sshllo.u32 0, 4
    loop: start=0, step=1, limit=1
    $region87: #{_lambda_.1} parent=85 // loop_pre_header
      _
    $region88: #{_lambda_.1} parent=85 // loop_header
      %s648 = sphi 0, %s652
      %p649 = scmp.ge.s32.totalorder %s648, 1
      %s653 = sphi %s636, %s636
      %s654 = sphi %s637, %s637
    $region89: #{_lambda_.1} parent=85 // loop_header_branch
      %651 = sbr.rel (%p649) target = $region93
    $region90: #{_lambda_.1} parent=85 // loop_body
      %v655 = vld [vmem:[%s653] sm:%s646]
      %656 = vst [vmem:[%s654] sm:%s646] %v655
      %v657 = vld [vmem:[%s653 + $0x8] sm:%s646]
      %658 = vst [vmem:[%s654 + $0x4] sm:%s646] %v657
      %v659 = vld [vmem:[%s653 + $0x4] sm:%s646]
      %660 = vst [vmem:[%s654 + $0x8] sm:%s646] %v659
      %v661 = vld [vmem:[%s653 + $0xc] sm:%s646]
      %662 = vst [vmem:[%s654 + $0xc] sm:%s646] %v661
      %v663 = vld [vmem:[%s653 + $0x10] sm:%s646]
      %664 = vst [vmem:[%s654 + $0x10] sm:%s646] %v663
      %v665 = vld [vmem:[%s653 + $0x18] sm:%s646]
      %666 = vst [vmem:[%s654 + $0x14] sm:%s646] %v665
      %v667 = vld [vmem:[%s653 + $0x14] sm:%s646]
      %668 = vst [vmem:[%s654 + $0x18] sm:%s646] %v667
      %v669 = vld [vmem:[%s653 + $0x1c] sm:%s646]
      %670 = vst [vmem:[%s654 + $0x1c] sm:%s646] %v669
    $region91: #{_lambda_.1} parent=85 // loop_footer
      %s652 = sadd.s32 1, %s648
    $region92: #{_lambda_.1} parent=85 // loop_footer_branch
      %647 = sbr.rel target = $region88
    $region93: #{_lambda_.1} parent=85 // loop_exit
      _
  $region86: #{_lambda_.1} parent=0 // pred_fallthru
    _
  // Predicated region
  $region112: #{_lambda_.1} parent=0 // pred_check
    _
  $region113: #{_lambda_.1} parent=0 // pred_check_branch
    %716 = sbr.rel (0) target = $region115
  $region114: #{_lambda_.1} parent=0 // pred_region
    %717 = vsyncadd %s133, 512
  $region115: #{_lambda_.1} parent=0 // pred_fallthru
    _
  %s718 = scalar_lea.hbm %s3, 768
  // Predicated region
  $region116: #{_lambda_.1} parent=0 // pred_check
    _
  $region117: #{_lambda_.1} parent=0 // pred_check_branch
    %720 = sbr.rel target = $region119
  $region118: #{_lambda_.1} parent=0 // pred_region
    %721 = sst [smem:[#allocation10]] [#allocation28]
    %722 = sst [smem:[#allocation11]] [#allocation27]
  $region119: #{_lambda_.1} parent=0 // pred_fallthru
    _
  %724 = shalt.err (0)
  %s726 = sshll.u32 %s146, 4
  %s727 = int_to_ptr.vmem [resolvable:$true] %s726
  %729 = dma.hbm_to_vmem [thread:$0]  %s718, 256, %s727, %s147
  %s730 = scalar_lea.hbm %s4, 384
  // Predicated region
  $region120: #{_lambda_.1} parent=0 // pred_check
    _
  $region121: #{_lambda_.1} parent=0 // pred_check_branch
    %732 = sbr.rel target = $region123
  $region122: #{_lambda_.1} parent=0 // pred_region
    %733 = sst [smem:[#allocation10]] [#allocation30]
    %734 = sst [smem:[#allocation11]] [#allocation29]
  $region123: #{_lambda_.1} parent=0 // pred_fallthru
    _
  %736 = shalt.err (0)
  %s738 = sshll.u32 %s160, 4
  %s739 = int_to_ptr.vmem [resolvable:$true] %s738
  %741 = dma.hbm_to_vmem [thread:$0]  %s730, 128, %s739, %s161
  %v742 = vld [vmem:[#allocation5] sm:$0xff]
  %v743 = vpack.c.bf16 %v629, %v628
  %v744 = vld [vmem:[#allocation2] sm:$0xff]
  %v745 = vld [vmem:[#allocation2 + $0x8] sm:$0xff]
  %v747 = vsel %vm179, %v743, 0
  %749 = vmatprep.subr.bf16.mxu0 0
  %750 = vmatpush1.bf16.msra.mxu0 %v744
  %751 = vmatprep.subr.bf16.mxu0 0
  %752 = vmatpush1.bf16.msra.mxu0 %v745
  %753 = vmatprep.subr.bf16.mxu0 0
  %754 = vmatpush1.bf16.msra.mxu0 0
  %755 = vmatprep.subr.bf16.mxu0 0
  %756 = vmatpush1.bf16.msra.mxu0 0
  %757 = vmatprep.subr.bf16.mxu0 0
  %758 = vmatpush1.bf16.msra.mxu0 0
  %759 = vmatprep.subr.bf16.mxu0 0
  %760 = vmatpush1.bf16.msra.mxu0 0
  %761 = vmatprep.subr.bf16.mxu0 0
  %762 = vmatpush1.bf16.msra.mxu0 0
  %763 = vmatprep.subr.bf16.mxu0 0
  %764 = vmatpush1.bf16.msra.mxu0 0
  %765 = vmatprep.subr.bf16.mxu0 0
  %766 = vmatpush1.bf16.msra.mxu0 0
  %767 = vmatprep.subr.bf16.mxu0 0
  %768 = vmatpush1.bf16.msra.mxu0 0
  %769 = vmatprep.subr.bf16.mxu0 0
  %770 = vmatpush1.bf16.msra.mxu0 0
  %771 = vmatprep.subr.bf16.mxu0 0
  %772 = vmatpush1.bf16.msra.mxu0 0
  %773 = vmatprep.subr.bf16.mxu0 0
  %774 = vmatpush1.bf16.msra.mxu0 0
  %775 = vmatprep.subr.bf16.mxu0 0
  %776 = vmatpush1.bf16.msra.mxu0 0
  %777 = vmatprep.subr.bf16.mxu0 0
  %778 = vmatpush1.bf16.msra.mxu0 0
  %779 = vmatprep.subr.bf16.mxu0 0
  %780 = vmatpush1.bf16.msra.mxu0 0
  %781 = vmatprep.mubr.bf16.mxu0 0
  %782 = vmatmul.mubr.bf16.gmra.mrb[0].mxu0 %v747
  %v783 = vpop.f32.mrb[0].mxu0
  %v784 = vadd.f32 0.0, %v783
  %v785 = vpop.f32.mrb[0].mxu0
  %v786 = vpop.f32.mrb[0].mxu0
  %v787 = vadd.f32 0.0, %v786
  %v788 = vpop.f32.mrb[0].mxu0
  %789 = vdwg.mxu0
  %v790 = vadd.f32 %v784, %v787
  %v791 = vrot.slane %v790, 4
  %v792 = vadd.f32 %v790, %v791
  %v793 = vrot.slane %v792, 2
  %v794 = vadd.f32 %v792, %v793
  %v795 = vrot.slane %v794, 1
  %v796 = vadd.f32 %v794, %v795
  %v797 = vmul.f32 %v784, %v784
  %v798 = vmul.f32 %v787, %v787
  %v799 = vadd.f32 %v797, %v798
  %v800 = vrot.slane %v799, 4
  %v801 = vadd.f32 %v799, %v800
  %v802 = vrot.slane %v801, 2
  %v803 = vadd.f32 %v801, %v802
  %v804 = vrot.slane %v803, 1
  %v805 = vadd.f32 %v803, %v804
  %v806 = vmul.f32 %v796, 0.0625
  %v807 = vmul.f32 %v805, 0.0625
  %v808 = vmul.f32 %v806, %v806
  %v809 = vsub.f32 %v807, %v808
  %v810 = vmax.f32 %v809, 0.0
  %v811 = vadd.f32 %v810, 1e-05
  %v812 = vrsqrt.pop %v811
  %v813 = vmul.f32 %v742, %v812
  %v814 = vmul.f32 %v806, %v813
  %v816 = vrot.slane %v814, 7
  %v818 = vsub.f32 %v742, %v816
  %v819 = vlaneseq
  %v820 = vshrl.u32 %v819, 7
  %v821 = vsub.s32 0, %v820
  %v822 = vrot.slane %v813, %v821
  %v823 = vmul.f32 %v784, %v822
  %v824 = vmul.f32 %v787, %v822
  %v825 = vlaneseq
  %v826 = vshrl.u32 %v825, 7
  %v827 = vsub.s32 1, %v826
  %v828 = vrot.slane %v818, %v827
  %v829 = vadd.f32 %v823, %v828
  %v830 = vadd.f32 %v824, %v828
  %v831 = vmax.f32 %v829, 0.0
  %v832 = vmax.f32 %v830, 0.0
  %v833 = vpack.c.bf16 %v832, %v831
  %v834 = vld [vmem:[#allocation4] sm:$0xff]
  %v835 = vld [vmem:[#allocation4 + $0x8] sm:$0xff]
  %v837 = vsel %vm179, %v833, 0
  %839 = vmatprep.subr.bf16.mxu0 0
  %840 = vmatpush1.bf16.msra.mxu0 %v834
  %841 = vmatprep.subr.bf16.mxu0 0
  %842 = vmatpush1.bf16.msra.mxu0 %v835
  %843 = vmatprep.subr.bf16.mxu0 0
  %844 = vmatpush1.bf16.msra.mxu0 0
  %845 = vmatprep.subr.bf16.mxu0 0
  %846 = vmatpush1.bf16.msra.mxu0 0
  %847 = vmatprep.subr.bf16.mxu0 0
  %848 = vmatpush1.bf16.msra.mxu0 0
  %849 = vmatprep.subr.bf16.mxu0 0
  %850 = vmatpush1.bf16.msra.mxu0 0
  %851 = vmatprep.subr.bf16.mxu0 0
  %852 = vmatpush1.bf16.msra.mxu0 0
  %853 = vmatprep.subr.bf16.mxu0 0
  %854 = vmatpush1.bf16.msra.mxu0 0
  %855 = vmatprep.subr.bf16.mxu0 0
  %856 = vmatpush1.bf16.msra.mxu0 0
  %857 = vmatprep.subr.bf16.mxu0 0
  %858 = vmatpush1.bf16.msra.mxu0 0
  %859 = vmatprep.subr.bf16.mxu0 0
  %860 = vmatpush1.bf16.msra.mxu0 0
  %861 = vmatprep.subr.bf16.mxu0 0
  %862 = vmatpush1.bf16.msra.mxu0 0
  %863 = vmatprep.subr.bf16.mxu0 0
  %864 = vmatpush1.bf16.msra.mxu0 0
  %865 = vmatprep.subr.bf16.mxu0 0
  %866 = vmatpush1.bf16.msra.mxu0 0
  %867 = vmatprep.subr.bf16.mxu0 0
  %868 = vmatpush1.bf16.msra.mxu0 0
  %869 = vmatprep.subr.bf16.mxu0 0
  %870 = vmatpush1.bf16.msra.mxu0 0
  %871 = vmatprep.mubr.bf16.mxu0 0
  %872 = vmatmul.mubr.bf16.gmra.mrb[0].mxu0 %v837
  %v873 = vpop.f32.mrb[0].mxu0
  %v874 = vadd.f32 0.0, %v873
  %v875 = vpop.f32.mrb[0].mxu0
  %v876 = vpop.f32.mrb[0].mxu0
  %v877 = vadd.f32 0.0, %v876
  %v878 = vpop.f32.mrb[0].mxu0
  %879 = vdwg.mxu0
  %v880 = vadd.f32 %v874, %v877
  %v881 = vrot.slane %v880, 4
  %v882 = vadd.f32 %v880, %v881
  %v883 = vrot.slane %v882, 2
  %v884 = vadd.f32 %v882, %v883
  %v885 = vrot.slane %v884, 1
  %v886 = vadd.f32 %v884, %v885
  %v887 = vmul.f32 %v874, %v874
  %v888 = vmul.f32 %v877, %v877
  %v889 = vadd.f32 %v887, %v888
  %v890 = vrot.slane %v889, 4
  %v891 = vadd.f32 %v889, %v890
  %v892 = vrot.slane %v891, 2
  %v893 = vadd.f32 %v891, %v892
  %v894 = vrot.slane %v893, 1
  %v895 = vadd.f32 %v893, %v894
  %v896 = vmul.f32 %v886, 0.0625
  %v897 = vmul.f32 %v895, 0.0625
  %v898 = vmul.f32 %v896, %v896
  %v899 = vsub.f32 %v897, %v898
  %v900 = vmax.f32 %v899, 0.0
  %v901 = vadd.f32 %v900, 1e-05
  %v902 = vrsqrt.pop %v901
  %v903 = vmul.f32 %v742, %v902
  %v904 = vmul.f32 %v896, %v903
  %v906 = vrot.slane %v904, 7
  %v908 = vsub.f32 %v742, %v906
  %v909 = vlaneseq
  %v910 = vshrl.u32 %v909, 7
  %v911 = vsub.s32 2, %v910
  %v912 = vrot.slane %v903, %v911
  %v913 = vmul.f32 %v874, %v912
  %v914 = vmul.f32 %v877, %v912
  %v915 = vlaneseq
  %v916 = vshrl.u32 %v915, 7
  %v917 = vsub.s32 3, %v916
  %v918 = vrot.slane %v908, %v917
  %v919 = vadd.f32 %v913, %v918
  %v920 = vadd.f32 %v914, %v918
  %v921 = vadd.f32 %v919, %v628
  %v922 = vadd.f32 %v920, %v629
  %v923 = vmax.f32 %v921, 0.0
  %v924 = vmax.f32 %v922, 0.0
  %s925 = sshll.u32 %s123, 4
  %926 = dma.done %s133, %s925
  %s927 = sshll.u32 %s126, 4
  %928 = dma.done %s147, %s927
  %s929 = sshll.u32 %s129, 4
  %930 = dma.done %s161, %s929
  %s931 = scalar_lea.hbm %s1, 512
  // Predicated region
  $region124: #{_lambda_.1} parent=0 // pred_check
    _
  $region125: #{_lambda_.1} parent=0 // pred_check_branch
    %933 = sbr.rel target = $region127
  $region126: #{_lambda_.1} parent=0 // pred_region
    %934 = sst [smem:[#allocation10]] [#allocation32]
    %935 = sst [smem:[#allocation11]] [#allocation31]
  $region127: #{_lambda_.1} parent=0 // pred_fallthru
    _
  %937 = shalt.err (0)
  %s939 = sshll.u32 [#allocation2], 4
  %s940 = int_to_ptr.vmem [resolvable:$true] %s939
  %942 = dma.hbm_to_vmem [thread:$0]  %s931, 256, %s940, [#allocation6]
  %s943 = scalar_lea.hbm %s3, 1024
  // Predicated region
  $region128: #{_lambda_.1} parent=0 // pred_check
    _
  $region129: #{_lambda_.1} parent=0 // pred_check_branch
    %945 = sbr.rel target = $region131
  $region130: #{_lambda_.1} parent=0 // pred_region
    %946 = sst [smem:[#allocation10]] [#allocation34]
    %947 = sst [smem:[#allocation11]] [#allocation33]
  $region131: #{_lambda_.1} parent=0 // pred_fallthru
    _
  %949 = shalt.err (0)
  %s951 = sshll.u32 [#allocation4], 4
  %s952 = int_to_ptr.vmem [resolvable:$true] %s951
  %954 = dma.hbm_to_vmem [thread:$0]  %s943, 256, %s952, %s96
  %s955 = scalar_lea.hbm %s4, 512
  // Predicated region
  $region132: #{_lambda_.1} parent=0 // pred_check
    _
  $region133: #{_lambda_.1} parent=0 // pred_check_branch
    %957 = sbr.rel target = $region135
  $region134: #{_lambda_.1} parent=0 // pred_region
    %958 = sst [smem:[#allocation10]] [#allocation36]
    %959 = sst [smem:[#allocation11]] [#allocation35]
  $region135: #{_lambda_.1} parent=0 // pred_fallthru
    _
  %961 = shalt.err (0)
  %s963 = sshll.u32 [#allocation5], 4
  %s964 = int_to_ptr.vmem [resolvable:$true] %s963
  %966 = dma.hbm_to_vmem [thread:$0]  %s955, 128, %s964, %s108
  %v967 = vld [vmem:[%s160] sm:$0xff]
  %v968 = vpack.c.bf16 %v924, %v923
  %v969 = vld [vmem:[%s637] sm:$0xff]
  %v970 = vld [vmem:[%s637 + $0x8] sm:$0xff]
  %v971 = vld [vmem:[%s637 + $0x10] sm:$0xff]
  %v972 = vld [vmem:[%s637 + $0x18] sm:$0xff]
  %v974 = vsel %vm179, %v968, 0
  %976 = vmatprep.subr.bf16.mxu0 %v970
  %977 = vmatpush1.bf16.msra.mxu0 %v969
  %978 = vmatprep.subr.bf16.mxu0 %v972
  %979 = vmatpush1.bf16.msra.mxu0 %v971
  %980 = vmatprep.subr.bf16.mxu0 0
  %981 = vmatpush1.bf16.msra.mxu0 0
  %982 = vmatprep.subr.bf16.mxu0 0
  %983 = vmatpush1.bf16.msra.mxu0 0
  %984 = vmatprep.subr.bf16.mxu0 0
  %985 = vmatpush1.bf16.msra.mxu0 0
  %986 = vmatprep.subr.bf16.mxu0 0
  %987 = vmatpush1.bf16.msra.mxu0 0
  %988 = vmatprep.subr.bf16.mxu0 0
  %989 = vmatpush1.bf16.msra.mxu0 0
  %990 = vmatprep.subr.bf16.mxu0 0
  %991 = vmatpush1.bf16.msra.mxu0 0
  %992 = vmatprep.subr.bf16.mxu0 0
  %993 = vmatpush1.bf16.msra.mxu0 0
  %994 = vmatprep.subr.bf16.mxu0 0
  %995 = vmatpush1.bf16.msra.mxu0 0
  %996 = vmatprep.subr.bf16.mxu0 0
  %997 = vmatpush1.bf16.msra.mxu0 0
  %998 = vmatprep.subr.bf16.mxu0 0
  %999 = vmatpush1.bf16.msra.mxu0 0
  %1000 = vmatprep.subr.bf16.mxu0 0
  %1001 = vmatpush1.bf16.msra.mxu0 0
  %1002 = vmatprep.subr.bf16.mxu0 0
  %1003 = vmatpush1.bf16.msra.mxu0 0
  %1004 = vmatprep.subr.bf16.mxu0 0
  %1005 = vmatpush1.bf16.msra.mxu0 0
  %1006 = vmatprep.subr.bf16.mxu0 0
  %1007 = vmatpush1.bf16.msra.mxu0 0
  %1008 = vmatprep.mubr.bf16.mxu0 0
  %1009 = vmatmul.mubr.bf16.gmra.mrb[0].mxu0 %v974
  %v1010 = vpop.f32.mrb[0].mxu0
  %v1011 = vadd.f32 0.0, %v1010
  %v1012 = vpop.f32.mrb[0].mxu0
  %v1013 = vadd.f32 0.0, %v1012
  %v1014 = vpop.f32.mrb[0].mxu0
  %v1015 = vadd.f32 0.0, %v1014
  %v1016 = vpop.f32.mrb[0].mxu0
  %v1017 = vadd.f32 0.0, %v1016
  %1018 = vdwg.mxu0
  %v1020 = vrot.slane %v967, 4
  %v1022 = vadd.f32 %v1011, %v1015
  %v1023 = vrot.slane %v1022, 4
  %v1024 = vadd.f32 %v1022, %v1023
  %v1025 = vrot.slane %v1024, 2
  %v1026 = vadd.f32 %v1024, %v1025
  %v1027 = vrot.slane %v1026, 1
  %v1028 = vadd.f32 %v1026, %v1027
  %v1029 = vadd.f32 %v1013, %v1017
  %v1030 = vrot.slane %v1029, 4
  %v1031 = vadd.f32 %v1029, %v1030
  %v1032 = vrot.slane %v1031, 2
  %v1033 = vadd.f32 %v1031, %v1032
  %v1034 = vrot.slane %v1033, 1
  %v1035 = vadd.f32 %v1033, %v1034
  %v1036 = vmul.f32 %v1011, %v1011
  %v1037 = vmul.f32 %v1013, %v1013
  %v1038 = vmul.f32 %v1015, %v1015
  %v1039 = vmul.f32 %v1017, %v1017
  %v1040 = vadd.f32 %v1036, %v1038
  %v1041 = vrot.slane %v1040, 4
  %v1042 = vadd.f32 %v1040, %v1041
  %v1043 = vrot.slane %v1042, 2
  %v1044 = vadd.f32 %v1042, %v1043
  %v1045 = vrot.slane %v1044, 1
  %v1046 = vadd.f32 %v1044, %v1045
  %v1047 = vadd.f32 %v1037, %v1039
  %v1048 = vrot.slane %v1047, 4
  %v1049 = vadd.f32 %v1047, %v1048
  %v1050 = vrot.slane %v1049, 2
  %v1051 = vadd.f32 %v1049, %v1050
  %v1052 = vrot.slane %v1051, 1
  %v1053 = vadd.f32 %v1051, %v1052
  %v1054 = vmul.f32 %v1028, 0.0625
  %v1055 = vmul.f32 %v1035, 0.0625
  %v1056 = vmul.f32 %v1046, 0.0625
  %v1057 = vmul.f32 %v1053, 0.0625
  %v1058 = vmul.f32 %v1054, %v1054
  %v1059 = vmul.f32 %v1055, %v1055
  %v1060 = vsub.f32 %v1056, %v1058
  %v1061 = vsub.f32 %v1057, %v1059
  %v1062 = vmax.f32 %v1060, 0.0
  %v1063 = vmax.f32 %v1061, 0.0
  %v1064 = vadd.f32 %v1062, 1e-05
  %v1065 = vadd.f32 %v1063, 1e-05
  %v1066 = vrsqrt.pop %v1064
  %v1067 = vrsqrt.pop %v1065
  %v1068 = vmul.f32 %v967, %v1066
  %v1069 = vmul.f32 %v1020, %v1067
  %v1070 = vmul.f32 %v1054, %v1068
  %v1071 = vmul.f32 %v1055, %v1069
  %v1074 = vrot.slane %v1070, 7
  %v1075 = vrot.slane %v1071, 7
  %v1078 = vsub.f32 %v967, %v1074
  %v1079 = vsub.f32 %v1020, %v1075
  %v1080 = vlaneseq
  %v1081 = vshrl.u32 %v1080, 7
  %v1082 = vsub.s32 0, %v1081
  %v1083 = vrot.slane %v1068, %v1082
  %v1084 = vlaneseq
  %v1085 = vshrl.u32 %v1084, 7
  %v1086 = vsub.s32 0, %v1085
  %v1087 = vrot.slane %v1069, %v1086
  %v1088 = vmul.f32 %v1011, %v1083
  %v1089 = vmul.f32 %v1013, %v1087
  %v1090 = vmul.f32 %v1015, %v1083
  %v1091 = vmul.f32 %v1017, %v1087
  %v1092 = vlaneseq
  %v1093 = vshrl.u32 %v1092, 7
  %v1094 = vsub.s32 1, %v1093
  %v1095 = vrot.slane %v1078, %v1094
  %v1096 = vlaneseq
  %v1097 = vshrl.u32 %v1096, 7
  %v1098 = vsub.s32 1, %v1097
  %v1099 = vrot.slane %v1079, %v1098
  %v1100 = vadd.f32 %v1088, %v1095
  %v1101 = vadd.f32 %v1089, %v1099
  %v1102 = vadd.f32 %v1090, %v1095
  %v1103 = vadd.f32 %v1091, %v1099
  %v1104 = vmax.f32 %v1100, 0.0
  %v1105 = vmax.f32 %v1102, 0.0
  %v1106 = vpack.c.bf16 %v1105, %v1104
  %v1107 = vld [vmem:[%s146] sm:$0xff]
  %v1108 = vld [vmem:[%s146 + $0x8] sm:$0xff]
  %v1110 = vsel %vm179, %v1106, 0
  %1112 = vmatprep.subr.bf16.mxu0 0
  %1113 = vmatpush1.bf16.msra.mxu0 %v1107
  %1114 = vmatprep.subr.bf16.mxu0 0
  %1115 = vmatpush1.bf16.msra.mxu0 %v1108
  %1116 = vmatprep.subr.bf16.mxu0 0
  %1117 = vmatpush1.bf16.msra.mxu0 0
  %1118 = vmatprep.subr.bf16.mxu0 0
  %1119 = vmatpush1.bf16.msra.mxu0 0
  %1120 = vmatprep.subr.bf16.mxu0 0
  %1121 = vmatpush1.bf16.msra.mxu0 0
  %1122 = vmatprep.subr.bf16.mxu0 0
  %1123 = vmatpush1.bf16.msra.mxu0 0
  %1124 = vmatprep.subr.bf16.mxu0 0
  %1125 = vmatpush1.bf16.msra.mxu0 0
  %1126 = vmatprep.subr.bf16.mxu0 0
  %1127 = vmatpush1.bf16.msra.mxu0 0
  %1128 = vmatprep.subr.bf16.mxu0 0
  %1129 = vmatpush1.bf16.msra.mxu0 0
  %1130 = vmatprep.subr.bf16.mxu0 0
  %1131 = vmatpush1.bf16.msra.mxu0 0
  %1132 = vmatprep.subr.bf16.mxu0 0
  %1133 = vmatpush1.bf16.msra.mxu0 0
  %1134 = vmatprep.subr.bf16.mxu0 0
  %1135 = vmatpush1.bf16.msra.mxu0 0
  %1136 = vmatprep.subr.bf16.mxu0 0
  %1137 = vmatpush1.bf16.msra.mxu0 0
  %1138 = vmatprep.subr.bf16.mxu0 0
  %1139 = vmatpush1.bf16.msra.mxu0 0
  %1140 = vmatprep.subr.bf16.mxu0 0
  %1141 = vmatpush1.bf16.msra.mxu0 0
  %1142 = vmatprep.subr.bf16.mxu0 0
  %1143 = vmatpush1.bf16.msra.mxu0 0
  %1144 = vmatprep.mubr.bf16.mxu0 0
  %1145 = vmatmul.mubr.bf16.gmra.mrb[0].mxu0 %v1110
  %v1146 = vpop.f32.mrb[0].mxu0
  %v1147 = vadd.f32 0.0, %v1146
  %v1148 = vpop.f32.mrb[0].mxu0
  %v1149 = vpop.f32.mrb[0].mxu0
  %v1150 = vadd.f32 0.0, %v1149
  %v1151 = vpop.f32.mrb[0].mxu0
  %1152 = vdwg.mxu0
  %v1153 = vadd.f32 %v1147, %v1150
  %v1154 = vrot.slane %v1153, 4
  %v1155 = vadd.f32 %v1153, %v1154
  %v1156 = vrot.slane %v1155, 2
  %v1157 = vadd.f32 %v1155, %v1156
  %v1158 = vrot.slane %v1157, 1
  %v1159 = vadd.f32 %v1157, %v1158
  %v1160 = vmul.f32 %v1147, %v1147
  %v1161 = vmul.f32 %v1150, %v1150
  %v1162 = vadd.f32 %v1160, %v1161
  %v1163 = vrot.slane %v1162, 4
  %v1164 = vadd.f32 %v1162, %v1163
  %v1165 = vrot.slane %v1164, 2
  %v1166 = vadd.f32 %v1164, %v1165
  %v1167 = vrot.slane %v1166, 1
  %v1168 = vadd.f32 %v1166, %v1167
  %v1169 = vmul.f32 %v1159, 0.0625
  %v1170 = vmul.f32 %v1168, 0.0625
  %v1171 = vmul.f32 %v1169, %v1169
  %v1172 = vsub.f32 %v1170, %v1171
  %v1173 = vmax.f32 %v1172, 0.0
  %v1174 = vadd.f32 %v1173, 1e-05
  %v1175 = vrsqrt.pop %v1174
  %v1176 = vmul.f32 %v967, %v1175
  %v1177 = vmul.f32 %v1169, %v1176
  %v1179 = vrot.slane %v1177, 7
  %v1181 = vsub.f32 %v967, %v1179
  %v1182 = vlaneseq
  %v1183 = vshrl.u32 %v1182, 7
  %v1184 = vsub.s32 2, %v1183
  %v1185 = vrot.slane %v1176, %v1184
  %v1186 = vmul.f32 %v1147, %v1185
  %v1187 = vmul.f32 %v1150, %v1185
  %v1188 = vlaneseq
  %v1189 = vshrl.u32 %v1188, 7
  %v1190 = vsub.s32 3, %v1189
  %v1191 = vrot.slane %v1181, %v1190
  %v1192 = vadd.f32 %v1186, %v1191
  %v1193 = vadd.f32 %v1187, %v1191
  %v1194 = vadd.f32 %v1192, %v1101
  %v1195 = vadd.f32 %v1193, %v1103
  %v1196 = vmax.f32 %v1194, 0.0
  %v1197 = vmax.f32 %v1195, 0.0
  %s1198 = sshll.u32 %s126, 4
  %1199 = dma.done [#allocation6], %s1198
  %s1200 = sshll.u32 %s126, 4
  %1201 = dma.done %s96, %s1200
  %s1202 = sshll.u32 %s129, 4
  %1203 = dma.done %s108, %s1202
  %s1204 = scalar_lea.hbm %s1, 768
  // Predicated region
  $region136: #{_lambda_.1} parent=0 // pred_check
    _
  $region137: #{_lambda_.1} parent=0 // pred_check_branch
    %1206 = sbr.rel target = $region139
  $region138: #{_lambda_.1} parent=0 // pred_region
    %1207 = sst [smem:[#allocation10]] [#allocation38]
    %1208 = sst [smem:[#allocation11]] [#allocation37]
  $region139: #{_lambda_.1} parent=0 // pred_fallthru
    _
  %1210 = shalt.err (0)
  %s1212 = sshll.u32 %s132, 4
  %s1213 = int_to_ptr.vmem [resolvable:$true] %s1212
  %1215 = dma.hbm_to_vmem [thread:$0]  %s1204, 256, %s1213, %s133
  %s1216 = scalar_lea.hbm %s3, 1280
  // Predicated region
  $region140: #{_lambda_.1} parent=0 // pred_check
    _
  $region141: #{_lambda_.1} parent=0 // pred_check_branch
    %1218 = sbr.rel target = $region143
  $region142: #{_lambda_.1} parent=0 // pred_region
    %1219 = sst [smem:[#allocation10]] [#allocation40]
    %1220 = sst [smem:[#allocation11]] [#allocation39]
  $region143: #{_lambda_.1} parent=0 // pred_fallthru
    _
  %1222 = shalt.err (0)
  %s1224 = sshll.u32 %s146, 4
  %s1225 = int_to_ptr.vmem [resolvable:$true] %s1224
  %1227 = dma.hbm_to_vmem [thread:$0]  %s1216, 256, %s1225, %s147
  %s1228 = scalar_lea.hbm %s4, 640
  // Predicated region
  $region144: #{_lambda_.1} parent=0 // pred_check
    _
  $region145: #{_lambda_.1} parent=0 // pred_check_branch
    %1230 = sbr.rel target = $region147
  $region146: #{_lambda_.1} parent=0 // pred_region
    %1231 = sst [smem:[#allocation10]] [#allocation42]
    %1232 = sst [smem:[#allocation11]] [#allocation41]
  $region147: #{_lambda_.1} parent=0 // pred_fallthru
    _
  %1234 = shalt.err (0)
  %s1236 = sshll.u32 %s160, 4
  %s1237 = int_to_ptr.vmem [resolvable:$true] %s1236
  %1239 = dma.hbm_to_vmem [thread:$0]  %s1228, 128, %s1237, %s161
  %v1240 = vld [vmem:[#allocation5] sm:$0xff]
  %v1241 = vpack.c.bf16 %v1197, %v1196
  %v1242 = vld [vmem:[#allocation2] sm:$0xff]
  %v1243 = vld [vmem:[#allocation2 + $0x8] sm:$0xff]
  %v1245 = vsel %vm179, %v1241, 0
  %1247 = vmatprep.subr.bf16.mxu0 0
  %1248 = vmatpush1.bf16.msra.mxu0 %v1242
  %1249 = vmatprep.subr.bf16.mxu0 0
  %1250 = vmatpush1.bf16.msra.mxu0 %v1243
  %1251 = vmatprep.subr.bf16.mxu0 0
  %1252 = vmatpush1.bf16.msra.mxu0 0
  %1253 = vmatprep.subr.bf16.mxu0 0
  %1254 = vmatpush1.bf16.msra.mxu0 0
  %1255 = vmatprep.subr.bf16.mxu0 0
  %1256 = vmatpush1.bf16.msra.mxu0 0
  %1257 = vmatprep.subr.bf16.mxu0 0
  %1258 = vmatpush1.bf16.msra.mxu0 0
  %1259 = vmatprep.subr.bf16.mxu0 0
  %1260 = vmatpush1.bf16.msra.mxu0 0
  %1261 = vmatprep.subr.bf16.mxu0 0
  %1262 = vmatpush1.bf16.msra.mxu0 0
  %1263 = vmatprep.subr.bf16.mxu0 0
  %1264 = vmatpush1.bf16.msra.mxu0 0
  %1265 = vmatprep.subr.bf16.mxu0 0
  %1266 = vmatpush1.bf16.msra.mxu0 0
  %1267 = vmatprep.subr.bf16.mxu0 0
  %1268 = vmatpush1.bf16.msra.mxu0 0
  %1269 = vmatprep.subr.bf16.mxu0 0
  %1270 = vmatpush1.bf16.msra.mxu0 0
  %1271 = vmatprep.subr.bf16.mxu0 0
  %1272 = vmatpush1.bf16.msra.mxu0 0
  %1273 = vmatprep.subr.bf16.mxu0 0
  %1274 = vmatpush1.bf16.msra.mxu0 0
  %1275 = vmatprep.subr.bf16.mxu0 0
  %1276 = vmatpush1.bf16.msra.mxu0 0
  %1277 = vmatprep.subr.bf16.mxu0 0
  %1278 = vmatpush1.bf16.msra.mxu0 0
  %1279 = vmatprep.mubr.bf16.mxu0 0
  %1280 = vmatmul.mubr.bf16.gmra.mrb[0].mxu0 %v1245
  %v1281 = vpop.f32.mrb[0].mxu0
  %v1282 = vadd.f32 0.0, %v1281
  %v1283 = vpop.f32.mrb[0].mxu0
  %v1284 = vpop.f32.mrb[0].mxu0
  %v1285 = vadd.f32 0.0, %v1284
  %v1286 = vpop.f32.mrb[0].mxu0
  %1287 = vdwg.mxu0
  %v1288 = vadd.f32 %v1282, %v1285
  %v1289 = vrot.slane %v1288, 4
  %v1290 = vadd.f32 %v1288, %v1289
  %v1291 = vrot.slane %v1290, 2
  %v1292 = vadd.f32 %v1290, %v1291
  %v1293 = vrot.slane %v1292, 1
  %v1294 = vadd.f32 %v1292, %v1293
  %v1295 = vmul.f32 %v1282, %v1282
  %v1296 = vmul.f32 %v1285, %v1285
  %v1297 = vadd.f32 %v1295, %v1296
  %v1298 = vrot.slane %v1297, 4
  %v1299 = vadd.f32 %v1297, %v1298
  %v1300 = vrot.slane %v1299, 2
  %v1301 = vadd.f32 %v1299, %v1300
  %v1302 = vrot.slane %v1301, 1
  %v1303 = vadd.f32 %v1301, %v1302
  %v1304 = vmul.f32 %v1294, 0.0625
  %v1305 = vmul.f32 %v1303, 0.0625
  %v1306 = vmul.f32 %v1304, %v1304
  %v1307 = vsub.f32 %v1305, %v1306
  %v1308 = vmax.f32 %v1307, 0.0
  %v1309 = vadd.f32 %v1308, 1e-05
  %v1310 = vrsqrt.pop %v1309
  %v1311 = vmul.f32 %v1240, %v1310
  %v1312 = vmul.f32 %v1304, %v1311
  %v1314 = vrot.slane %v1312, 7
  %v1316 = vsub.f32 %v1240, %v1314
  %v1317 = vlaneseq
  %v1318 = vshrl.u32 %v1317, 7
  %v1319 = vsub.s32 0, %v1318
  %v1320 = vrot.slane %v1311, %v1319
  %v1321 = vmul.f32 %v1282, %v1320
  %v1322 = vmul.f32 %v1285, %v1320
  %v1323 = vlaneseq
  %v1324 = vshrl.u32 %v1323, 7
  %v1325 = vsub.s32 1, %v1324
  %v1326 = vrot.slane %v1316, %v1325
  %v1327 = vadd.f32 %v1321, %v1326
  %v1328 = vadd.f32 %v1322, %v1326
  %v1329 = vmax.f32 %v1327, 0.0
  %v1330 = vmax.f32 %v1328, 0.0
  %v1331 = vpack.c.bf16 %v1330, %v1329
  %v1332 = vld [vmem:[#allocation4] sm:$0xff]
  %v1333 = vld [vmem:[#allocation4 + $0x8] sm:$0xff]
  %v1335 = vsel %vm179, %v1331, 0
  %1337 = vmatprep.subr.bf16.mxu0 0
  %1338 = vmatpush1.bf16.msra.mxu0 %v1332
  %1339 = vmatprep.subr.bf16.mxu0 0
  %1340 = vmatpush1.bf16.msra.mxu0 %v1333
  %1341 = vmatprep.subr.bf16.mxu0 0
  %1342 = vmatpush1.bf16.msra.mxu0 0
  %1343 = vmatprep.subr.bf16.mxu0 0
  %1344 = vmatpush1.bf16.msra.mxu0 0
  %1345 = vmatprep.subr.bf16.mxu0 0
  %1346 = vmatpush1.bf16.msra.mxu0 0
  %1347 = vmatprep.subr.bf16.mxu0 0
  %1348 = vmatpush1.bf16.msra.mxu0 0
  %1349 = vmatprep.subr.bf16.mxu0 0
  %1350 = vmatpush1.bf16.msra.mxu0 0
  %1351 = vmatprep.subr.bf16.mxu0 0
  %1352 = vmatpush1.bf16.msra.mxu0 0
  %1353 = vmatprep.subr.bf16.mxu0 0
  %1354 = vmatpush1.bf16.msra.mxu0 0
  %1355 = vmatprep.subr.bf16.mxu0 0
  %1356 = vmatpush1.bf16.msra.mxu0 0
  %1357 = vmatprep.subr.bf16.mxu0 0
  %1358 = vmatpush1.bf16.msra.mxu0 0
  %1359 = vmatprep.subr.bf16.mxu0 0
  %1360 = vmatpush1.bf16.msra.mxu0 0
  %1361 = vmatprep.subr.bf16.mxu0 0
  %1362 = vmatpush1.bf16.msra.mxu0 0
  %1363 = vmatprep.subr.bf16.mxu0 0
  %1364 = vmatpush1.bf16.msra.mxu0 0
  %1365 = vmatprep.subr.bf16.mxu0 0
  %1366 = vmatpush1.bf16.msra.mxu0 0
  %1367 = vmatprep.subr.bf16.mxu0 0
  %1368 = vmatpush1.bf16.msra.mxu0 0
  %1369 = vmatprep.mubr.bf16.mxu0 0
  %1370 = vmatmul.mubr.bf16.gmra.mrb[0].mxu0 %v1335
  %v1371 = vpop.f32.mrb[0].mxu0
  %v1372 = vadd.f32 0.0, %v1371
  %v1373 = vpop.f32.mrb[0].mxu0
  %v1374 = vpop.f32.mrb[0].mxu0
  %v1375 = vadd.f32 0.0, %v1374
  %v1376 = vpop.f32.mrb[0].mxu0
  %1377 = vdwg.mxu0
  %v1378 = vadd.f32 %v1372, %v1375
  %v1379 = vrot.slane %v1378, 4
  %v1380 = vadd.f32 %v1378, %v1379
  %v1381 = vrot.slane %v1380, 2
  %v1382 = vadd.f32 %v1380, %v1381
  %v1383 = vrot.slane %v1382, 1
  %v1384 = vadd.f32 %v1382, %v1383
  %v1385 = vmul.f32 %v1372, %v1372
  %v1386 = vmul.f32 %v1375, %v1375
  %v1387 = vadd.f32 %v1385, %v1386
  %v1388 = vrot.slane %v1387, 4
  %v1389 = vadd.f32 %v1387, %v1388
  %v1390 = vrot.slane %v1389, 2
  %v1391 = vadd.f32 %v1389, %v1390
  %v1392 = vrot.slane %v1391, 1
  %v1393 = vadd.f32 %v1391, %v1392
  %v1394 = vmul.f32 %v1384, 0.0625
  %v1395 = vmul.f32 %v1393, 0.0625
  %v1396 = vmul.f32 %v1394, %v1394
  %v1397 = vsub.f32 %v1395, %v1396
  %v1398 = vmax.f32 %v1397, 0.0
  %v1399 = vadd.f32 %v1398, 1e-05
  %v1400 = vrsqrt.pop %v1399
  %v1401 = vmul.f32 %v1240, %v1400
  %v1402 = vmul.f32 %v1394, %v1401
  %v1404 = vrot.slane %v1402, 7
  %v1406 = vsub.f32 %v1240, %v1404
  %v1407 = vlaneseq
  %v1408 = vshrl.u32 %v1407, 7
  %v1409 = vsub.s32 2, %v1408
  %v1410 = vrot.slane %v1401, %v1409
  %v1411 = vmul.f32 %v1372, %v1410
  %v1412 = vmul.f32 %v1375, %v1410
  %v1413 = vlaneseq
  %v1414 = vshrl.u32 %v1413, 7
  %v1415 = vsub.s32 3, %v1414
  %v1416 = vrot.slane %v1406, %v1415
  %v1417 = vadd.f32 %v1411, %v1416
  %v1418 = vadd.f32 %v1412, %v1416
  %v1419 = vadd.f32 %v1417, %v1196
  %v1420 = vadd.f32 %v1418, %v1197
  %v1421 = vmax.f32 %v1419, 0.0
  %v1422 = vmax.f32 %v1420, 0.0
  %s1423 = sshll.u32 %s126, 4
  %1424 = dma.done %s133, %s1423
  %s1425 = sshll.u32 %s126, 4
  %1426 = dma.done %s147, %s1425
  %s1427 = sshll.u32 %s129, 4
  %1428 = dma.done %s161, %s1427
  %s1429 = scalar_lea.hbm %s1, 1024
  // Predicated region
  $region148: #{_lambda_.1} parent=0 // pred_check
    _
  $region149: #{_lambda_.1} parent=0 // pred_check_branch
    %1431 = sbr.rel target = $region151
  $region150: #{_lambda_.1} parent=0 // pred_region
    %1432 = sst [smem:[#allocation10]] [#allocation44]
    %1433 = sst [smem:[#allocation11]] [#allocation43]
  $region151: #{_lambda_.1} parent=0 // pred_fallthru
    _
  %1435 = shalt.err (0)
  %s1437 = sshll.u32 [#allocation2], 4
  %s1438 = int_to_ptr.vmem [resolvable:$true] %s1437
  %1440 = dma.hbm_to_vmem [thread:$0]  %s1429, 256, %s1438, [#allocation6]
  %s1441 = scalar_lea.hbm %s3, 1536
  // Predicated region
  $region152: #{_lambda_.1} parent=0 // pred_check
    _
  $region153: #{_lambda_.1} parent=0 // pred_check_branch
    %1443 = sbr.rel target = $region155
  $region154: #{_lambda_.1} parent=0 // pred_region
    %1444 = sst [smem:[#allocation10]] [#allocation46]
    %1445 = sst [smem:[#allocation11]] [#allocation45]
  $region155: #{_lambda_.1} parent=0 // pred_fallthru
    _
  %1447 = shalt.err (0)
  %s1449 = sshll.u32 [#allocation4], 4
  %s1450 = int_to_ptr.vmem [resolvable:$true] %s1449
  %1452 = dma.hbm_to_vmem [thread:$0]  %s1441, 256, %s1450, %s96
  %s1453 = scalar_lea.hbm %s4, 768
  // Predicated region
  $region156: #{_lambda_.1} parent=0 // pred_check
    _
  $region157: #{_lambda_.1} parent=0 // pred_check_branch
    %1455 = sbr.rel target = $region159
  $region158: #{_lambda_.1} parent=0 // pred_region
    %1456 = sst [smem:[#allocation10]] [#allocation48]
    %1457 = sst [smem:[#allocation11]] [#allocation47]
  $region159: #{_lambda_.1} parent=0 // pred_fallthru
    _
  %1459 = shalt.err (0)
  %s1461 = sshll.u32 [#allocation5], 4
  %s1462 = int_to_ptr.vmem [resolvable:$true] %s1461
  %1464 = dma.hbm_to_vmem [thread:$0]  %s1453, 128, %s1462, %s108
  %v1465 = vld [vmem:[%s160] sm:$0xff]
  %v1466 = vpack.c.bf16 %v1422, %v1421
  %v1467 = vld [vmem:[%s132] sm:$0xff]
  %v1468 = vld [vmem:[%s132 + $0x8] sm:$0xff]
  %v1470 = vsel %vm179, %v1466, 0
  %1472 = vmatprep.subr.bf16.mxu0 0
  %1473 = vmatpush1.bf16.msra.mxu0 %v1467
  %1474 = vmatprep.subr.bf16.mxu0 0
  %1475 = vmatpush1.bf16.msra.mxu0 %v1468
  %1476 = vmatprep.subr.bf16.mxu0 0
  %1477 = vmatpush1.bf16.msra.mxu0 0
  %1478 = vmatprep.subr.bf16.mxu0 0
  %1479 = vmatpush1.bf16.msra.mxu0 0
  %1480 = vmatprep.subr.bf16.mxu0 0
  %1481 = vmatpush1.bf16.msra.mxu0 0
  %1482 = vmatprep.subr.bf16.mxu0 0
  %1483 = vmatpush1.bf16.msra.mxu0 0
  %1484 = vmatprep.subr.bf16.mxu0 0
  %1485 = vmatpush1.bf16.msra.mxu0 0
  %1486 = vmatprep.subr.bf16.mxu0 0
  %1487 = vmatpush1.bf16.msra.mxu0 0
  %1488 = vmatprep.subr.bf16.mxu0 0
  %1489 = vmatpush1.bf16.msra.mxu0 0
  %1490 = vmatprep.subr.bf16.mxu0 0
  %1491 = vmatpush1.bf16.msra.mxu0 0
  %1492 = vmatprep.subr.bf16.mxu0 0
  %1493 = vmatpush1.bf16.msra.mxu0 0
  %1494 = vmatprep.subr.bf16.mxu0 0
  %1495 = vmatpush1.bf16.msra.mxu0 0
  %1496 = vmatprep.subr.bf16.mxu0 0
  %1497 = vmatpush1.bf16.msra.mxu0 0
  %1498 = vmatprep.subr.bf16.mxu0 0
  %1499 = vmatpush1.bf16.msra.mxu0 0
  %1500 = vmatprep.subr.bf16.mxu0 0
  %1501 = vmatpush1.bf16.msra.mxu0 0
  %1502 = vmatprep.subr.bf16.mxu0 0
  %1503 = vmatpush1.bf16.msra.mxu0 0
  %1504 = vmatprep.mubr.bf16.mxu0 0
  %1505 = vmatmul.mubr.bf16.gmra.mrb[0].mxu0 %v1470
  %v1506 = vpop.f32.mrb[0].mxu0
  %v1507 = vadd.f32 0.0, %v1506
  %v1508 = vpop.f32.mrb[0].mxu0
  %v1509 = vpop.f32.mrb[0].mxu0
  %v1510 = vadd.f32 0.0, %v1509
  %v1511 = vpop.f32.mrb[0].mxu0
  %1512 = vdwg.mxu0
  %v1513 = vadd.f32 %v1507, %v1510
  %v1514 = vrot.slane %v1513, 4
  %v1515 = vadd.f32 %v1513, %v1514
  %v1516 = vrot.slane %v1515, 2
  %v1517 = vadd.f32 %v1515, %v1516
  %v1518 = vrot.slane %v1517, 1
  %v1519 = vadd.f32 %v1517, %v1518
  %v1520 = vmul.f32 %v1507, %v1507
  %v1521 = vmul.f32 %v1510, %v1510
  %v1522 = vadd.f32 %v1520, %v1521
  %v1523 = vrot.slane %v1522, 4
  %v1524 = vadd.f32 %v1522, %v1523
  %v1525 = vrot.slane %v1524, 2
  %v1526 = vadd.f32 %v1524, %v1525
  %v1527 = vrot.slane %v1526, 1
  %v1528 = vadd.f32 %v1526, %v1527
  %v1529 = vmul.f32 %v1519, 0.0625
  %v1530 = vmul.f32 %v1528, 0.0625
  %v1531 = vmul.f32 %v1529, %v1529
  %v1532 = vsub.f32 %v1530, %v1531
  %v1533 = vmax.f32 %v1532, 0.0
  %v1534 = vadd.f32 %v1533, 1e-05
  %v1535 = vrsqrt.pop %v1534
  %v1536 = vmul.f32 %v1465, %v1535
  %v1537 = vmul.f32 %v1529, %v1536
  %v1539 = vrot.slane %v1537, 7
  %v1541 = vsub.f32 %v1465, %v1539
  %v1542 = vlaneseq
  %v1543 = vshrl.u32 %v1542, 7
  %v1544 = vsub.s32 0, %v1543
  %v1545 = vrot.slane %v1536, %v1544
  %v1546 = vmul.f32 %v1507, %v1545
  %v1547 = vmul.f32 %v1510, %v1545
  %v1548 = vlaneseq
  %v1549 = vshrl.u32 %v1548, 7
  %v1550 = vsub.s32 1, %v1549
  %v1551 = vrot.slane %v1541, %v1550
  %v1552 = vadd.f32 %v1546, %v1551
  %v1553 = vadd.f32 %v1547, %v1551
  %v1554 = vmax.f32 %v1552, 0.0
  %v1555 = vmax.f32 %v1553, 0.0
  %v1556 = vpack.c.bf16 %v1555, %v1554
  %v1557 = vld [vmem:[%s146] sm:$0xff]
  %v1558 = vld [vmem:[%s146 + $0x8] sm:$0xff]
  %v1560 = vsel %vm179, %v1556, 0
  %1562 = vmatprep.subr.bf16.mxu0 0
  %1563 = vmatpush1.bf16.msra.mxu0 %v1557
  %1564 = vmatprep.subr.bf16.mxu0 0
  %1565 = vmatpush1.bf16.msra.mxu0 %v1558
  %1566 = vmatprep.subr.bf16.mxu0 0
  %1567 = vmatpush1.bf16.msra.mxu0 0
  %1568 = vmatprep.subr.bf16.mxu0 0
  %1569 = vmatpush1.bf16.msra.mxu0 0
  %1570 = vmatprep.subr.bf16.mxu0 0
  %1571 = vmatpush1.bf16.msra.mxu0 0
  %1572 = vmatprep.subr.bf16.mxu0 0
  %1573 = vmatpush1.bf16.msra.mxu0 0
  %1574 = vmatprep.subr.bf16.mxu0 0
  %1575 = vmatpush1.bf16.msra.mxu0 0
  %1576 = vmatprep.subr.bf16.mxu0 0
  %1577 = vmatpush1.bf16.msra.mxu0 0
  %1578 = vmatprep.subr.bf16.mxu0 0
  %1579 = vmatpush1.bf16.msra.mxu0 0
  %1580 = vmatprep.subr.bf16.mxu0 0
  %1581 = vmatpush1.bf16.msra.mxu0 0
  %1582 = vmatprep.subr.bf16.mxu0 0
  %1583 = vmatpush1.bf16.msra.mxu0 0
  %1584 = vmatprep.subr.bf16.mxu0 0
  %1585 = vmatpush1.bf16.msra.mxu0 0
  %1586 = vmatprep.subr.bf16.mxu0 0
  %1587 = vmatpush1.bf16.msra.mxu0 0
  %1588 = vmatprep.subr.bf16.mxu0 0
  %1589 = vmatpush1.bf16.msra.mxu0 0
  %1590 = vmatprep.subr.bf16.mxu0 0
  %1591 = vmatpush1.bf16.msra.mxu0 0
  %1592 = vmatprep.subr.bf16.mxu0 0
  %1593 = vmatpush1.bf16.msra.mxu0 0
  %1594 = vmatprep.mubr.bf16.mxu0 0
  %1595 = vmatmul.mubr.bf16.gmra.mrb[0].mxu0 %v1560
  %v1596 = vpop.f32.mrb[0].mxu0
  %v1597 = vadd.f32 0.0, %v1596
  %v1598 = vpop.f32.mrb[0].mxu0
  %v1599 = vpop.f32.mrb[0].mxu0
  %v1600 = vadd.f32 0.0, %v1599
  %v1601 = vpop.f32.mrb[0].mxu0
  %1602 = vdwg.mxu0
  %v1603 = vadd.f32 %v1597, %v1600
  %v1604 = vrot.slane %v1603, 4
  %v1605 = vadd.f32 %v1603, %v1604
  %v1606 = vrot.slane %v1605, 2
  %v1607 = vadd.f32 %v1605, %v1606
  %v1608 = vrot.slane %v1607, 1
  %v1609 = vadd.f32 %v1607, %v1608
  %v1610 = vmul.f32 %v1597, %v1597
  %v1611 = vmul.f32 %v1600, %v1600
  %v1612 = vadd.f32 %v1610, %v1611
  %v1613 = vrot.slane %v1612, 4
  %v1614 = vadd.f32 %v1612, %v1613
  %v1615 = vrot.slane %v1614, 2
  %v1616 = vadd.f32 %v1614, %v1615
  %v1617 = vrot.slane %v1616, 1
  %v1618 = vadd.f32 %v1616, %v1617
  %v1619 = vmul.f32 %v1609, 0.0625
  %v1620 = vmul.f32 %v1618, 0.0625
  %v1621 = vmul.f32 %v1619, %v1619
  %v1622 = vsub.f32 %v1620, %v1621
  %v1623 = vmax.f32 %v1622, 0.0
  %v1624 = vadd.f32 %v1623, 1e-05
  %v1625 = vrsqrt.pop %v1624
  %v1626 = vmul.f32 %v1465, %v1625
  %v1627 = vmul.f32 %v1619, %v1626
  %v1629 = vrot.slane %v1627, 7
  %v1631 = vsub.f32 %v1465, %v1629
  %v1632 = vlaneseq
  %v1633 = vshrl.u32 %v1632, 7
  %v1634 = vsub.s32 2, %v1633
  %v1635 = vrot.slane %v1626, %v1634
  %v1636 = vmul.f32 %v1597, %v1635
  %v1637 = vmul.f32 %v1600, %v1635
  %v1638 = vlaneseq
  %v1639 = vshrl.u32 %v1638, 7
  %v1640 = vsub.s32 3, %v1639
  %v1641 = vrot.slane %v1631, %v1640
  %v1642 = vadd.f32 %v1636, %v1641
  %v1643 = vadd.f32 %v1637, %v1641
  %v1644 = vadd.f32 %v1642, %v1421
  %v1645 = vadd.f32 %v1643, %v1422
  %v1646 = vmax.f32 %v1644, 0.0
  %v1647 = vmax.f32 %v1645, 0.0
  %s1648 = sshll.u32 %s126, 4
  %1649 = dma.done [#allocation6], %s1648
  %s1650 = sshll.u32 %s126, 4
  %1651 = dma.done %s96, %s1650
  %s1652 = sshll.u32 %s129, 4
  %1653 = dma.done %s108, %s1652
  %s1654 = scalar_lea.hbm %s1, 1280
  // Predicated region
  $region160: #{_lambda_.1} parent=0 // pred_check
    _
  $region161: #{_lambda_.1} parent=0 // pred_check_branch
    %1656 = sbr.rel target = $region163
  $region162: #{_lambda_.1} parent=0 // pred_region
    %1657 = sst [smem:[#allocation10]] [#allocation50]
    %1658 = sst [smem:[#allocation11]] [#allocation49]
  $region163: #{_lambda_.1} parent=0 // pred_fallthru
    _
  %1660 = shalt.err (0)
  %s1662 = sshll.u32 %s132, 4
  %s1663 = int_to_ptr.vmem [resolvable:$true] %s1662
  %1665 = dma.hbm_to_vmem [thread:$0]  %s1654, 256, %s1663, %s133
  %s1666 = scalar_lea.hbm %s3, 1792
  // Predicated region
  $region164: #{_lambda_.1} parent=0 // pred_check
    _
  $region165: #{_lambda_.1} parent=0 // pred_check_branch
    %1668 = sbr.rel target = $region167
  $region166: #{_lambda_.1} parent=0 // pred_region
    %1669 = sst [smem:[#allocation10]] [#allocation52]
    %1670 = sst [smem:[#allocation11]] [#allocation51]
  $region167: #{_lambda_.1} parent=0 // pred_fallthru
    _
  %1672 = shalt.err (0)
  %s1674 = sshll.u32 %s146, 4
  %s1675 = int_to_ptr.vmem [resolvable:$true] %s1674
  %1677 = dma.hbm_to_vmem [thread:$0]  %s1666, 256, %s1675, %s147
  %s1678 = scalar_lea.hbm %s4, 896
  // Predicated region
  $region168: #{_lambda_.1} parent=0 // pred_check
    _
  $region169: #{_lambda_.1} parent=0 // pred_check_branch
    %1680 = sbr.rel target = $region171
  $region170: #{_lambda_.1} parent=0 // pred_region
    %1681 = sst [smem:[#allocation10]] [#allocation54]
    %1682 = sst [smem:[#allocation11]] [#allocation53]
  $region171: #{_lambda_.1} parent=0 // pred_fallthru
    _
  %1684 = shalt.err (0)
  %s1686 = sshll.u32 %s160, 4
  %s1687 = int_to_ptr.vmem [resolvable:$true] %s1686
  %1689 = dma.hbm_to_vmem [thread:$0]  %s1678, 128, %s1687, %s161
  %v1690 = vld [vmem:[#allocation5] sm:$0xff]
  %v1691 = vpack.c.bf16 %v1647, %v1646
  %v1692 = vld [vmem:[#allocation2] sm:$0xff]
  %v1693 = vld [vmem:[#allocation2 + $0x8] sm:$0xff]
  %v1695 = vsel %vm179, %v1691, 0
  %1697 = vmatprep.subr.bf16.mxu0 0
  %1698 = vmatpush1.bf16.msra.mxu0 %v1692
  %1699 = vmatprep.subr.bf16.mxu0 0
  %1700 = vmatpush1.bf16.msra.mxu0 %v1693
  %1701 = vmatprep.subr.bf16.mxu0 0
  %1702 = vmatpush1.bf16.msra.mxu0 0
  %1703 = vmatprep.subr.bf16.mxu0 0
  %1704 = vmatpush1.bf16.msra.mxu0 0
  %1705 = vmatprep.subr.bf16.mxu0 0
  %1706 = vmatpush1.bf16.msra.mxu0 0
  %1707 = vmatprep.subr.bf16.mxu0 0
  %1708 = vmatpush1.bf16.msra.mxu0 0
  %1709 = vmatprep.subr.bf16.mxu0 0
  %1710 = vmatpush1.bf16.msra.mxu0 0
  %1711 = vmatprep.subr.bf16.mxu0 0
  %1712 = vmatpush1.bf16.msra.mxu0 0
  %1713 = vmatprep.subr.bf16.mxu0 0
  %1714 = vmatpush1.bf16.msra.mxu0 0
  %1715 = vmatprep.subr.bf16.mxu0 0
  %1716 = vmatpush1.bf16.msra.mxu0 0
  %1717 = vmatprep.subr.bf16.mxu0 0
  %1718 = vmatpush1.bf16.msra.mxu0 0
  %1719 = vmatprep.subr.bf16.mxu0 0
  %1720 = vmatpush1.bf16.msra.mxu0 0
  %1721 = vmatprep.subr.bf16.mxu0 0
  %1722 = vmatpush1.bf16.msra.mxu0 0
  %1723 = vmatprep.subr.bf16.mxu0 0
  %1724 = vmatpush1.bf16.msra.mxu0 0
  %1725 = vmatprep.subr.bf16.mxu0 0
  %1726 = vmatpush1.bf16.msra.mxu0 0
  %1727 = vmatprep.subr.bf16.mxu0 0
  %1728 = vmatpush1.bf16.msra.mxu0 0
  %1729 = vmatprep.mubr.bf16.mxu0 0
  %1730 = vmatmul.mubr.bf16.gmra.mrb[0].mxu0 %v1695
  %v1731 = vpop.f32.mrb[0].mxu0
  %v1732 = vadd.f32 0.0, %v1731
  %v1733 = vpop.f32.mrb[0].mxu0
  %v1734 = vpop.f32.mrb[0].mxu0
  %v1735 = vadd.f32 0.0, %v1734
  %v1736 = vpop.f32.mrb[0].mxu0
  %1737 = vdwg.mxu0
  %v1738 = vadd.f32 %v1732, %v1735
  %v1739 = vrot.slane %v1738, 4
  %v1740 = vadd.f32 %v1738, %v1739
  %v1741 = vrot.slane %v1740, 2
  %v1742 = vadd.f32 %v1740, %v1741
  %v1743 = vrot.slane %v1742, 1
  %v1744 = vadd.f32 %v1742, %v1743
  %v1745 = vmul.f32 %v1732, %v1732
  %v1746 = vmul.f32 %v1735, %v1735
  %v1747 = vadd.f32 %v1745, %v1746
  %v1748 = vrot.slane %v1747, 4
  %v1749 = vadd.f32 %v1747, %v1748
  %v1750 = vrot.slane %v1749, 2
  %v1751 = vadd.f32 %v1749, %v1750
  %v1752 = vrot.slane %v1751, 1
  %v1753 = vadd.f32 %v1751, %v1752
  %v1754 = vmul.f32 %v1744, 0.0625
  %v1755 = vmul.f32 %v1753, 0.0625
  %v1756 = vmul.f32 %v1754, %v1754
  %v1757 = vsub.f32 %v1755, %v1756
  %v1758 = vmax.f32 %v1757, 0.0
  %v1759 = vadd.f32 %v1758, 1e-05
  %v1760 = vrsqrt.pop %v1759
  %v1761 = vmul.f32 %v1690, %v1760
  %v1762 = vmul.f32 %v1754, %v1761
  %v1764 = vrot.slane %v1762, 7
  %v1766 = vsub.f32 %v1690, %v1764
  %v1767 = vlaneseq
  %v1768 = vshrl.u32 %v1767, 7
  %v1769 = vsub.s32 0, %v1768
  %v1770 = vrot.slane %v1761, %v1769
  %v1771 = vmul.f32 %v1732, %v1770
  %v1772 = vmul.f32 %v1735, %v1770
  %v1773 = vlaneseq
  %v1774 = vshrl.u32 %v1773, 7
  %v1775 = vsub.s32 1, %v1774
  %v1776 = vrot.slane %v1766, %v1775
  %v1777 = vadd.f32 %v1771, %v1776
  %v1778 = vadd.f32 %v1772, %v1776
  %v1779 = vmax.f32 %v1777, 0.0
  %v1780 = vmax.f32 %v1778, 0.0
  %v1781 = vpack.c.bf16 %v1780, %v1779
  %v1782 = vld [vmem:[#allocation4] sm:$0xff]
  %v1783 = vld [vmem:[#allocation4 + $0x8] sm:$0xff]
  %v1785 = vsel %vm179, %v1781, 0
  %1787 = vmatprep.subr.bf16.mxu0 0
  %1788 = vmatpush1.bf16.msra.mxu0 %v1782
  %1789 = vmatprep.subr.bf16.mxu0 0
  %1790 = vmatpush1.bf16.msra.mxu0 %v1783
  %1791 = vmatprep.subr.bf16.mxu0 0
  %1792 = vmatpush1.bf16.msra.mxu0 0
  %1793 = vmatprep.subr.bf16.mxu0 0
  %1794 = vmatpush1.bf16.msra.mxu0 0
  %1795 = vmatprep.subr.bf16.mxu0 0
  %1796 = vmatpush1.bf16.msra.mxu0 0
  %1797 = vmatprep.subr.bf16.mxu0 0
  %1798 = vmatpush1.bf16.msra.mxu0 0
  %1799 = vmatprep.subr.bf16.mxu0 0
  %1800 = vmatpush1.bf16.msra.mxu0 0
  %1801 = vmatprep.subr.bf16.mxu0 0
  %1802 = vmatpush1.bf16.msra.mxu0 0
  %1803 = vmatprep.subr.bf16.mxu0 0
  %1804 = vmatpush1.bf16.msra.mxu0 0
  %1805 = vmatprep.subr.bf16.mxu0 0
  %1806 = vmatpush1.bf16.msra.mxu0 0
  %1807 = vmatprep.subr.bf16.mxu0 0
  %1808 = vmatpush1.bf16.msra.mxu0 0
  %1809 = vmatprep.subr.bf16.mxu0 0
  %1810 = vmatpush1.bf16.msra.mxu0 0
  %1811 = vmatprep.subr.bf16.mxu0 0
  %1812 = vmatpush1.bf16.msra.mxu0 0
  %1813 = vmatprep.subr.bf16.mxu0 0
  %1814 = vmatpush1.bf16.msra.mxu0 0
  %1815 = vmatprep.subr.bf16.mxu0 0
  %1816 = vmatpush1.bf16.msra.mxu0 0
  %1817 = vmatprep.subr.bf16.mxu0 0
  %1818 = vmatpush1.bf16.msra.mxu0 0
  %1819 = vmatprep.mubr.bf16.mxu0 0
  %1820 = vmatmul.mubr.bf16.gmra.mrb[0].mxu0 %v1785
  %v1821 = vpop.f32.mrb[0].mxu0
  %v1822 = vadd.f32 0.0, %v1821
  %v1823 = vpop.f32.mrb[0].mxu0
  %v1824 = vpop.f32.mrb[0].mxu0
  %v1825 = vadd.f32 0.0, %v1824
  %v1826 = vpop.f32.mrb[0].mxu0
  %1827 = vdwg.mxu0
  %v1828 = vadd.f32 %v1822, %v1825
  %v1829 = vrot.slane %v1828, 4
  %v1830 = vadd.f32 %v1828, %v1829
  %v1831 = vrot.slane %v1830, 2
  %v1832 = vadd.f32 %v1830, %v1831
  %v1833 = vrot.slane %v1832, 1
  %v1834 = vadd.f32 %v1832, %v1833
  %v1835 = vmul.f32 %v1822, %v1822
  %v1836 = vmul.f32 %v1825, %v1825
  %v1837 = vadd.f32 %v1835, %v1836
  %v1838 = vrot.slane %v1837, 4
  %v1839 = vadd.f32 %v1837, %v1838
  %v1840 = vrot.slane %v1839, 2
  %v1841 = vadd.f32 %v1839, %v1840
  %v1842 = vrot.slane %v1841, 1
  %v1843 = vadd.f32 %v1841, %v1842
  %v1844 = vmul.f32 %v1834, 0.0625
  %v1845 = vmul.f32 %v1843, 0.0625
  %v1846 = vmul.f32 %v1844, %v1844
  %v1847 = vsub.f32 %v1845, %v1846
  %v1848 = vmax.f32 %v1847, 0.0
  %v1849 = vadd.f32 %v1848, 1e-05
  %v1850 = vrsqrt.pop %v1849
  %v1851 = vmul.f32 %v1690, %v1850
  %v1852 = vmul.f32 %v1844, %v1851
  %v1854 = vrot.slane %v1852, 7
  %v1856 = vsub.f32 %v1690, %v1854
  %v1857 = vlaneseq
  %v1858 = vshrl.u32 %v1857, 7
  %v1859 = vsub.s32 2, %v1858
  %v1860 = vrot.slane %v1851, %v1859
  %v1861 = vmul.f32 %v1822, %v1860
  %v1862 = vmul.f32 %v1825, %v1860
  %v1863 = vlaneseq
  %v1864 = vshrl.u32 %v1863, 7
  %v1865 = vsub.s32 3, %v1864
  %v1866 = vrot.slane %v1856, %v1865
  %v1867 = vadd.f32 %v1861, %v1866
  %v1868 = vadd.f32 %v1862, %v1866
  %v1869 = vadd.f32 %v1867, %v1646
  %v1870 = vadd.f32 %v1868, %v1647
  %v1871 = vmax.f32 %v1869, 0.0
  %v1872 = vmax.f32 %v1870, 0.0
  %s1873 = sshll.u32 %s126, 4
  %1874 = dma.done %s133, %s1873
  %s1875 = sshll.u32 %s126, 4
  %1876 = dma.done %s147, %s1875
  %s1877 = sshll.u32 %s129, 4
  %1878 = dma.done %s161, %s1877
  %s1879 = scalar_lea.hbm %s1, 1536
  // Predicated region
  $region172: #{_lambda_.1} parent=0 // pred_check
    _
  $region173: #{_lambda_.1} parent=0 // pred_check_branch
    %1881 = sbr.rel target = $region175
  $region174: #{_lambda_.1} parent=0 // pred_region
    %1882 = sst [smem:[#allocation10]] [#allocation56]
    %1883 = sst [smem:[#allocation11]] [#allocation55]
  $region175: #{_lambda_.1} parent=0 // pred_fallthru
    _
  %1885 = shalt.err (0)
  %s1887 = sshll.u32 [#allocation2], 4
  %s1888 = int_to_ptr.vmem [resolvable:$true] %s1887
  %1890 = dma.hbm_to_vmem [thread:$0]  %s1879, 256, %s1888, [#allocation6]
  %s1891 = scalar_lea.hbm %s3, 2048
  // Predicated region
  $region176: #{_lambda_.1} parent=0 // pred_check
    _
  $region177: #{_lambda_.1} parent=0 // pred_check_branch
    %1893 = sbr.rel target = $region179
  $region178: #{_lambda_.1} parent=0 // pred_region
    %1894 = sst [smem:[#allocation10]] [#allocation58]
    %1895 = sst [smem:[#allocation11]] [#allocation57]
  $region179: #{_lambda_.1} parent=0 // pred_fallthru
    _
  %1897 = shalt.err (0)
  %s1899 = sshll.u32 [#allocation4], 4
  %s1900 = int_to_ptr.vmem [resolvable:$true] %s1899
  %1902 = dma.hbm_to_vmem [thread:$0]  %s1891, 256, %s1900, %s96
  %s1903 = scalar_lea.hbm %s4, 1024
  // Predicated region
  $region180: #{_lambda_.1} parent=0 // pred_check
    _
  $region181: #{_lambda_.1} parent=0 // pred_check_branch
    %1905 = sbr.rel target = $region183
  $region182: #{_lambda_.1} parent=0 // pred_region
    %1906 = sst [smem:[#allocation10]] [#allocation60]
    %1907 = sst [smem:[#allocation11]] [#allocation59]
  $region183: #{_lambda_.1} parent=0 // pred_fallthru
    _
  %1909 = shalt.err (0)
  %s1911 = sshll.u32 [#allocation5], 4
  %s1912 = int_to_ptr.vmem [resolvable:$true] %s1911
  %1914 = dma.hbm_to_vmem [thread:$0]  %s1903, 128, %s1912, %s108
  %v1915 = vld [vmem:[%s160] sm:$0xff]
  %v1916 = vpack.c.bf16 %v1872, %v1871
  %v1917 = vld [vmem:[%s132] sm:$0xff]
  %v1918 = vld [vmem:[%s132 + $0x8] sm:$0xff]
  %v1920 = vsel %vm179, %v1916, 0
  %1922 = vmatprep.subr.bf16.mxu0 0
  %1923 = vmatpush1.bf16.msra.mxu0 %v1917
  %1924 = vmatprep.subr.bf16.mxu0 0
  %1925 = vmatpush1.bf16.msra.mxu0 %v1918
  %1926 = vmatprep.subr.bf16.mxu0 0
  %1927 = vmatpush1.bf16.msra.mxu0 0
  %1928 = vmatprep.subr.bf16.mxu0 0
  %1929 = vmatpush1.bf16.msra.mxu0 0
  %1930 = vmatprep.subr.bf16.mxu0 0
  %1931 = vmatpush1.bf16.msra.mxu0 0
  %1932 = vmatprep.subr.bf16.mxu0 0
  %1933 = vmatpush1.bf16.msra.mxu0 0
  %1934 = vmatprep.subr.bf16.mxu0 0
  %1935 = vmatpush1.bf16.msra.mxu0 0
  %1936 = vmatprep.subr.bf16.mxu0 0
  %1937 = vmatpush1.bf16.msra.mxu0 0
  %1938 = vmatprep.subr.bf16.mxu0 0
  %1939 = vmatpush1.bf16.msra.mxu0 0
  %1940 = vmatprep.subr.bf16.mxu0 0
  %1941 = vmatpush1.bf16.msra.mxu0 0
  %1942 = vmatprep.subr.bf16.mxu0 0
  %1943 = vmatpush1.bf16.msra.mxu0 0
  %1944 = vmatprep.subr.bf16.mxu0 0
  %1945 = vmatpush1.bf16.msra.mxu0 0
  %1946 = vmatprep.subr.bf16.mxu0 0
  %1947 = vmatpush1.bf16.msra.mxu0 0
  %1948 = vmatprep.subr.bf16.mxu0 0
  %1949 = vmatpush1.bf16.msra.mxu0 0
  %1950 = vmatprep.subr.bf16.mxu0 0
  %1951 = vmatpush1.bf16.msra.mxu0 0
  %1952 = vmatprep.subr.bf16.mxu0 0
  %1953 = vmatpush1.bf16.msra.mxu0 0
  %1954 = vmatprep.mubr.bf16.mxu0 0
  %1955 = vmatmul.mubr.bf16.gmra.mrb[0].mxu0 %v1920
  %v1956 = vpop.f32.mrb[0].mxu0
  %v1957 = vadd.f32 0.0, %v1956
  %v1958 = vpop.f32.mrb[0].mxu0
  %v1959 = vpop.f32.mrb[0].mxu0
  %v1960 = vadd.f32 0.0, %v1959
  %v1961 = vpop.f32.mrb[0].mxu0
  %1962 = vdwg.mxu0
  %v1963 = vadd.f32 %v1957, %v1960
  %v1964 = vrot.slane %v1963, 4
  %v1965 = vadd.f32 %v1963, %v1964
  %v1966 = vrot.slane %v1965, 2
  %v1967 = vadd.f32 %v1965, %v1966
  %v1968 = vrot.slane %v1967, 1
  %v1969 = vadd.f32 %v1967, %v1968
  %v1970 = vmul.f32 %v1957, %v1957
  %v1971 = vmul.f32 %v1960, %v1960
  %v1972 = vadd.f32 %v1970, %v1971
  %v1973 = vrot.slane %v1972, 4
  %v1974 = vadd.f32 %v1972, %v1973
  %v1975 = vrot.slane %v1974, 2
  %v1976 = vadd.f32 %v1974, %v1975
  %v1977 = vrot.slane %v1976, 1
  %v1978 = vadd.f32 %v1976, %v1977
  %v1979 = vmul.f32 %v1969, 0.0625
  %v1980 = vmul.f32 %v1978, 0.0625
  %v1981 = vmul.f32 %v1979, %v1979
  %v1982 = vsub.f32 %v1980, %v1981
  %v1983 = vmax.f32 %v1982, 0.0
  %v1984 = vadd.f32 %v1983, 1e-05
  %v1985 = vrsqrt.pop %v1984
  %v1986 = vmul.f32 %v1915, %v1985
  %v1987 = vmul.f32 %v1979, %v1986
  %v1989 = vrot.slane %v1987, 7
  %v1991 = vsub.f32 %v1915, %v1989
  %v1992 = vlaneseq
  %v1993 = vshrl.u32 %v1992, 7
  %v1994 = vsub.s32 0, %v1993
  %v1995 = vrot.slane %v1986, %v1994
  %v1996 = vmul.f32 %v1957, %v1995
  %v1997 = vmul.f32 %v1960, %v1995
  %v1998 = vlaneseq
  %v1999 = vshrl.u32 %v1998, 7
  %v2000 = vsub.s32 1, %v1999
  %v2001 = vrot.slane %v1991, %v2000
  %v2002 = vadd.f32 %v1996, %v2001
  %v2003 = vadd.f32 %v1997, %v2001
  %v2004 = vmax.f32 %v2002, 0.0
  %v2005 = vmax.f32 %v2003, 0.0
  %v2006 = vpack.c.bf16 %v2005, %v2004
  %v2007 = vld [vmem:[%s146] sm:$0xff]
  %v2008 = vld [vmem:[%s146 + $0x8] sm:$0xff]
  %v2010 = vsel %vm179, %v2006, 0
  %2012 = vmatprep.subr.bf16.mxu0 0
  %2013 = vmatpush1.bf16.msra.mxu0 %v2007
  %2014 = vmatprep.subr.bf16.mxu0 0
  %2015 = vmatpush1.bf16.msra.mxu0 %v2008
  %2016 = vmatprep.subr.bf16.mxu0 0
  %2017 = vmatpush1.bf16.msra.mxu0 0
  %2018 = vmatprep.subr.bf16.mxu0 0
  %2019 = vmatpush1.bf16.msra.mxu0 0
  %2020 = vmatprep.subr.bf16.mxu0 0
  %2021 = vmatpush1.bf16.msra.mxu0 0
  %2022 = vmatprep.subr.bf16.mxu0 0
  %2023 = vmatpush1.bf16.msra.mxu0 0
  %2024 = vmatprep.subr.bf16.mxu0 0
  %2025 = vmatpush1.bf16.msra.mxu0 0
  %2026 = vmatprep.subr.bf16.mxu0 0
  %2027 = vmatpush1.bf16.msra.mxu0 0
  %2028 = vmatprep.subr.bf16.mxu0 0
  %2029 = vmatpush1.bf16.msra.mxu0 0
  %2030 = vmatprep.subr.bf16.mxu0 0
  %2031 = vmatpush1.bf16.msra.mxu0 0
  %2032 = vmatprep.subr.bf16.mxu0 0
  %2033 = vmatpush1.bf16.msra.mxu0 0
  %2034 = vmatprep.subr.bf16.mxu0 0
  %2035 = vmatpush1.bf16.msra.mxu0 0
  %2036 = vmatprep.subr.bf16.mxu0 0
  %2037 = vmatpush1.bf16.msra.mxu0 0
  %2038 = vmatprep.subr.bf16.mxu0 0
  %2039 = vmatpush1.bf16.msra.mxu0 0
  %2040 = vmatprep.subr.bf16.mxu0 0
  %2041 = vmatpush1.bf16.msra.mxu0 0
  %2042 = vmatprep.subr.bf16.mxu0 0
  %2043 = vmatpush1.bf16.msra.mxu0 0
  %2044 = vmatprep.mubr.bf16.mxu0 0
  %2045 = vmatmul.mubr.bf16.gmra.mrb[0].mxu0 %v2010
  %v2046 = vpop.f32.mrb[0].mxu0
  %v2047 = vadd.f32 0.0, %v2046
  %v2048 = vpop.f32.mrb[0].mxu0
  %v2049 = vpop.f32.mrb[0].mxu0
  %v2050 = vadd.f32 0.0, %v2049
  %v2051 = vpop.f32.mrb[0].mxu0
  %2052 = vdwg.mxu0
  %v2053 = vadd.f32 %v2047, %v2050
  %v2054 = vrot.slane %v2053, 4
  %v2055 = vadd.f32 %v2053, %v2054
  %v2056 = vrot.slane %v2055, 2
  %v2057 = vadd.f32 %v2055, %v2056
  %v2058 = vrot.slane %v2057, 1
  %v2059 = vadd.f32 %v2057, %v2058
  %v2060 = vmul.f32 %v2047, %v2047
  %v2061 = vmul.f32 %v2050, %v2050
  %v2062 = vadd.f32 %v2060, %v2061
  %v2063 = vrot.slane %v2062, 4
  %v2064 = vadd.f32 %v2062, %v2063
  %v2065 = vrot.slane %v2064, 2
  %v2066 = vadd.f32 %v2064, %v2065
  %v2067 = vrot.slane %v2066, 1
  %v2068 = vadd.f32 %v2066, %v2067
  %v2069 = vmul.f32 %v2059, 0.0625
  %v2070 = vmul.f32 %v2068, 0.0625
  %v2071 = vmul.f32 %v2069, %v2069
  %v2072 = vsub.f32 %v2070, %v2071
  %v2073 = vmax.f32 %v2072, 0.0
  %v2074 = vadd.f32 %v2073, 1e-05
  %v2075 = vrsqrt.pop %v2074
  %v2076 = vmul.f32 %v1915, %v2075
  %v2077 = vmul.f32 %v2069, %v2076
  %v2079 = vrot.slane %v2077, 7
  %v2081 = vsub.f32 %v1915, %v2079
  %v2082 = vlaneseq
  %v2083 = vshrl.u32 %v2082, 7
  %v2084 = vsub.s32 2, %v2083
  %v2085 = vrot.slane %v2076, %v2084
  %v2086 = vmul.f32 %v2047, %v2085
  %v2087 = vmul.f32 %v2050, %v2085
  %v2088 = vlaneseq
  %v2089 = vshrl.u32 %v2088, 7
  %v2090 = vsub.s32 3, %v2089
  %v2091 = vrot.slane %v2081, %v2090
  %v2092 = vadd.f32 %v2086, %v2091
  %v2093 = vadd.f32 %v2087, %v2091
  %v2094 = vadd.f32 %v2092, %v1871
  %v2095 = vadd.f32 %v2093, %v1872
  %v2096 = vmax.f32 %v2094, 0.0
  %v2097 = vmax.f32 %v2095, 0.0
  %s2098 = sshll.u32 %s126, 4
  %2099 = dma.done [#allocation6], %s2098
  %s2100 = sshll.u32 %s126, 4
  %2101 = dma.done %s96, %s2100
  %s2102 = sshll.u32 %s129, 4
  %2103 = dma.done %s108, %s2102
  %s2104 = scalar_lea.hbm %s1, 1792
  // Predicated region
  $region184: #{_lambda_.1} parent=0 // pred_check
    _
  $region185: #{_lambda_.1} parent=0 // pred_check_branch
    %2106 = sbr.rel target = $region187
  $region186: #{_lambda_.1} parent=0 // pred_region
    %2107 = sst [smem:[#allocation10]] [#allocation62]
    %2108 = sst [smem:[#allocation11]] [#allocation61]
  $region187: #{_lambda_.1} parent=0 // pred_fallthru
    _
  %2110 = shalt.err (0)
  %s2112 = sshll.u32 %s132, 4
  %s2113 = int_to_ptr.vmem [resolvable:$true] %s2112
  %2115 = dma.hbm_to_vmem [thread:$0]  %s2104, 256, %s2113, %s133
  %s2116 = scalar_lea.hbm %s3, 2304
  // Predicated region
  $region188: #{_lambda_.1} parent=0 // pred_check
    _
  $region189: #{_lambda_.1} parent=0 // pred_check_branch
    %2118 = sbr.rel target = $region191
  $region190: #{_lambda_.1} parent=0 // pred_region
    %2119 = sst [smem:[#allocation10]] [#allocation64]
    %2120 = sst [smem:[#allocation11]] [#allocation63]
  $region191: #{_lambda_.1} parent=0 // pred_fallthru
    _
  %2122 = shalt.err (0)
  %s2124 = sshll.u32 %s146, 4
  %s2125 = int_to_ptr.vmem [resolvable:$true] %s2124
  %2127 = dma.hbm_to_vmem [thread:$0]  %s2116, 256, %s2125, %s147
  %s2128 = scalar_lea.hbm %s4, 1152
  // Predicated region
  $region192: #{_lambda_.1} parent=0 // pred_check
    _
  $region193: #{_lambda_.1} parent=0 // pred_check_branch
    %2130 = sbr.rel target = $region195
  $region194: #{_lambda_.1} parent=0 // pred_region
    %2131 = sst [smem:[#allocation10]] [#allocation66]
    %2132 = sst [smem:[#allocation11]] [#allocation65]
  $region195: #{_lambda_.1} parent=0 // pred_fallthru
    _
  %2134 = shalt.err (0)
  %s2136 = sshll.u32 %s160, 4
  %s2137 = int_to_ptr.vmem [resolvable:$true] %s2136
  %2139 = dma.hbm_to_vmem [thread:$0]  %s2128, 128, %s2137, %s161
  %v2140 = vld [vmem:[#allocation5] sm:$0xff]
  %v2141 = vpack.c.bf16 %v2097, %v2096
  %v2142 = vld [vmem:[#allocation2] sm:$0xff]
  %v2143 = vld [vmem:[#allocation2 + $0x8] sm:$0xff]
  %v2145 = vsel %vm179, %v2141, 0
  %2147 = vmatprep.subr.bf16.mxu0 0
  %2148 = vmatpush1.bf16.msra.mxu0 %v2142
  %2149 = vmatprep.subr.bf16.mxu0 0
  %2150 = vmatpush1.bf16.msra.mxu0 %v2143
  %2151 = vmatprep.subr.bf16.mxu0 0
  %2152 = vmatpush1.bf16.msra.mxu0 0
  %2153 = vmatprep.subr.bf16.mxu0 0
  %2154 = vmatpush1.bf16.msra.mxu0 0
  %2155 = vmatprep.subr.bf16.mxu0 0
  %2156 = vmatpush1.bf16.msra.mxu0 0
  %2157 = vmatprep.subr.bf16.mxu0 0
  %2158 = vmatpush1.bf16.msra.mxu0 0
  %2159 = vmatprep.subr.bf16.mxu0 0
  %2160 = vmatpush1.bf16.msra.mxu0 0
  %2161 = vmatprep.subr.bf16.mxu0 0
  %2162 = vmatpush1.bf16.msra.mxu0 0
  %2163 = vmatprep.subr.bf16.mxu0 0
  %2164 = vmatpush1.bf16.msra.mxu0 0
  %2165 = vmatprep.subr.bf16.mxu0 0
  %2166 = vmatpush1.bf16.msra.mxu0 0
  %2167 = vmatprep.subr.bf16.mxu0 0
  %2168 = vmatpush1.bf16.msra.mxu0 0
  %2169 = vmatprep.subr.bf16.mxu0 0
  %2170 = vmatpush1.bf16.msra.mxu0 0
  %2171 = vmatprep.subr.bf16.mxu0 0
  %2172 = vmatpush1.bf16.msra.mxu0 0
  %2173 = vmatprep.subr.bf16.mxu0 0
  %2174 = vmatpush1.bf16.msra.mxu0 0
  %2175 = vmatprep.subr.bf16.mxu0 0
  %2176 = vmatpush1.bf16.msra.mxu0 0
  %2177 = vmatprep.subr.bf16.mxu0 0
  %2178 = vmatpush1.bf16.msra.mxu0 0
  %2179 = vmatprep.mubr.bf16.mxu0 0
  %2180 = vmatmul.mubr.bf16.gmra.mrb[0].mxu0 %v2145
  %v2181 = vpop.f32.mrb[0].mxu0
  %v2182 = vadd.f32 0.0, %v2181
  %v2183 = vpop.f32.mrb[0].mxu0
  %v2184 = vpop.f32.mrb[0].mxu0
  %v2185 = vadd.f32 0.0, %v2184
  %v2186 = vpop.f32.mrb[0].mxu0
  %2187 = vdwg.mxu0
  %v2188 = vadd.f32 %v2182, %v2185
  %v2189 = vrot.slane %v2188, 4
  %v2190 = vadd.f32 %v2188, %v2189
  %v2191 = vrot.slane %v2190, 2
  %v2192 = vadd.f32 %v2190, %v2191
  %v2193 = vrot.slane %v2192, 1
  %v2194 = vadd.f32 %v2192, %v2193
  %v2195 = vmul.f32 %v2182, %v2182
  %v2196 = vmul.f32 %v2185, %v2185
  %v2197 = vadd.f32 %v2195, %v2196
  %v2198 = vrot.slane %v2197, 4
  %v2199 = vadd.f32 %v2197, %v2198
  %v2200 = vrot.slane %v2199, 2
  %v2201 = vadd.f32 %v2199, %v2200
  %v2202 = vrot.slane %v2201, 1
  %v2203 = vadd.f32 %v2201, %v2202
  %v2204 = vmul.f32 %v2194, 0.0625
  %v2205 = vmul.f32 %v2203, 0.0625
  %v2206 = vmul.f32 %v2204, %v2204
  %v2207 = vsub.f32 %v2205, %v2206
  %v2208 = vmax.f32 %v2207, 0.0
  %v2209 = vadd.f32 %v2208, 1e-05
  %v2210 = vrsqrt.pop %v2209
  %v2211 = vmul.f32 %v2140, %v2210
  %v2212 = vmul.f32 %v2204, %v2211
  %v2214 = vrot.slane %v2212, 7
  %v2216 = vsub.f32 %v2140, %v2214
  %v2217 = vlaneseq
  %v2218 = vshrl.u32 %v2217, 7
  %v2219 = vsub.s32 0, %v2218
  %v2220 = vrot.slane %v2211, %v2219
  %v2221 = vmul.f32 %v2182, %v2220
  %v2222 = vmul.f32 %v2185, %v2220
  %v2223 = vlaneseq
  %v2224 = vshrl.u32 %v2223, 7
  %v2225 = vsub.s32 1, %v2224
  %v2226 = vrot.slane %v2216, %v2225
  %v2227 = vadd.f32 %v2221, %v2226
  %v2228 = vadd.f32 %v2222, %v2226
  %v2229 = vmax.f32 %v2227, 0.0
  %v2230 = vmax.f32 %v2228, 0.0
  %v2231 = vpack.c.bf16 %v2230, %v2229
  %v2232 = vld [vmem:[#allocation4] sm:$0xff]
  %v2233 = vld [vmem:[#allocation4 + $0x8] sm:$0xff]
  %v2235 = vsel %vm179, %v2231, 0
  %2237 = vmatprep.subr.bf16.mxu0 0
  %2238 = vmatpush1.bf16.msra.mxu0 %v2232
  %2239 = vmatprep.subr.bf16.mxu0 0
  %2240 = vmatpush1.bf16.msra.mxu0 %v2233
  %2241 = vmatprep.subr.bf16.mxu0 0
  %2242 = vmatpush1.bf16.msra.mxu0 0
  %2243 = vmatprep.subr.bf16.mxu0 0
  %2244 = vmatpush1.bf16.msra.mxu0 0
  %2245 = vmatprep.subr.bf16.mxu0 0
  %2246 = vmatpush1.bf16.msra.mxu0 0
  %2247 = vmatprep.subr.bf16.mxu0 0
  %2248 = vmatpush1.bf16.msra.mxu0 0
  %2249 = vmatprep.subr.bf16.mxu0 0
  %2250 = vmatpush1.bf16.msra.mxu0 0
  %2251 = vmatprep.subr.bf16.mxu0 0
  %2252 = vmatpush1.bf16.msra.mxu0 0
  %2253 = vmatprep.subr.bf16.mxu0 0
  %2254 = vmatpush1.bf16.msra.mxu0 0
  %2255 = vmatprep.subr.bf16.mxu0 0
  %2256 = vmatpush1.bf16.msra.mxu0 0
  %2257 = vmatprep.subr.bf16.mxu0 0
  %2258 = vmatpush1.bf16.msra.mxu0 0
  %2259 = vmatprep.subr.bf16.mxu0 0
  %2260 = vmatpush1.bf16.msra.mxu0 0
  %2261 = vmatprep.subr.bf16.mxu0 0
  %2262 = vmatpush1.bf16.msra.mxu0 0
  %2263 = vmatprep.subr.bf16.mxu0 0
  %2264 = vmatpush1.bf16.msra.mxu0 0
  %2265 = vmatprep.subr.bf16.mxu0 0
  %2266 = vmatpush1.bf16.msra.mxu0 0
  %2267 = vmatprep.subr.bf16.mxu0 0
  %2268 = vmatpush1.bf16.msra.mxu0 0
  %2269 = vmatprep.mubr.bf16.mxu0 0
  %2270 = vmatmul.mubr.bf16.gmra.mrb[0].mxu0 %v2235
  %v2271 = vpop.f32.mrb[0].mxu0
  %v2272 = vadd.f32 0.0, %v2271
  %v2273 = vpop.f32.mrb[0].mxu0
  %v2274 = vpop.f32.mrb[0].mxu0
  %v2275 = vadd.f32 0.0, %v2274
  %v2276 = vpop.f32.mrb[0].mxu0
  %2277 = vdwg.mxu0
  %v2278 = vadd.f32 %v2272, %v2275
  %v2279 = vrot.slane %v2278, 4
  %v2280 = vadd.f32 %v2278, %v2279
  %v2281 = vrot.slane %v2280, 2
  %v2282 = vadd.f32 %v2280, %v2281
  %v2283 = vrot.slane %v2282, 1
  %v2284 = vadd.f32 %v2282, %v2283
  %v2285 = vmul.f32 %v2272, %v2272
  %v2286 = vmul.f32 %v2275, %v2275
  %v2287 = vadd.f32 %v2285, %v2286
  %v2288 = vrot.slane %v2287, 4
  %v2289 = vadd.f32 %v2287, %v2288
  %v2290 = vrot.slane %v2289, 2
  %v2291 = vadd.f32 %v2289, %v2290
  %v2292 = vrot.slane %v2291, 1
  %v2293 = vadd.f32 %v2291, %v2292
  %v2294 = vmul.f32 %v2284, 0.0625
  %v2295 = vmul.f32 %v2293, 0.0625
  %v2296 = vmul.f32 %v2294, %v2294
  %v2297 = vsub.f32 %v2295, %v2296
  %v2298 = vmax.f32 %v2297, 0.0
  %v2299 = vadd.f32 %v2298, 1e-05
  %v2300 = vrsqrt.pop %v2299
  %v2301 = vmul.f32 %v2140, %v2300
  %v2302 = vmul.f32 %v2294, %v2301
  %v2304 = vrot.slane %v2302, 7
  %v2306 = vsub.f32 %v2140, %v2304
  %v2307 = vlaneseq
  %v2308 = vshrl.u32 %v2307, 7
  %v2309 = vsub.s32 2, %v2308
  %v2310 = vrot.slane %v2301, %v2309
  %v2311 = vmul.f32 %v2272, %v2310
  %v2312 = vmul.f32 %v2275, %v2310
  %v2313 = vlaneseq
  %v2314 = vshrl.u32 %v2313, 7
  %v2315 = vsub.s32 3, %v2314
  %v2316 = vrot.slane %v2306, %v2315
  %v2317 = vadd.f32 %v2311, %v2316
  %v2318 = vadd.f32 %v2312, %v2316
  %v2319 = vadd.f32 %v2317, %v2096
  %v2320 = vadd.f32 %v2318, %v2097
  %v2321 = vmax.f32 %v2319, 0.0
  %v2322 = vmax.f32 %v2320, 0.0
  %s2323 = sshll.u32 %s126, 4
  %2324 = dma.done %s133, %s2323
  %s2325 = sshll.u32 %s126, 4
  %2326 = dma.done %s147, %s2325
  %s2327 = sshll.u32 %s129, 4
  %2328 = dma.done %s161, %s2327
  %s2329 = scalar_lea.hbm %s1, 2048
  // Predicated region
  $region196: #{_lambda_.1} parent=0 // pred_check
    _
  $region197: #{_lambda_.1} parent=0 // pred_check_branch
    %2331 = sbr.rel target = $region199
  $region198: #{_lambda_.1} parent=0 // pred_region
    %2332 = sst [smem:[#allocation10]] [#allocation68]
    %2333 = sst [smem:[#allocation11]] [#allocation67]
  $region199: #{_lambda_.1} parent=0 // pred_fallthru
    _
  %2335 = shalt.err (0)
  %s2337 = sshll.u32 [#allocation2], 4
  %s2338 = int_to_ptr.vmem [resolvable:$true] %s2337
  %2340 = dma.hbm_to_vmem [thread:$0]  %s2329, 256, %s2338, [#allocation6]
  %s2341 = scalar_lea.hbm %s3, 2560
  // Predicated region
  $region200: #{_lambda_.1} parent=0 // pred_check
    _
  $region201: #{_lambda_.1} parent=0 // pred_check_branch
    %2343 = sbr.rel target = $region203
  $region202: #{_lambda_.1} parent=0 // pred_region
    %2344 = sst [smem:[#allocation10]] [#allocation70]
    %2345 = sst [smem:[#allocation11]] [#allocation69]
  $region203: #{_lambda_.1} parent=0 // pred_fallthru
    _
  %2347 = shalt.err (0)
  %s2349 = sshll.u32 [#allocation4], 4
  %s2350 = int_to_ptr.vmem [resolvable:$true] %s2349
  %2352 = dma.hbm_to_vmem [thread:$0]  %s2341, 256, %s2350, %s96
  %s2353 = scalar_lea.hbm %s4, 1280
  // Predicated region
  $region204: #{_lambda_.1} parent=0 // pred_check
    _
  $region205: #{_lambda_.1} parent=0 // pred_check_branch
    %2355 = sbr.rel target = $region207
  $region206: #{_lambda_.1} parent=0 // pred_region
    %2356 = sst [smem:[#allocation10]] [#allocation72]
    %2357 = sst [smem:[#allocation11]] [#allocation71]
  $region207: #{_lambda_.1} parent=0 // pred_fallthru
    _
  %2359 = shalt.err (0)
  %s2361 = sshll.u32 [#allocation5], 4
  %s2362 = int_to_ptr.vmem [resolvable:$true] %s2361
  %2364 = dma.hbm_to_vmem [thread:$0]  %s2353, 128, %s2362, %s108
  %v2365 = vld [vmem:[%s160] sm:$0xff]
  %v2366 = vpack.c.bf16 %v2322, %v2321
  %v2367 = vld [vmem:[%s132] sm:$0xff]
  %v2368 = vld [vmem:[%s132 + $0x8] sm:$0xff]
  %v2370 = vsel %vm179, %v2366, 0
  %2372 = vmatprep.subr.bf16.mxu0 0
  %2373 = vmatpush1.bf16.msra.mxu0 %v2367
  %2374 = vmatprep.subr.bf16.mxu0 0
  %2375 = vmatpush1.bf16.msra.mxu0 %v2368
  %2376 = vmatprep.subr.bf16.mxu0 0
  %2377 = vmatpush1.bf16.msra.mxu0 0
  %2378 = vmatprep.subr.bf16.mxu0 0
  %2379 = vmatpush1.bf16.msra.mxu0 0
  %2380 = vmatprep.subr.bf16.mxu0 0
  %2381 = vmatpush1.bf16.msra.mxu0 0
  %2382 = vmatprep.subr.bf16.mxu0 0
  %2383 = vmatpush1.bf16.msra.mxu0 0
  %2384 = vmatprep.subr.bf16.mxu0 0
  %2385 = vmatpush1.bf16.msra.mxu0 0
  %2386 = vmatprep.subr.bf16.mxu0 0
  %2387 = vmatpush1.bf16.msra.mxu0 0
  %2388 = vmatprep.subr.bf16.mxu0 0
  %2389 = vmatpush1.bf16.msra.mxu0 0
  %2390 = vmatprep.subr.bf16.mxu0 0
  %2391 = vmatpush1.bf16.msra.mxu0 0
  %2392 = vmatprep.subr.bf16.mxu0 0
  %2393 = vmatpush1.bf16.msra.mxu0 0
  %2394 = vmatprep.subr.bf16.mxu0 0
  %2395 = vmatpush1.bf16.msra.mxu0 0
  %2396 = vmatprep.subr.bf16.mxu0 0
  %2397 = vmatpush1.bf16.msra.mxu0 0
  %2398 = vmatprep.subr.bf16.mxu0 0
  %2399 = vmatpush1.bf16.msra.mxu0 0
  %2400 = vmatprep.subr.bf16.mxu0 0
  %2401 = vmatpush1.bf16.msra.mxu0 0
  %2402 = vmatprep.subr.bf16.mxu0 0
  %2403 = vmatpush1.bf16.msra.mxu0 0
  %2404 = vmatprep.mubr.bf16.mxu0 0
  %2405 = vmatmul.mubr.bf16.gmra.mrb[0].mxu0 %v2370
  %v2406 = vpop.f32.mrb[0].mxu0
  %v2407 = vadd.f32 0.0, %v2406
  %v2408 = vpop.f32.mrb[0].mxu0
  %v2409 = vpop.f32.mrb[0].mxu0
  %v2410 = vadd.f32 0.0, %v2409
  %v2411 = vpop.f32.mrb[0].mxu0
  %2412 = vdwg.mxu0
  %v2413 = vadd.f32 %v2407, %v2410
  %v2414 = vrot.slane %v2413, 4
  %v2415 = vadd.f32 %v2413, %v2414
  %v2416 = vrot.slane %v2415, 2
  %v2417 = vadd.f32 %v2415, %v2416
  %v2418 = vrot.slane %v2417, 1
  %v2419 = vadd.f32 %v2417, %v2418
  %v2420 = vmul.f32 %v2407, %v2407
  %v2421 = vmul.f32 %v2410, %v2410
  %v2422 = vadd.f32 %v2420, %v2421
  %v2423 = vrot.slane %v2422, 4
  %v2424 = vadd.f32 %v2422, %v2423
  %v2425 = vrot.slane %v2424, 2
  %v2426 = vadd.f32 %v2424, %v2425
  %v2427 = vrot.slane %v2426, 1
  %v2428 = vadd.f32 %v2426, %v2427
  %v2429 = vmul.f32 %v2419, 0.0625
  %v2430 = vmul.f32 %v2428, 0.0625
  %v2431 = vmul.f32 %v2429, %v2429
  %v2432 = vsub.f32 %v2430, %v2431
  %v2433 = vmax.f32 %v2432, 0.0
  %v2434 = vadd.f32 %v2433, 1e-05
  %v2435 = vrsqrt.pop %v2434
  %v2436 = vmul.f32 %v2365, %v2435
  %v2437 = vmul.f32 %v2429, %v2436
  %v2439 = vrot.slane %v2437, 7
  %v2441 = vsub.f32 %v2365, %v2439
  %v2442 = vlaneseq
  %v2443 = vshrl.u32 %v2442, 7
  %v2444 = vsub.s32 0, %v2443
  %v2445 = vrot.slane %v2436, %v2444
  %v2446 = vmul.f32 %v2407, %v2445
  %v2447 = vmul.f32 %v2410, %v2445
  %v2448 = vlaneseq
  %v2449 = vshrl.u32 %v2448, 7
  %v2450 = vsub.s32 1, %v2449
  %v2451 = vrot.slane %v2441, %v2450
  %v2452 = vadd.f32 %v2446, %v2451
  %v2453 = vadd.f32 %v2447, %v2451
  %v2454 = vmax.f32 %v2452, 0.0
  %v2455 = vmax.f32 %v2453, 0.0
  %v2456 = vpack.c.bf16 %v2455, %v2454
  %v2457 = vld [vmem:[%s146] sm:$0xff]
  %v2458 = vld [vmem:[%s146 + $0x8] sm:$0xff]
  %v2460 = vsel %vm179, %v2456, 0
  %2462 = vmatprep.subr.bf16.mxu0 0
  %2463 = vmatpush1.bf16.msra.mxu0 %v2457
  %2464 = vmatprep.subr.bf16.mxu0 0
  %2465 = vmatpush1.bf16.msra.mxu0 %v2458
  %2466 = vmatprep.subr.bf16.mxu0 0
  %2467 = vmatpush1.bf16.msra.mxu0 0
  %2468 = vmatprep.subr.bf16.mxu0 0
  %2469 = vmatpush1.bf16.msra.mxu0 0
  %2470 = vmatprep.subr.bf16.mxu0 0
  %2471 = vmatpush1.bf16.msra.mxu0 0
  %2472 = vmatprep.subr.bf16.mxu0 0
  %2473 = vmatpush1.bf16.msra.mxu0 0
  %2474 = vmatprep.subr.bf16.mxu0 0
  %2475 = vmatpush1.bf16.msra.mxu0 0
  %2476 = vmatprep.subr.bf16.mxu0 0
  %2477 = vmatpush1.bf16.msra.mxu0 0
  %2478 = vmatprep.subr.bf16.mxu0 0
  %2479 = vmatpush1.bf16.msra.mxu0 0
  %2480 = vmatprep.subr.bf16.mxu0 0
  %2481 = vmatpush1.bf16.msra.mxu0 0
  %2482 = vmatprep.subr.bf16.mxu0 0
  %2483 = vmatpush1.bf16.msra.mxu0 0
  %2484 = vmatprep.subr.bf16.mxu0 0
  %2485 = vmatpush1.bf16.msra.mxu0 0
  %2486 = vmatprep.subr.bf16.mxu0 0
  %2487 = vmatpush1.bf16.msra.mxu0 0
  %2488 = vmatprep.subr.bf16.mxu0 0
  %2489 = vmatpush1.bf16.msra.mxu0 0
  %2490 = vmatprep.subr.bf16.mxu0 0
  %2491 = vmatpush1.bf16.msra.mxu0 0
  %2492 = vmatprep.subr.bf16.mxu0 0
  %2493 = vmatpush1.bf16.msra.mxu0 0
  %2494 = vmatprep.mubr.bf16.mxu0 0
  %2495 = vmatmul.mubr.bf16.gmra.mrb[0].mxu0 %v2460
  %v2496 = vpop.f32.mrb[0].mxu0
  %v2497 = vadd.f32 0.0, %v2496
  %v2498 = vpop.f32.mrb[0].mxu0
  %v2499 = vpop.f32.mrb[0].mxu0
  %v2500 = vadd.f32 0.0, %v2499
  %v2501 = vpop.f32.mrb[0].mxu0
  %2502 = vdwg.mxu0
  %v2503 = vadd.f32 %v2497, %v2500
  %v2504 = vrot.slane %v2503, 4
  %v2505 = vadd.f32 %v2503, %v2504
  %v2506 = vrot.slane %v2505, 2
  %v2507 = vadd.f32 %v2505, %v2506
  %v2508 = vrot.slane %v2507, 1
  %v2509 = vadd.f32 %v2507, %v2508
  %v2510 = vmul.f32 %v2497, %v2497
  %v2511 = vmul.f32 %v2500, %v2500
  %v2512 = vadd.f32 %v2510, %v2511
  %v2513 = vrot.slane %v2512, 4
  %v2514 = vadd.f32 %v2512, %v2513
  %v2515 = vrot.slane %v2514, 2
  %v2516 = vadd.f32 %v2514, %v2515
  %v2517 = vrot.slane %v2516, 1
  %v2518 = vadd.f32 %v2516, %v2517
  %v2519 = vmul.f32 %v2509, 0.0625
  %v2520 = vmul.f32 %v2518, 0.0625
  %v2521 = vmul.f32 %v2519, %v2519
  %v2522 = vsub.f32 %v2520, %v2521
  %v2523 = vmax.f32 %v2522, 0.0
  %v2524 = vadd.f32 %v2523, 1e-05
  %v2525 = vrsqrt.pop %v2524
  %v2526 = vmul.f32 %v2365, %v2525
  %v2527 = vmul.f32 %v2519, %v2526
  %v2529 = vrot.slane %v2527, 7
  %v2531 = vsub.f32 %v2365, %v2529
  %v2532 = vlaneseq
  %v2533 = vshrl.u32 %v2532, 7
  %v2534 = vsub.s32 2, %v2533
  %v2535 = vrot.slane %v2526, %v2534
  %v2536 = vmul.f32 %v2497, %v2535
  %v2537 = vmul.f32 %v2500, %v2535
  %v2538 = vlaneseq
  %v2539 = vshrl.u32 %v2538, 7
  %v2540 = vsub.s32 3, %v2539
  %v2541 = vrot.slane %v2531, %v2540
  %v2542 = vadd.f32 %v2536, %v2541
  %v2543 = vadd.f32 %v2537, %v2541
  %v2544 = vadd.f32 %v2542, %v2321
  %v2545 = vadd.f32 %v2543, %v2322
  %v2546 = vmax.f32 %v2544, 0.0
  %v2547 = vmax.f32 %v2545, 0.0
  %s2548 = sshll.u32 %s126, 4
  %2549 = dma.done [#allocation6], %s2548
  %s2550 = sshll.u32 %s126, 4
  %2551 = dma.done %s96, %s2550
  %s2552 = sshll.u32 %s129, 4
  %2553 = dma.done %s108, %s2552
  %s2554 = scalar_lea.hbm %s1, 2304
  // Predicated region
  $region208: #{_lambda_.1} parent=0 // pred_check
    _
  $region209: #{_lambda_.1} parent=0 // pred_check_branch
    %2556 = sbr.rel target = $region211
  $region210: #{_lambda_.1} parent=0 // pred_region
    %2557 = sst [smem:[#allocation10]] [#allocation74]
    %2558 = sst [smem:[#allocation11]] [#allocation73]
  $region211: #{_lambda_.1} parent=0 // pred_fallthru
    _
  %2560 = shalt.err (0)
  %s2562 = sshll.u32 %s132, 4
  %s2563 = int_to_ptr.vmem [resolvable:$true] %s2562
  %2565 = dma.hbm_to_vmem [thread:$0]  %s2554, 256, %s2563, %s133
  %s2566 = scalar_lea.hbm %s3, 2816
  // Predicated region
  $region212: #{_lambda_.1} parent=0 // pred_check
    _
  $region213: #{_lambda_.1} parent=0 // pred_check_branch
    %2568 = sbr.rel target = $region215
  $region214: #{_lambda_.1} parent=0 // pred_region
    %2569 = sst [smem:[#allocation10]] [#allocation76]
    %2570 = sst [smem:[#allocation11]] [#allocation75]
  $region215: #{_lambda_.1} parent=0 // pred_fallthru
    _
  %2572 = shalt.err (0)
  %s2574 = sshll.u32 %s146, 4
  %s2575 = int_to_ptr.vmem [resolvable:$true] %s2574
  %2577 = dma.hbm_to_vmem [thread:$0]  %s2566, 256, %s2575, %s147
  %s2578 = scalar_lea.hbm %s4, 1408
  // Predicated region
  $region216: #{_lambda_.1} parent=0 // pred_check
    _
  $region217: #{_lambda_.1} parent=0 // pred_check_branch
    %2580 = sbr.rel target = $region219
  $region218: #{_lambda_.1} parent=0 // pred_region
    %2581 = sst [smem:[#allocation10]] [#allocation78]
    %2582 = sst [smem:[#allocation11]] [#allocation77]
  $region219: #{_lambda_.1} parent=0 // pred_fallthru
    _
  %2584 = shalt.err (0)
  %s2586 = sshll.u32 %s160, 4
  %s2587 = int_to_ptr.vmem [resolvable:$true] %s2586
  %2589 = dma.hbm_to_vmem [thread:$0]  %s2578, 128, %s2587, %s161
  %v2590 = vld [vmem:[#allocation5] sm:$0xff]
  %v2591 = vpack.c.bf16 %v2547, %v2546
  %v2592 = vld [vmem:[#allocation2] sm:$0xff]
  %v2593 = vld [vmem:[#allocation2 + $0x8] sm:$0xff]
  %v2595 = vsel %vm179, %v2591, 0
  %2597 = vmatprep.subr.bf16.mxu0 0
  %2598 = vmatpush1.bf16.msra.mxu0 %v2592
  %2599 = vmatprep.subr.bf16.mxu0 0
  %2600 = vmatpush1.bf16.msra.mxu0 %v2593
  %2601 = vmatprep.subr.bf16.mxu0 0
  %2602 = vmatpush1.bf16.msra.mxu0 0
  %2603 = vmatprep.subr.bf16.mxu0 0
  %2604 = vmatpush1.bf16.msra.mxu0 0
  %2605 = vmatprep.subr.bf16.mxu0 0
  %2606 = vmatpush1.bf16.msra.mxu0 0
  %2607 = vmatprep.subr.bf16.mxu0 0
  %2608 = vmatpush1.bf16.msra.mxu0 0
  %2609 = vmatprep.subr.bf16.mxu0 0
  %2610 = vmatpush1.bf16.msra.mxu0 0
  %2611 = vmatprep.subr.bf16.mxu0 0
  %2612 = vmatpush1.bf16.msra.mxu0 0
  %2613 = vmatprep.subr.bf16.mxu0 0
  %2614 = vmatpush1.bf16.msra.mxu0 0
  %2615 = vmatprep.subr.bf16.mxu0 0
  %2616 = vmatpush1.bf16.msra.mxu0 0
  %2617 = vmatprep.subr.bf16.mxu0 0
  %2618 = vmatpush1.bf16.msra.mxu0 0
  %2619 = vmatprep.subr.bf16.mxu0 0
  %2620 = vmatpush1.bf16.msra.mxu0 0
  %2621 = vmatprep.subr.bf16.mxu0 0
  %2622 = vmatpush1.bf16.msra.mxu0 0
  %2623 = vmatprep.subr.bf16.mxu0 0
  %2624 = vmatpush1.bf16.msra.mxu0 0
  %2625 = vmatprep.subr.bf16.mxu0 0
  %2626 = vmatpush1.bf16.msra.mxu0 0
  %2627 = vmatprep.subr.bf16.mxu0 0
  %2628 = vmatpush1.bf16.msra.mxu0 0
  %2629 = vmatprep.mubr.bf16.mxu0 0
  %2630 = vmatmul.mubr.bf16.gmra.mrb[0].mxu0 %v2595
  %v2631 = vpop.f32.mrb[0].mxu0
  %v2632 = vadd.f32 0.0, %v2631
  %v2633 = vpop.f32.mrb[0].mxu0
  %v2634 = vpop.f32.mrb[0].mxu0
  %v2635 = vadd.f32 0.0, %v2634
  %v2636 = vpop.f32.mrb[0].mxu0
  %2637 = vdwg.mxu0
  %v2638 = vadd.f32 %v2632, %v2635
  %v2639 = vrot.slane %v2638, 4
  %v2640 = vadd.f32 %v2638, %v2639
  %v2641 = vrot.slane %v2640, 2
  %v2642 = vadd.f32 %v2640, %v2641
  %v2643 = vrot.slane %v2642, 1
  %v2644 = vadd.f32 %v2642, %v2643
  %v2645 = vmul.f32 %v2632, %v2632
  %v2646 = vmul.f32 %v2635, %v2635
  %v2647 = vadd.f32 %v2645, %v2646
  %v2648 = vrot.slane %v2647, 4
  %v2649 = vadd.f32 %v2647, %v2648
  %v2650 = vrot.slane %v2649, 2
  %v2651 = vadd.f32 %v2649, %v2650
  %v2652 = vrot.slane %v2651, 1
  %v2653 = vadd.f32 %v2651, %v2652
  %v2654 = vmul.f32 %v2644, 0.0625
  %v2655 = vmul.f32 %v2653, 0.0625
  %v2656 = vmul.f32 %v2654, %v2654
  %v2657 = vsub.f32 %v2655, %v2656
  %v2658 = vmax.f32 %v2657, 0.0
  %v2659 = vadd.f32 %v2658, 1e-05
  %v2660 = vrsqrt.pop %v2659
  %v2661 = vmul.f32 %v2590, %v2660
  %v2662 = vmul.f32 %v2654, %v2661
  %v2664 = vrot.slane %v2662, 7
  %v2666 = vsub.f32 %v2590, %v2664
  %v2667 = vlaneseq
  %v2668 = vshrl.u32 %v2667, 7
  %v2669 = vsub.s32 0, %v2668
  %v2670 = vrot.slane %v2661, %v2669
  %v2671 = vmul.f32 %v2632, %v2670
  %v2672 = vmul.f32 %v2635, %v2670
  %v2673 = vlaneseq
  %v2674 = vshrl.u32 %v2673, 7
  %v2675 = vsub.s32 1, %v2674
  %v2676 = vrot.slane %v2666, %v2675
  %v2677 = vadd.f32 %v2671, %v2676
  %v2678 = vadd.f32 %v2672, %v2676
  %v2679 = vmax.f32 %v2677, 0.0
  %v2680 = vmax.f32 %v2678, 0.0
  %v2681 = vpack.c.bf16 %v2680, %v2679
  %v2682 = vld [vmem:[#allocation4] sm:$0xff]
  %v2683 = vld [vmem:[#allocation4 + $0x8] sm:$0xff]
  %v2685 = vsel %vm179, %v2681, 0
  %2687 = vmatprep.subr.bf16.mxu0 0
  %2688 = vmatpush1.bf16.msra.mxu0 %v2682
  %2689 = vmatprep.subr.bf16.mxu0 0
  %2690 = vmatpush1.bf16.msra.mxu0 %v2683
  %2691 = vmatprep.subr.bf16.mxu0 0
  %2692 = vmatpush1.bf16.msra.mxu0 0
  %2693 = vmatprep.subr.bf16.mxu0 0
  %2694 = vmatpush1.bf16.msra.mxu0 0
  %2695 = vmatprep.subr.bf16.mxu0 0
  %2696 = vmatpush1.bf16.msra.mxu0 0
  %2697 = vmatprep.subr.bf16.mxu0 0
  %2698 = vmatpush1.bf16.msra.mxu0 0
  %2699 = vmatprep.subr.bf16.mxu0 0
  %2700 = vmatpush1.bf16.msra.mxu0 0
  %2701 = vmatprep.subr.bf16.mxu0 0
  %2702 = vmatpush1.bf16.msra.mxu0 0
  %2703 = vmatprep.subr.bf16.mxu0 0
  %2704 = vmatpush1.bf16.msra.mxu0 0
  %2705 = vmatprep.subr.bf16.mxu0 0
  %2706 = vmatpush1.bf16.msra.mxu0 0
  %2707 = vmatprep.subr.bf16.mxu0 0
  %2708 = vmatpush1.bf16.msra.mxu0 0
  %2709 = vmatprep.subr.bf16.mxu0 0
  %2710 = vmatpush1.bf16.msra.mxu0 0
  %2711 = vmatprep.subr.bf16.mxu0 0
  %2712 = vmatpush1.bf16.msra.mxu0 0
  %2713 = vmatprep.subr.bf16.mxu0 0
  %2714 = vmatpush1.bf16.msra.mxu0 0
  %2715 = vmatprep.subr.bf16.mxu0 0
  %2716 = vmatpush1.bf16.msra.mxu0 0
  %2717 = vmatprep.subr.bf16.mxu0 0
  %2718 = vmatpush1.bf16.msra.mxu0 0
  %2719 = vmatprep.mubr.bf16.mxu0 0
  %2720 = vmatmul.mubr.bf16.gmra.mrb[0].mxu0 %v2685
  %v2721 = vpop.f32.mrb[0].mxu0
  %v2722 = vadd.f32 0.0, %v2721
  %v2723 = vpop.f32.mrb[0].mxu0
  %v2724 = vpop.f32.mrb[0].mxu0
  %v2725 = vadd.f32 0.0, %v2724
  %v2726 = vpop.f32.mrb[0].mxu0
  %2727 = vdwg.mxu0
  %v2728 = vadd.f32 %v2722, %v2725
  %v2729 = vrot.slane %v2728, 4
  %v2730 = vadd.f32 %v2728, %v2729
  %v2731 = vrot.slane %v2730, 2
  %v2732 = vadd.f32 %v2730, %v2731
  %v2733 = vrot.slane %v2732, 1
  %v2734 = vadd.f32 %v2732, %v2733
  %v2735 = vmul.f32 %v2722, %v2722
  %v2736 = vmul.f32 %v2725, %v2725
  %v2737 = vadd.f32 %v2735, %v2736
  %v2738 = vrot.slane %v2737, 4
  %v2739 = vadd.f32 %v2737, %v2738
  %v2740 = vrot.slane %v2739, 2
  %v2741 = vadd.f32 %v2739, %v2740
  %v2742 = vrot.slane %v2741, 1
  %v2743 = vadd.f32 %v2741, %v2742
  %v2744 = vmul.f32 %v2734, 0.0625
  %v2745 = vmul.f32 %v2743, 0.0625
  %v2746 = vmul.f32 %v2744, %v2744
  %v2747 = vsub.f32 %v2745, %v2746
  %v2748 = vmax.f32 %v2747, 0.0
  %v2749 = vadd.f32 %v2748, 1e-05
  %v2750 = vrsqrt.pop %v2749
  %v2751 = vmul.f32 %v2590, %v2750
  %v2752 = vmul.f32 %v2744, %v2751
  %v2754 = vrot.slane %v2752, 7
  %v2756 = vsub.f32 %v2590, %v2754
  %v2757 = vlaneseq
  %v2758 = vshrl.u32 %v2757, 7
  %v2759 = vsub.s32 2, %v2758
  %v2760 = vrot.slane %v2751, %v2759
  %v2761 = vmul.f32 %v2722, %v2760
  %v2762 = vmul.f32 %v2725, %v2760
  %v2763 = vlaneseq
  %v2764 = vshrl.u32 %v2763, 7
  %v2765 = vsub.s32 3, %v2764
  %v2766 = vrot.slane %v2756, %v2765
  %v2767 = vadd.f32 %v2761, %v2766
  %v2768 = vadd.f32 %v2762, %v2766
  %v2769 = vadd.f32 %v2767, %v2546
  %v2770 = vadd.f32 %v2768, %v2547
  %v2771 = vmax.f32 %v2769, 0.0
  %v2772 = vmax.f32 %v2770, 0.0
  %s2773 = sshll.u32 %s126, 4
  %2774 = dma.done %s133, %s2773
  %s2775 = sshll.u32 %s126, 4
  %2776 = dma.done %s147, %s2775
  %s2777 = sshll.u32 %s129, 4
  %2778 = dma.done %s161, %s2777
  %s2779 = scalar_lea.hbm %s1, 2560
  // Predicated region
  $region220: #{_lambda_.1} parent=0 // pred_check
    _
  $region221: #{_lambda_.1} parent=0 // pred_check_branch
    %2781 = sbr.rel target = $region223
  $region222: #{_lambda_.1} parent=0 // pred_region
    %2782 = sst [smem:[#allocation10]] [#allocation80]
    %2783 = sst [smem:[#allocation11]] [#allocation79]
  $region223: #{_lambda_.1} parent=0 // pred_fallthru
    _
  %2785 = shalt.err (0)
  %s2787 = sshll.u32 [#allocation2], 4
  %s2788 = int_to_ptr.vmem [resolvable:$true] %s2787
  %2790 = dma.hbm_to_vmem [thread:$0]  %s2779, 256, %s2788, [#allocation6]
  %s2791 = scalar_lea.hbm %s3, 3072
  // Predicated region
  $region224: #{_lambda_.1} parent=0 // pred_check
    _
  $region225: #{_lambda_.1} parent=0 // pred_check_branch
    %2793 = sbr.rel target = $region227
  $region226: #{_lambda_.1} parent=0 // pred_region
    %2794 = sst [smem:[#allocation10]] [#allocation82]
    %2795 = sst [smem:[#allocation11]] [#allocation81]
  $region227: #{_lambda_.1} parent=0 // pred_fallthru
    _
  %2797 = shalt.err (0)
  %s2799 = sshll.u32 [#allocation4], 4
  %s2800 = int_to_ptr.vmem [resolvable:$true] %s2799
  %2802 = dma.hbm_to_vmem [thread:$0]  %s2791, 256, %s2800, %s96
  %s2803 = scalar_lea.hbm %s4, 1536
  // Predicated region
  $region228: #{_lambda_.1} parent=0 // pred_check
    _
  $region229: #{_lambda_.1} parent=0 // pred_check_branch
    %2805 = sbr.rel target = $region231
  $region230: #{_lambda_.1} parent=0 // pred_region
    %2806 = sst [smem:[#allocation10]] [#allocation84]
    %2807 = sst [smem:[#allocation11]] [#allocation83]
  $region231: #{_lambda_.1} parent=0 // pred_fallthru
    _
  %2809 = shalt.err (0)
  %s2811 = sshll.u32 [#allocation5], 4
  %s2812 = int_to_ptr.vmem [resolvable:$true] %s2811
  %2814 = dma.hbm_to_vmem [thread:$0]  %s2803, 128, %s2812, %s108
  %v2815 = vld [vmem:[%s160] sm:$0xff]
  %v2816 = vpack.c.bf16 %v2772, %v2771
  %v2817 = vld [vmem:[%s132] sm:$0xff]
  %v2818 = vld [vmem:[%s132 + $0x8] sm:$0xff]
  %v2820 = vsel %vm179, %v2816, 0
  %2822 = vmatprep.subr.bf16.mxu0 0
  %2823 = vmatpush1.bf16.msra.mxu0 %v2817
  %2824 = vmatprep.subr.bf16.mxu0 0
  %2825 = vmatpush1.bf16.msra.mxu0 %v2818
  %2826 = vmatprep.subr.bf16.mxu0 0
  %2827 = vmatpush1.bf16.msra.mxu0 0
  %2828 = vmatprep.subr.bf16.mxu0 0
  %2829 = vmatpush1.bf16.msra.mxu0 0
  %2830 = vmatprep.subr.bf16.mxu0 0
  %2831 = vmatpush1.bf16.msra.mxu0 0
  %2832 = vmatprep.subr.bf16.mxu0 0
  %2833 = vmatpush1.bf16.msra.mxu0 0
  %2834 = vmatprep.subr.bf16.mxu0 0
  %2835 = vmatpush1.bf16.msra.mxu0 0
  %2836 = vmatprep.subr.bf16.mxu0 0
  %2837 = vmatpush1.bf16.msra.mxu0 0
  %2838 = vmatprep.subr.bf16.mxu0 0
  %2839 = vmatpush1.bf16.msra.mxu0 0
  %2840 = vmatprep.subr.bf16.mxu0 0
  %2841 = vmatpush1.bf16.msra.mxu0 0
  %2842 = vmatprep.subr.bf16.mxu0 0
  %2843 = vmatpush1.bf16.msra.mxu0 0
  %2844 = vmatprep.subr.bf16.mxu0 0
  %2845 = vmatpush1.bf16.msra.mxu0 0
  %2846 = vmatprep.subr.bf16.mxu0 0
  %2847 = vmatpush1.bf16.msra.mxu0 0
  %2848 = vmatprep.subr.bf16.mxu0 0
  %2849 = vmatpush1.bf16.msra.mxu0 0
  %2850 = vmatprep.subr.bf16.mxu0 0
  %2851 = vmatpush1.bf16.msra.mxu0 0
  %2852 = vmatprep.subr.bf16.mxu0 0
  %2853 = vmatpush1.bf16.msra.mxu0 0
  %2854 = vmatprep.mubr.bf16.mxu0 0
  %2855 = vmatmul.mubr.bf16.gmra.mrb[0].mxu0 %v2820
  %v2856 = vpop.f32.mrb[0].mxu0
  %v2857 = vadd.f32 0.0, %v2856
  %v2858 = vpop.f32.mrb[0].mxu0
  %v2859 = vpop.f32.mrb[0].mxu0
  %v2860 = vadd.f32 0.0, %v2859
  %v2861 = vpop.f32.mrb[0].mxu0
  %2862 = vdwg.mxu0
  %v2863 = vadd.f32 %v2857, %v2860
  %v2864 = vrot.slane %v2863, 4
  %v2865 = vadd.f32 %v2863, %v2864
  %v2866 = vrot.slane %v2865, 2
  %v2867 = vadd.f32 %v2865, %v2866
  %v2868 = vrot.slane %v2867, 1
  %v2869 = vadd.f32 %v2867, %v2868
  %v2870 = vmul.f32 %v2857, %v2857
  %v2871 = vmul.f32 %v2860, %v2860
  %v2872 = vadd.f32 %v2870, %v2871
  %v2873 = vrot.slane %v2872, 4
  %v2874 = vadd.f32 %v2872, %v2873
  %v2875 = vrot.slane %v2874, 2
  %v2876 = vadd.f32 %v2874, %v2875
  %v2877 = vrot.slane %v2876, 1
  %v2878 = vadd.f32 %v2876, %v2877
  %v2879 = vmul.f32 %v2869, 0.0625
  %v2880 = vmul.f32 %v2878, 0.0625
  %v2881 = vmul.f32 %v2879, %v2879
  %v2882 = vsub.f32 %v2880, %v2881
  %v2883 = vmax.f32 %v2882, 0.0
  %v2884 = vadd.f32 %v2883, 1e-05
  %v2885 = vrsqrt.pop %v2884
  %v2886 = vmul.f32 %v2815, %v2885
  %v2887 = vmul.f32 %v2879, %v2886
  %v2889 = vrot.slane %v2887, 7
  %v2891 = vsub.f32 %v2815, %v2889
  %v2892 = vlaneseq
  %v2893 = vshrl.u32 %v2892, 7
  %v2894 = vsub.s32 0, %v2893
  %v2895 = vrot.slane %v2886, %v2894
  %v2896 = vmul.f32 %v2857, %v2895
  %v2897 = vmul.f32 %v2860, %v2895
  %v2898 = vlaneseq
  %v2899 = vshrl.u32 %v2898, 7
  %v2900 = vsub.s32 1, %v2899
  %v2901 = vrot.slane %v2891, %v2900
  %v2902 = vadd.f32 %v2896, %v2901
  %v2903 = vadd.f32 %v2897, %v2901
  %v2904 = vmax.f32 %v2902, 0.0
  %v2905 = vmax.f32 %v2903, 0.0
  %v2906 = vpack.c.bf16 %v2905, %v2904
  %v2907 = vld [vmem:[%s146] sm:$0xff]
  %v2908 = vld [vmem:[%s146 + $0x8] sm:$0xff]
  %v2910 = vsel %vm179, %v2906, 0
  %2912 = vmatprep.subr.bf16.mxu0 0
  %2913 = vmatpush1.bf16.msra.mxu0 %v2907
  %2914 = vmatprep.subr.bf16.mxu0 0
  %2915 = vmatpush1.bf16.msra.mxu0 %v2908
  %2916 = vmatprep.subr.bf16.mxu0 0
  %2917 = vmatpush1.bf16.msra.mxu0 0
  %2918 = vmatprep.subr.bf16.mxu0 0
  %2919 = vmatpush1.bf16.msra.mxu0 0
  %2920 = vmatprep.subr.bf16.mxu0 0
  %2921 = vmatpush1.bf16.msra.mxu0 0
  %2922 = vmatprep.subr.bf16.mxu0 0
  %2923 = vmatpush1.bf16.msra.mxu0 0
  %2924 = vmatprep.subr.bf16.mxu0 0
  %2925 = vmatpush1.bf16.msra.mxu0 0
  %2926 = vmatprep.subr.bf16.mxu0 0
  %2927 = vmatpush1.bf16.msra.mxu0 0
  %2928 = vmatprep.subr.bf16.mxu0 0
  %2929 = vmatpush1.bf16.msra.mxu0 0
  %2930 = vmatprep.subr.bf16.mxu0 0
  %2931 = vmatpush1.bf16.msra.mxu0 0
  %2932 = vmatprep.subr.bf16.mxu0 0
  %2933 = vmatpush1.bf16.msra.mxu0 0
  %2934 = vmatprep.subr.bf16.mxu0 0
  %2935 = vmatpush1.bf16.msra.mxu0 0
  %2936 = vmatprep.subr.bf16.mxu0 0
  %2937 = vmatpush1.bf16.msra.mxu0 0
  %2938 = vmatprep.subr.bf16.mxu0 0
  %2939 = vmatpush1.bf16.msra.mxu0 0
  %2940 = vmatprep.subr.bf16.mxu0 0
  %2941 = vmatpush1.bf16.msra.mxu0 0
  %2942 = vmatprep.subr.bf16.mxu0 0
  %2943 = vmatpush1.bf16.msra.mxu0 0
  %2944 = vmatprep.mubr.bf16.mxu0 0
  %2945 = vmatmul.mubr.bf16.gmra.mrb[0].mxu0 %v2910
  %v2946 = vpop.f32.mrb[0].mxu0
  %v2947 = vadd.f32 0.0, %v2946
  %v2948 = vpop.f32.mrb[0].mxu0
  %v2949 = vpop.f32.mrb[0].mxu0
  %v2950 = vadd.f32 0.0, %v2949
  %v2951 = vpop.f32.mrb[0].mxu0
  %2952 = vdwg.mxu0
  %v2953 = vadd.f32 %v2947, %v2950
  %v2954 = vrot.slane %v2953, 4
  %v2955 = vadd.f32 %v2953, %v2954
  %v2956 = vrot.slane %v2955, 2
  %v2957 = vadd.f32 %v2955, %v2956
  %v2958 = vrot.slane %v2957, 1
  %v2959 = vadd.f32 %v2957, %v2958
  %v2960 = vmul.f32 %v2947, %v2947
  %v2961 = vmul.f32 %v2950, %v2950
  %v2962 = vadd.f32 %v2960, %v2961
  %v2963 = vrot.slane %v2962, 4
  %v2964 = vadd.f32 %v2962, %v2963
  %v2965 = vrot.slane %v2964, 2
  %v2966 = vadd.f32 %v2964, %v2965
  %v2967 = vrot.slane %v2966, 1
  %v2968 = vadd.f32 %v2966, %v2967
  %v2969 = vmul.f32 %v2959, 0.0625
  %v2970 = vmul.f32 %v2968, 0.0625
  %v2971 = vmul.f32 %v2969, %v2969
  %v2972 = vsub.f32 %v2970, %v2971
  %v2973 = vmax.f32 %v2972, 0.0
  %v2974 = vadd.f32 %v2973, 1e-05
  %v2975 = vrsqrt.pop %v2974
  %v2976 = vmul.f32 %v2815, %v2975
  %v2977 = vmul.f32 %v2969, %v2976
  %v2979 = vrot.slane %v2977, 7
  %v2981 = vsub.f32 %v2815, %v2979
  %v2982 = vlaneseq
  %v2983 = vshrl.u32 %v2982, 7
  %v2984 = vsub.s32 2, %v2983
  %v2985 = vrot.slane %v2976, %v2984
  %v2986 = vmul.f32 %v2947, %v2985
  %v2987 = vmul.f32 %v2950, %v2985
  %v2988 = vlaneseq
  %v2989 = vshrl.u32 %v2988, 7
  %v2990 = vsub.s32 3, %v2989
  %v2991 = vrot.slane %v2981, %v2990
  %v2992 = vadd.f32 %v2986, %v2991
  %v2993 = vadd.f32 %v2987, %v2991
  %v2994 = vadd.f32 %v2992, %v2771
  %v2995 = vadd.f32 %v2993, %v2772
  %v2996 = vmax.f32 %v2994, 0.0
  %v2997 = vmax.f32 %v2995, 0.0
  %s2998 = sshll.u32 %s126, 4
  %2999 = dma.done [#allocation6], %s2998
  %s3000 = sshll.u32 %s126, 4
  %3001 = dma.done %s96, %s3000
  %s3002 = sshll.u32 %s129, 4
  %3003 = dma.done %s108, %s3002
  %s3004 = scalar_lea.hbm %s1, 2816
  // Predicated region
  $region232: #{_lambda_.1} parent=0 // pred_check
    _
  $region233: #{_lambda_.1} parent=0 // pred_check_branch
    %3006 = sbr.rel target = $region235
  $region234: #{_lambda_.1} parent=0 // pred_region
    %3007 = sst [smem:[#allocation10]] [#allocation86]
    %3008 = sst [smem:[#allocation11]] [#allocation85]
  $region235: #{_lambda_.1} parent=0 // pred_fallthru
    _
  %3010 = shalt.err (0)
  %s3012 = sshll.u32 %s132, 4
  %s3013 = int_to_ptr.vmem [resolvable:$true] %s3012
  %3015 = dma.hbm_to_vmem [thread:$0]  %s3004, 256, %s3013, %s133
  %s3016 = scalar_lea.hbm %s3, 3328
  // Predicated region
  $region236: #{_lambda_.1} parent=0 // pred_check
    _
  $region237: #{_lambda_.1} parent=0 // pred_check_branch
    %3018 = sbr.rel target = $region239
  $region238: #{_lambda_.1} parent=0 // pred_region
    %3019 = sst [smem:[#allocation10]] [#allocation88]
    %3020 = sst [smem:[#allocation11]] [#allocation87]
  $region239: #{_lambda_.1} parent=0 // pred_fallthru
    _
  %3022 = shalt.err (0)
  %s3024 = sshll.u32 %s146, 4
  %s3025 = int_to_ptr.vmem [resolvable:$true] %s3024
  %3027 = dma.hbm_to_vmem [thread:$0]  %s3016, 256, %s3025, %s147
  %s3028 = scalar_lea.hbm %s4, 1664
  // Predicated region
  $region240: #{_lambda_.1} parent=0 // pred_check
    _
  $region241: #{_lambda_.1} parent=0 // pred_check_branch
    %3030 = sbr.rel target = $region243
  $region242: #{_lambda_.1} parent=0 // pred_region
    %3031 = sst [smem:[#allocation10]] [#allocation90]
    %3032 = sst [smem:[#allocation11]] [#allocation89]
  $region243: #{_lambda_.1} parent=0 // pred_fallthru
    _
  %3034 = shalt.err (0)
  %s3036 = sshll.u32 %s160, 4
  %s3037 = int_to_ptr.vmem [resolvable:$true] %s3036
  %3039 = dma.hbm_to_vmem [thread:$0]  %s3028, 128, %s3037, %s161
  %v3040 = vld [vmem:[#allocation5] sm:$0xff]
  %v3041 = vpack.c.bf16 %v2997, %v2996
  %v3042 = vld [vmem:[#allocation2] sm:$0xff]
  %v3043 = vld [vmem:[#allocation2 + $0x8] sm:$0xff]
  %v3045 = vsel %vm179, %v3041, 0
  %3047 = vmatprep.subr.bf16.mxu0 0
  %3048 = vmatpush1.bf16.msra.mxu0 %v3042
  %3049 = vmatprep.subr.bf16.mxu0 0
  %3050 = vmatpush1.bf16.msra.mxu0 %v3043
  %3051 = vmatprep.subr.bf16.mxu0 0
  %3052 = vmatpush1.bf16.msra.mxu0 0
  %3053 = vmatprep.subr.bf16.mxu0 0
  %3054 = vmatpush1.bf16.msra.mxu0 0
  %3055 = vmatprep.subr.bf16.mxu0 0
  %3056 = vmatpush1.bf16.msra.mxu0 0
  %3057 = vmatprep.subr.bf16.mxu0 0
  %3058 = vmatpush1.bf16.msra.mxu0 0
  %3059 = vmatprep.subr.bf16.mxu0 0
  %3060 = vmatpush1.bf16.msra.mxu0 0
  %3061 = vmatprep.subr.bf16.mxu0 0
  %3062 = vmatpush1.bf16.msra.mxu0 0
  %3063 = vmatprep.subr.bf16.mxu0 0
  %3064 = vmatpush1.bf16.msra.mxu0 0
  %3065 = vmatprep.subr.bf16.mxu0 0
  %3066 = vmatpush1.bf16.msra.mxu0 0
  %3067 = vmatprep.subr.bf16.mxu0 0
  %3068 = vmatpush1.bf16.msra.mxu0 0
  %3069 = vmatprep.subr.bf16.mxu0 0
  %3070 = vmatpush1.bf16.msra.mxu0 0
  %3071 = vmatprep.subr.bf16.mxu0 0
  %3072 = vmatpush1.bf16.msra.mxu0 0
  %3073 = vmatprep.subr.bf16.mxu0 0
  %3074 = vmatpush1.bf16.msra.mxu0 0
  %3075 = vmatprep.subr.bf16.mxu0 0
  %3076 = vmatpush1.bf16.msra.mxu0 0
  %3077 = vmatprep.subr.bf16.mxu0 0
  %3078 = vmatpush1.bf16.msra.mxu0 0
  %3079 = vmatprep.mubr.bf16.mxu0 0
  %3080 = vmatmul.mubr.bf16.gmra.mrb[0].mxu0 %v3045
  %v3081 = vpop.f32.mrb[0].mxu0
  %v3082 = vadd.f32 0.0, %v3081
  %v3083 = vpop.f32.mrb[0].mxu0
  %v3084 = vpop.f32.mrb[0].mxu0
  %v3085 = vadd.f32 0.0, %v3084
  %v3086 = vpop.f32.mrb[0].mxu0
  %3087 = vdwg.mxu0
  %v3088 = vadd.f32 %v3082, %v3085
  %v3089 = vrot.slane %v3088, 4
  %v3090 = vadd.f32 %v3088, %v3089
  %v3091 = vrot.slane %v3090, 2
  %v3092 = vadd.f32 %v3090, %v3091
  %v3093 = vrot.slane %v3092, 1
  %v3094 = vadd.f32 %v3092, %v3093
  %v3095 = vmul.f32 %v3082, %v3082
  %v3096 = vmul.f32 %v3085, %v3085
  %v3097 = vadd.f32 %v3095, %v3096
  %v3098 = vrot.slane %v3097, 4
  %v3099 = vadd.f32 %v3097, %v3098
  %v3100 = vrot.slane %v3099, 2
  %v3101 = vadd.f32 %v3099, %v3100
  %v3102 = vrot.slane %v3101, 1
  %v3103 = vadd.f32 %v3101, %v3102
  %v3104 = vmul.f32 %v3094, 0.0625
  %v3105 = vmul.f32 %v3103, 0.0625
  %v3106 = vmul.f32 %v3104, %v3104
  %v3107 = vsub.f32 %v3105, %v3106
  %v3108 = vmax.f32 %v3107, 0.0
  %v3109 = vadd.f32 %v3108, 1e-05
  %v3110 = vrsqrt.pop %v3109
  %v3111 = vmul.f32 %v3040, %v3110
  %v3112 = vmul.f32 %v3104, %v3111
  %v3114 = vrot.slane %v3112, 7
  %v3116 = vsub.f32 %v3040, %v3114
  %v3117 = vlaneseq
  %v3118 = vshrl.u32 %v3117, 7
  %v3119 = vsub.s32 0, %v3118
  %v3120 = vrot.slane %v3111, %v3119
  %v3121 = vmul.f32 %v3082, %v3120
  %v3122 = vmul.f32 %v3085, %v3120
  %v3123 = vlaneseq
  %v3124 = vshrl.u32 %v3123, 7
  %v3125 = vsub.s32 1, %v3124
  %v3126 = vrot.slane %v3116, %v3125
  %v3127 = vadd.f32 %v3121, %v3126
  %v3128 = vadd.f32 %v3122, %v3126
  %v3129 = vmax.f32 %v3127, 0.0
  %v3130 = vmax.f32 %v3128, 0.0
  %v3131 = vpack.c.bf16 %v3130, %v3129
  %v3132 = vld [vmem:[#allocation4] sm:$0xff]
  %v3133 = vld [vmem:[#allocation4 + $0x8] sm:$0xff]
  %v3135 = vsel %vm179, %v3131, 0
  %3137 = vmatprep.subr.bf16.mxu0 0
  %3138 = vmatpush1.bf16.msra.mxu0 %v3132
  %3139 = vmatprep.subr.bf16.mxu0 0
  %3140 = vmatpush1.bf16.msra.mxu0 %v3133
  %3141 = vmatprep.subr.bf16.mxu0 0
  %3142 = vmatpush1.bf16.msra.mxu0 0
  %3143 = vmatprep.subr.bf16.mxu0 0
  %3144 = vmatpush1.bf16.msra.mxu0 0
  %3145 = vmatprep.subr.bf16.mxu0 0
  %3146 = vmatpush1.bf16.msra.mxu0 0
  %3147 = vmatprep.subr.bf16.mxu0 0
  %3148 = vmatpush1.bf16.msra.mxu0 0
  %3149 = vmatprep.subr.bf16.mxu0 0
  %3150 = vmatpush1.bf16.msra.mxu0 0
  %3151 = vmatprep.subr.bf16.mxu0 0
  %3152 = vmatpush1.bf16.msra.mxu0 0
  %3153 = vmatprep.subr.bf16.mxu0 0
  %3154 = vmatpush1.bf16.msra.mxu0 0
  %3155 = vmatprep.subr.bf16.mxu0 0
  %3156 = vmatpush1.bf16.msra.mxu0 0
  %3157 = vmatprep.subr.bf16.mxu0 0
  %3158 = vmatpush1.bf16.msra.mxu0 0
  %3159 = vmatprep.subr.bf16.mxu0 0
  %3160 = vmatpush1.bf16.msra.mxu0 0
  %3161 = vmatprep.subr.bf16.mxu0 0
  %3162 = vmatpush1.bf16.msra.mxu0 0
  %3163 = vmatprep.subr.bf16.mxu0 0
  %3164 = vmatpush1.bf16.msra.mxu0 0
  %3165 = vmatprep.subr.bf16.mxu0 0
  %3166 = vmatpush1.bf16.msra.mxu0 0
  %3167 = vmatprep.subr.bf16.mxu0 0
  %3168 = vmatpush1.bf16.msra.mxu0 0
  %3169 = vmatprep.mubr.bf16.mxu0 0
  %3170 = vmatmul.mubr.bf16.gmra.mrb[0].mxu0 %v3135
  %v3171 = vpop.f32.mrb[0].mxu0
  %v3172 = vadd.f32 0.0, %v3171
  %v3173 = vpop.f32.mrb[0].mxu0
  %v3174 = vpop.f32.mrb[0].mxu0
  %v3175 = vadd.f32 0.0, %v3174
  %v3176 = vpop.f32.mrb[0].mxu0
  %3177 = vdwg.mxu0
  %v3178 = vadd.f32 %v3172, %v3175
  %v3179 = vrot.slane %v3178, 4
  %v3180 = vadd.f32 %v3178, %v3179
  %v3181 = vrot.slane %v3180, 2
  %v3182 = vadd.f32 %v3180, %v3181
  %v3183 = vrot.slane %v3182, 1
  %v3184 = vadd.f32 %v3182, %v3183
  %v3185 = vmul.f32 %v3172, %v3172
  %v3186 = vmul.f32 %v3175, %v3175
  %v3187 = vadd.f32 %v3185, %v3186
  %v3188 = vrot.slane %v3187, 4
  %v3189 = vadd.f32 %v3187, %v3188
  %v3190 = vrot.slane %v3189, 2
  %v3191 = vadd.f32 %v3189, %v3190
  %v3192 = vrot.slane %v3191, 1
  %v3193 = vadd.f32 %v3191, %v3192
  %v3194 = vmul.f32 %v3184, 0.0625
  %v3195 = vmul.f32 %v3193, 0.0625
  %v3196 = vmul.f32 %v3194, %v3194
  %v3197 = vsub.f32 %v3195, %v3196
  %v3198 = vmax.f32 %v3197, 0.0
  %v3199 = vadd.f32 %v3198, 1e-05
  %v3200 = vrsqrt.pop %v3199
  %v3201 = vmul.f32 %v3040, %v3200
  %v3202 = vmul.f32 %v3194, %v3201
  %v3204 = vrot.slane %v3202, 7
  %v3206 = vsub.f32 %v3040, %v3204
  %v3207 = vlaneseq
  %v3208 = vshrl.u32 %v3207, 7
  %v3209 = vsub.s32 2, %v3208
  %v3210 = vrot.slane %v3201, %v3209
  %v3211 = vmul.f32 %v3172, %v3210
  %v3212 = vmul.f32 %v3175, %v3210
  %v3213 = vlaneseq
  %v3214 = vshrl.u32 %v3213, 7
  %v3215 = vsub.s32 3, %v3214
  %v3216 = vrot.slane %v3206, %v3215
  %v3217 = vadd.f32 %v3211, %v3216
  %v3218 = vadd.f32 %v3212, %v3216
  %v3219 = vadd.f32 %v3217, %v2996
  %v3220 = vadd.f32 %v3218, %v2997
  %v3221 = vmax.f32 %v3219, 0.0
  %v3222 = vmax.f32 %v3220, 0.0
  %s3223 = sshll.u32 %s126, 4
  %3224 = dma.done %s133, %s3223
  %s3225 = sshll.u32 %s126, 4
  %3226 = dma.done %s147, %s3225
  %s3227 = sshll.u32 %s129, 4
  %3228 = dma.done %s161, %s3227
  %s3229 = scalar_lea.hbm %s1, 3072
  // Predicated region
  $region244: #{_lambda_.1} parent=0 // pred_check
    _
  $region245: #{_lambda_.1} parent=0 // pred_check_branch
    %3231 = sbr.rel target = $region247
  $region246: #{_lambda_.1} parent=0 // pred_region
    %3232 = sst [smem:[#allocation10]] [#allocation92]
    %3233 = sst [smem:[#allocation11]] [#allocation91]
  $region247: #{_lambda_.1} parent=0 // pred_fallthru
    _
  %3235 = shalt.err (0)
  %s3237 = sshll.u32 [#allocation2], 4
  %s3238 = int_to_ptr.vmem [resolvable:$true] %s3237
  %3240 = dma.hbm_to_vmem [thread:$0]  %s3229, 256, %s3238, [#allocation6]
  %s3241 = scalar_lea.hbm %s3, 3584
  // Predicated region
  $region248: #{_lambda_.1} parent=0 // pred_check
    _
  $region249: #{_lambda_.1} parent=0 // pred_check_branch
    %3243 = sbr.rel target = $region251
  $region250: #{_lambda_.1} parent=0 // pred_region
    %3244 = sst [smem:[#allocation10]] [#allocation94]
    %3245 = sst [smem:[#allocation11]] [#allocation93]
  $region251: #{_lambda_.1} parent=0 // pred_fallthru
    _
  %3247 = shalt.err (0)
  %s3249 = sshll.u32 [#allocation4], 4
  %s3250 = int_to_ptr.vmem [resolvable:$true] %s3249
  %3252 = dma.hbm_to_vmem [thread:$0]  %s3241, 256, %s3250, %s96
  %s3253 = scalar_lea.hbm %s4, 1792
  // Predicated region
  $region252: #{_lambda_.1} parent=0 // pred_check
    _
  $region253: #{_lambda_.1} parent=0 // pred_check_branch
    %3255 = sbr.rel target = $region255
  $region254: #{_lambda_.1} parent=0 // pred_region
    %3256 = sst [smem:[#allocation10]] [#allocation96]
    %3257 = sst [smem:[#allocation11]] [#allocation95]
  $region255: #{_lambda_.1} parent=0 // pred_fallthru
    _
  %3259 = shalt.err (0)
  %s3261 = sshll.u32 [#allocation5], 4
  %s3262 = int_to_ptr.vmem [resolvable:$true] %s3261
  %3264 = dma.hbm_to_vmem [thread:$0]  %s3253, 128, %s3262, %s108
  %v3265 = vld [vmem:[%s160] sm:$0xff]
  %v3266 = vpack.c.bf16 %v3222, %v3221
  %v3267 = vld [vmem:[%s132] sm:$0xff]
  %v3268 = vld [vmem:[%s132 + $0x8] sm:$0xff]
  %v3270 = vsel %vm179, %v3266, 0
  %3272 = vmatprep.subr.bf16.mxu0 0
  %3273 = vmatpush1.bf16.msra.mxu0 %v3267
  %3274 = vmatprep.subr.bf16.mxu0 0
  %3275 = vmatpush1.bf16.msra.mxu0 %v3268
  %3276 = vmatprep.subr.bf16.mxu0 0
  %3277 = vmatpush1.bf16.msra.mxu0 0
  %3278 = vmatprep.subr.bf16.mxu0 0
  %3279 = vmatpush1.bf16.msra.mxu0 0
  %3280 = vmatprep.subr.bf16.mxu0 0
  %3281 = vmatpush1.bf16.msra.mxu0 0
  %3282 = vmatprep.subr.bf16.mxu0 0
  %3283 = vmatpush1.bf16.msra.mxu0 0
  %3284 = vmatprep.subr.bf16.mxu0 0
  %3285 = vmatpush1.bf16.msra.mxu0 0
  %3286 = vmatprep.subr.bf16.mxu0 0
  %3287 = vmatpush1.bf16.msra.mxu0 0
  %3288 = vmatprep.subr.bf16.mxu0 0
  %3289 = vmatpush1.bf16.msra.mxu0 0
  %3290 = vmatprep.subr.bf16.mxu0 0
  %3291 = vmatpush1.bf16.msra.mxu0 0
  %3292 = vmatprep.subr.bf16.mxu0 0
  %3293 = vmatpush1.bf16.msra.mxu0 0
  %3294 = vmatprep.subr.bf16.mxu0 0
  %3295 = vmatpush1.bf16.msra.mxu0 0
  %3296 = vmatprep.subr.bf16.mxu0 0
  %3297 = vmatpush1.bf16.msra.mxu0 0
  %3298 = vmatprep.subr.bf16.mxu0 0
  %3299 = vmatpush1.bf16.msra.mxu0 0
  %3300 = vmatprep.subr.bf16.mxu0 0
  %3301 = vmatpush1.bf16.msra.mxu0 0
  %3302 = vmatprep.subr.bf16.mxu0 0
  %3303 = vmatpush1.bf16.msra.mxu0 0
  %3304 = vmatprep.mubr.bf16.mxu0 0
  %3305 = vmatmul.mubr.bf16.gmra.mrb[0].mxu0 %v3270
  %v3306 = vpop.f32.mrb[0].mxu0
  %v3307 = vadd.f32 0.0, %v3306
  %v3308 = vpop.f32.mrb[0].mxu0
  %v3309 = vpop.f32.mrb[0].mxu0
  %v3310 = vadd.f32 0.0, %v3309
  %v3311 = vpop.f32.mrb[0].mxu0
  %3312 = vdwg.mxu0
  %v3313 = vadd.f32 %v3307, %v3310
  %v3314 = vrot.slane %v3313, 4
  %v3315 = vadd.f32 %v3313, %v3314
  %v3316 = vrot.slane %v3315, 2
  %v3317 = vadd.f32 %v3315, %v3316
  %v3318 = vrot.slane %v3317, 1
  %v3319 = vadd.f32 %v3317, %v3318
  %v3320 = vmul.f32 %v3307, %v3307
  %v3321 = vmul.f32 %v3310, %v3310
  %v3322 = vadd.f32 %v3320, %v3321
  %v3323 = vrot.slane %v3322, 4
  %v3324 = vadd.f32 %v3322, %v3323
  %v3325 = vrot.slane %v3324, 2
  %v3326 = vadd.f32 %v3324, %v3325
  %v3327 = vrot.slane %v3326, 1
  %v3328 = vadd.f32 %v3326, %v3327
  %v3329 = vmul.f32 %v3319, 0.0625
  %v3330 = vmul.f32 %v3328, 0.0625
  %v3331 = vmul.f32 %v3329, %v3329
  %v3332 = vsub.f32 %v3330, %v3331
  %v3333 = vmax.f32 %v3332, 0.0
  %v3334 = vadd.f32 %v3333, 1e-05
  %v3335 = vrsqrt.pop %v3334
  %v3336 = vmul.f32 %v3265, %v3335
  %v3337 = vmul.f32 %v3329, %v3336
  %v3339 = vrot.slane %v3337, 7
  %v3341 = vsub.f32 %v3265, %v3339
  %v3342 = vlaneseq
  %v3343 = vshrl.u32 %v3342, 7
  %v3344 = vsub.s32 0, %v3343
  %v3345 = vrot.slane %v3336, %v3344
  %v3346 = vmul.f32 %v3307, %v3345
  %v3347 = vmul.f32 %v3310, %v3345
  %v3348 = vlaneseq
  %v3349 = vshrl.u32 %v3348, 7
  %v3350 = vsub.s32 1, %v3349
  %v3351 = vrot.slane %v3341, %v3350
  %v3352 = vadd.f32 %v3346, %v3351
  %v3353 = vadd.f32 %v3347, %v3351
  %v3354 = vmax.f32 %v3352, 0.0
  %v3355 = vmax.f32 %v3353, 0.0
  %v3356 = vpack.c.bf16 %v3355, %v3354
  %v3357 = vld [vmem:[%s146] sm:$0xff]
  %v3358 = vld [vmem:[%s146 + $0x8] sm:$0xff]
  %v3360 = vsel %vm179, %v3356, 0
  %3362 = vmatprep.subr.bf16.mxu0 0
  %3363 = vmatpush1.bf16.msra.mxu0 %v3357
  %3364 = vmatprep.subr.bf16.mxu0 0
  %3365 = vmatpush1.bf16.msra.mxu0 %v3358
  %3366 = vmatprep.subr.bf16.mxu0 0
  %3367 = vmatpush1.bf16.msra.mxu0 0
  %3368 = vmatprep.subr.bf16.mxu0 0
  %3369 = vmatpush1.bf16.msra.mxu0 0
  %3370 = vmatprep.subr.bf16.mxu0 0
  %3371 = vmatpush1.bf16.msra.mxu0 0
  %3372 = vmatprep.subr.bf16.mxu0 0
  %3373 = vmatpush1.bf16.msra.mxu0 0
  %3374 = vmatprep.subr.bf16.mxu0 0
  %3375 = vmatpush1.bf16.msra.mxu0 0
  %3376 = vmatprep.subr.bf16.mxu0 0
  %3377 = vmatpush1.bf16.msra.mxu0 0
  %3378 = vmatprep.subr.bf16.mxu0 0
  %3379 = vmatpush1.bf16.msra.mxu0 0
  %3380 = vmatprep.subr.bf16.mxu0 0
  %3381 = vmatpush1.bf16.msra.mxu0 0
  %3382 = vmatprep.subr.bf16.mxu0 0
  %3383 = vmatpush1.bf16.msra.mxu0 0
  %3384 = vmatprep.subr.bf16.mxu0 0
  %3385 = vmatpush1.bf16.msra.mxu0 0
  %3386 = vmatprep.subr.bf16.mxu0 0
  %3387 = vmatpush1.bf16.msra.mxu0 0
  %3388 = vmatprep.subr.bf16.mxu0 0
  %3389 = vmatpush1.bf16.msra.mxu0 0
  %3390 = vmatprep.subr.bf16.mxu0 0
  %3391 = vmatpush1.bf16.msra.mxu0 0
  %3392 = vmatprep.subr.bf16.mxu0 0
  %3393 = vmatpush1.bf16.msra.mxu0 0
  %3394 = vmatprep.mubr.bf16.mxu0 0
  %3395 = vmatmul.mubr.bf16.gmra.mrb[0].mxu0 %v3360
  %v3396 = vpop.f32.mrb[0].mxu0
  %v3397 = vadd.f32 0.0, %v3396
  %v3398 = vpop.f32.mrb[0].mxu0
  %v3399 = vpop.f32.mrb[0].mxu0
  %v3400 = vadd.f32 0.0, %v3399
  %v3401 = vpop.f32.mrb[0].mxu0
  %3402 = vdwg.mxu0
  %v3403 = vadd.f32 %v3397, %v3400
  %v3404 = vrot.slane %v3403, 4
  %v3405 = vadd.f32 %v3403, %v3404
  %v3406 = vrot.slane %v3405, 2
  %v3407 = vadd.f32 %v3405, %v3406
  %v3408 = vrot.slane %v3407, 1
  %v3409 = vadd.f32 %v3407, %v3408
  %v3410 = vmul.f32 %v3397, %v3397
  %v3411 = vmul.f32 %v3400, %v3400
  %v3412 = vadd.f32 %v3410, %v3411
  %v3413 = vrot.slane %v3412, 4
  %v3414 = vadd.f32 %v3412, %v3413
  %v3415 = vrot.slane %v3414, 2
  %v3416 = vadd.f32 %v3414, %v3415
  %v3417 = vrot.slane %v3416, 1
  %v3418 = vadd.f32 %v3416, %v3417
  %v3419 = vmul.f32 %v3409, 0.0625
  %v3420 = vmul.f32 %v3418, 0.0625
  %v3421 = vmul.f32 %v3419, %v3419
  %v3422 = vsub.f32 %v3420, %v3421
  %v3423 = vmax.f32 %v3422, 0.0
  %v3424 = vadd.f32 %v3423, 1e-05
  %v3425 = vrsqrt.pop %v3424
  %v3426 = vmul.f32 %v3265, %v3425
  %v3427 = vmul.f32 %v3419, %v3426
  %v3429 = vrot.slane %v3427, 7
  %v3431 = vsub.f32 %v3265, %v3429
  %v3432 = vlaneseq
  %v3433 = vshrl.u32 %v3432, 7
  %v3434 = vsub.s32 2, %v3433
  %v3435 = vrot.slane %v3426, %v3434
  %v3436 = vmul.f32 %v3397, %v3435
  %v3437 = vmul.f32 %v3400, %v3435
  %v3438 = vlaneseq
  %v3439 = vshrl.u32 %v3438, 7
  %v3440 = vsub.s32 3, %v3439
  %v3441 = vrot.slane %v3431, %v3440
  %v3442 = vadd.f32 %v3436, %v3441
  %v3443 = vadd.f32 %v3437, %v3441
  %v3444 = vadd.f32 %v3442, %v3221
  %v3445 = vadd.f32 %v3443, %v3222
  %v3446 = vmax.f32 %v3444, 0.0
  %v3447 = vmax.f32 %v3445, 0.0
  %s3448 = sshll.u32 %s126, 4
  %3449 = dma.done [#allocation6], %s3448
  %s3450 = sshll.u32 %s126, 4
  %3451 = dma.done %s96, %s3450
  %s3452 = sshll.u32 %s129, 4
  %3453 = dma.done %s108, %s3452
  %s3454 = scalar_lea.hbm %s1, 3328
  // Predicated region
  $region256: #{_lambda_.1} parent=0 // pred_check
    _
  $region257: #{_lambda_.1} parent=0 // pred_check_branch
    %3456 = sbr.rel target = $region259
  $region258: #{_lambda_.1} parent=0 // pred_region
    %3457 = sst [smem:[#allocation10]] [#allocation98]
    %3458 = sst [smem:[#allocation11]] [#allocation97]
  $region259: #{_lambda_.1} parent=0 // pred_fallthru
    _
  %3460 = shalt.err (0)
  %s3462 = sshll.u32 %s132, 4
  %s3463 = int_to_ptr.vmem [resolvable:$true] %s3462
  %3465 = dma.hbm_to_vmem [thread:$0]  %s3454, 256, %s3463, %s133
  %s3466 = scalar_lea.hbm %s3, 3840
  // Predicated region
  $region260: #{_lambda_.1} parent=0 // pred_check
    _
  $region261: #{_lambda_.1} parent=0 // pred_check_branch
    %3468 = sbr.rel target = $region263
  $region262: #{_lambda_.1} parent=0 // pred_region
    %3469 = sst [smem:[#allocation10]] [#allocation100]
    %3470 = sst [smem:[#allocation11]] [#allocation99]
  $region263: #{_lambda_.1} parent=0 // pred_fallthru
    _
  %3472 = shalt.err (0)
  %s3474 = sshll.u32 %s146, 4
  %s3475 = int_to_ptr.vmem [resolvable:$true] %s3474
  %3477 = dma.hbm_to_vmem [thread:$0]  %s3466, 256, %s3475, %s147
  %s3478 = scalar_lea.hbm %s4, 1920
  // Predicated region
  $region264: #{_lambda_.1} parent=0 // pred_check
    _
  $region265: #{_lambda_.1} parent=0 // pred_check_branch
    %3480 = sbr.rel target = $region267
  $region266: #{_lambda_.1} parent=0 // pred_region
    %3481 = sst [smem:[#allocation10]] [#allocation102]
    %3482 = sst [smem:[#allocation11]] [#allocation101]
  $region267: #{_lambda_.1} parent=0 // pred_fallthru
    _
  %3484 = shalt.err (0)
  %s3486 = sshll.u32 %s160, 4
  %s3487 = int_to_ptr.vmem [resolvable:$true] %s3486
  %3489 = dma.hbm_to_vmem [thread:$0]  %s3478, 128, %s3487, %s161
  %v3490 = vld [vmem:[#allocation5] sm:$0xff]
  %v3491 = vpack.c.bf16 %v3447, %v3446
  %v3492 = vld [vmem:[#allocation2] sm:$0xff]
  %v3493 = vld [vmem:[#allocation2 + $0x8] sm:$0xff]
  %v3495 = vsel %vm179, %v3491, 0
  %3497 = vmatprep.subr.bf16.mxu0 0
  %3498 = vmatpush1.bf16.msra.mxu0 %v3492
  %3499 = vmatprep.subr.bf16.mxu0 0
  %3500 = vmatpush1.bf16.msra.mxu0 %v3493
  %3501 = vmatprep.subr.bf16.mxu0 0
  %3502 = vmatpush1.bf16.msra.mxu0 0
  %3503 = vmatprep.subr.bf16.mxu0 0
  %3504 = vmatpush1.bf16.msra.mxu0 0
  %3505 = vmatprep.subr.bf16.mxu0 0
  %3506 = vmatpush1.bf16.msra.mxu0 0
  %3507 = vmatprep.subr.bf16.mxu0 0
  %3508 = vmatpush1.bf16.msra.mxu0 0
  %3509 = vmatprep.subr.bf16.mxu0 0
  %3510 = vmatpush1.bf16.msra.mxu0 0
  %3511 = vmatprep.subr.bf16.mxu0 0
  %3512 = vmatpush1.bf16.msra.mxu0 0
  %3513 = vmatprep.subr.bf16.mxu0 0
  %3514 = vmatpush1.bf16.msra.mxu0 0
  %3515 = vmatprep.subr.bf16.mxu0 0
  %3516 = vmatpush1.bf16.msra.mxu0 0
  %3517 = vmatprep.subr.bf16.mxu0 0
  %3518 = vmatpush1.bf16.msra.mxu0 0
  %3519 = vmatprep.subr.bf16.mxu0 0
  %3520 = vmatpush1.bf16.msra.mxu0 0
  %3521 = vmatprep.subr.bf16.mxu0 0
  %3522 = vmatpush1.bf16.msra.mxu0 0
  %3523 = vmatprep.subr.bf16.mxu0 0
  %3524 = vmatpush1.bf16.msra.mxu0 0
  %3525 = vmatprep.subr.bf16.mxu0 0
  %3526 = vmatpush1.bf16.msra.mxu0 0
  %3527 = vmatprep.subr.bf16.mxu0 0
  %3528 = vmatpush1.bf16.msra.mxu0 0
  %3529 = vmatprep.mubr.bf16.mxu0 0
  %3530 = vmatmul.mubr.bf16.gmra.mrb[0].mxu0 %v3495
  %v3531 = vpop.f32.mrb[0].mxu0
  %v3532 = vadd.f32 0.0, %v3531
  %v3533 = vpop.f32.mrb[0].mxu0
  %v3534 = vpop.f32.mrb[0].mxu0
  %v3535 = vadd.f32 0.0, %v3534
  %v3536 = vpop.f32.mrb[0].mxu0
  %3537 = vdwg.mxu0
  %v3538 = vadd.f32 %v3532, %v3535
  %v3539 = vrot.slane %v3538, 4
  %v3540 = vadd.f32 %v3538, %v3539
  %v3541 = vrot.slane %v3540, 2
  %v3542 = vadd.f32 %v3540, %v3541
  %v3543 = vrot.slane %v3542, 1
  %v3544 = vadd.f32 %v3542, %v3543
  %v3545 = vmul.f32 %v3532, %v3532
  %v3546 = vmul.f32 %v3535, %v3535
  %v3547 = vadd.f32 %v3545, %v3546
  %v3548 = vrot.slane %v3547, 4
  %v3549 = vadd.f32 %v3547, %v3548
  %v3550 = vrot.slane %v3549, 2
  %v3551 = vadd.f32 %v3549, %v3550
  %v3552 = vrot.slane %v3551, 1
  %v3553 = vadd.f32 %v3551, %v3552
  %v3554 = vmul.f32 %v3544, 0.0625
  %v3555 = vmul.f32 %v3553, 0.0625
  %v3556 = vmul.f32 %v3554, %v3554
  %v3557 = vsub.f32 %v3555, %v3556
  %v3558 = vmax.f32 %v3557, 0.0
  %v3559 = vadd.f32 %v3558, 1e-05
  %v3560 = vrsqrt.pop %v3559
  %v3561 = vmul.f32 %v3490, %v3560
  %v3562 = vmul.f32 %v3554, %v3561
  %v3564 = vrot.slane %v3562, 7
  %v3566 = vsub.f32 %v3490, %v3564
  %v3567 = vlaneseq
  %v3568 = vshrl.u32 %v3567, 7
  %v3569 = vsub.s32 0, %v3568
  %v3570 = vrot.slane %v3561, %v3569
  %v3571 = vmul.f32 %v3532, %v3570
  %v3572 = vmul.f32 %v3535, %v3570
  %v3573 = vlaneseq
  %v3574 = vshrl.u32 %v3573, 7
  %v3575 = vsub.s32 1, %v3574
  %v3576 = vrot.slane %v3566, %v3575
  %v3577 = vadd.f32 %v3571, %v3576
  %v3578 = vadd.f32 %v3572, %v3576
  %v3579 = vmax.f32 %v3577, 0.0
  %v3580 = vmax.f32 %v3578, 0.0
  %v3581 = vpack.c.bf16 %v3580, %v3579
  %v3582 = vld [vmem:[#allocation4] sm:$0xff]
  %v3583 = vld [vmem:[#allocation4 + $0x8] sm:$0xff]
  %v3585 = vsel %vm179, %v3581, 0
  %3587 = vmatprep.subr.bf16.mxu0 0
  %3588 = vmatpush1.bf16.msra.mxu0 %v3582
  %3589 = vmatprep.subr.bf16.mxu0 0
  %3590 = vmatpush1.bf16.msra.mxu0 %v3583
  %3591 = vmatprep.subr.bf16.mxu0 0
  %3592 = vmatpush1.bf16.msra.mxu0 0
  %3593 = vmatprep.subr.bf16.mxu0 0
  %3594 = vmatpush1.bf16.msra.mxu0 0
  %3595 = vmatprep.subr.bf16.mxu0 0
  %3596 = vmatpush1.bf16.msra.mxu0 0
  %3597 = vmatprep.subr.bf16.mxu0 0
  %3598 = vmatpush1.bf16.msra.mxu0 0
  %3599 = vmatprep.subr.bf16.mxu0 0
  %3600 = vmatpush1.bf16.msra.mxu0 0
  %3601 = vmatprep.subr.bf16.mxu0 0
  %3602 = vmatpush1.bf16.msra.mxu0 0
  %3603 = vmatprep.subr.bf16.mxu0 0
  %3604 = vmatpush1.bf16.msra.mxu0 0
  %3605 = vmatprep.subr.bf16.mxu0 0
  %3606 = vmatpush1.bf16.msra.mxu0 0
  %3607 = vmatprep.subr.bf16.mxu0 0
  %3608 = vmatpush1.bf16.msra.mxu0 0
  %3609 = vmatprep.subr.bf16.mxu0 0
  %3610 = vmatpush1.bf16.msra.mxu0 0
  %3611 = vmatprep.subr.bf16.mxu0 0
  %3612 = vmatpush1.bf16.msra.mxu0 0
  %3613 = vmatprep.subr.bf16.mxu0 0
  %3614 = vmatpush1.bf16.msra.mxu0 0
  %3615 = vmatprep.subr.bf16.mxu0 0
  %3616 = vmatpush1.bf16.msra.mxu0 0
  %3617 = vmatprep.subr.bf16.mxu0 0
  %3618 = vmatpush1.bf16.msra.mxu0 0
  %3619 = vmatprep.mubr.bf16.mxu0 0
  %3620 = vmatmul.mubr.bf16.gmra.mrb[0].mxu0 %v3585
  %v3621 = vpop.f32.mrb[0].mxu0
  %v3622 = vadd.f32 0.0, %v3621
  %v3623 = vpop.f32.mrb[0].mxu0
  %v3624 = vpop.f32.mrb[0].mxu0
  %v3625 = vadd.f32 0.0, %v3624
  %v3626 = vpop.f32.mrb[0].mxu0
  %3627 = vdwg.mxu0
  %v3628 = vadd.f32 %v3622, %v3625
  %v3629 = vrot.slane %v3628, 4
  %v3630 = vadd.f32 %v3628, %v3629
  %v3631 = vrot.slane %v3630, 2
  %v3632 = vadd.f32 %v3630, %v3631
  %v3633 = vrot.slane %v3632, 1
  %v3634 = vadd.f32 %v3632, %v3633
  %v3635 = vmul.f32 %v3622, %v3622
  %v3636 = vmul.f32 %v3625, %v3625
  %v3637 = vadd.f32 %v3635, %v3636
  %v3638 = vrot.slane %v3637, 4
  %v3639 = vadd.f32 %v3637, %v3638
  %v3640 = vrot.slane %v3639, 2
  %v3641 = vadd.f32 %v3639, %v3640
  %v3642 = vrot.slane %v3641, 1
  %v3643 = vadd.f32 %v3641, %v3642
  %v3644 = vmul.f32 %v3634, 0.0625
  %v3645 = vmul.f32 %v3643, 0.0625
  %v3646 = vmul.f32 %v3644, %v3644
  %v3647 = vsub.f32 %v3645, %v3646
  %v3648 = vmax.f32 %v3647, 0.0
  %v3649 = vadd.f32 %v3648, 1e-05
  %v3650 = vrsqrt.pop %v3649
  %v3651 = vmul.f32 %v3490, %v3650
  %v3652 = vmul.f32 %v3644, %v3651
  %v3654 = vrot.slane %v3652, 7
  %v3656 = vsub.f32 %v3490, %v3654
  %v3657 = vlaneseq
  %v3658 = vshrl.u32 %v3657, 7
  %v3659 = vsub.s32 2, %v3658
  %v3660 = vrot.slane %v3651, %v3659
  %v3661 = vmul.f32 %v3622, %v3660
  %v3662 = vmul.f32 %v3625, %v3660
  %v3663 = vlaneseq
  %v3664 = vshrl.u32 %v3663, 7
  %v3665 = vsub.s32 3, %v3664
  %v3666 = vrot.slane %v3656, %v3665
  %v3667 = vadd.f32 %v3661, %v3666
  %v3668 = vadd.f32 %v3662, %v3666
  %v3669 = vadd.f32 %v3667, %v3446
  %v3670 = vadd.f32 %v3668, %v3447
  %v3671 = vmax.f32 %v3669, 0.0
  %v3672 = vmax.f32 %v3670, 0.0
  %s3673 = sshll.u32 %s126, 4
  %3674 = dma.done %s133, %s3673
  %s3675 = sshll.u32 %s126, 4
  %3676 = dma.done %s147, %s3675
  %s3677 = sshll.u32 %s129, 4
  %3678 = dma.done %s161, %s3677
  %v3679 = vld [vmem:[%s160] sm:$0xff]
  %v3680 = vpack.c.bf16 %v3672, %v3671
  %v3681 = vld [vmem:[%s132] sm:$0xff]
  %v3682 = vld [vmem:[%s132 + $0x8] sm:$0xff]
  %v3684 = vsel %vm179, %v3680, 0
  %3686 = vmatprep.subr.bf16.mxu0 0
  %3687 = vmatpush1.bf16.msra.mxu0 %v3681
  %3688 = vmatprep.subr.bf16.mxu0 0
  %3689 = vmatpush1.bf16.msra.mxu0 %v3682
  %3690 = vmatprep.subr.bf16.mxu0 0
  %3691 = vmatpush1.bf16.msra.mxu0 0
  %3692 = vmatprep.subr.bf16.mxu0 0
  %3693 = vmatpush1.bf16.msra.mxu0 0
  %3694 = vmatprep.subr.bf16.mxu0 0
  %3695 = vmatpush1.bf16.msra.mxu0 0
  %3696 = vmatprep.subr.bf16.mxu0 0
  %3697 = vmatpush1.bf16.msra.mxu0 0
  %3698 = vmatprep.subr.bf16.mxu0 0
  %3699 = vmatpush1.bf16.msra.mxu0 0
  %3700 = vmatprep.subr.bf16.mxu0 0
  %3701 = vmatpush1.bf16.msra.mxu0 0
  %3702 = vmatprep.subr.bf16.mxu0 0
  %3703 = vmatpush1.bf16.msra.mxu0 0
  %3704 = vmatprep.subr.bf16.mxu0 0
  %3705 = vmatpush1.bf16.msra.mxu0 0
  %3706 = vmatprep.subr.bf16.mxu0 0
  %3707 = vmatpush1.bf16.msra.mxu0 0
  %3708 = vmatprep.subr.bf16.mxu0 0
  %3709 = vmatpush1.bf16.msra.mxu0 0
  %3710 = vmatprep.subr.bf16.mxu0 0
  %3711 = vmatpush1.bf16.msra.mxu0 0
  %3712 = vmatprep.subr.bf16.mxu0 0
  %3713 = vmatpush1.bf16.msra.mxu0 0
  %3714 = vmatprep.subr.bf16.mxu0 0
  %3715 = vmatpush1.bf16.msra.mxu0 0
  %3716 = vmatprep.subr.bf16.mxu0 0
  %3717 = vmatpush1.bf16.msra.mxu0 0
  %3718 = vmatprep.mubr.bf16.mxu0 0
  %3719 = vmatmul.mubr.bf16.gmra.mrb[0].mxu0 %v3684
  %v3720 = vpop.f32.mrb[0].mxu0
  %v3721 = vadd.f32 0.0, %v3720
  %v3722 = vpop.f32.mrb[0].mxu0
  %v3723 = vpop.f32.mrb[0].mxu0
  %v3724 = vadd.f32 0.0, %v3723
  %v3725 = vpop.f32.mrb[0].mxu0
  %3726 = vdwg.mxu0
  %v3727 = vadd.f32 %v3721, %v3724
  %v3728 = vrot.slane %v3727, 4
  %v3729 = vadd.f32 %v3727, %v3728
  %v3730 = vrot.slane %v3729, 2
  %v3731 = vadd.f32 %v3729, %v3730
  %v3732 = vrot.slane %v3731, 1
  %v3733 = vadd.f32 %v3731, %v3732
  %v3734 = vmul.f32 %v3721, %v3721
  %v3735 = vmul.f32 %v3724, %v3724
  %v3736 = vadd.f32 %v3734, %v3735
  %v3737 = vrot.slane %v3736, 4
  %v3738 = vadd.f32 %v3736, %v3737
  %v3739 = vrot.slane %v3738, 2
  %v3740 = vadd.f32 %v3738, %v3739
  %v3741 = vrot.slane %v3740, 1
  %v3742 = vadd.f32 %v3740, %v3741
  %v3743 = vmul.f32 %v3733, 0.0625
  %v3744 = vmul.f32 %v3742, 0.0625
  %v3745 = vmul.f32 %v3743, %v3743
  %v3746 = vsub.f32 %v3744, %v3745
  %v3747 = vmax.f32 %v3746, 0.0
  %v3748 = vadd.f32 %v3747, 1e-05
  %v3749 = vrsqrt.pop %v3748
  %v3750 = vmul.f32 %v3679, %v3749
  %v3751 = vmul.f32 %v3743, %v3750
  %v3753 = vrot.slane %v3751, 7
  %v3755 = vsub.f32 %v3679, %v3753
  %v3756 = vlaneseq
  %v3757 = vshrl.u32 %v3756, 7
  %v3758 = vsub.s32 0, %v3757
  %v3759 = vrot.slane %v3750, %v3758
  %v3760 = vmul.f32 %v3721, %v3759
  %v3761 = vmul.f32 %v3724, %v3759
  %v3762 = vlaneseq
  %v3763 = vshrl.u32 %v3762, 7
  %v3764 = vsub.s32 1, %v3763
  %v3765 = vrot.slane %v3755, %v3764
  %v3766 = vadd.f32 %v3760, %v3765
  %v3767 = vadd.f32 %v3761, %v3765
  %v3768 = vmax.f32 %v3766, 0.0
  %v3769 = vmax.f32 %v3767, 0.0
  %v3770 = vpack.c.bf16 %v3769, %v3768
  %v3771 = vld [vmem:[%s146] sm:$0xff]
  %v3772 = vld [vmem:[%s146 + $0x8] sm:$0xff]
  %v3774 = vsel %vm179, %v3770, 0
  %3776 = vmatprep.subr.bf16.mxu0 0
  %3777 = vmatpush1.bf16.msra.mxu0 %v3771
  %3778 = vmatprep.subr.bf16.mxu0 0
  %3779 = vmatpush1.bf16.msra.mxu0 %v3772
  %3780 = vmatprep.subr.bf16.mxu0 0
  %3781 = vmatpush1.bf16.msra.mxu0 0
  %3782 = vmatprep.subr.bf16.mxu0 0
  %3783 = vmatpush1.bf16.msra.mxu0 0
  %3784 = vmatprep.subr.bf16.mxu0 0
  %3785 = vmatpush1.bf16.msra.mxu0 0
  %3786 = vmatprep.subr.bf16.mxu0 0
  %3787 = vmatpush1.bf16.msra.mxu0 0
  %3788 = vmatprep.subr.bf16.mxu0 0
  %3789 = vmatpush1.bf16.msra.mxu0 0
  %3790 = vmatprep.subr.bf16.mxu0 0
  %3791 = vmatpush1.bf16.msra.mxu0 0
  %3792 = vmatprep.subr.bf16.mxu0 0
  %3793 = vmatpush1.bf16.msra.mxu0 0
  %3794 = vmatprep.subr.bf16.mxu0 0
  %3795 = vmatpush1.bf16.msra.mxu0 0
  %3796 = vmatprep.subr.bf16.mxu0 0
  %3797 = vmatpush1.bf16.msra.mxu0 0
  %3798 = vmatprep.subr.bf16.mxu0 0
  %3799 = vmatpush1.bf16.msra.mxu0 0
  %3800 = vmatprep.subr.bf16.mxu0 0
  %3801 = vmatpush1.bf16.msra.mxu0 0
  %3802 = vmatprep.subr.bf16.mxu0 0
  %3803 = vmatpush1.bf16.msra.mxu0 0
  %3804 = vmatprep.subr.bf16.mxu0 0
  %3805 = vmatpush1.bf16.msra.mxu0 0
  %3806 = vmatprep.subr.bf16.mxu0 0
  %3807 = vmatpush1.bf16.msra.mxu0 0
  %3808 = vmatprep.mubr.bf16.mxu0 0
  %3809 = vmatmul.mubr.bf16.gmra.mrb[0].mxu0 %v3774
  %v3810 = vpop.f32.mrb[0].mxu0
  %v3811 = vadd.f32 0.0, %v3810
  %v3812 = vpop.f32.mrb[0].mxu0
  %v3813 = vpop.f32.mrb[0].mxu0
  %v3814 = vadd.f32 0.0, %v3813
  %v3815 = vpop.f32.mrb[0].mxu0
  %3816 = vdwg.mxu0
  %v3817 = vadd.f32 %v3811, %v3814
  %v3818 = vrot.slane %v3817, 4
  %v3819 = vadd.f32 %v3817, %v3818
  %v3820 = vrot.slane %v3819, 2
  %v3821 = vadd.f32 %v3819, %v3820
  %v3822 = vrot.slane %v3821, 1
  %v3823 = vadd.f32 %v3821, %v3822
  %v3824 = vmul.f32 %v3811, %v3811
  %v3825 = vmul.f32 %v3814, %v3814
  %v3826 = vadd.f32 %v3824, %v3825
  %v3827 = vrot.slane %v3826, 4
  %v3828 = vadd.f32 %v3826, %v3827
  %v3829 = vrot.slane %v3828, 2
  %v3830 = vadd.f32 %v3828, %v3829
  %v3831 = vrot.slane %v3830, 1
  %v3832 = vadd.f32 %v3830, %v3831
  %v3833 = vmul.f32 %v3823, 0.0625
  %v3834 = vmul.f32 %v3832, 0.0625
  %v3835 = vmul.f32 %v3833, %v3833
  %v3836 = vsub.f32 %v3834, %v3835
  %v3837 = vmax.f32 %v3836, 0.0
  %v3838 = vadd.f32 %v3837, 1e-05
  %v3839 = vrsqrt.pop %v3838
  %v3840 = vmul.f32 %v3679, %v3839
  %v3841 = vmul.f32 %v3833, %v3840
  %v3843 = vrot.slane %v3841, 7
  %v3845 = vsub.f32 %v3679, %v3843
  %v3846 = vlaneseq
  %v3847 = vshrl.u32 %v3846, 7
  %v3848 = vsub.s32 2, %v3847
  %v3849 = vrot.slane %v3840, %v3848
  %v3850 = vmul.f32 %v3811, %v3849
  %v3851 = vmul.f32 %v3814, %v3849
  %v3852 = vlaneseq
  %v3853 = vshrl.u32 %v3852, 7
  %v3854 = vsub.s32 3, %v3853
  %v3855 = vrot.slane %v3845, %v3854
  %v3856 = vadd.f32 %v3850, %v3855
  %v3857 = vadd.f32 %v3851, %v3855
  %v3858 = vadd.f32 %v3856, %v3671
  %v3859 = vadd.f32 %v3857, %v3672
  %v3860 = vmax.f32 %v3858, 0.0
  %v3861 = vmax.f32 %v3859, 0.0
  %v3862 = vld [vmem:[%s5] sm:$0xff]
  %v3863 = vpack.c.bf16 %v3862, %v3862
  %v3864 = vpack.c.bf16 %v3861, %v3860
  %vm3865 = vcmask 130048
  %v3867 = vsel %vm3865, %v3863, 0
  %3869 = vmatprep.subr.bf16.mxu0 0
  %3870 = vmatpush1.bf16.msra.mxu0 %v3864
  %3871 = vmatprep.subr.bf16.mxu0 0
  %3872 = vmatpush1.bf16.msra.mxu0 0
  %3873 = vmatprep.subr.bf16.mxu0 0
  %3874 = vmatpush1.bf16.msra.mxu0 0
  %3875 = vmatprep.subr.bf16.mxu0 0
  %3876 = vmatpush1.bf16.msra.mxu0 0
  %3877 = vmatprep.subr.bf16.mxu0 0
  %3878 = vmatpush1.bf16.msra.mxu0 0
  %3879 = vmatprep.subr.bf16.mxu0 0
  %3880 = vmatpush1.bf16.msra.mxu0 0
  %3881 = vmatprep.subr.bf16.mxu0 0
  %3882 = vmatpush1.bf16.msra.mxu0 0
  %3883 = vmatprep.subr.bf16.mxu0 0
  %3884 = vmatpush1.bf16.msra.mxu0 0
  %3885 = vmatprep.subr.bf16.mxu0 0
  %3886 = vmatpush1.bf16.msra.mxu0 0
  %3887 = vmatprep.subr.bf16.mxu0 0
  %3888 = vmatpush1.bf16.msra.mxu0 0
  %3889 = vmatprep.subr.bf16.mxu0 0
  %3890 = vmatpush1.bf16.msra.mxu0 0
  %3891 = vmatprep.subr.bf16.mxu0 0
  %3892 = vmatpush1.bf16.msra.mxu0 0
  %3893 = vmatprep.subr.bf16.mxu0 0
  %3894 = vmatpush1.bf16.msra.mxu0 0
  %3895 = vmatprep.subr.bf16.mxu0 0
  %3896 = vmatpush1.bf16.msra.mxu0 0
  %3897 = vmatprep.subr.bf16.mxu0 0
  %3898 = vmatpush1.bf16.msra.mxu0 0
  %3899 = vmatprep.subr.bf16.mxu0 0
  %3900 = vmatpush1.bf16.msra.mxu0 0
  %3901 = vmatprep.mubr.bf16.mxu0 0
  %3902 = vmatmul.mubr.bf16.gmra.mrb[0].mxu0 %v3867
  %v3903 = vpop.f32.mrb[0].mxu0
  %v3904 = vadd.f32 0.0, %v3903
  %v3905 = vpop.f32.mrb[0].mxu0
  %v3906 = vpop.f32.mrb[0].mxu0
  %v3907 = vpop.f32.mrb[0].mxu0
  %3908 = vdwg.mxu0
  %3909 = vst [vmem:[%s6] sm:$0xff] %v3904
  // Predicated region
  $region268: #{_lambda_.1} parent=0 // pred_check
    _
  $region269: #{_lambda_.1} parent=0 // pred_check_branch
    %3911 = sbr.rel (0) target = $region271
  $region270: #{_lambda_.1} parent=0 // pred_region
    _
  $region271: #{_lambda_.1} parent=0 // pred_fallthru
    _
  // Predicated region
  $region272: #{_lambda_.1} parent=0 // pred_check
    _
  $region273: #{_lambda_.1} parent=0 // pred_check_branch
    %3913 = sbr.rel (0) target = $region275
  $region274: #{_lambda_.1} parent=0 // pred_region
    _
  $region275: #{_lambda_.1} parent=0 // pred_fallthru
    _
  %3914 = vsyncmov [#allocation6]
  %s3915 = vpop.sfrf %3914
  %p3916 = scmp.eq.s32.totalorder %s3915, 0
  %p3917 = pneg %p3916
  %3919 = shalt.err (%p3917)
  %s3920 = scalar_lea.sflag [#allocation6], 1
  %3921 = vsyncmov %s3920
  %s3922 = vpop.sfrf %3921
  %p3923 = scmp.eq.s32.totalorder %s3922, 0
  %p3924 = pneg %p3923
  %3926 = shalt.err (%p3924)
  %s3927 = scalar_lea.sflag [#allocation6], 2
  %3928 = vsyncmov %s3927
  %s3929 = vpop.sfrf %3928
  %p3930 = scmp.eq.s32.totalorder %s3929, 0
  %p3931 = pneg %p3930
  %3933 = shalt.err (%p3931)
  %s3934 = scalar_lea.sflag [#allocation6], 3
  %3935 = vsyncmov %s3934
  %s3936 = vpop.sfrf %3935
  %p3937 = scmp.eq.s32.totalorder %s3936, 0
  %p3938 = pneg %p3937
  %3940 = shalt.err (%p3938)
  %s3941 = scalar_lea.sflag [#allocation6], 4
  %3942 = vsyncmov %s3941
  %s3943 = vpop.sfrf %3942
  %p3944 = scmp.eq.s32.totalorder %s3943, 0
  %p3945 = pneg %p3944
  %3947 = shalt.err (%p3945)
  %s3948 = scalar_lea.sflag [#allocation6], 5
  %3949 = vsyncmov %s3948
  %s3950 = vpop.sfrf %3949
  %p3951 = scmp.eq.s32.totalorder %s3950, 0
  %p3952 = pneg %p3951
  %3954 = shalt.err (%p3952)

</llo_original>
